<compile_context>
chip_gen: v5e
topology: v5e:2x2
jax: 0.10.0
libtpu: 0.0.40
codegen_flags: <defaults>
</compile_context>

<pallas_src>
import math

import numpy as np

import jax
import jax.numpy as jnp
from jax.experimental import pallas as pl
from jax.experimental.pallas import tpu as pltpu


# Tap order (dy, dx) == (kh - 1, kw - 1); flat index t = (dy + 1) * 3 + (dx + 1).
TAPS = tuple((dy, dx) for dy in (-1, 0, 1) for dx in (-1, 0, 1))


def _out_hw(h, w, stride):
    # 3x3/pad=1 and 1x1/pad=0 convs give the same output size for stride 1 or 2.
    return (h - 1) // stride + 1, (w - 1) // stride + 1


def _build_gather_taps(h, w, stride):
    """G[t, ys*w+xs, yo*wo+xo] = 1 where (ys, xs) = (stride*yo+dy, stride*xo+dx).

    Right-multiplying an activation [C, h*w] by G[t] yields the tap-(dy,dx)
    im2col patch rows [C, ho*wo] with zero padding and stride folded in.
    """
    ho, wo = _out_hw(h, w, stride)
    g = np.zeros((9, h * w, ho * wo), np.float32)
    for t, (dy, dx) in enumerate(TAPS):
        for yo in range(ho):
            ys = stride * yo + dy
            if not 0 <= ys < h:
                continue
            for xo in range(wo):
                xs = stride * xo + dx
                if 0 <= xs < w:
                    g[t, ys * w + xs, yo * wo + xo] = 1.0
    return jnp.asarray(g, dtype=jnp.bfloat16)   # 0/1 values -> exact in bf16


# ----------------------------------------------------------------------------
# Parameters (inference-mode BN folded: scale -> W, per-channel bias kept)
# ----------------------------------------------------------------------------
def make_conv_bn_params(key, cin, cout, ksize):
    """Returns (kernel_params, reference_params) using identical bf16 folded W."""
    k1, k2, k3, k4, k5 = jax.random.split(key, 5)
    fan_in = ksize * ksize * cin
    w = jax.random.normal(k1, (cout, cin, ksize, ksize), jnp.float32)
    w = w / math.sqrt(fan_in)
    gamma = jax.random.uniform(k2, (cout,), minval=0.5, maxval=1.5)
    beta = jax.random.normal(k3, (cout,)) * 0.1
    mean = jax.random.normal(k4, (cout,)) * 0.1
    var = jax.random.uniform(k5, (cout,), minval=0.5, maxval=1.5)
    scale = gamma / jnp.sqrt(var + 1e-5)
    bias = (beta - mean * scale).astype(jnp.float32)

    w_folded = (w * scale[:, None, None, None]).astype(jnp.bfloat16)
    if ksize == 3:
        # [cout, cin, kh, kw] -> [9, cout, cin]; tap index t = kh*3 + kw.
        w_k = jnp.transpose(w_folded, (2, 3, 0, 1)).reshape(9, cout, cin)
    else:
        w_k = w_folded.reshape(cout, cin)
    kp = {"w": w_k, "b": bias.reshape(cout, 1)}
    rp = {"w": w_folded.astype(jnp.float32), "b": bias}
    return kp, rp


def make_block_params(key, in_planes, planes, stride):
    k1, k2, k3 = jax.random.split(key, 3)
    c1k, c1r = make_conv_bn_params(k1, in_planes, planes, 3)
    c2k, c2r = make_conv_bn_params(k2, planes, planes, 3)
    kp = {"conv1": c1k, "conv2": c2k, "shortcut": None}
    rp = {"conv1": c1r, "conv2": c2r, "shortcut": None}
    if stride != 1 or in_planes != planes:
        sck, scr = make_conv_bn_params(k3, in_planes, planes, 1)
        kp["shortcut"], rp["shortcut"] = sck, scr
    return kp, rp


def make_encoder_params(key, hidden_size, num_blocks):
    keys = iter(jax.random.split(key, 64))
    c1k, c1r = make_conv_bn_params(next(keys), 3, 16, 3)
    kparams, rparams, cfg = {"conv1": c1k}, {"conv1": c1r}, {}
    in_planes = 16

    def make_layer(name, planes, n_blocks, stride):
        nonlocal in_planes
        strides = [stride] + [1] * (n_blocks - 1)     # mirrors _make_layer
        kl, rl = [], []
        for s in strides:
            bk, br = make_block_params(next(keys), in_planes, planes, s)
            kl.append(bk)
            rl.append(br)
            in_planes = planes
        kparams[name], rparams[name], cfg[name] = kl, rl, strides

    make_layer("layer1", 16, num_blocks[0], 1)
    make_layer("layer2", 16, num_blocks[1], 2)
    make_layer("layer3", hidden_size, num_blocks[2] - 1, 2)   # BasicBlockNoAct
    return kparams, rparams, cfg


# ----------------------------------------------------------------------------
# Fused encoder: one pallas_call for the whole forward pass
# ----------------------------------------------------------------------------
def build_fused_encoder(kparams, cfg, batch, h0, w0):
    in_ch = kparams["conv1"]["w"].shape[2]
    c3 = kparams["layer3"][-1]["conv2"]["b"].shape[0]

    # --- static walk: spatial sizes + required gather-matrix sets ---
    g_keys = []

    def register(h, w, s):
        if (h, w, s) not in g_keys:
            g_keys.append((h, w, s))

    h, w = h0, w0
    register(h, w, 1)                       # conv1
    for lname in ("layer1", "layer2", "layer3"):
        for s in cfg[lname]:
            register(h, w, s)               # block conv1 (+ 1x1 shortcut centre)
            h, w = _out_hw(h, w, s)
            register(h, w, 1)               # block conv2
    h3, w3 = h, w
    m3 = h3 * w3

    g_arrays = [_build_gather_taps(*k) for k in g_keys]
    n_g = len(g_arrays)

    leaves, treedef = jax.tree_util.tree_flatten(kparams)
    n_leaves = len(leaves)

    # --- kernel: one grid step == one sample; everything VMEM/vreg resident ---
    def kernel(*refs):
        x_ref = refs[0]
        g_refs = {k: refs[1 + i] for i, k in enumerate(g_keys)}
        params = jax.tree_util.tree_unflatten(
            treedef, refs[1 + n_g:1 + n_g + n_leaves])
        o_ref = refs[1 + n_g + n_leaves]

        def conv3x3_bn(a, ah, aw, cp, stride, relu, residual=None):
            g_ref = g_refs[(ah, aw, stride)]
            ab = a.astype(jnp.bfloat16)
            acc = None
            for t in range(9):
                # in-kernel im2col: gather tap-t patches, then tap matmul.
                pt = jnp.dot(ab, g_ref[t], preferred_element_type=jnp.float32)
                part = jnp.dot(cp["w"][t], pt.astype(jnp.bfloat16),
                               preferred_element_type=jnp.float32)
                acc = part if acc is None else acc + part
            oh, ow = _out_hw(ah, aw, stride)
            y = acc + cp["b"][...]
            if residual is not None:
                y = y + residual
            if relu:
                y = jnp.maximum(y, 0.0)
            return y, oh, ow

        def conv1x1_bn(a, ah, aw, cp, stride):
            ab = a.astype(jnp.bfloat16)
            if stride != 1:
                g_ref = g_refs[(ah, aw, stride)]
                ab = jnp.dot(ab, g_ref[4],           # centre tap == subsample
                             preferred_element_type=jnp.float32
                             ).astype(jnp.bfloat16)
            oh, ow = _out_hw(ah, aw, stride)
            y = jnp.dot(cp["w"][...], ab, preferred_element_type=jnp.float32)
            return y + cp["b"][...], oh, ow

        def basic_block(a, ah, aw, bp, stride, final_relu):
            hid, bh, bw = conv3x3_bn(a, ah, aw, bp["conv1"], stride, relu=True)
            if bp["shortcut"] is not None:
                res, _, _ = conv1x1_bn(a, ah, aw, bp["shortcut"], stride)
            else:
                res = a
            return conv3x3_bn(hid, bh, bw, bp["conv2"], 1, relu=final_relu,
                              residual=res)

        a = x_ref[0]                                   # [Cin, H0*W0] f32
        ah, aw = h0, w0
        a, ah, aw = conv3x3_bn(a, ah, aw, params["conv1"], 1, relu=True)
        for lname, final_relu in (("layer1", True), ("layer2", True),
                                  ("layer3", False)):
            for bp, s in zip(params[lname], cfg[lname]):
                a, ah, aw = basic_block(a, ah, aw, bp, s, final_relu)

        # fused flatten + F.normalize(v, dim=1, eps=1e-12) for this sample.
        ssq = jnp.sum(a * a)
        inv = jax.lax.rsqrt(jnp.maximum(ssq, 1e-24))
        o_ref[0] = (a * inv).astype(o_ref.dtype)

    # --- specs ---
    def resident(shape):
        nd = len(shape)

        def imap(n):
            return (0,) * nd

        return pl.BlockSpec(shape, imap)

    in_specs = [pl.BlockSpec((1, in_ch, h0 * w0), lambda n: (n, 0, 0))]
    in_specs += [resident(g.shape) for g in g_arrays]
    in_specs += [resident(leaf.shape) for leaf in leaves]
    out_specs = pl.BlockSpec((1, c3, m3), lambda n: (n, 0, 0))

    call = pl.pallas_call(
        kernel,
        out_shape=jax.ShapeDtypeStruct((batch, c3, m3), jnp.float32),
        grid=(batch,),
        in_specs=in_specs,
        out_specs=out_specs,
        compiler_params=pltpu.CompilerParams(
            dimension_semantics=("parallel",),   # batch -> both v7x TensorCores
        ),
    )

    def fwd(x_nchw):
        xr = x_nchw.astype(jnp.float32).reshape(batch, in_ch, h0 * w0)
        v = call(xr, *g_arrays, *leaves)        # [N, C3, H3*W3], L2-normalized
        return v.reshape(batch, -1)             # row-major == torch .view(N, -1)

    return fwd


# ----------------------------------------------------------------------------
# Pure-JAX reference (mirrors the PyTorch Encoder forward, inference-mode BN)
# ----------------------------------------------------------------------------
def ref_forward(rparams, cfg, x_nchw):
    def conv_bn(x, rp, stride, pad):
        y = jax.lax.conv_general_dilated(
            x, rp["w"], window_strides=(stride, stride),
            padding=((pad, pad), (pad, pad)),
            dimension_numbers=("NCHW", "OIHW", "NCHW"))
        return y + rp["b"][None, :, None, None]

    def block(x, bp, stride, final_relu):
        h = jax.nn.relu(conv_bn(x, bp["conv1"], stride, 1))
        y = conv_bn(h, bp["conv2"], 1, 1)
        if bp["shortcut"] is not None:
            y = y + conv_bn(x, bp["shortcut"], stride, 0)
        else:
            y = y + x
        return jax.nn.relu(y) if final_relu else y

    out = jax.nn.relu(conv_bn(x_nchw, rparams["conv1"], 1, 1))
    for name, fr in (("layer1", True), ("layer2", True), ("layer3", False)):
        for bp, s in zip(rparams[name], cfg[name]):
            out = block(out, bp, s, fr)
    v = out.reshape(out.shape[0], -1)
    norm = jnp.sqrt(jnp.sum(v * v, axis=1, keepdims=True))
    return v / jnp.maximum(norm, 1e-12)


# ----------------------------------------------------------------------------
if __name__ == "__main__":
    key = jax.random.PRNGKey(0)
    k_param, k_x = jax.random.split(key)

    hidden_size = 32
    num_blocks = [1, 1, 2]                    # layer3 gets num_blocks[2]-1 = 1
    batch, in_ch, h0, w0 = 2, 3, 16, 16       # conv1 requires 3 input channels

    kparams, rparams, cfg = make_encoder_params(k_param, hidden_size, num_blocks)
    x = jax.random.normal(k_x, (batch, in_ch, h0, w0), jnp.float32)

    fwd = jax.jit(build_fused_encoder(kparams, cfg, batch, h0, w0))
    v = jax.block_until_ready(fwd(x))

    # Two stride-2 stages take 16x16 -> 4x4.
    assert v.shape == (batch, hidden_size * 4 * 4), v.shape

    # Rows are unit-norm after the fused F.normalize.
    norms = jnp.linalg.norm(v, axis=1)
    assert bool(jnp.all(jnp.abs(norms - 1.0) < 1e-3)), norms

    # Numerical check vs. a pure-JAX lax.conv reference of the same network.
    v_ref = ref_forward(rparams, cfg, x)
    rel = float(jnp.linalg.norm(v - v_ref) / jnp.linalg.norm(v_ref))
    assert rel < 5e-2, f"kernel/reference mismatch: rel={rel:.3e}"

    print("KERNEL_OK")
</pallas_src>

<mosaic_0001>
module attributes {stable_mosaic.version = 11 : i64} {
  func.func @kernel(%arg0: i32, %arg1: memref<1x3x256xf32, #tpu.memory_space<vmem>>, %arg2: memref<9x256x256xbf16, #tpu.memory_space<vmem>>, %arg3: memref<9x256x64xbf16, #tpu.memory_space<vmem>>, %arg4: memref<9x64x64xbf16, #tpu.memory_space<vmem>>, %arg5: memref<9x64x16xbf16, #tpu.memory_space<vmem>>, %arg6: memref<9x16x16xbf16, #tpu.memory_space<vmem>>, %arg7: memref<16x1xf32, #tpu.memory_space<vmem>>, %arg8: memref<9x16x3xbf16, #tpu.memory_space<vmem>>, %arg9: memref<16x1xf32, #tpu.memory_space<vmem>>, %arg10: memref<9x16x16xbf16, #tpu.memory_space<vmem>>, %arg11: memref<16x1xf32, #tpu.memory_space<vmem>>, %arg12: memref<9x16x16xbf16, #tpu.memory_space<vmem>>, %arg13: memref<16x1xf32, #tpu.memory_space<vmem>>, %arg14: memref<9x16x16xbf16, #tpu.memory_space<vmem>>, %arg15: memref<16x1xf32, #tpu.memory_space<vmem>>, %arg16: memref<9x16x16xbf16, #tpu.memory_space<vmem>>, %arg17: memref<16x1xf32, #tpu.memory_space<vmem>>, %arg18: memref<16x16xbf16, #tpu.memory_space<vmem>>, %arg19: memref<32x1xf32, #tpu.memory_space<vmem>>, %arg20: memref<9x32x16xbf16, #tpu.memory_space<vmem>>, %arg21: memref<32x1xf32, #tpu.memory_space<vmem>>, %arg22: memref<9x32x32xbf16, #tpu.memory_space<vmem>>, %arg23: memref<32x1xf32, #tpu.memory_space<vmem>>, %arg24: memref<32x16xbf16, #tpu.memory_space<vmem>>, %arg25: memref<1x32x16xf32, #tpu.memory_space<vmem>>) attributes {dimension_semantics = [#tpu.dimension_semantics<parallel>], iteration_bounds = array<i64: 2>, scalar_prefetch = 0 : i64, scratch_operands = 0 : i64, tpu.core_type = #tpu.core_type<tc>, window_params = [{transform_indices = @transform_0, window_bounds = array<i64: 1, 3, 256>}, {pipeline_mode = #tpu.pipeline_mode<synchronous>, transform_indices = @transform_1, window_bounds = array<i64: 9, 256, 256>}, {pipeline_mode = #tpu.pipeline_mode<synchronous>, transform_indices = @transform_2, window_bounds = array<i64: 9, 256, 64>}, {pipeline_mode = #tpu.pipeline_mode<synchronous>, transform_indices = @transform_3, window_bounds = array<i64: 9, 64, 64>}, {pipeline_mode = #tpu.pipeline_mode<synchronous>, transform_indices = @transform_4, window_bounds = array<i64: 9, 64, 16>}, {pipeline_mode = #tpu.pipeline_mode<synchronous>, transform_indices = @transform_5, window_bounds = array<i64: 9, 16, 16>}, {pipeline_mode = #tpu.pipeline_mode<synchronous>, transform_indices = @transform_6, window_bounds = array<i64: 16, 1>}, {pipeline_mode = #tpu.pipeline_mode<synchronous>, transform_indices = @transform_7, window_bounds = array<i64: 9, 16, 3>}, {pipeline_mode = #tpu.pipeline_mode<synchronous>, transform_indices = @transform_8, window_bounds = array<i64: 16, 1>}, {pipeline_mode = #tpu.pipeline_mode<synchronous>, transform_indices = @transform_9, window_bounds = array<i64: 9, 16, 16>}, {pipeline_mode = #tpu.pipeline_mode<synchronous>, transform_indices = @transform_10, window_bounds = array<i64: 16, 1>}, {pipeline_mode = #tpu.pipeline_mode<synchronous>, transform_indices = @transform_11, window_bounds = array<i64: 9, 16, 16>}, {pipeline_mode = #tpu.pipeline_mode<synchronous>, transform_indices = @transform_12, window_bounds = array<i64: 16, 1>}, {pipeline_mode = #tpu.pipeline_mode<synchronous>, transform_indices = @transform_13, window_bounds = array<i64: 9, 16, 16>}, {pipeline_mode = #tpu.pipeline_mode<synchronous>, transform_indices = @transform_14, window_bounds = array<i64: 16, 1>}, {pipeline_mode = #tpu.pipeline_mode<synchronous>, transform_indices = @transform_15, window_bounds = array<i64: 9, 16, 16>}, {pipeline_mode = #tpu.pipeline_mode<synchronous>, transform_indices = @transform_16, window_bounds = array<i64: 16, 1>}, {pipeline_mode = #tpu.pipeline_mode<synchronous>, transform_indices = @transform_17, window_bounds = array<i64: 16, 16>}, {pipeline_mode = #tpu.pipeline_mode<synchronous>, transform_indices = @transform_18, window_bounds = array<i64: 32, 1>}, {pipeline_mode = #tpu.pipeline_mode<synchronous>, transform_indices = @transform_19, window_bounds = array<i64: 9, 32, 16>}, {pipeline_mode = #tpu.pipeline_mode<synchronous>, transform_indices = @transform_20, window_bounds = array<i64: 32, 1>}, {pipeline_mode = #tpu.pipeline_mode<synchronous>, transform_indices = @transform_21, window_bounds = array<i64: 9, 32, 32>}, {pipeline_mode = #tpu.pipeline_mode<synchronous>, transform_indices = @transform_22, window_bounds = array<i64: 32, 1>}, {pipeline_mode = #tpu.pipeline_mode<synchronous>, transform_indices = @transform_23, window_bounds = array<i64: 32, 16>}, {transform_indices = @transform_24, window_bounds = array<i64: 1, 32, 16>}]} {
    %c0 = arith.constant 0 : index
    %c0_0 = arith.constant 0 : index
    %c0_1 = arith.constant 0 : index
    %0 = vector.load %arg1[%c0, %c0_0, %c0_1] : memref<1x3x256xf32, #tpu.memory_space<vmem>>, vector<1x3x256xf32>
    %1 = vector.shape_cast %0 : vector<1x3x256xf32> to vector<3x256xf32>
    %2 = arith.truncf %1 : vector<3x256xf32> to vector<3x256xbf16>
    %c0_2 = arith.constant 0 : index
    %c0_3 = arith.constant 0 : index
    %c0_4 = arith.constant 0 : index
    %3 = vector.load %arg2[%c0_2, %c0_3, %c0_4] : memref<9x256x256xbf16, #tpu.memory_space<vmem>>, vector<1x256x256xbf16>
    %4 = vector.shape_cast %3 : vector<1x256x256xbf16> to vector<256x256xbf16>
    %cst = arith.constant dense<0.000000e+00> : vector<3x256xf32>
    %5 = tpu.matmul %2, %4, %cst {dimension_numbers = #tpu.dot_dimension_numbers<[1], [0], [0], [1], [0, 0, 1, 1], [], []>} : vector<3x256xbf16>, vector<256x256xbf16>, vector<3x256xf32> -> vector<3x256xf32>
    %c0_5 = arith.constant 0 : index
    %c0_6 = arith.constant 0 : index
    %c0_7 = arith.constant 0 : index
    %6 = vector.load %arg8[%c0_5, %c0_6, %c0_7] : memref<9x16x3xbf16, #tpu.memory_space<vmem>>, vector<1x16x3xbf16>
    %7 = vector.shape_cast %6 : vector<1x16x3xbf16> to vector<16x3xbf16>
    %8 = arith.truncf %5 : vector<3x256xf32> to vector<3x256xbf16>
    %cst_8 = arith.constant dense<0.000000e+00> : vector<16x256xf32>
    %9 = tpu.matmul %7, %8, %cst_8 {dimension_numbers = #tpu.dot_dimension_numbers<[1], [0], [0], [1], [0, 0, 1, 1], [], []>} : vector<16x3xbf16>, vector<3x256xbf16>, vector<16x256xf32> -> vector<16x256xf32>
    %c1 = arith.constant 1 : index
    %c0_9 = arith.constant 0 : index
    %c0_10 = arith.constant 0 : index
    %10 = vector.load %arg2[%c1, %c0_9, %c0_10] : memref<9x256x256xbf16, #tpu.memory_space<vmem>>, vector<1x256x256xbf16>
    %11 = vector.shape_cast %10 : vector<1x256x256xbf16> to vector<256x256xbf16>
    %cst_11 = arith.constant dense<0.000000e+00> : vector<3x256xf32>
    %12 = tpu.matmul %2, %11, %cst_11 {dimension_numbers = #tpu.dot_dimension_numbers<[1], [0], [0], [1], [0, 0, 1, 1], [], []>} : vector<3x256xbf16>, vector<256x256xbf16>, vector<3x256xf32> -> vector<3x256xf32>
    %c1_12 = arith.constant 1 : index
    %c0_13 = arith.constant 0 : index
    %c0_14 = arith.constant 0 : index
    %13 = vector.load %arg8[%c1_12, %c0_13, %c0_14] : memref<9x16x3xbf16, #tpu.memory_space<vmem>>, vector<1x16x3xbf16>
    %14 = vector.shape_cast %13 : vector<1x16x3xbf16> to vector<16x3xbf16>
    %15 = arith.truncf %12 : vector<3x256xf32> to vector<3x256xbf16>
    %cst_15 = arith.constant dense<0.000000e+00> : vector<16x256xf32>
    %16 = tpu.matmul %14, %15, %cst_15 {dimension_numbers = #tpu.dot_dimension_numbers<[1], [0], [0], [1], [0, 0, 1, 1], [], []>} : vector<16x3xbf16>, vector<3x256xbf16>, vector<16x256xf32> -> vector<16x256xf32>
    %17 = arith.addf %9, %16 : vector<16x256xf32>
    %c2 = arith.constant 2 : index
    %c0_16 = arith.constant 0 : index
    %c0_17 = arith.constant 0 : index
    %18 = vector.load %arg2[%c2, %c0_16, %c0_17] : memref<9x256x256xbf16, #tpu.memory_space<vmem>>, vector<1x256x256xbf16>
    %19 = vector.shape_cast %18 : vector<1x256x256xbf16> to vector<256x256xbf16>
    %cst_18 = arith.constant dense<0.000000e+00> : vector<3x256xf32>
    %20 = tpu.matmul %2, %19, %cst_18 {dimension_numbers = #tpu.dot_dimension_numbers<[1], [0], [0], [1], [0, 0, 1, 1], [], []>} : vector<3x256xbf16>, vector<256x256xbf16>, vector<3x256xf32> -> vector<3x256xf32>
    %c2_19 = arith.constant 2 : index
    %c0_20 = arith.constant 0 : index
    %c0_21 = arith.constant 0 : index
    %21 = vector.load %arg8[%c2_19, %c0_20, %c0_21] : memref<9x16x3xbf16, #tpu.memory_space<vmem>>, vector<1x16x3xbf16>
    %22 = vector.shape_cast %21 : vector<1x16x3xbf16> to vector<16x3xbf16>
    %23 = arith.truncf %20 : vector<3x256xf32> to vector<3x256xbf16>
    %cst_22 = arith.constant dense<0.000000e+00> : vector<16x256xf32>
    %24 = tpu.matmul %22, %23, %cst_22 {dimension_numbers = #tpu.dot_dimension_numbers<[1], [0], [0], [1], [0, 0, 1, 1], [], []>} : vector<16x3xbf16>, vector<3x256xbf16>, vector<16x256xf32> -> vector<16x256xf32>
    %25 = arith.addf %17, %24 : vector<16x256xf32>
    %c3 = arith.constant 3 : index
    %c0_23 = arith.constant 0 : index
    %c0_24 = arith.constant 0 : index
    %26 = vector.load %arg2[%c3, %c0_23, %c0_24] : memref<9x256x256xbf16, #tpu.memory_space<vmem>>, vector<1x256x256xbf16>
    %27 = vector.shape_cast %26 : vector<1x256x256xbf16> to vector<256x256xbf16>
    %cst_25 = arith.constant dense<0.000000e+00> : vector<3x256xf32>
    %28 = tpu.matmul %2, %27, %cst_25 {dimension_numbers = #tpu.dot_dimension_numbers<[1], [0], [0], [1], [0, 0, 1, 1], [], []>} : vector<3x256xbf16>, vector<256x256xbf16>, vector<3x256xf32> -> vector<3x256xf32>
    %c3_26 = arith.constant 3 : index
    %c0_27 = arith.constant 0 : index
    %c0_28 = arith.constant 0 : index
    %29 = vector.load %arg8[%c3_26, %c0_27, %c0_28] : memref<9x16x3xbf16, #tpu.memory_space<vmem>>, vector<1x16x3xbf16>
    %30 = vector.shape_cast %29 : vector<1x16x3xbf16> to vector<16x3xbf16>
    %31 = arith.truncf %28 : vector<3x256xf32> to vector<3x256xbf16>
    %cst_29 = arith.constant dense<0.000000e+00> : vector<16x256xf32>
    %32 = tpu.matmul %30, %31, %cst_29 {dimension_numbers = #tpu.dot_dimension_numbers<[1], [0], [0], [1], [0, 0, 1, 1], [], []>} : vector<16x3xbf16>, vector<3x256xbf16>, vector<16x256xf32> -> vector<16x256xf32>
    %33 = arith.addf %25, %32 : vector<16x256xf32>
    %c4 = arith.constant 4 : index
    %c0_30 = arith.constant 0 : index
    %c0_31 = arith.constant 0 : index
    %34 = vector.load %arg2[%c4, %c0_30, %c0_31] : memref<9x256x256xbf16, #tpu.memory_space<vmem>>, vector<1x256x256xbf16>
    %35 = vector.shape_cast %34 : vector<1x256x256xbf16> to vector<256x256xbf16>
    %cst_32 = arith.constant dense<0.000000e+00> : vector<3x256xf32>
    %36 = tpu.matmul %2, %35, %cst_32 {dimension_numbers = #tpu.dot_dimension_numbers<[1], [0], [0], [1], [0, 0, 1, 1], [], []>} : vector<3x256xbf16>, vector<256x256xbf16>, vector<3x256xf32> -> vector<3x256xf32>
    %c4_33 = arith.constant 4 : index
    %c0_34 = arith.constant 0 : index
    %c0_35 = arith.constant 0 : index
    %37 = vector.load %arg8[%c4_33, %c0_34, %c0_35] : memref<9x16x3xbf16, #tpu.memory_space<vmem>>, vector<1x16x3xbf16>
    %38 = vector.shape_cast %37 : vector<1x16x3xbf16> to vector<16x3xbf16>
    %39 = arith.truncf %36 : vector<3x256xf32> to vector<3x256xbf16>
    %cst_36 = arith.constant dense<0.000000e+00> : vector<16x256xf32>
    %40 = tpu.matmul %38, %39, %cst_36 {dimension_numbers = #tpu.dot_dimension_numbers<[1], [0], [0], [1], [0, 0, 1, 1], [], []>} : vector<16x3xbf16>, vector<3x256xbf16>, vector<16x256xf32> -> vector<16x256xf32>
    %41 = arith.addf %33, %40 : vector<16x256xf32>
    %c5 = arith.constant 5 : index
    %c0_37 = arith.constant 0 : index
    %c0_38 = arith.constant 0 : index
    %42 = vector.load %arg2[%c5, %c0_37, %c0_38] : memref<9x256x256xbf16, #tpu.memory_space<vmem>>, vector<1x256x256xbf16>
    %43 = vector.shape_cast %42 : vector<1x256x256xbf16> to vector<256x256xbf16>
    %cst_39 = arith.constant dense<0.000000e+00> : vector<3x256xf32>
    %44 = tpu.matmul %2, %43, %cst_39 {dimension_numbers = #tpu.dot_dimension_numbers<[1], [0], [0], [1], [0, 0, 1, 1], [], []>} : vector<3x256xbf16>, vector<256x256xbf16>, vector<3x256xf32> -> vector<3x256xf32>
    %c5_40 = arith.constant 5 : index
    %c0_41 = arith.constant 0 : index
    %c0_42 = arith.constant 0 : index
    %45 = vector.load %arg8[%c5_40, %c0_41, %c0_42] : memref<9x16x3xbf16, #tpu.memory_space<vmem>>, vector<1x16x3xbf16>
    %46 = vector.shape_cast %45 : vector<1x16x3xbf16> to vector<16x3xbf16>
    %47 = arith.truncf %44 : vector<3x256xf32> to vector<3x256xbf16>
    %cst_43 = arith.constant dense<0.000000e+00> : vector<16x256xf32>
    %48 = tpu.matmul %46, %47, %cst_43 {dimension_numbers = #tpu.dot_dimension_numbers<[1], [0], [0], [1], [0, 0, 1, 1], [], []>} : vector<16x3xbf16>, vector<3x256xbf16>, vector<16x256xf32> -> vector<16x256xf32>
    %49 = arith.addf %41, %48 : vector<16x256xf32>
    %c6 = arith.constant 6 : index
    %c0_44 = arith.constant 0 : index
    %c0_45 = arith.constant 0 : index
    %50 = vector.load %arg2[%c6, %c0_44, %c0_45] : memref<9x256x256xbf16, #tpu.memory_space<vmem>>, vector<1x256x256xbf16>
    %51 = vector.shape_cast %50 : vector<1x256x256xbf16> to vector<256x256xbf16>
    %cst_46 = arith.constant dense<0.000000e+00> : vector<3x256xf32>
    %52 = tpu.matmul %2, %51, %cst_46 {dimension_numbers = #tpu.dot_dimension_numbers<[1], [0], [0], [1], [0, 0, 1, 1], [], []>} : vector<3x256xbf16>, vector<256x256xbf16>, vector<3x256xf32> -> vector<3x256xf32>
    %c6_47 = arith.constant 6 : index
    %c0_48 = arith.constant 0 : index
    %c0_49 = arith.constant 0 : index
    %53 = vector.load %arg8[%c6_47, %c0_48, %c0_49] : memref<9x16x3xbf16, #tpu.memory_space<vmem>>, vector<1x16x3xbf16>
    %54 = vector.shape_cast %53 : vector<1x16x3xbf16> to vector<16x3xbf16>
    %55 = arith.truncf %52 : vector<3x256xf32> to vector<3x256xbf16>
    %cst_50 = arith.constant dense<0.000000e+00> : vector<16x256xf32>
    %56 = tpu.matmul %54, %55, %cst_50 {dimension_numbers = #tpu.dot_dimension_numbers<[1], [0], [0], [1], [0, 0, 1, 1], [], []>} : vector<16x3xbf16>, vector<3x256xbf16>, vector<16x256xf32> -> vector<16x256xf32>
    %57 = arith.addf %49, %56 : vector<16x256xf32>
    %c7 = arith.constant 7 : index
    %c0_51 = arith.constant 0 : index
    %c0_52 = arith.constant 0 : index
    %58 = vector.load %arg2[%c7, %c0_51, %c0_52] : memref<9x256x256xbf16, #tpu.memory_space<vmem>>, vector<1x256x256xbf16>
    %59 = vector.shape_cast %58 : vector<1x256x256xbf16> to vector<256x256xbf16>
    %cst_53 = arith.constant dense<0.000000e+00> : vector<3x256xf32>
    %60 = tpu.matmul %2, %59, %cst_53 {dimension_numbers = #tpu.dot_dimension_numbers<[1], [0], [0], [1], [0, 0, 1, 1], [], []>} : vector<3x256xbf16>, vector<256x256xbf16>, vector<3x256xf32> -> vector<3x256xf32>
    %c7_54 = arith.constant 7 : index
    %c0_55 = arith.constant 0 : index
    %c0_56 = arith.constant 0 : index
    %61 = vector.load %arg8[%c7_54, %c0_55, %c0_56] : memref<9x16x3xbf16, #tpu.memory_space<vmem>>, vector<1x16x3xbf16>
    %62 = vector.shape_cast %61 : vector<1x16x3xbf16> to vector<16x3xbf16>
    %63 = arith.truncf %60 : vector<3x256xf32> to vector<3x256xbf16>
    %cst_57 = arith.constant dense<0.000000e+00> : vector<16x256xf32>
    %64 = tpu.matmul %62, %63, %cst_57 {dimension_numbers = #tpu.dot_dimension_numbers<[1], [0], [0], [1], [0, 0, 1, 1], [], []>} : vector<16x3xbf16>, vector<3x256xbf16>, vector<16x256xf32> -> vector<16x256xf32>
    %65 = arith.addf %57, %64 : vector<16x256xf32>
    %c8 = arith.constant 8 : index
    %c0_58 = arith.constant 0 : index
    %c0_59 = arith.constant 0 : index
    %66 = vector.load %arg2[%c8, %c0_58, %c0_59] : memref<9x256x256xbf16, #tpu.memory_space<vmem>>, vector<1x256x256xbf16>
    %67 = vector.shape_cast %66 : vector<1x256x256xbf16> to vector<256x256xbf16>
    %cst_60 = arith.constant dense<0.000000e+00> : vector<3x256xf32>
    %68 = tpu.matmul %2, %67, %cst_60 {dimension_numbers = #tpu.dot_dimension_numbers<[1], [0], [0], [1], [0, 0, 1, 1], [], []>} : vector<3x256xbf16>, vector<256x256xbf16>, vector<3x256xf32> -> vector<3x256xf32>
    %c8_61 = arith.constant 8 : index
    %c0_62 = arith.constant 0 : index
    %c0_63 = arith.constant 0 : index
    %69 = vector.load %arg8[%c8_61, %c0_62, %c0_63] : memref<9x16x3xbf16, #tpu.memory_space<vmem>>, vector<1x16x3xbf16>
    %70 = vector.shape_cast %69 : vector<1x16x3xbf16> to vector<16x3xbf16>
    %71 = arith.truncf %68 : vector<3x256xf32> to vector<3x256xbf16>
    %cst_64 = arith.constant dense<0.000000e+00> : vector<16x256xf32>
    %72 = tpu.matmul %70, %71, %cst_64 {dimension_numbers = #tpu.dot_dimension_numbers<[1], [0], [0], [1], [0, 0, 1, 1], [], []>} : vector<16x3xbf16>, vector<3x256xbf16>, vector<16x256xf32> -> vector<16x256xf32>
    %73 = arith.addf %65, %72 : vector<16x256xf32>
    %c0_65 = arith.constant 0 : index
    %c0_66 = arith.constant 0 : index
    %74 = vector.load %arg7[%c0_65, %c0_66] : memref<16x1xf32, #tpu.memory_space<vmem>>, vector<16x1xf32>
    %75 = vector.broadcast %74 : vector<16x1xf32> to vector<16x256xf32>
    %76 = arith.addf %73, %75 : vector<16x256xf32>
    %cst_67 = arith.constant 0.000000e+00 : f32
    %77 = vector.broadcast %cst_67 : f32 to vector<16x256xf32>
    %78 = arith.maximumf %76, %77 : vector<16x256xf32>
    %79 = arith.truncf %78 : vector<16x256xf32> to vector<16x256xbf16>
    %c0_68 = arith.constant 0 : index
    %c0_69 = arith.constant 0 : index
    %c0_70 = arith.constant 0 : index
    %80 = vector.load %arg2[%c0_68, %c0_69, %c0_70] : memref<9x256x256xbf16, #tpu.memory_space<vmem>>, vector<1x256x256xbf16>
    %81 = vector.shape_cast %80 : vector<1x256x256xbf16> to vector<256x256xbf16>
    %cst_71 = arith.constant dense<0.000000e+00> : vector<16x256xf32>
    %82 = tpu.matmul %79, %81, %cst_71 {dimension_numbers = #tpu.dot_dimension_numbers<[1], [0], [0], [1], [0, 0, 1, 1], [], []>} : vector<16x256xbf16>, vector<256x256xbf16>, vector<16x256xf32> -> vector<16x256xf32>
    %c0_72 = arith.constant 0 : index
    %c0_73 = arith.constant 0 : index
    %c0_74 = arith.constant 0 : index
    %83 = vector.load %arg10[%c0_72, %c0_73, %c0_74] : memref<9x16x16xbf16, #tpu.memory_space<vmem>>, vector<1x16x16xbf16>
    %84 = vector.shape_cast %83 : vector<1x16x16xbf16> to vector<16x16xbf16>
    %85 = arith.truncf %82 : vector<16x256xf32> to vector<16x256xbf16>
    %cst_75 = arith.constant dense<0.000000e+00> : vector<16x256xf32>
    %86 = tpu.matmul %84, %85, %cst_75 {dimension_numbers = #tpu.dot_dimension_numbers<[1], [0], [0], [1], [0, 0, 1, 1], [], []>} : vector<16x16xbf16>, vector<16x256xbf16>, vector<16x256xf32> -> vector<16x256xf32>
    %c1_76 = arith.constant 1 : index
    %c0_77 = arith.constant 0 : index
    %c0_78 = arith.constant 0 : index
    %87 = vector.load %arg2[%c1_76, %c0_77, %c0_78] : memref<9x256x256xbf16, #tpu.memory_space<vmem>>, vector<1x256x256xbf16>
    %88 = vector.shape_cast %87 : vector<1x256x256xbf16> to vector<256x256xbf16>
    %cst_79 = arith.constant dense<0.000000e+00> : vector<16x256xf32>
    %89 = tpu.matmul %79, %88, %cst_79 {dimension_numbers = #tpu.dot_dimension_numbers<[1], [0], [0], [1], [0, 0, 1, 1], [], []>} : vector<16x256xbf16>, vector<256x256xbf16>, vector<16x256xf32> -> vector<16x256xf32>
    %c1_80 = arith.constant 1 : index
    %c0_81 = arith.constant 0 : index
    %c0_82 = arith.constant 0 : index
    %90 = vector.load %arg10[%c1_80, %c0_81, %c0_82] : memref<9x16x16xbf16, #tpu.memory_space<vmem>>, vector<1x16x16xbf16>
    %91 = vector.shape_cast %90 : vector<1x16x16xbf16> to vector<16x16xbf16>
    %92 = arith.truncf %89 : vector<16x256xf32> to vector<16x256xbf16>
    %cst_83 = arith.constant dense<0.000000e+00> : vector<16x256xf32>
    %93 = tpu.matmul %91, %92, %cst_83 {dimension_numbers = #tpu.dot_dimension_numbers<[1], [0], [0], [1], [0, 0, 1, 1], [], []>} : vector<16x16xbf16>, vector<16x256xbf16>, vector<16x256xf32> -> vector<16x256xf32>
    %94 = arith.addf %86, %93 : vector<16x256xf32>
    %c2_84 = arith.constant 2 : index
    %c0_85 = arith.constant 0 : index
    %c0_86 = arith.constant 0 : index
    %95 = vector.load %arg2[%c2_84, %c0_85, %c0_86] : memref<9x256x256xbf16, #tpu.memory_space<vmem>>, vector<1x256x256xbf16>
    %96 = vector.shape_cast %95 : vector<1x256x256xbf16> to vector<256x256xbf16>
    %cst_87 = arith.constant dense<0.000000e+00> : vector<16x256xf32>
    %97 = tpu.matmul %79, %96, %cst_87 {dimension_numbers = #tpu.dot_dimension_numbers<[1], [0], [0], [1], [0, 0, 1, 1], [], []>} : vector<16x256xbf16>, vector<256x256xbf16>, vector<16x256xf32> -> vector<16x256xf32>
    %c2_88 = arith.constant 2 : index
    %c0_89 = arith.constant 0 : index
    %c0_90 = arith.constant 0 : index
    %98 = vector.load %arg10[%c2_88, %c0_89, %c0_90] : memref<9x16x16xbf16, #tpu.memory_space<vmem>>, vector<1x16x16xbf16>
    %99 = vector.shape_cast %98 : vector<1x16x16xbf16> to vector<16x16xbf16>
    %100 = arith.truncf %97 : vector<16x256xf32> to vector<16x256xbf16>
    %cst_91 = arith.constant dense<0.000000e+00> : vector<16x256xf32>
    %101 = tpu.matmul %99, %100, %cst_91 {dimension_numbers = #tpu.dot_dimension_numbers<[1], [0], [0], [1], [0, 0, 1, 1], [], []>} : vector<16x16xbf16>, vector<16x256xbf16>, vector<16x256xf32> -> vector<16x256xf32>
    %102 = arith.addf %94, %101 : vector<16x256xf32>
    %c3_92 = arith.constant 3 : index
    %c0_93 = arith.constant 0 : index
    %c0_94 = arith.constant 0 : index
    %103 = vector.load %arg2[%c3_92, %c0_93, %c0_94] : memref<9x256x256xbf16, #tpu.memory_space<vmem>>, vector<1x256x256xbf16>
    %104 = vector.shape_cast %103 : vector<1x256x256xbf16> to vector<256x256xbf16>
    %cst_95 = arith.constant dense<0.000000e+00> : vector<16x256xf32>
    %105 = tpu.matmul %79, %104, %cst_95 {dimension_numbers = #tpu.dot_dimension_numbers<[1], [0], [0], [1], [0, 0, 1, 1], [], []>} : vector<16x256xbf16>, vector<256x256xbf16>, vector<16x256xf32> -> vector<16x256xf32>
    %c3_96 = arith.constant 3 : index
    %c0_97 = arith.constant 0 : index
    %c0_98 = arith.constant 0 : index
    %106 = vector.load %arg10[%c3_96, %c0_97, %c0_98] : memref<9x16x16xbf16, #tpu.memory_space<vmem>>, vector<1x16x16xbf16>
    %107 = vector.shape_cast %106 : vector<1x16x16xbf16> to vector<16x16xbf16>
    %108 = arith.truncf %105 : vector<16x256xf32> to vector<16x256xbf16>
    %cst_99 = arith.constant dense<0.000000e+00> : vector<16x256xf32>
    %109 = tpu.matmul %107, %108, %cst_99 {dimension_numbers = #tpu.dot_dimension_numbers<[1], [0], [0], [1], [0, 0, 1, 1], [], []>} : vector<16x16xbf16>, vector<16x256xbf16>, vector<16x256xf32> -> vector<16x256xf32>
    %110 = arith.addf %102, %109 : vector<16x256xf32>
    %c4_100 = arith.constant 4 : index
    %c0_101 = arith.constant 0 : index
    %c0_102 = arith.constant 0 : index
    %111 = vector.load %arg2[%c4_100, %c0_101, %c0_102] : memref<9x256x256xbf16, #tpu.memory_space<vmem>>, vector<1x256x256xbf16>
    %112 = vector.shape_cast %111 : vector<1x256x256xbf16> to vector<256x256xbf16>
    %cst_103 = arith.constant dense<0.000000e+00> : vector<16x256xf32>
    %113 = tpu.matmul %79, %112, %cst_103 {dimension_numbers = #tpu.dot_dimension_numbers<[1], [0], [0], [1], [0, 0, 1, 1], [], []>} : vector<16x256xbf16>, vector<256x256xbf16>, vector<16x256xf32> -> vector<16x256xf32>
    %c4_104 = arith.constant 4 : index
    %c0_105 = arith.constant 0 : index
    %c0_106 = arith.constant 0 : index
    %114 = vector.load %arg10[%c4_104, %c0_105, %c0_106] : memref<9x16x16xbf16, #tpu.memory_space<vmem>>, vector<1x16x16xbf16>
    %115 = vector.shape_cast %114 : vector<1x16x16xbf16> to vector<16x16xbf16>
    %116 = arith.truncf %113 : vector<16x256xf32> to vector<16x256xbf16>
    %cst_107 = arith.constant dense<0.000000e+00> : vector<16x256xf32>
    %117 = tpu.matmul %115, %116, %cst_107 {dimension_numbers = #tpu.dot_dimension_numbers<[1], [0], [0], [1], [0, 0, 1, 1], [], []>} : vector<16x16xbf16>, vector<16x256xbf16>, vector<16x256xf32> -> vector<16x256xf32>
    %118 = arith.addf %110, %117 : vector<16x256xf32>
    %c5_108 = arith.constant 5 : index
    %c0_109 = arith.constant 0 : index
    %c0_110 = arith.constant 0 : index
    %119 = vector.load %arg2[%c5_108, %c0_109, %c0_110] : memref<9x256x256xbf16, #tpu.memory_space<vmem>>, vector<1x256x256xbf16>
    %120 = vector.shape_cast %119 : vector<1x256x256xbf16> to vector<256x256xbf16>
    %cst_111 = arith.constant dense<0.000000e+00> : vector<16x256xf32>
    %121 = tpu.matmul %79, %120, %cst_111 {dimension_numbers = #tpu.dot_dimension_numbers<[1], [0], [0], [1], [0, 0, 1, 1], [], []>} : vector<16x256xbf16>, vector<256x256xbf16>, vector<16x256xf32> -> vector<16x256xf32>
    %c5_112 = arith.constant 5 : index
    %c0_113 = arith.constant 0 : index
    %c0_114 = arith.constant 0 : index
    %122 = vector.load %arg10[%c5_112, %c0_113, %c0_114] : memref<9x16x16xbf16, #tpu.memory_space<vmem>>, vector<1x16x16xbf16>
    %123 = vector.shape_cast %122 : vector<1x16x16xbf16> to vector<16x16xbf16>
    %124 = arith.truncf %121 : vector<16x256xf32> to vector<16x256xbf16>
    %cst_115 = arith.constant dense<0.000000e+00> : vector<16x256xf32>
    %125 = tpu.matmul %123, %124, %cst_115 {dimension_numbers = #tpu.dot_dimension_numbers<[1], [0], [0], [1], [0, 0, 1, 1], [], []>} : vector<16x16xbf16>, vector<16x256xbf16>, vector<16x256xf32> -> vector<16x256xf32>
    %126 = arith.addf %118, %125 : vector<16x256xf32>
    %c6_116 = arith.constant 6 : index
    %c0_117 = arith.constant 0 : index
    %c0_118 = arith.constant 0 : index
    %127 = vector.load %arg2[%c6_116, %c0_117, %c0_118] : memref<9x256x256xbf16, #tpu.memory_space<vmem>>, vector<1x256x256xbf16>
    %128 = vector.shape_cast %127 : vector<1x256x256xbf16> to vector<256x256xbf16>
    %cst_119 = arith.constant dense<0.000000e+00> : vector<16x256xf32>
    %129 = tpu.matmul %79, %128, %cst_119 {dimension_numbers = #tpu.dot_dimension_numbers<[1], [0], [0], [1], [0, 0, 1, 1], [], []>} : vector<16x256xbf16>, vector<256x256xbf16>, vector<16x256xf32> -> vector<16x256xf32>
    %c6_120 = arith.constant 6 : index
    %c0_121 = arith.constant 0 : index
    %c0_122 = arith.constant 0 : index
    %130 = vector.load %arg10[%c6_120, %c0_121, %c0_122] : memref<9x16x16xbf16, #tpu.memory_space<vmem>>, vector<1x16x16xbf16>
    %131 = vector.shape_cast %130 : vector<1x16x16xbf16> to vector<16x16xbf16>
    %132 = arith.truncf %129 : vector<16x256xf32> to vector<16x256xbf16>
    %cst_123 = arith.constant dense<0.000000e+00> : vector<16x256xf32>
    %133 = tpu.matmul %131, %132, %cst_123 {dimension_numbers = #tpu.dot_dimension_numbers<[1], [0], [0], [1], [0, 0, 1, 1], [], []>} : vector<16x16xbf16>, vector<16x256xbf16>, vector<16x256xf32> -> vector<16x256xf32>
    %134 = arith.addf %126, %133 : vector<16x256xf32>
    %c7_124 = arith.constant 7 : index
    %c0_125 = arith.constant 0 : index
    %c0_126 = arith.constant 0 : index
    %135 = vector.load %arg2[%c7_124, %c0_125, %c0_126] : memref<9x256x256xbf16, #tpu.memory_space<vmem>>, vector<1x256x256xbf16>
    %136 = vector.shape_cast %135 : vector<1x256x256xbf16> to vector<256x256xbf16>
    %cst_127 = arith.constant dense<0.000000e+00> : vector<16x256xf32>
    %137 = tpu.matmul %79, %136, %cst_127 {dimension_numbers = #tpu.dot_dimension_numbers<[1], [0], [0], [1], [0, 0, 1, 1], [], []>} : vector<16x256xbf16>, vector<256x256xbf16>, vector<16x256xf32> -> vector<16x256xf32>
    %c7_128 = arith.constant 7 : index
    %c0_129 = arith.constant 0 : index
    %c0_130 = arith.constant 0 : index
    %138 = vector.load %arg10[%c7_128, %c0_129, %c0_130] : memref<9x16x16xbf16, #tpu.memory_space<vmem>>, vector<1x16x16xbf16>
    %139 = vector.shape_cast %138 : vector<1x16x16xbf16> to vector<16x16xbf16>
    %140 = arith.truncf %137 : vector<16x256xf32> to vector<16x256xbf16>
    %cst_131 = arith.constant dense<0.000000e+00> : vector<16x256xf32>
    %141 = tpu.matmul %139, %140, %cst_131 {dimension_numbers = #tpu.dot_dimension_numbers<[1], [0], [0], [1], [0, 0, 1, 1], [], []>} : vector<16x16xbf16>, vector<16x256xbf16>, vector<16x256xf32> -> vector<16x256xf32>
    %142 = arith.addf %134, %141 : vector<16x256xf32>
    %c8_132 = arith.constant 8 : index
    %c0_133 = arith.constant 0 : index
    %c0_134 = arith.constant 0 : index
    %143 = vector.load %arg2[%c8_132, %c0_133, %c0_134] : memref<9x256x256xbf16, #tpu.memory_space<vmem>>, vector<1x256x256xbf16>
    %144 = vector.shape_cast %143 : vector<1x256x256xbf16> to vector<256x256xbf16>
    %cst_135 = arith.constant dense<0.000000e+00> : vector<16x256xf32>
    %145 = tpu.matmul %79, %144, %cst_135 {dimension_numbers = #tpu.dot_dimension_numbers<[1], [0], [0], [1], [0, 0, 1, 1], [], []>} : vector<16x256xbf16>, vector<256x256xbf16>, vector<16x256xf32> -> vector<16x256xf32>
    %c8_136 = arith.constant 8 : index
    %c0_137 = arith.constant 0 : index
    %c0_138 = arith.constant 0 : index
    %146 = vector.load %arg10[%c8_136, %c0_137, %c0_138] : memref<9x16x16xbf16, #tpu.memory_space<vmem>>, vector<1x16x16xbf16>
    %147 = vector.shape_cast %146 : vector<1x16x16xbf16> to vector<16x16xbf16>
    %148 = arith.truncf %145 : vector<16x256xf32> to vector<16x256xbf16>
    %cst_139 = arith.constant dense<0.000000e+00> : vector<16x256xf32>
    %149 = tpu.matmul %147, %148, %cst_139 {dimension_numbers = #tpu.dot_dimension_numbers<[1], [0], [0], [1], [0, 0, 1, 1], [], []>} : vector<16x16xbf16>, vector<16x256xbf16>, vector<16x256xf32> -> vector<16x256xf32>
    %150 = arith.addf %142, %149 : vector<16x256xf32>
    %c0_140 = arith.constant 0 : index
    %c0_141 = arith.constant 0 : index
    %151 = vector.load %arg9[%c0_140, %c0_141] : memref<16x1xf32, #tpu.memory_space<vmem>>, vector<16x1xf32>
    %152 = vector.broadcast %151 : vector<16x1xf32> to vector<16x256xf32>
    %153 = arith.addf %150, %152 : vector<16x256xf32>
    %cst_142 = arith.constant 0.000000e+00 : f32
    %154 = vector.broadcast %cst_142 : f32 to vector<16x256xf32>
    %155 = arith.maximumf %153, %154 : vector<16x256xf32>
    %156 = arith.truncf %155 : vector<16x256xf32> to vector<16x256xbf16>
    %c0_143 = arith.constant 0 : index
    %c0_144 = arith.constant 0 : index
    %c0_145 = arith.constant 0 : index
    %157 = vector.load %arg2[%c0_143, %c0_144, %c0_145] : memref<9x256x256xbf16, #tpu.memory_space<vmem>>, vector<1x256x256xbf16>
    %158 = vector.shape_cast %157 : vector<1x256x256xbf16> to vector<256x256xbf16>
    %cst_146 = arith.constant dense<0.000000e+00> : vector<16x256xf32>
    %159 = tpu.matmul %156, %158, %cst_146 {dimension_numbers = #tpu.dot_dimension_numbers<[1], [0], [0], [1], [0, 0, 1, 1], [], []>} : vector<16x256xbf16>, vector<256x256xbf16>, vector<16x256xf32> -> vector<16x256xf32>
    %c0_147 = arith.constant 0 : index
    %c0_148 = arith.constant 0 : index
    %c0_149 = arith.constant 0 : index
    %160 = vector.load %arg12[%c0_147, %c0_148, %c0_149] : memref<9x16x16xbf16, #tpu.memory_space<vmem>>, vector<1x16x16xbf16>
    %161 = vector.shape_cast %160 : vector<1x16x16xbf16> to vector<16x16xbf16>
    %162 = arith.truncf %159 : vector<16x256xf32> to vector<16x256xbf16>
    %cst_150 = arith.constant dense<0.000000e+00> : vector<16x256xf32>
    %163 = tpu.matmul %161, %162, %cst_150 {dimension_numbers = #tpu.dot_dimension_numbers<[1], [0], [0], [1], [0, 0, 1, 1], [], []>} : vector<16x16xbf16>, vector<16x256xbf16>, vector<16x256xf32> -> vector<16x256xf32>
    %c1_151 = arith.constant 1 : index
    %c0_152 = arith.constant 0 : index
    %c0_153 = arith.constant 0 : index
    %164 = vector.load %arg2[%c1_151, %c0_152, %c0_153] : memref<9x256x256xbf16, #tpu.memory_space<vmem>>, vector<1x256x256xbf16>
    %165 = vector.shape_cast %164 : vector<1x256x256xbf16> to vector<256x256xbf16>
    %cst_154 = arith.constant dense<0.000000e+00> : vector<16x256xf32>
    %166 = tpu.matmul %156, %165, %cst_154 {dimension_numbers = #tpu.dot_dimension_numbers<[1], [0], [0], [1], [0, 0, 1, 1], [], []>} : vector<16x256xbf16>, vector<256x256xbf16>, vector<16x256xf32> -> vector<16x256xf32>
    %c1_155 = arith.constant 1 : index
    %c0_156 = arith.constant 0 : index
    %c0_157 = arith.constant 0 : index
    %167 = vector.load %arg12[%c1_155, %c0_156, %c0_157] : memref<9x16x16xbf16, #tpu.memory_space<vmem>>, vector<1x16x16xbf16>
    %168 = vector.shape_cast %167 : vector<1x16x16xbf16> to vector<16x16xbf16>
    %169 = arith.truncf %166 : vector<16x256xf32> to vector<16x256xbf16>
    %cst_158 = arith.constant dense<0.000000e+00> : vector<16x256xf32>
    %170 = tpu.matmul %168, %169, %cst_158 {dimension_numbers = #tpu.dot_dimension_numbers<[1], [0], [0], [1], [0, 0, 1, 1], [], []>} : vector<16x16xbf16>, vector<16x256xbf16>, vector<16x256xf32> -> vector<16x256xf32>
    %171 = arith.addf %163, %170 : vector<16x256xf32>
    %c2_159 = arith.constant 2 : index
    %c0_160 = arith.constant 0 : index
    %c0_161 = arith.constant 0 : index
    %172 = vector.load %arg2[%c2_159, %c0_160, %c0_161] : memref<9x256x256xbf16, #tpu.memory_space<vmem>>, vector<1x256x256xbf16>
    %173 = vector.shape_cast %172 : vector<1x256x256xbf16> to vector<256x256xbf16>
    %cst_162 = arith.constant dense<0.000000e+00> : vector<16x256xf32>
    %174 = tpu.matmul %156, %173, %cst_162 {dimension_numbers = #tpu.dot_dimension_numbers<[1], [0], [0], [1], [0, 0, 1, 1], [], []>} : vector<16x256xbf16>, vector<256x256xbf16>, vector<16x256xf32> -> vector<16x256xf32>
    %c2_163 = arith.constant 2 : index
    %c0_164 = arith.constant 0 : index
    %c0_165 = arith.constant 0 : index
    %175 = vector.load %arg12[%c2_163, %c0_164, %c0_165] : memref<9x16x16xbf16, #tpu.memory_space<vmem>>, vector<1x16x16xbf16>
    %176 = vector.shape_cast %175 : vector<1x16x16xbf16> to vector<16x16xbf16>
    %177 = arith.truncf %174 : vector<16x256xf32> to vector<16x256xbf16>
    %cst_166 = arith.constant dense<0.000000e+00> : vector<16x256xf32>
    %178 = tpu.matmul %176, %177, %cst_166 {dimension_numbers = #tpu.dot_dimension_numbers<[1], [0], [0], [1], [0, 0, 1, 1], [], []>} : vector<16x16xbf16>, vector<16x256xbf16>, vector<16x256xf32> -> vector<16x256xf32>
    %179 = arith.addf %171, %178 : vector<16x256xf32>
    %c3_167 = arith.constant 3 : index
    %c0_168 = arith.constant 0 : index
    %c0_169 = arith.constant 0 : index
    %180 = vector.load %arg2[%c3_167, %c0_168, %c0_169] : memref<9x256x256xbf16, #tpu.memory_space<vmem>>, vector<1x256x256xbf16>
    %181 = vector.shape_cast %180 : vector<1x256x256xbf16> to vector<256x256xbf16>
    %cst_170 = arith.constant dense<0.000000e+00> : vector<16x256xf32>
    %182 = tpu.matmul %156, %181, %cst_170 {dimension_numbers = #tpu.dot_dimension_numbers<[1], [0], [0], [1], [0, 0, 1, 1], [], []>} : vector<16x256xbf16>, vector<256x256xbf16>, vector<16x256xf32> -> vector<16x256xf32>
    %c3_171 = arith.constant 3 : index
    %c0_172 = arith.constant 0 : index
    %c0_173 = arith.constant 0 : index
    %183 = vector.load %arg12[%c3_171, %c0_172, %c0_173] : memref<9x16x16xbf16, #tpu.memory_space<vmem>>, vector<1x16x16xbf16>
    %184 = vector.shape_cast %183 : vector<1x16x16xbf16> to vector<16x16xbf16>
    %185 = arith.truncf %182 : vector<16x256xf32> to vector<16x256xbf16>
    %cst_174 = arith.constant dense<0.000000e+00> : vector<16x256xf32>
    %186 = tpu.matmul %184, %185, %cst_174 {dimension_numbers = #tpu.dot_dimension_numbers<[1], [0], [0], [1], [0, 0, 1, 1], [], []>} : vector<16x16xbf16>, vector<16x256xbf16>, vector<16x256xf32> -> vector<16x256xf32>
    %187 = arith.addf %179, %186 : vector<16x256xf32>
    %c4_175 = arith.constant 4 : index
    %c0_176 = arith.constant 0 : index
    %c0_177 = arith.constant 0 : index
    %188 = vector.load %arg2[%c4_175, %c0_176, %c0_177] : memref<9x256x256xbf16, #tpu.memory_space<vmem>>, vector<1x256x256xbf16>
    %189 = vector.shape_cast %188 : vector<1x256x256xbf16> to vector<256x256xbf16>
    %cst_178 = arith.constant dense<0.000000e+00> : vector<16x256xf32>
    %190 = tpu.matmul %156, %189, %cst_178 {dimension_numbers = #tpu.dot_dimension_numbers<[1], [0], [0], [1], [0, 0, 1, 1], [], []>} : vector<16x256xbf16>, vector<256x256xbf16>, vector<16x256xf32> -> vector<16x256xf32>
    %c4_179 = arith.constant 4 : index
    %c0_180 = arith.constant 0 : index
    %c0_181 = arith.constant 0 : index
    %191 = vector.load %arg12[%c4_179, %c0_180, %c0_181] : memref<9x16x16xbf16, #tpu.memory_space<vmem>>, vector<1x16x16xbf16>
    %192 = vector.shape_cast %191 : vector<1x16x16xbf16> to vector<16x16xbf16>
    %193 = arith.truncf %190 : vector<16x256xf32> to vector<16x256xbf16>
    %cst_182 = arith.constant dense<0.000000e+00> : vector<16x256xf32>
    %194 = tpu.matmul %192, %193, %cst_182 {dimension_numbers = #tpu.dot_dimension_numbers<[1], [0], [0], [1], [0, 0, 1, 1], [], []>} : vector<16x16xbf16>, vector<16x256xbf16>, vector<16x256xf32> -> vector<16x256xf32>
    %195 = arith.addf %187, %194 : vector<16x256xf32>
    %c5_183 = arith.constant 5 : index
    %c0_184 = arith.constant 0 : index
    %c0_185 = arith.constant 0 : index
    %196 = vector.load %arg2[%c5_183, %c0_184, %c0_185] : memref<9x256x256xbf16, #tpu.memory_space<vmem>>, vector<1x256x256xbf16>
    %197 = vector.shape_cast %196 : vector<1x256x256xbf16> to vector<256x256xbf16>
    %cst_186 = arith.constant dense<0.000000e+00> : vector<16x256xf32>
    %198 = tpu.matmul %156, %197, %cst_186 {dimension_numbers = #tpu.dot_dimension_numbers<[1], [0], [0], [1], [0, 0, 1, 1], [], []>} : vector<16x256xbf16>, vector<256x256xbf16>, vector<16x256xf32> -> vector<16x256xf32>
    %c5_187 = arith.constant 5 : index
    %c0_188 = arith.constant 0 : index
    %c0_189 = arith.constant 0 : index
    %199 = vector.load %arg12[%c5_187, %c0_188, %c0_189] : memref<9x16x16xbf16, #tpu.memory_space<vmem>>, vector<1x16x16xbf16>
    %200 = vector.shape_cast %199 : vector<1x16x16xbf16> to vector<16x16xbf16>
    %201 = arith.truncf %198 : vector<16x256xf32> to vector<16x256xbf16>
    %cst_190 = arith.constant dense<0.000000e+00> : vector<16x256xf32>
    %202 = tpu.matmul %200, %201, %cst_190 {dimension_numbers = #tpu.dot_dimension_numbers<[1], [0], [0], [1], [0, 0, 1, 1], [], []>} : vector<16x16xbf16>, vector<16x256xbf16>, vector<16x256xf32> -> vector<16x256xf32>
    %203 = arith.addf %195, %202 : vector<16x256xf32>
    %c6_191 = arith.constant 6 : index
    %c0_192 = arith.constant 0 : index
    %c0_193 = arith.constant 0 : index
    %204 = vector.load %arg2[%c6_191, %c0_192, %c0_193] : memref<9x256x256xbf16, #tpu.memory_space<vmem>>, vector<1x256x256xbf16>
    %205 = vector.shape_cast %204 : vector<1x256x256xbf16> to vector<256x256xbf16>
    %cst_194 = arith.constant dense<0.000000e+00> : vector<16x256xf32>
    %206 = tpu.matmul %156, %205, %cst_194 {dimension_numbers = #tpu.dot_dimension_numbers<[1], [0], [0], [1], [0, 0, 1, 1], [], []>} : vector<16x256xbf16>, vector<256x256xbf16>, vector<16x256xf32> -> vector<16x256xf32>
    %c6_195 = arith.constant 6 : index
    %c0_196 = arith.constant 0 : index
    %c0_197 = arith.constant 0 : index
    %207 = vector.load %arg12[%c6_195, %c0_196, %c0_197] : memref<9x16x16xbf16, #tpu.memory_space<vmem>>, vector<1x16x16xbf16>
    %208 = vector.shape_cast %207 : vector<1x16x16xbf16> to vector<16x16xbf16>
    %209 = arith.truncf %206 : vector<16x256xf32> to vector<16x256xbf16>
    %cst_198 = arith.constant dense<0.000000e+00> : vector<16x256xf32>
    %210 = tpu.matmul %208, %209, %cst_198 {dimension_numbers = #tpu.dot_dimension_numbers<[1], [0], [0], [1], [0, 0, 1, 1], [], []>} : vector<16x16xbf16>, vector<16x256xbf16>, vector<16x256xf32> -> vector<16x256xf32>
    %211 = arith.addf %203, %210 : vector<16x256xf32>
    %c7_199 = arith.constant 7 : index
    %c0_200 = arith.constant 0 : index
    %c0_201 = arith.constant 0 : index
    %212 = vector.load %arg2[%c7_199, %c0_200, %c0_201] : memref<9x256x256xbf16, #tpu.memory_space<vmem>>, vector<1x256x256xbf16>
    %213 = vector.shape_cast %212 : vector<1x256x256xbf16> to vector<256x256xbf16>
    %cst_202 = arith.constant dense<0.000000e+00> : vector<16x256xf32>
    %214 = tpu.matmul %156, %213, %cst_202 {dimension_numbers = #tpu.dot_dimension_numbers<[1], [0], [0], [1], [0, 0, 1, 1], [], []>} : vector<16x256xbf16>, vector<256x256xbf16>, vector<16x256xf32> -> vector<16x256xf32>
    %c7_203 = arith.constant 7 : index
    %c0_204 = arith.constant 0 : index
    %c0_205 = arith.constant 0 : index
    %215 = vector.load %arg12[%c7_203, %c0_204, %c0_205] : memref<9x16x16xbf16, #tpu.memory_space<vmem>>, vector<1x16x16xbf16>
    %216 = vector.shape_cast %215 : vector<1x16x16xbf16> to vector<16x16xbf16>
    %217 = arith.truncf %214 : vector<16x256xf32> to vector<16x256xbf16>
    %cst_206 = arith.constant dense<0.000000e+00> : vector<16x256xf32>
    %218 = tpu.matmul %216, %217, %cst_206 {dimension_numbers = #tpu.dot_dimension_numbers<[1], [0], [0], [1], [0, 0, 1, 1], [], []>} : vector<16x16xbf16>, vector<16x256xbf16>, vector<16x256xf32> -> vector<16x256xf32>
    %219 = arith.addf %211, %218 : vector<16x256xf32>
    %c8_207 = arith.constant 8 : index
    %c0_208 = arith.constant 0 : index
    %c0_209 = arith.constant 0 : index
    %220 = vector.load %arg2[%c8_207, %c0_208, %c0_209] : memref<9x256x256xbf16, #tpu.memory_space<vmem>>, vector<1x256x256xbf16>
    %221 = vector.shape_cast %220 : vector<1x256x256xbf16> to vector<256x256xbf16>
    %cst_210 = arith.constant dense<0.000000e+00> : vector<16x256xf32>
    %222 = tpu.matmul %156, %221, %cst_210 {dimension_numbers = #tpu.dot_dimension_numbers<[1], [0], [0], [1], [0, 0, 1, 1], [], []>} : vector<16x256xbf16>, vector<256x256xbf16>, vector<16x256xf32> -> vector<16x256xf32>
    %c8_211 = arith.constant 8 : index
    %c0_212 = arith.constant 0 : index
    %c0_213 = arith.constant 0 : index
    %223 = vector.load %arg12[%c8_211, %c0_212, %c0_213] : memref<9x16x16xbf16, #tpu.memory_space<vmem>>, vector<1x16x16xbf16>
    %224 = vector.shape_cast %223 : vector<1x16x16xbf16> to vector<16x16xbf16>
    %225 = arith.truncf %222 : vector<16x256xf32> to vector<16x256xbf16>
    %cst_214 = arith.constant dense<0.000000e+00> : vector<16x256xf32>
    %226 = tpu.matmul %224, %225, %cst_214 {dimension_numbers = #tpu.dot_dimension_numbers<[1], [0], [0], [1], [0, 0, 1, 1], [], []>} : vector<16x16xbf16>, vector<16x256xbf16>, vector<16x256xf32> -> vector<16x256xf32>
    %227 = arith.addf %219, %226 : vector<16x256xf32>
    %c0_215 = arith.constant 0 : index
    %c0_216 = arith.constant 0 : index
    %228 = vector.load %arg11[%c0_215, %c0_216] : memref<16x1xf32, #tpu.memory_space<vmem>>, vector<16x1xf32>
    %229 = vector.broadcast %228 : vector<16x1xf32> to vector<16x256xf32>
    %230 = arith.addf %227, %229 : vector<16x256xf32>
    %231 = arith.addf %230, %78 : vector<16x256xf32>
    %cst_217 = arith.constant 0.000000e+00 : f32
    %232 = vector.broadcast %cst_217 : f32 to vector<16x256xf32>
    %233 = arith.maximumf %231, %232 : vector<16x256xf32>
    %234 = arith.truncf %233 : vector<16x256xf32> to vector<16x256xbf16>
    %c0_218 = arith.constant 0 : index
    %c0_219 = arith.constant 0 : index
    %c0_220 = arith.constant 0 : index
    %235 = vector.load %arg3[%c0_218, %c0_219, %c0_220] : memref<9x256x64xbf16, #tpu.memory_space<vmem>>, vector<1x256x64xbf16>
    %236 = vector.shape_cast %235 : vector<1x256x64xbf16> to vector<256x64xbf16>
    %cst_221 = arith.constant dense<0.000000e+00> : vector<16x64xf32>
    %237 = tpu.matmul %234, %236, %cst_221 {dimension_numbers = #tpu.dot_dimension_numbers<[1], [0], [0], [1], [0, 0, 1, 1], [], []>} : vector<16x256xbf16>, vector<256x64xbf16>, vector<16x64xf32> -> vector<16x64xf32>
    %c0_222 = arith.constant 0 : index
    %c0_223 = arith.constant 0 : index
    %c0_224 = arith.constant 0 : index
    %238 = vector.load %arg14[%c0_222, %c0_223, %c0_224] : memref<9x16x16xbf16, #tpu.memory_space<vmem>>, vector<1x16x16xbf16>
    %239 = vector.shape_cast %238 : vector<1x16x16xbf16> to vector<16x16xbf16>
    %240 = arith.truncf %237 : vector<16x64xf32> to vector<16x64xbf16>
    %cst_225 = arith.constant dense<0.000000e+00> : vector<16x64xf32>
    %241 = tpu.matmul %239, %240, %cst_225 {dimension_numbers = #tpu.dot_dimension_numbers<[1], [0], [0], [1], [0, 0, 1, 1], [], []>} : vector<16x16xbf16>, vector<16x64xbf16>, vector<16x64xf32> -> vector<16x64xf32>
    %c1_226 = arith.constant 1 : index
    %c0_227 = arith.constant 0 : index
    %c0_228 = arith.constant 0 : index
    %242 = vector.load %arg3[%c1_226, %c0_227, %c0_228] : memref<9x256x64xbf16, #tpu.memory_space<vmem>>, vector<1x256x64xbf16>
    %243 = vector.shape_cast %242 : vector<1x256x64xbf16> to vector<256x64xbf16>
    %cst_229 = arith.constant dense<0.000000e+00> : vector<16x64xf32>
    %244 = tpu.matmul %234, %243, %cst_229 {dimension_numbers = #tpu.dot_dimension_numbers<[1], [0], [0], [1], [0, 0, 1, 1], [], []>} : vector<16x256xbf16>, vector<256x64xbf16>, vector<16x64xf32> -> vector<16x64xf32>
    %c1_230 = arith.constant 1 : index
    %c0_231 = arith.constant 0 : index
    %c0_232 = arith.constant 0 : index
    %245 = vector.load %arg14[%c1_230, %c0_231, %c0_232] : memref<9x16x16xbf16, #tpu.memory_space<vmem>>, vector<1x16x16xbf16>
    %246 = vector.shape_cast %245 : vector<1x16x16xbf16> to vector<16x16xbf16>
    %247 = arith.truncf %244 : vector<16x64xf32> to vector<16x64xbf16>
    %cst_233 = arith.constant dense<0.000000e+00> : vector<16x64xf32>
    %248 = tpu.matmul %246, %247, %cst_233 {dimension_numbers = #tpu.dot_dimension_numbers<[1], [0], [0], [1], [0, 0, 1, 1], [], []>} : vector<16x16xbf16>, vector<16x64xbf16>, vector<16x64xf32> -> vector<16x64xf32>
    %249 = arith.addf %241, %248 : vector<16x64xf32>
    %c2_234 = arith.constant 2 : index
    %c0_235 = arith.constant 0 : index
    %c0_236 = arith.constant 0 : index
    %250 = vector.load %arg3[%c2_234, %c0_235, %c0_236] : memref<9x256x64xbf16, #tpu.memory_space<vmem>>, vector<1x256x64xbf16>
    %251 = vector.shape_cast %250 : vector<1x256x64xbf16> to vector<256x64xbf16>
    %cst_237 = arith.constant dense<0.000000e+00> : vector<16x64xf32>
    %252 = tpu.matmul %234, %251, %cst_237 {dimension_numbers = #tpu.dot_dimension_numbers<[1], [0], [0], [1], [0, 0, 1, 1], [], []>} : vector<16x256xbf16>, vector<256x64xbf16>, vector<16x64xf32> -> vector<16x64xf32>
    %c2_238 = arith.constant 2 : index
    %c0_239 = arith.constant 0 : index
    %c0_240 = arith.constant 0 : index
    %253 = vector.load %arg14[%c2_238, %c0_239, %c0_240] : memref<9x16x16xbf16, #tpu.memory_space<vmem>>, vector<1x16x16xbf16>
    %254 = vector.shape_cast %253 : vector<1x16x16xbf16> to vector<16x16xbf16>
    %255 = arith.truncf %252 : vector<16x64xf32> to vector<16x64xbf16>
    %cst_241 = arith.constant dense<0.000000e+00> : vector<16x64xf32>
    %256 = tpu.matmul %254, %255, %cst_241 {dimension_numbers = #tpu.dot_dimension_numbers<[1], [0], [0], [1], [0, 0, 1, 1], [], []>} : vector<16x16xbf16>, vector<16x64xbf16>, vector<16x64xf32> -> vector<16x64xf32>
    %257 = arith.addf %249, %256 : vector<16x64xf32>
    %c3_242 = arith.constant 3 : index
    %c0_243 = arith.constant 0 : index
    %c0_244 = arith.constant 0 : index
    %258 = vector.load %arg3[%c3_242, %c0_243, %c0_244] : memref<9x256x64xbf16, #tpu.memory_space<vmem>>, vector<1x256x64xbf16>
    %259 = vector.shape_cast %258 : vector<1x256x64xbf16> to vector<256x64xbf16>
    %cst_245 = arith.constant dense<0.000000e+00> : vector<16x64xf32>
    %260 = tpu.matmul %234, %259, %cst_245 {dimension_numbers = #tpu.dot_dimension_numbers<[1], [0], [0], [1], [0, 0, 1, 1], [], []>} : vector<16x256xbf16>, vector<256x64xbf16>, vector<16x64xf32> -> vector<16x64xf32>
    %c3_246 = arith.constant 3 : index
    %c0_247 = arith.constant 0 : index
    %c0_248 = arith.constant 0 : index
    %261 = vector.load %arg14[%c3_246, %c0_247, %c0_248] : memref<9x16x16xbf16, #tpu.memory_space<vmem>>, vector<1x16x16xbf16>
    %262 = vector.shape_cast %261 : vector<1x16x16xbf16> to vector<16x16xbf16>
    %263 = arith.truncf %260 : vector<16x64xf32> to vector<16x64xbf16>
    %cst_249 = arith.constant dense<0.000000e+00> : vector<16x64xf32>
    %264 = tpu.matmul %262, %263, %cst_249 {dimension_numbers = #tpu.dot_dimension_numbers<[1], [0], [0], [1], [0, 0, 1, 1], [], []>} : vector<16x16xbf16>, vector<16x64xbf16>, vector<16x64xf32> -> vector<16x64xf32>
    %265 = arith.addf %257, %264 : vector<16x64xf32>
    %c4_250 = arith.constant 4 : index
    %c0_251 = arith.constant 0 : index
    %c0_252 = arith.constant 0 : index
    %266 = vector.load %arg3[%c4_250, %c0_251, %c0_252] : memref<9x256x64xbf16, #tpu.memory_space<vmem>>, vector<1x256x64xbf16>
    %267 = vector.shape_cast %266 : vector<1x256x64xbf16> to vector<256x64xbf16>
    %cst_253 = arith.constant dense<0.000000e+00> : vector<16x64xf32>
    %268 = tpu.matmul %234, %267, %cst_253 {dimension_numbers = #tpu.dot_dimension_numbers<[1], [0], [0], [1], [0, 0, 1, 1], [], []>} : vector<16x256xbf16>, vector<256x64xbf16>, vector<16x64xf32> -> vector<16x64xf32>
    %c4_254 = arith.constant 4 : index
    %c0_255 = arith.constant 0 : index
    %c0_256 = arith.constant 0 : index
    %269 = vector.load %arg14[%c4_254, %c0_255, %c0_256] : memref<9x16x16xbf16, #tpu.memory_space<vmem>>, vector<1x16x16xbf16>
    %270 = vector.shape_cast %269 : vector<1x16x16xbf16> to vector<16x16xbf16>
    %271 = arith.truncf %268 : vector<16x64xf32> to vector<16x64xbf16>
    %cst_257 = arith.constant dense<0.000000e+00> : vector<16x64xf32>
    %272 = tpu.matmul %270, %271, %cst_257 {dimension_numbers = #tpu.dot_dimension_numbers<[1], [0], [0], [1], [0, 0, 1, 1], [], []>} : vector<16x16xbf16>, vector<16x64xbf16>, vector<16x64xf32> -> vector<16x64xf32>
    %273 = arith.addf %265, %272 : vector<16x64xf32>
    %c5_258 = arith.constant 5 : index
    %c0_259 = arith.constant 0 : index
    %c0_260 = arith.constant 0 : index
    %274 = vector.load %arg3[%c5_258, %c0_259, %c0_260] : memref<9x256x64xbf16, #tpu.memory_space<vmem>>, vector<1x256x64xbf16>
    %275 = vector.shape_cast %274 : vector<1x256x64xbf16> to vector<256x64xbf16>
    %cst_261 = arith.constant dense<0.000000e+00> : vector<16x64xf32>
    %276 = tpu.matmul %234, %275, %cst_261 {dimension_numbers = #tpu.dot_dimension_numbers<[1], [0], [0], [1], [0, 0, 1, 1], [], []>} : vector<16x256xbf16>, vector<256x64xbf16>, vector<16x64xf32> -> vector<16x64xf32>
    %c5_262 = arith.constant 5 : index
    %c0_263 = arith.constant 0 : index
    %c0_264 = arith.constant 0 : index
    %277 = vector.load %arg14[%c5_262, %c0_263, %c0_264] : memref<9x16x16xbf16, #tpu.memory_space<vmem>>, vector<1x16x16xbf16>
    %278 = vector.shape_cast %277 : vector<1x16x16xbf16> to vector<16x16xbf16>
    %279 = arith.truncf %276 : vector<16x64xf32> to vector<16x64xbf16>
    %cst_265 = arith.constant dense<0.000000e+00> : vector<16x64xf32>
    %280 = tpu.matmul %278, %279, %cst_265 {dimension_numbers = #tpu.dot_dimension_numbers<[1], [0], [0], [1], [0, 0, 1, 1], [], []>} : vector<16x16xbf16>, vector<16x64xbf16>, vector<16x64xf32> -> vector<16x64xf32>
    %281 = arith.addf %273, %280 : vector<16x64xf32>
    %c6_266 = arith.constant 6 : index
    %c0_267 = arith.constant 0 : index
    %c0_268 = arith.constant 0 : index
    %282 = vector.load %arg3[%c6_266, %c0_267, %c0_268] : memref<9x256x64xbf16, #tpu.memory_space<vmem>>, vector<1x256x64xbf16>
    %283 = vector.shape_cast %282 : vector<1x256x64xbf16> to vector<256x64xbf16>
    %cst_269 = arith.constant dense<0.000000e+00> : vector<16x64xf32>
    %284 = tpu.matmul %234, %283, %cst_269 {dimension_numbers = #tpu.dot_dimension_numbers<[1], [0], [0], [1], [0, 0, 1, 1], [], []>} : vector<16x256xbf16>, vector<256x64xbf16>, vector<16x64xf32> -> vector<16x64xf32>
    %c6_270 = arith.constant 6 : index
    %c0_271 = arith.constant 0 : index
    %c0_272 = arith.constant 0 : index
    %285 = vector.load %arg14[%c6_270, %c0_271, %c0_272] : memref<9x16x16xbf16, #tpu.memory_space<vmem>>, vector<1x16x16xbf16>
    %286 = vector.shape_cast %285 : vector<1x16x16xbf16> to vector<16x16xbf16>
    %287 = arith.truncf %284 : vector<16x64xf32> to vector<16x64xbf16>
    %cst_273 = arith.constant dense<0.000000e+00> : vector<16x64xf32>
    %288 = tpu.matmul %286, %287, %cst_273 {dimension_numbers = #tpu.dot_dimension_numbers<[1], [0], [0], [1], [0, 0, 1, 1], [], []>} : vector<16x16xbf16>, vector<16x64xbf16>, vector<16x64xf32> -> vector<16x64xf32>
    %289 = arith.addf %281, %288 : vector<16x64xf32>
    %c7_274 = arith.constant 7 : index
    %c0_275 = arith.constant 0 : index
    %c0_276 = arith.constant 0 : index
    %290 = vector.load %arg3[%c7_274, %c0_275, %c0_276] : memref<9x256x64xbf16, #tpu.memory_space<vmem>>, vector<1x256x64xbf16>
    %291 = vector.shape_cast %290 : vector<1x256x64xbf16> to vector<256x64xbf16>
    %cst_277 = arith.constant dense<0.000000e+00> : vector<16x64xf32>
    %292 = tpu.matmul %234, %291, %cst_277 {dimension_numbers = #tpu.dot_dimension_numbers<[1], [0], [0], [1], [0, 0, 1, 1], [], []>} : vector<16x256xbf16>, vector<256x64xbf16>, vector<16x64xf32> -> vector<16x64xf32>
    %c7_278 = arith.constant 7 : index
    %c0_279 = arith.constant 0 : index
    %c0_280 = arith.constant 0 : index
    %293 = vector.load %arg14[%c7_278, %c0_279, %c0_280] : memref<9x16x16xbf16, #tpu.memory_space<vmem>>, vector<1x16x16xbf16>
    %294 = vector.shape_cast %293 : vector<1x16x16xbf16> to vector<16x16xbf16>
    %295 = arith.truncf %292 : vector<16x64xf32> to vector<16x64xbf16>
    %cst_281 = arith.constant dense<0.000000e+00> : vector<16x64xf32>
    %296 = tpu.matmul %294, %295, %cst_281 {dimension_numbers = #tpu.dot_dimension_numbers<[1], [0], [0], [1], [0, 0, 1, 1], [], []>} : vector<16x16xbf16>, vector<16x64xbf16>, vector<16x64xf32> -> vector<16x64xf32>
    %297 = arith.addf %289, %296 : vector<16x64xf32>
    %c8_282 = arith.constant 8 : index
    %c0_283 = arith.constant 0 : index
    %c0_284 = arith.constant 0 : index
    %298 = vector.load %arg3[%c8_282, %c0_283, %c0_284] : memref<9x256x64xbf16, #tpu.memory_space<vmem>>, vector<1x256x64xbf16>
    %299 = vector.shape_cast %298 : vector<1x256x64xbf16> to vector<256x64xbf16>
    %cst_285 = arith.constant dense<0.000000e+00> : vector<16x64xf32>
    %300 = tpu.matmul %234, %299, %cst_285 {dimension_numbers = #tpu.dot_dimension_numbers<[1], [0], [0], [1], [0, 0, 1, 1], [], []>} : vector<16x256xbf16>, vector<256x64xbf16>, vector<16x64xf32> -> vector<16x64xf32>
    %c8_286 = arith.constant 8 : index
    %c0_287 = arith.constant 0 : index
    %c0_288 = arith.constant 0 : index
    %301 = vector.load %arg14[%c8_286, %c0_287, %c0_288] : memref<9x16x16xbf16, #tpu.memory_space<vmem>>, vector<1x16x16xbf16>
    %302 = vector.shape_cast %301 : vector<1x16x16xbf16> to vector<16x16xbf16>
    %303 = arith.truncf %300 : vector<16x64xf32> to vector<16x64xbf16>
    %cst_289 = arith.constant dense<0.000000e+00> : vector<16x64xf32>
    %304 = tpu.matmul %302, %303, %cst_289 {dimension_numbers = #tpu.dot_dimension_numbers<[1], [0], [0], [1], [0, 0, 1, 1], [], []>} : vector<16x16xbf16>, vector<16x64xbf16>, vector<16x64xf32> -> vector<16x64xf32>
    %305 = arith.addf %297, %304 : vector<16x64xf32>
    %c0_290 = arith.constant 0 : index
    %c0_291 = arith.constant 0 : index
    %306 = vector.load %arg13[%c0_290, %c0_291] : memref<16x1xf32, #tpu.memory_space<vmem>>, vector<16x1xf32>
    %307 = vector.broadcast %306 : vector<16x1xf32> to vector<16x64xf32>
    %308 = arith.addf %305, %307 : vector<16x64xf32>
    %cst_292 = arith.constant 0.000000e+00 : f32
    %309 = vector.broadcast %cst_292 : f32 to vector<16x64xf32>
    %310 = arith.maximumf %308, %309 : vector<16x64xf32>
    %311 = arith.truncf %233 : vector<16x256xf32> to vector<16x256xbf16>
    %c4_293 = arith.constant 4 : index
    %c0_294 = arith.constant 0 : index
    %c0_295 = arith.constant 0 : index
    %312 = vector.load %arg3[%c4_293, %c0_294, %c0_295] : memref<9x256x64xbf16, #tpu.memory_space<vmem>>, vector<1x256x64xbf16>
    %313 = vector.shape_cast %312 : vector<1x256x64xbf16> to vector<256x64xbf16>
    %cst_296 = arith.constant dense<0.000000e+00> : vector<16x64xf32>
    %314 = tpu.matmul %311, %313, %cst_296 {dimension_numbers = #tpu.dot_dimension_numbers<[1], [0], [0], [1], [0, 0, 1, 1], [], []>} : vector<16x256xbf16>, vector<256x64xbf16>, vector<16x64xf32> -> vector<16x64xf32>
    %315 = arith.truncf %314 : vector<16x64xf32> to vector<16x64xbf16>
    %c0_297 = arith.constant 0 : index
    %c0_298 = arith.constant 0 : index
    %316 = vector.load %arg18[%c0_297, %c0_298] : memref<16x16xbf16, #tpu.memory_space<vmem>>, vector<16x16xbf16>
    %cst_299 = arith.constant dense<0.000000e+00> : vector<16x64xf32>
    %317 = tpu.matmul %316, %315, %cst_299 {dimension_numbers = #tpu.dot_dimension_numbers<[1], [0], [0], [1], [0, 0, 1, 1], [], []>} : vector<16x16xbf16>, vector<16x64xbf16>, vector<16x64xf32> -> vector<16x64xf32>
    %c0_300 = arith.constant 0 : index
    %c0_301 = arith.constant 0 : index
    %318 = vector.load %arg17[%c0_300, %c0_301] : memref<16x1xf32, #tpu.memory_space<vmem>>, vector<16x1xf32>
    %319 = vector.broadcast %318 : vector<16x1xf32> to vector<16x64xf32>
    %320 = arith.addf %317, %319 : vector<16x64xf32>
    %321 = arith.truncf %310 : vector<16x64xf32> to vector<16x64xbf16>
    %c0_302 = arith.constant 0 : index
    %c0_303 = arith.constant 0 : index
    %c0_304 = arith.constant 0 : index
    %322 = vector.load %arg4[%c0_302, %c0_303, %c0_304] : memref<9x64x64xbf16, #tpu.memory_space<vmem>>, vector<1x64x64xbf16>
    %323 = vector.shape_cast %322 : vector<1x64x64xbf16> to vector<64x64xbf16>
    %cst_305 = arith.constant dense<0.000000e+00> : vector<16x64xf32>
    %324 = tpu.matmul %321, %323, %cst_305 {dimension_numbers = #tpu.dot_dimension_numbers<[1], [0], [0], [1], [0, 0, 1, 1], [], []>} : vector<16x64xbf16>, vector<64x64xbf16>, vector<16x64xf32> -> vector<16x64xf32>
    %c0_306 = arith.constant 0 : index
    %c0_307 = arith.constant 0 : index
    %c0_308 = arith.constant 0 : index
    %325 = vector.load %arg16[%c0_306, %c0_307, %c0_308] : memref<9x16x16xbf16, #tpu.memory_space<vmem>>, vector<1x16x16xbf16>
    %326 = vector.shape_cast %325 : vector<1x16x16xbf16> to vector<16x16xbf16>
    %327 = arith.truncf %324 : vector<16x64xf32> to vector<16x64xbf16>
    %cst_309 = arith.constant dense<0.000000e+00> : vector<16x64xf32>
    %328 = tpu.matmul %326, %327, %cst_309 {dimension_numbers = #tpu.dot_dimension_numbers<[1], [0], [0], [1], [0, 0, 1, 1], [], []>} : vector<16x16xbf16>, vector<16x64xbf16>, vector<16x64xf32> -> vector<16x64xf32>
    %c1_310 = arith.constant 1 : index
    %c0_311 = arith.constant 0 : index
    %c0_312 = arith.constant 0 : index
    %329 = vector.load %arg4[%c1_310, %c0_311, %c0_312] : memref<9x64x64xbf16, #tpu.memory_space<vmem>>, vector<1x64x64xbf16>
    %330 = vector.shape_cast %329 : vector<1x64x64xbf16> to vector<64x64xbf16>
    %cst_313 = arith.constant dense<0.000000e+00> : vector<16x64xf32>
    %331 = tpu.matmul %321, %330, %cst_313 {dimension_numbers = #tpu.dot_dimension_numbers<[1], [0], [0], [1], [0, 0, 1, 1], [], []>} : vector<16x64xbf16>, vector<64x64xbf16>, vector<16x64xf32> -> vector<16x64xf32>
    %c1_314 = arith.constant 1 : index
    %c0_315 = arith.constant 0 : index
    %c0_316 = arith.constant 0 : index
    %332 = vector.load %arg16[%c1_314, %c0_315, %c0_316] : memref<9x16x16xbf16, #tpu.memory_space<vmem>>, vector<1x16x16xbf16>
    %333 = vector.shape_cast %332 : vector<1x16x16xbf16> to vector<16x16xbf16>
    %334 = arith.truncf %331 : vector<16x64xf32> to vector<16x64xbf16>
    %cst_317 = arith.constant dense<0.000000e+00> : vector<16x64xf32>
    %335 = tpu.matmul %333, %334, %cst_317 {dimension_numbers = #tpu.dot_dimension_numbers<[1], [0], [0], [1], [0, 0, 1, 1], [], []>} : vector<16x16xbf16>, vector<16x64xbf16>, vector<16x64xf32> -> vector<16x64xf32>
    %336 = arith.addf %328, %335 : vector<16x64xf32>
    %c2_318 = arith.constant 2 : index
    %c0_319 = arith.constant 0 : index
    %c0_320 = arith.constant 0 : index
    %337 = vector.load %arg4[%c2_318, %c0_319, %c0_320] : memref<9x64x64xbf16, #tpu.memory_space<vmem>>, vector<1x64x64xbf16>
    %338 = vector.shape_cast %337 : vector<1x64x64xbf16> to vector<64x64xbf16>
    %cst_321 = arith.constant dense<0.000000e+00> : vector<16x64xf32>
    %339 = tpu.matmul %321, %338, %cst_321 {dimension_numbers = #tpu.dot_dimension_numbers<[1], [0], [0], [1], [0, 0, 1, 1], [], []>} : vector<16x64xbf16>, vector<64x64xbf16>, vector<16x64xf32> -> vector<16x64xf32>
    %c2_322 = arith.constant 2 : index
    %c0_323 = arith.constant 0 : index
    %c0_324 = arith.constant 0 : index
    %340 = vector.load %arg16[%c2_322, %c0_323, %c0_324] : memref<9x16x16xbf16, #tpu.memory_space<vmem>>, vector<1x16x16xbf16>
    %341 = vector.shape_cast %340 : vector<1x16x16xbf16> to vector<16x16xbf16>
    %342 = arith.truncf %339 : vector<16x64xf32> to vector<16x64xbf16>
    %cst_325 = arith.constant dense<0.000000e+00> : vector<16x64xf32>
    %343 = tpu.matmul %341, %342, %cst_325 {dimension_numbers = #tpu.dot_dimension_numbers<[1], [0], [0], [1], [0, 0, 1, 1], [], []>} : vector<16x16xbf16>, vector<16x64xbf16>, vector<16x64xf32> -> vector<16x64xf32>
    %344 = arith.addf %336, %343 : vector<16x64xf32>
    %c3_326 = arith.constant 3 : index
    %c0_327 = arith.constant 0 : index
    %c0_328 = arith.constant 0 : index
    %345 = vector.load %arg4[%c3_326, %c0_327, %c0_328] : memref<9x64x64xbf16, #tpu.memory_space<vmem>>, vector<1x64x64xbf16>
    %346 = vector.shape_cast %345 : vector<1x64x64xbf16> to vector<64x64xbf16>
    %cst_329 = arith.constant dense<0.000000e+00> : vector<16x64xf32>
    %347 = tpu.matmul %321, %346, %cst_329 {dimension_numbers = #tpu.dot_dimension_numbers<[1], [0], [0], [1], [0, 0, 1, 1], [], []>} : vector<16x64xbf16>, vector<64x64xbf16>, vector<16x64xf32> -> vector<16x64xf32>
    %c3_330 = arith.constant 3 : index
    %c0_331 = arith.constant 0 : index
    %c0_332 = arith.constant 0 : index
    %348 = vector.load %arg16[%c3_330, %c0_331, %c0_332] : memref<9x16x16xbf16, #tpu.memory_space<vmem>>, vector<1x16x16xbf16>
    %349 = vector.shape_cast %348 : vector<1x16x16xbf16> to vector<16x16xbf16>
    %350 = arith.truncf %347 : vector<16x64xf32> to vector<16x64xbf16>
    %cst_333 = arith.constant dense<0.000000e+00> : vector<16x64xf32>
    %351 = tpu.matmul %349, %350, %cst_333 {dimension_numbers = #tpu.dot_dimension_numbers<[1], [0], [0], [1], [0, 0, 1, 1], [], []>} : vector<16x16xbf16>, vector<16x64xbf16>, vector<16x64xf32> -> vector<16x64xf32>
    %352 = arith.addf %344, %351 : vector<16x64xf32>
    %c4_334 = arith.constant 4 : index
    %c0_335 = arith.constant 0 : index
    %c0_336 = arith.constant 0 : index
    %353 = vector.load %arg4[%c4_334, %c0_335, %c0_336] : memref<9x64x64xbf16, #tpu.memory_space<vmem>>, vector<1x64x64xbf16>
    %354 = vector.shape_cast %353 : vector<1x64x64xbf16> to vector<64x64xbf16>
    %cst_337 = arith.constant dense<0.000000e+00> : vector<16x64xf32>
    %355 = tpu.matmul %321, %354, %cst_337 {dimension_numbers = #tpu.dot_dimension_numbers<[1], [0], [0], [1], [0, 0, 1, 1], [], []>} : vector<16x64xbf16>, vector<64x64xbf16>, vector<16x64xf32> -> vector<16x64xf32>
    %c4_338 = arith.constant 4 : index
    %c0_339 = arith.constant 0 : index
    %c0_340 = arith.constant 0 : index
    %356 = vector.load %arg16[%c4_338, %c0_339, %c0_340] : memref<9x16x16xbf16, #tpu.memory_space<vmem>>, vector<1x16x16xbf16>
    %357 = vector.shape_cast %356 : vector<1x16x16xbf16> to vector<16x16xbf16>
    %358 = arith.truncf %355 : vector<16x64xf32> to vector<16x64xbf16>
    %cst_341 = arith.constant dense<0.000000e+00> : vector<16x64xf32>
    %359 = tpu.matmul %357, %358, %cst_341 {dimension_numbers = #tpu.dot_dimension_numbers<[1], [0], [0], [1], [0, 0, 1, 1], [], []>} : vector<16x16xbf16>, vector<16x64xbf16>, vector<16x64xf32> -> vector<16x64xf32>
    %360 = arith.addf %352, %359 : vector<16x64xf32>
    %c5_342 = arith.constant 5 : index
    %c0_343 = arith.constant 0 : index
    %c0_344 = arith.constant 0 : index
    %361 = vector.load %arg4[%c5_342, %c0_343, %c0_344] : memref<9x64x64xbf16, #tpu.memory_space<vmem>>, vector<1x64x64xbf16>
    %362 = vector.shape_cast %361 : vector<1x64x64xbf16> to vector<64x64xbf16>
    %cst_345 = arith.constant dense<0.000000e+00> : vector<16x64xf32>
    %363 = tpu.matmul %321, %362, %cst_345 {dimension_numbers = #tpu.dot_dimension_numbers<[1], [0], [0], [1], [0, 0, 1, 1], [], []>} : vector<16x64xbf16>, vector<64x64xbf16>, vector<16x64xf32> -> vector<16x64xf32>
    %c5_346 = arith.constant 5 : index
    %c0_347 = arith.constant 0 : index
    %c0_348 = arith.constant 0 : index
    %364 = vector.load %arg16[%c5_346, %c0_347, %c0_348] : memref<9x16x16xbf16, #tpu.memory_space<vmem>>, vector<1x16x16xbf16>
    %365 = vector.shape_cast %364 : vector<1x16x16xbf16> to vector<16x16xbf16>
    %366 = arith.truncf %363 : vector<16x64xf32> to vector<16x64xbf16>
    %cst_349 = arith.constant dense<0.000000e+00> : vector<16x64xf32>
    %367 = tpu.matmul %365, %366, %cst_349 {dimension_numbers = #tpu.dot_dimension_numbers<[1], [0], [0], [1], [0, 0, 1, 1], [], []>} : vector<16x16xbf16>, vector<16x64xbf16>, vector<16x64xf32> -> vector<16x64xf32>
    %368 = arith.addf %360, %367 : vector<16x64xf32>
    %c6_350 = arith.constant 6 : index
    %c0_351 = arith.constant 0 : index
    %c0_352 = arith.constant 0 : index
    %369 = vector.load %arg4[%c6_350, %c0_351, %c0_352] : memref<9x64x64xbf16, #tpu.memory_space<vmem>>, vector<1x64x64xbf16>
    %370 = vector.shape_cast %369 : vector<1x64x64xbf16> to vector<64x64xbf16>
    %cst_353 = arith.constant dense<0.000000e+00> : vector<16x64xf32>
    %371 = tpu.matmul %321, %370, %cst_353 {dimension_numbers = #tpu.dot_dimension_numbers<[1], [0], [0], [1], [0, 0, 1, 1], [], []>} : vector<16x64xbf16>, vector<64x64xbf16>, vector<16x64xf32> -> vector<16x64xf32>
    %c6_354 = arith.constant 6 : index
    %c0_355 = arith.constant 0 : index
    %c0_356 = arith.constant 0 : index
    %372 = vector.load %arg16[%c6_354, %c0_355, %c0_356] : memref<9x16x16xbf16, #tpu.memory_space<vmem>>, vector<1x16x16xbf16>
    %373 = vector.shape_cast %372 : vector<1x16x16xbf16> to vector<16x16xbf16>
    %374 = arith.truncf %371 : vector<16x64xf32> to vector<16x64xbf16>
    %cst_357 = arith.constant dense<0.000000e+00> : vector<16x64xf32>
    %375 = tpu.matmul %373, %374, %cst_357 {dimension_numbers = #tpu.dot_dimension_numbers<[1], [0], [0], [1], [0, 0, 1, 1], [], []>} : vector<16x16xbf16>, vector<16x64xbf16>, vector<16x64xf32> -> vector<16x64xf32>
    %376 = arith.addf %368, %375 : vector<16x64xf32>
    %c7_358 = arith.constant 7 : index
    %c0_359 = arith.constant 0 : index
    %c0_360 = arith.constant 0 : index
    %377 = vector.load %arg4[%c7_358, %c0_359, %c0_360] : memref<9x64x64xbf16, #tpu.memory_space<vmem>>, vector<1x64x64xbf16>
    %378 = vector.shape_cast %377 : vector<1x64x64xbf16> to vector<64x64xbf16>
    %cst_361 = arith.constant dense<0.000000e+00> : vector<16x64xf32>
    %379 = tpu.matmul %321, %378, %cst_361 {dimension_numbers = #tpu.dot_dimension_numbers<[1], [0], [0], [1], [0, 0, 1, 1], [], []>} : vector<16x64xbf16>, vector<64x64xbf16>, vector<16x64xf32> -> vector<16x64xf32>
    %c7_362 = arith.constant 7 : index
    %c0_363 = arith.constant 0 : index
    %c0_364 = arith.constant 0 : index
    %380 = vector.load %arg16[%c7_362, %c0_363, %c0_364] : memref<9x16x16xbf16, #tpu.memory_space<vmem>>, vector<1x16x16xbf16>
    %381 = vector.shape_cast %380 : vector<1x16x16xbf16> to vector<16x16xbf16>
    %382 = arith.truncf %379 : vector<16x64xf32> to vector<16x64xbf16>
    %cst_365 = arith.constant dense<0.000000e+00> : vector<16x64xf32>
    %383 = tpu.matmul %381, %382, %cst_365 {dimension_numbers = #tpu.dot_dimension_numbers<[1], [0], [0], [1], [0, 0, 1, 1], [], []>} : vector<16x16xbf16>, vector<16x64xbf16>, vector<16x64xf32> -> vector<16x64xf32>
    %384 = arith.addf %376, %383 : vector<16x64xf32>
    %c8_366 = arith.constant 8 : index
    %c0_367 = arith.constant 0 : index
    %c0_368 = arith.constant 0 : index
    %385 = vector.load %arg4[%c8_366, %c0_367, %c0_368] : memref<9x64x64xbf16, #tpu.memory_space<vmem>>, vector<1x64x64xbf16>
    %386 = vector.shape_cast %385 : vector<1x64x64xbf16> to vector<64x64xbf16>
    %cst_369 = arith.constant dense<0.000000e+00> : vector<16x64xf32>
    %387 = tpu.matmul %321, %386, %cst_369 {dimension_numbers = #tpu.dot_dimension_numbers<[1], [0], [0], [1], [0, 0, 1, 1], [], []>} : vector<16x64xbf16>, vector<64x64xbf16>, vector<16x64xf32> -> vector<16x64xf32>
    %c8_370 = arith.constant 8 : index
    %c0_371 = arith.constant 0 : index
    %c0_372 = arith.constant 0 : index
    %388 = vector.load %arg16[%c8_370, %c0_371, %c0_372] : memref<9x16x16xbf16, #tpu.memory_space<vmem>>, vector<1x16x16xbf16>
    %389 = vector.shape_cast %388 : vector<1x16x16xbf16> to vector<16x16xbf16>
    %390 = arith.truncf %387 : vector<16x64xf32> to vector<16x64xbf16>
    %cst_373 = arith.constant dense<0.000000e+00> : vector<16x64xf32>
    %391 = tpu.matmul %389, %390, %cst_373 {dimension_numbers = #tpu.dot_dimension_numbers<[1], [0], [0], [1], [0, 0, 1, 1], [], []>} : vector<16x16xbf16>, vector<16x64xbf16>, vector<16x64xf32> -> vector<16x64xf32>
    %392 = arith.addf %384, %391 : vector<16x64xf32>
    %c0_374 = arith.constant 0 : index
    %c0_375 = arith.constant 0 : index
    %393 = vector.load %arg15[%c0_374, %c0_375] : memref<16x1xf32, #tpu.memory_space<vmem>>, vector<16x1xf32>
    %394 = vector.broadcast %393 : vector<16x1xf32> to vector<16x64xf32>
    %395 = arith.addf %392, %394 : vector<16x64xf32>
    %396 = arith.addf %395, %320 : vector<16x64xf32>
    %cst_376 = arith.constant 0.000000e+00 : f32
    %397 = vector.broadcast %cst_376 : f32 to vector<16x64xf32>
    %398 = arith.maximumf %396, %397 : vector<16x64xf32>
    %399 = arith.truncf %398 : vector<16x64xf32> to vector<16x64xbf16>
    %c0_377 = arith.constant 0 : index
    %c0_378 = arith.constant 0 : index
    %c0_379 = arith.constant 0 : index
    %400 = vector.load %arg5[%c0_377, %c0_378, %c0_379] : memref<9x64x16xbf16, #tpu.memory_space<vmem>>, vector<1x64x16xbf16>
    %401 = vector.shape_cast %400 : vector<1x64x16xbf16> to vector<64x16xbf16>
    %cst_380 = arith.constant dense<0.000000e+00> : vector<16x16xf32>
    %402 = tpu.matmul %399, %401, %cst_380 {dimension_numbers = #tpu.dot_dimension_numbers<[1], [0], [0], [1], [0, 0, 1, 1], [], []>} : vector<16x64xbf16>, vector<64x16xbf16>, vector<16x16xf32> -> vector<16x16xf32>
    %c0_381 = arith.constant 0 : index
    %c0_382 = arith.constant 0 : index
    %c0_383 = arith.constant 0 : index
    %403 = vector.load %arg20[%c0_381, %c0_382, %c0_383] : memref<9x32x16xbf16, #tpu.memory_space<vmem>>, vector<1x32x16xbf16>
    %404 = vector.shape_cast %403 : vector<1x32x16xbf16> to vector<32x16xbf16>
    %405 = arith.truncf %402 : vector<16x16xf32> to vector<16x16xbf16>
    %cst_384 = arith.constant dense<0.000000e+00> : vector<32x16xf32>
    %406 = tpu.matmul %404, %405, %cst_384 {dimension_numbers = #tpu.dot_dimension_numbers<[1], [0], [0], [1], [0, 0, 1, 1], [], []>} : vector<32x16xbf16>, vector<16x16xbf16>, vector<32x16xf32> -> vector<32x16xf32>
    %c1_385 = arith.constant 1 : index
    %c0_386 = arith.constant 0 : index
    %c0_387 = arith.constant 0 : index
    %407 = vector.load %arg5[%c1_385, %c0_386, %c0_387] : memref<9x64x16xbf16, #tpu.memory_space<vmem>>, vector<1x64x16xbf16>
    %408 = vector.shape_cast %407 : vector<1x64x16xbf16> to vector<64x16xbf16>
    %cst_388 = arith.constant dense<0.000000e+00> : vector<16x16xf32>
    %409 = tpu.matmul %399, %408, %cst_388 {dimension_numbers = #tpu.dot_dimension_numbers<[1], [0], [0], [1], [0, 0, 1, 1], [], []>} : vector<16x64xbf16>, vector<64x16xbf16>, vector<16x16xf32> -> vector<16x16xf32>
    %c1_389 = arith.constant 1 : index
    %c0_390 = arith.constant 0 : index
    %c0_391 = arith.constant 0 : index
    %410 = vector.load %arg20[%c1_389, %c0_390, %c0_391] : memref<9x32x16xbf16, #tpu.memory_space<vmem>>, vector<1x32x16xbf16>
    %411 = vector.shape_cast %410 : vector<1x32x16xbf16> to vector<32x16xbf16>
    %412 = arith.truncf %409 : vector<16x16xf32> to vector<16x16xbf16>
    %cst_392 = arith.constant dense<0.000000e+00> : vector<32x16xf32>
    %413 = tpu.matmul %411, %412, %cst_392 {dimension_numbers = #tpu.dot_dimension_numbers<[1], [0], [0], [1], [0, 0, 1, 1], [], []>} : vector<32x16xbf16>, vector<16x16xbf16>, vector<32x16xf32> -> vector<32x16xf32>
    %414 = arith.addf %406, %413 : vector<32x16xf32>
    %c2_393 = arith.constant 2 : index
    %c0_394 = arith.constant 0 : index
    %c0_395 = arith.constant 0 : index
    %415 = vector.load %arg5[%c2_393, %c0_394, %c0_395] : memref<9x64x16xbf16, #tpu.memory_space<vmem>>, vector<1x64x16xbf16>
    %416 = vector.shape_cast %415 : vector<1x64x16xbf16> to vector<64x16xbf16>
    %cst_396 = arith.constant dense<0.000000e+00> : vector<16x16xf32>
    %417 = tpu.matmul %399, %416, %cst_396 {dimension_numbers = #tpu.dot_dimension_numbers<[1], [0], [0], [1], [0, 0, 1, 1], [], []>} : vector<16x64xbf16>, vector<64x16xbf16>, vector<16x16xf32> -> vector<16x16xf32>
    %c2_397 = arith.constant 2 : index
    %c0_398 = arith.constant 0 : index
    %c0_399 = arith.constant 0 : index
    %418 = vector.load %arg20[%c2_397, %c0_398, %c0_399] : memref<9x32x16xbf16, #tpu.memory_space<vmem>>, vector<1x32x16xbf16>
    %419 = vector.shape_cast %418 : vector<1x32x16xbf16> to vector<32x16xbf16>
    %420 = arith.truncf %417 : vector<16x16xf32> to vector<16x16xbf16>
    %cst_400 = arith.constant dense<0.000000e+00> : vector<32x16xf32>
    %421 = tpu.matmul %419, %420, %cst_400 {dimension_numbers = #tpu.dot_dimension_numbers<[1], [0], [0], [1], [0, 0, 1, 1], [], []>} : vector<32x16xbf16>, vector<16x16xbf16>, vector<32x16xf32> -> vector<32x16xf32>
    %422 = arith.addf %414, %421 : vector<32x16xf32>
    %c3_401 = arith.constant 3 : index
    %c0_402 = arith.constant 0 : index
    %c0_403 = arith.constant 0 : index
    %423 = vector.load %arg5[%c3_401, %c0_402, %c0_403] : memref<9x64x16xbf16, #tpu.memory_space<vmem>>, vector<1x64x16xbf16>
    %424 = vector.shape_cast %423 : vector<1x64x16xbf16> to vector<64x16xbf16>
    %cst_404 = arith.constant dense<0.000000e+00> : vector<16x16xf32>
    %425 = tpu.matmul %399, %424, %cst_404 {dimension_numbers = #tpu.dot_dimension_numbers<[1], [0], [0], [1], [0, 0, 1, 1], [], []>} : vector<16x64xbf16>, vector<64x16xbf16>, vector<16x16xf32> -> vector<16x16xf32>
    %c3_405 = arith.constant 3 : index
    %c0_406 = arith.constant 0 : index
    %c0_407 = arith.constant 0 : index
    %426 = vector.load %arg20[%c3_405, %c0_406, %c0_407] : memref<9x32x16xbf16, #tpu.memory_space<vmem>>, vector<1x32x16xbf16>
    %427 = vector.shape_cast %426 : vector<1x32x16xbf16> to vector<32x16xbf16>
    %428 = arith.truncf %425 : vector<16x16xf32> to vector<16x16xbf16>
    %cst_408 = arith.constant dense<0.000000e+00> : vector<32x16xf32>
    %429 = tpu.matmul %427, %428, %cst_408 {dimension_numbers = #tpu.dot_dimension_numbers<[1], [0], [0], [1], [0, 0, 1, 1], [], []>} : vector<32x16xbf16>, vector<16x16xbf16>, vector<32x16xf32> -> vector<32x16xf32>
    %430 = arith.addf %422, %429 : vector<32x16xf32>
    %c4_409 = arith.constant 4 : index
    %c0_410 = arith.constant 0 : index
    %c0_411 = arith.constant 0 : index
    %431 = vector.load %arg5[%c4_409, %c0_410, %c0_411] : memref<9x64x16xbf16, #tpu.memory_space<vmem>>, vector<1x64x16xbf16>
    %432 = vector.shape_cast %431 : vector<1x64x16xbf16> to vector<64x16xbf16>
    %cst_412 = arith.constant dense<0.000000e+00> : vector<16x16xf32>
    %433 = tpu.matmul %399, %432, %cst_412 {dimension_numbers = #tpu.dot_dimension_numbers<[1], [0], [0], [1], [0, 0, 1, 1], [], []>} : vector<16x64xbf16>, vector<64x16xbf16>, vector<16x16xf32> -> vector<16x16xf32>
    %c4_413 = arith.constant 4 : index
    %c0_414 = arith.constant 0 : index
    %c0_415 = arith.constant 0 : index
    %434 = vector.load %arg20[%c4_413, %c0_414, %c0_415] : memref<9x32x16xbf16, #tpu.memory_space<vmem>>, vector<1x32x16xbf16>
    %435 = vector.shape_cast %434 : vector<1x32x16xbf16> to vector<32x16xbf16>
    %436 = arith.truncf %433 : vector<16x16xf32> to vector<16x16xbf16>
    %cst_416 = arith.constant dense<0.000000e+00> : vector<32x16xf32>
    %437 = tpu.matmul %435, %436, %cst_416 {dimension_numbers = #tpu.dot_dimension_numbers<[1], [0], [0], [1], [0, 0, 1, 1], [], []>} : vector<32x16xbf16>, vector<16x16xbf16>, vector<32x16xf32> -> vector<32x16xf32>
    %438 = arith.addf %430, %437 : vector<32x16xf32>
    %c5_417 = arith.constant 5 : index
    %c0_418 = arith.constant 0 : index
    %c0_419 = arith.constant 0 : index
    %439 = vector.load %arg5[%c5_417, %c0_418, %c0_419] : memref<9x64x16xbf16, #tpu.memory_space<vmem>>, vector<1x64x16xbf16>
    %440 = vector.shape_cast %439 : vector<1x64x16xbf16> to vector<64x16xbf16>
    %cst_420 = arith.constant dense<0.000000e+00> : vector<16x16xf32>
    %441 = tpu.matmul %399, %440, %cst_420 {dimension_numbers = #tpu.dot_dimension_numbers<[1], [0], [0], [1], [0, 0, 1, 1], [], []>} : vector<16x64xbf16>, vector<64x16xbf16>, vector<16x16xf32> -> vector<16x16xf32>
    %c5_421 = arith.constant 5 : index
    %c0_422 = arith.constant 0 : index
    %c0_423 = arith.constant 0 : index
    %442 = vector.load %arg20[%c5_421, %c0_422, %c0_423] : memref<9x32x16xbf16, #tpu.memory_space<vmem>>, vector<1x32x16xbf16>
    %443 = vector.shape_cast %442 : vector<1x32x16xbf16> to vector<32x16xbf16>
    %444 = arith.truncf %441 : vector<16x16xf32> to vector<16x16xbf16>
    %cst_424 = arith.constant dense<0.000000e+00> : vector<32x16xf32>
    %445 = tpu.matmul %443, %444, %cst_424 {dimension_numbers = #tpu.dot_dimension_numbers<[1], [0], [0], [1], [0, 0, 1, 1], [], []>} : vector<32x16xbf16>, vector<16x16xbf16>, vector<32x16xf32> -> vector<32x16xf32>
    %446 = arith.addf %438, %445 : vector<32x16xf32>
    %c6_425 = arith.constant 6 : index
    %c0_426 = arith.constant 0 : index
    %c0_427 = arith.constant 0 : index
    %447 = vector.load %arg5[%c6_425, %c0_426, %c0_427] : memref<9x64x16xbf16, #tpu.memory_space<vmem>>, vector<1x64x16xbf16>
    %448 = vector.shape_cast %447 : vector<1x64x16xbf16> to vector<64x16xbf16>
    %cst_428 = arith.constant dense<0.000000e+00> : vector<16x16xf32>
    %449 = tpu.matmul %399, %448, %cst_428 {dimension_numbers = #tpu.dot_dimension_numbers<[1], [0], [0], [1], [0, 0, 1, 1], [], []>} : vector<16x64xbf16>, vector<64x16xbf16>, vector<16x16xf32> -> vector<16x16xf32>
    %c6_429 = arith.constant 6 : index
    %c0_430 = arith.constant 0 : index
    %c0_431 = arith.constant 0 : index
    %450 = vector.load %arg20[%c6_429, %c0_430, %c0_431] : memref<9x32x16xbf16, #tpu.memory_space<vmem>>, vector<1x32x16xbf16>
    %451 = vector.shape_cast %450 : vector<1x32x16xbf16> to vector<32x16xbf16>
    %452 = arith.truncf %449 : vector<16x16xf32> to vector<16x16xbf16>
    %cst_432 = arith.constant dense<0.000000e+00> : vector<32x16xf32>
    %453 = tpu.matmul %451, %452, %cst_432 {dimension_numbers = #tpu.dot_dimension_numbers<[1], [0], [0], [1], [0, 0, 1, 1], [], []>} : vector<32x16xbf16>, vector<16x16xbf16>, vector<32x16xf32> -> vector<32x16xf32>
    %454 = arith.addf %446, %453 : vector<32x16xf32>
    %c7_433 = arith.constant 7 : index
    %c0_434 = arith.constant 0 : index
    %c0_435 = arith.constant 0 : index
    %455 = vector.load %arg5[%c7_433, %c0_434, %c0_435] : memref<9x64x16xbf16, #tpu.memory_space<vmem>>, vector<1x64x16xbf16>
    %456 = vector.shape_cast %455 : vector<1x64x16xbf16> to vector<64x16xbf16>
    %cst_436 = arith.constant dense<0.000000e+00> : vector<16x16xf32>
    %457 = tpu.matmul %399, %456, %cst_436 {dimension_numbers = #tpu.dot_dimension_numbers<[1], [0], [0], [1], [0, 0, 1, 1], [], []>} : vector<16x64xbf16>, vector<64x16xbf16>, vector<16x16xf32> -> vector<16x16xf32>
    %c7_437 = arith.constant 7 : index
    %c0_438 = arith.constant 0 : index
    %c0_439 = arith.constant 0 : index
    %458 = vector.load %arg20[%c7_437, %c0_438, %c0_439] : memref<9x32x16xbf16, #tpu.memory_space<vmem>>, vector<1x32x16xbf16>
    %459 = vector.shape_cast %458 : vector<1x32x16xbf16> to vector<32x16xbf16>
    %460 = arith.truncf %457 : vector<16x16xf32> to vector<16x16xbf16>
    %cst_440 = arith.constant dense<0.000000e+00> : vector<32x16xf32>
    %461 = tpu.matmul %459, %460, %cst_440 {dimension_numbers = #tpu.dot_dimension_numbers<[1], [0], [0], [1], [0, 0, 1, 1], [], []>} : vector<32x16xbf16>, vector<16x16xbf16>, vector<32x16xf32> -> vector<32x16xf32>
    %462 = arith.addf %454, %461 : vector<32x16xf32>
    %c8_441 = arith.constant 8 : index
    %c0_442 = arith.constant 0 : index
    %c0_443 = arith.constant 0 : index
    %463 = vector.load %arg5[%c8_441, %c0_442, %c0_443] : memref<9x64x16xbf16, #tpu.memory_space<vmem>>, vector<1x64x16xbf16>
    %464 = vector.shape_cast %463 : vector<1x64x16xbf16> to vector<64x16xbf16>
    %cst_444 = arith.constant dense<0.000000e+00> : vector<16x16xf32>
    %465 = tpu.matmul %399, %464, %cst_444 {dimension_numbers = #tpu.dot_dimension_numbers<[1], [0], [0], [1], [0, 0, 1, 1], [], []>} : vector<16x64xbf16>, vector<64x16xbf16>, vector<16x16xf32> -> vector<16x16xf32>
    %c8_445 = arith.constant 8 : index
    %c0_446 = arith.constant 0 : index
    %c0_447 = arith.constant 0 : index
    %466 = vector.load %arg20[%c8_445, %c0_446, %c0_447] : memref<9x32x16xbf16, #tpu.memory_space<vmem>>, vector<1x32x16xbf16>
    %467 = vector.shape_cast %466 : vector<1x32x16xbf16> to vector<32x16xbf16>
    %468 = arith.truncf %465 : vector<16x16xf32> to vector<16x16xbf16>
    %cst_448 = arith.constant dense<0.000000e+00> : vector<32x16xf32>
    %469 = tpu.matmul %467, %468, %cst_448 {dimension_numbers = #tpu.dot_dimension_numbers<[1], [0], [0], [1], [0, 0, 1, 1], [], []>} : vector<32x16xbf16>, vector<16x16xbf16>, vector<32x16xf32> -> vector<32x16xf32>
    %470 = arith.addf %462, %469 : vector<32x16xf32>
    %c0_449 = arith.constant 0 : index
    %c0_450 = arith.constant 0 : index
    %471 = vector.load %arg19[%c0_449, %c0_450] : memref<32x1xf32, #tpu.memory_space<vmem>>, vector<32x1xf32>
    %472 = vector.broadcast %471 : vector<32x1xf32> to vector<32x16xf32>
    %473 = arith.addf %470, %472 : vector<32x16xf32>
    %cst_451 = arith.constant 0.000000e+00 : f32
    %474 = vector.broadcast %cst_451 : f32 to vector<32x16xf32>
    %475 = arith.maximumf %473, %474 : vector<32x16xf32>
    %476 = arith.truncf %398 : vector<16x64xf32> to vector<16x64xbf16>
    %c4_452 = arith.constant 4 : index
    %c0_453 = arith.constant 0 : index
    %c0_454 = arith.constant 0 : index
    %477 = vector.load %arg5[%c4_452, %c0_453, %c0_454] : memref<9x64x16xbf16, #tpu.memory_space<vmem>>, vector<1x64x16xbf16>
    %478 = vector.shape_cast %477 : vector<1x64x16xbf16> to vector<64x16xbf16>
    %cst_455 = arith.constant dense<0.000000e+00> : vector<16x16xf32>
    %479 = tpu.matmul %476, %478, %cst_455 {dimension_numbers = #tpu.dot_dimension_numbers<[1], [0], [0], [1], [0, 0, 1, 1], [], []>} : vector<16x64xbf16>, vector<64x16xbf16>, vector<16x16xf32> -> vector<16x16xf32>
    %480 = arith.truncf %479 : vector<16x16xf32> to vector<16x16xbf16>
    %c0_456 = arith.constant 0 : index
    %c0_457 = arith.constant 0 : index
    %481 = vector.load %arg24[%c0_456, %c0_457] : memref<32x16xbf16, #tpu.memory_space<vmem>>, vector<32x16xbf16>
    %cst_458 = arith.constant dense<0.000000e+00> : vector<32x16xf32>
    %482 = tpu.matmul %481, %480, %cst_458 {dimension_numbers = #tpu.dot_dimension_numbers<[1], [0], [0], [1], [0, 0, 1, 1], [], []>} : vector<32x16xbf16>, vector<16x16xbf16>, vector<32x16xf32> -> vector<32x16xf32>
    %c0_459 = arith.constant 0 : index
    %c0_460 = arith.constant 0 : index
    %483 = vector.load %arg23[%c0_459, %c0_460] : memref<32x1xf32, #tpu.memory_space<vmem>>, vector<32x1xf32>
    %484 = vector.broadcast %483 : vector<32x1xf32> to vector<32x16xf32>
    %485 = arith.addf %482, %484 : vector<32x16xf32>
    %486 = arith.truncf %475 : vector<32x16xf32> to vector<32x16xbf16>
    %c0_461 = arith.constant 0 : index
    %c0_462 = arith.constant 0 : index
    %c0_463 = arith.constant 0 : index
    %487 = vector.load %arg6[%c0_461, %c0_462, %c0_463] : memref<9x16x16xbf16, #tpu.memory_space<vmem>>, vector<1x16x16xbf16>
    %488 = vector.shape_cast %487 : vector<1x16x16xbf16> to vector<16x16xbf16>
    %cst_464 = arith.constant dense<0.000000e+00> : vector<32x16xf32>
    %489 = tpu.matmul %486, %488, %cst_464 {dimension_numbers = #tpu.dot_dimension_numbers<[1], [0], [0], [1], [0, 0, 1, 1], [], []>} : vector<32x16xbf16>, vector<16x16xbf16>, vector<32x16xf32> -> vector<32x16xf32>
    %c0_465 = arith.constant 0 : index
    %c0_466 = arith.constant 0 : index
    %c0_467 = arith.constant 0 : index
    %490 = vector.load %arg22[%c0_465, %c0_466, %c0_467] : memref<9x32x32xbf16, #tpu.memory_space<vmem>>, vector<1x32x32xbf16>
    %491 = vector.shape_cast %490 : vector<1x32x32xbf16> to vector<32x32xbf16>
    %492 = arith.truncf %489 : vector<32x16xf32> to vector<32x16xbf16>
    %cst_468 = arith.constant dense<0.000000e+00> : vector<32x16xf32>
    %493 = tpu.matmul %491, %492, %cst_468 {dimension_numbers = #tpu.dot_dimension_numbers<[1], [0], [0], [1], [0, 0, 1, 1], [], []>} : vector<32x32xbf16>, vector<32x16xbf16>, vector<32x16xf32> -> vector<32x16xf32>
    %c1_469 = arith.constant 1 : index
    %c0_470 = arith.constant 0 : index
    %c0_471 = arith.constant 0 : index
    %494 = vector.load %arg6[%c1_469, %c0_470, %c0_471] : memref<9x16x16xbf16, #tpu.memory_space<vmem>>, vector<1x16x16xbf16>
    %495 = vector.shape_cast %494 : vector<1x16x16xbf16> to vector<16x16xbf16>
    %cst_472 = arith.constant dense<0.000000e+00> : vector<32x16xf32>
    %496 = tpu.matmul %486, %495, %cst_472 {dimension_numbers = #tpu.dot_dimension_numbers<[1], [0], [0], [1], [0, 0, 1, 1], [], []>} : vector<32x16xbf16>, vector<16x16xbf16>, vector<32x16xf32> -> vector<32x16xf32>
    %c1_473 = arith.constant 1 : index
    %c0_474 = arith.constant 0 : index
    %c0_475 = arith.constant 0 : index
    %497 = vector.load %arg22[%c1_473, %c0_474, %c0_475] : memref<9x32x32xbf16, #tpu.memory_space<vmem>>, vector<1x32x32xbf16>
    %498 = vector.shape_cast %497 : vector<1x32x32xbf16> to vector<32x32xbf16>
    %499 = arith.truncf %496 : vector<32x16xf32> to vector<32x16xbf16>
    %cst_476 = arith.constant dense<0.000000e+00> : vector<32x16xf32>
    %500 = tpu.matmul %498, %499, %cst_476 {dimension_numbers = #tpu.dot_dimension_numbers<[1], [0], [0], [1], [0, 0, 1, 1], [], []>} : vector<32x32xbf16>, vector<32x16xbf16>, vector<32x16xf32> -> vector<32x16xf32>
    %501 = arith.addf %493, %500 : vector<32x16xf32>
    %c2_477 = arith.constant 2 : index
    %c0_478 = arith.constant 0 : index
    %c0_479 = arith.constant 0 : index
    %502 = vector.load %arg6[%c2_477, %c0_478, %c0_479] : memref<9x16x16xbf16, #tpu.memory_space<vmem>>, vector<1x16x16xbf16>
    %503 = vector.shape_cast %502 : vector<1x16x16xbf16> to vector<16x16xbf16>
    %cst_480 = arith.constant dense<0.000000e+00> : vector<32x16xf32>
    %504 = tpu.matmul %486, %503, %cst_480 {dimension_numbers = #tpu.dot_dimension_numbers<[1], [0], [0], [1], [0, 0, 1, 1], [], []>} : vector<32x16xbf16>, vector<16x16xbf16>, vector<32x16xf32> -> vector<32x16xf32>
    %c2_481 = arith.constant 2 : index
    %c0_482 = arith.constant 0 : index
    %c0_483 = arith.constant 0 : index
    %505 = vector.load %arg22[%c2_481, %c0_482, %c0_483] : memref<9x32x32xbf16, #tpu.memory_space<vmem>>, vector<1x32x32xbf16>
    %506 = vector.shape_cast %505 : vector<1x32x32xbf16> to vector<32x32xbf16>
    %507 = arith.truncf %504 : vector<32x16xf32> to vector<32x16xbf16>
    %cst_484 = arith.constant dense<0.000000e+00> : vector<32x16xf32>
    %508 = tpu.matmul %506, %507, %cst_484 {dimension_numbers = #tpu.dot_dimension_numbers<[1], [0], [0], [1], [0, 0, 1, 1], [], []>} : vector<32x32xbf16>, vector<32x16xbf16>, vector<32x16xf32> -> vector<32x16xf32>
    %509 = arith.addf %501, %508 : vector<32x16xf32>
    %c3_485 = arith.constant 3 : index
    %c0_486 = arith.constant 0 : index
    %c0_487 = arith.constant 0 : index
    %510 = vector.load %arg6[%c3_485, %c0_486, %c0_487] : memref<9x16x16xbf16, #tpu.memory_space<vmem>>, vector<1x16x16xbf16>
    %511 = vector.shape_cast %510 : vector<1x16x16xbf16> to vector<16x16xbf16>
    %cst_488 = arith.constant dense<0.000000e+00> : vector<32x16xf32>
    %512 = tpu.matmul %486, %511, %cst_488 {dimension_numbers = #tpu.dot_dimension_numbers<[1], [0], [0], [1], [0, 0, 1, 1], [], []>} : vector<32x16xbf16>, vector<16x16xbf16>, vector<32x16xf32> -> vector<32x16xf32>
    %c3_489 = arith.constant 3 : index
    %c0_490 = arith.constant 0 : index
    %c0_491 = arith.constant 0 : index
    %513 = vector.load %arg22[%c3_489, %c0_490, %c0_491] : memref<9x32x32xbf16, #tpu.memory_space<vmem>>, vector<1x32x32xbf16>
    %514 = vector.shape_cast %513 : vector<1x32x32xbf16> to vector<32x32xbf16>
    %515 = arith.truncf %512 : vector<32x16xf32> to vector<32x16xbf16>
    %cst_492 = arith.constant dense<0.000000e+00> : vector<32x16xf32>
    %516 = tpu.matmul %514, %515, %cst_492 {dimension_numbers = #tpu.dot_dimension_numbers<[1], [0], [0], [1], [0, 0, 1, 1], [], []>} : vector<32x32xbf16>, vector<32x16xbf16>, vector<32x16xf32> -> vector<32x16xf32>
    %517 = arith.addf %509, %516 : vector<32x16xf32>
    %c4_493 = arith.constant 4 : index
    %c0_494 = arith.constant 0 : index
    %c0_495 = arith.constant 0 : index
    %518 = vector.load %arg6[%c4_493, %c0_494, %c0_495] : memref<9x16x16xbf16, #tpu.memory_space<vmem>>, vector<1x16x16xbf16>
    %519 = vector.shape_cast %518 : vector<1x16x16xbf16> to vector<16x16xbf16>
    %cst_496 = arith.constant dense<0.000000e+00> : vector<32x16xf32>
    %520 = tpu.matmul %486, %519, %cst_496 {dimension_numbers = #tpu.dot_dimension_numbers<[1], [0], [0], [1], [0, 0, 1, 1], [], []>} : vector<32x16xbf16>, vector<16x16xbf16>, vector<32x16xf32> -> vector<32x16xf32>
    %c4_497 = arith.constant 4 : index
    %c0_498 = arith.constant 0 : index
    %c0_499 = arith.constant 0 : index
    %521 = vector.load %arg22[%c4_497, %c0_498, %c0_499] : memref<9x32x32xbf16, #tpu.memory_space<vmem>>, vector<1x32x32xbf16>
    %522 = vector.shape_cast %521 : vector<1x32x32xbf16> to vector<32x32xbf16>
    %523 = arith.truncf %520 : vector<32x16xf32> to vector<32x16xbf16>
    %cst_500 = arith.constant dense<0.000000e+00> : vector<32x16xf32>
    %524 = tpu.matmul %522, %523, %cst_500 {dimension_numbers = #tpu.dot_dimension_numbers<[1], [0], [0], [1], [0, 0, 1, 1], [], []>} : vector<32x32xbf16>, vector<32x16xbf16>, vector<32x16xf32> -> vector<32x16xf32>
    %525 = arith.addf %517, %524 : vector<32x16xf32>
    %c5_501 = arith.constant 5 : index
    %c0_502 = arith.constant 0 : index
    %c0_503 = arith.constant 0 : index
    %526 = vector.load %arg6[%c5_501, %c0_502, %c0_503] : memref<9x16x16xbf16, #tpu.memory_space<vmem>>, vector<1x16x16xbf16>
    %527 = vector.shape_cast %526 : vector<1x16x16xbf16> to vector<16x16xbf16>
    %cst_504 = arith.constant dense<0.000000e+00> : vector<32x16xf32>
    %528 = tpu.matmul %486, %527, %cst_504 {dimension_numbers = #tpu.dot_dimension_numbers<[1], [0], [0], [1], [0, 0, 1, 1], [], []>} : vector<32x16xbf16>, vector<16x16xbf16>, vector<32x16xf32> -> vector<32x16xf32>
    %c5_505 = arith.constant 5 : index
    %c0_506 = arith.constant 0 : index
    %c0_507 = arith.constant 0 : index
    %529 = vector.load %arg22[%c5_505, %c0_506, %c0_507] : memref<9x32x32xbf16, #tpu.memory_space<vmem>>, vector<1x32x32xbf16>
    %530 = vector.shape_cast %529 : vector<1x32x32xbf16> to vector<32x32xbf16>
    %531 = arith.truncf %528 : vector<32x16xf32> to vector<32x16xbf16>
    %cst_508 = arith.constant dense<0.000000e+00> : vector<32x16xf32>
    %532 = tpu.matmul %530, %531, %cst_508 {dimension_numbers = #tpu.dot_dimension_numbers<[1], [0], [0], [1], [0, 0, 1, 1], [], []>} : vector<32x32xbf16>, vector<32x16xbf16>, vector<32x16xf32> -> vector<32x16xf32>
    %533 = arith.addf %525, %532 : vector<32x16xf32>
    %c6_509 = arith.constant 6 : index
    %c0_510 = arith.constant 0 : index
    %c0_511 = arith.constant 0 : index
    %534 = vector.load %arg6[%c6_509, %c0_510, %c0_511] : memref<9x16x16xbf16, #tpu.memory_space<vmem>>, vector<1x16x16xbf16>
    %535 = vector.shape_cast %534 : vector<1x16x16xbf16> to vector<16x16xbf16>
    %cst_512 = arith.constant dense<0.000000e+00> : vector<32x16xf32>
    %536 = tpu.matmul %486, %535, %cst_512 {dimension_numbers = #tpu.dot_dimension_numbers<[1], [0], [0], [1], [0, 0, 1, 1], [], []>} : vector<32x16xbf16>, vector<16x16xbf16>, vector<32x16xf32> -> vector<32x16xf32>
    %c6_513 = arith.constant 6 : index
    %c0_514 = arith.constant 0 : index
    %c0_515 = arith.constant 0 : index
    %537 = vector.load %arg22[%c6_513, %c0_514, %c0_515] : memref<9x32x32xbf16, #tpu.memory_space<vmem>>, vector<1x32x32xbf16>
    %538 = vector.shape_cast %537 : vector<1x32x32xbf16> to vector<32x32xbf16>
    %539 = arith.truncf %536 : vector<32x16xf32> to vector<32x16xbf16>
    %cst_516 = arith.constant dense<0.000000e+00> : vector<32x16xf32>
    %540 = tpu.matmul %538, %539, %cst_516 {dimension_numbers = #tpu.dot_dimension_numbers<[1], [0], [0], [1], [0, 0, 1, 1], [], []>} : vector<32x32xbf16>, vector<32x16xbf16>, vector<32x16xf32> -> vector<32x16xf32>
    %541 = arith.addf %533, %540 : vector<32x16xf32>
    %c7_517 = arith.constant 7 : index
    %c0_518 = arith.constant 0 : index
    %c0_519 = arith.constant 0 : index
    %542 = vector.load %arg6[%c7_517, %c0_518, %c0_519] : memref<9x16x16xbf16, #tpu.memory_space<vmem>>, vector<1x16x16xbf16>
    %543 = vector.shape_cast %542 : vector<1x16x16xbf16> to vector<16x16xbf16>
    %cst_520 = arith.constant dense<0.000000e+00> : vector<32x16xf32>
    %544 = tpu.matmul %486, %543, %cst_520 {dimension_numbers = #tpu.dot_dimension_numbers<[1], [0], [0], [1], [0, 0, 1, 1], [], []>} : vector<32x16xbf16>, vector<16x16xbf16>, vector<32x16xf32> -> vector<32x16xf32>
    %c7_521 = arith.constant 7 : index
    %c0_522 = arith.constant 0 : index
    %c0_523 = arith.constant 0 : index
    %545 = vector.load %arg22[%c7_521, %c0_522, %c0_523] : memref<9x32x32xbf16, #tpu.memory_space<vmem>>, vector<1x32x32xbf16>
    %546 = vector.shape_cast %545 : vector<1x32x32xbf16> to vector<32x32xbf16>
    %547 = arith.truncf %544 : vector<32x16xf32> to vector<32x16xbf16>
    %cst_524 = arith.constant dense<0.000000e+00> : vector<32x16xf32>
    %548 = tpu.matmul %546, %547, %cst_524 {dimension_numbers = #tpu.dot_dimension_numbers<[1], [0], [0], [1], [0, 0, 1, 1], [], []>} : vector<32x32xbf16>, vector<32x16xbf16>, vector<32x16xf32> -> vector<32x16xf32>
    %549 = arith.addf %541, %548 : vector<32x16xf32>
    %c8_525 = arith.constant 8 : index
    %c0_526 = arith.constant 0 : index
    %c0_527 = arith.constant 0 : index
    %550 = vector.load %arg6[%c8_525, %c0_526, %c0_527] : memref<9x16x16xbf16, #tpu.memory_space<vmem>>, vector<1x16x16xbf16>
    %551 = vector.shape_cast %550 : vector<1x16x16xbf16> to vector<16x16xbf16>
    %cst_528 = arith.constant dense<0.000000e+00> : vector<32x16xf32>
    %552 = tpu.matmul %486, %551, %cst_528 {dimension_numbers = #tpu.dot_dimension_numbers<[1], [0], [0], [1], [0, 0, 1, 1], [], []>} : vector<32x16xbf16>, vector<16x16xbf16>, vector<32x16xf32> -> vector<32x16xf32>
    %c8_529 = arith.constant 8 : index
    %c0_530 = arith.constant 0 : index
    %c0_531 = arith.constant 0 : index
    %553 = vector.load %arg22[%c8_529, %c0_530, %c0_531] : memref<9x32x32xbf16, #tpu.memory_space<vmem>>, vector<1x32x32xbf16>
    %554 = vector.shape_cast %553 : vector<1x32x32xbf16> to vector<32x32xbf16>
    %555 = arith.truncf %552 : vector<32x16xf32> to vector<32x16xbf16>
    %cst_532 = arith.constant dense<0.000000e+00> : vector<32x16xf32>
    %556 = tpu.matmul %554, %555, %cst_532 {dimension_numbers = #tpu.dot_dimension_numbers<[1], [0], [0], [1], [0, 0, 1, 1], [], []>} : vector<32x32xbf16>, vector<32x16xbf16>, vector<32x16xf32> -> vector<32x16xf32>
    %557 = arith.addf %549, %556 : vector<32x16xf32>
    %c0_533 = arith.constant 0 : index
    %c0_534 = arith.constant 0 : index
    %558 = vector.load %arg21[%c0_533, %c0_534] : memref<32x1xf32, #tpu.memory_space<vmem>>, vector<32x1xf32>
    %559 = vector.broadcast %558 : vector<32x1xf32> to vector<32x16xf32>
    %560 = arith.addf %557, %559 : vector<32x16xf32>
    %561 = arith.addf %560, %485 : vector<32x16xf32>
    %562 = arith.mulf %561, %561 : vector<32x16xf32>
    %563 = vector.shape_cast %562 : vector<32x16xf32> to vector<1x32x16xf32>
    %cst_535 = arith.constant dense<0.000000e+00> : vector<1xf32>
    %564 = vector.multi_reduction <add>, %563, %cst_535 [1, 2] : vector<1x32x16xf32> to vector<1xf32>
    %565 = vector.shape_cast %564 : vector<1xf32> to vector<1x1x1xf32>
    %566 = vector.extract %565[0, 0, 0] : f32 from vector<1x1x1xf32>
    %cst_536 = arith.constant 1.000000e-24 : f32
    %567 = arith.maximumf %566, %cst_536 : f32
    %568 = math.rsqrt %567 : f32
    %569 = vector.broadcast %568 : f32 to vector<32x16xf32>
    %570 = arith.mulf %561, %569 : vector<32x16xf32>
    %c0_537 = arith.constant 0 : index
    %c0_538 = arith.constant 0 : index
    %c0_539 = arith.constant 0 : index
    %571 = vector.load %arg25[%c0_537, %c0_538, %c0_539] : memref<1x32x16xf32, #tpu.memory_space<vmem>>, vector<1x32x16xf32>
    %572 = vector.shape_cast %571 : vector<1x32x16xf32> to vector<32x16xf32>
    %573 = vector.shape_cast %570 : vector<32x16xf32> to vector<1x32x16xf32>
    tpu.vector_store %arg25[%c0_537, %c0_538, %c0_539], %573 {strides = array<i32>} : memref<1x32x16xf32, #tpu.memory_space<vmem>>, vector<1x32x16xf32>,
    return
  }
  func.func @transform_0(%arg0: i32) -> (i32, i32, i32) {
    %c0_i32 = arith.constant 0 : i32
    %c0_i32_0 = arith.constant 0 : i32
    %c0_i32_1 = arith.constant 0 : i32
    return %arg0, %c0_i32, %c0_i32_0 : i32, i32, i32
  }
  func.func @transform_1(%arg0: i32) -> (i32, i32, i32) {
    %c0_i32 = arith.constant 0 : i32
    %c0_i32_0 = arith.constant 0 : i32
    %c0_i32_1 = arith.constant 0 : i32
    %c0_i32_2 = arith.constant 0 : i32
    return %c0_i32, %c0_i32_0, %c0_i32_1 : i32, i32, i32
  }
  func.func @transform_2(%arg0: i32) -> (i32, i32, i32) {
    %c0_i32 = arith.constant 0 : i32
    %c0_i32_0 = arith.constant 0 : i32
    %c0_i32_1 = arith.constant 0 : i32
    %c0_i32_2 = arith.constant 0 : i32
    return %c0_i32, %c0_i32_0, %c0_i32_1 : i32, i32, i32
  }
  func.func @transform_3(%arg0: i32) -> (i32, i32, i32) {
    %c0_i32 = arith.constant 0 : i32
    %c0_i32_0 = arith.constant 0 : i32
    %c0_i32_1 = arith.constant 0 : i32
    %c0_i32_2 = arith.constant 0 : i32
    return %c0_i32, %c0_i32_0, %c0_i32_1 : i32, i32, i32
  }
  func.func @transform_4(%arg0: i32) -> (i32, i32, i32) {
    %c0_i32 = arith.constant 0 : i32
    %c0_i32_0 = arith.constant 0 : i32
    %c0_i32_1 = arith.constant 0 : i32
    %c0_i32_2 = arith.constant 0 : i32
    return %c0_i32, %c0_i32_0, %c0_i32_1 : i32, i32, i32
  }
  func.func @transform_5(%arg0: i32) -> (i32, i32, i32) {
    %c0_i32 = arith.constant 0 : i32
    %c0_i32_0 = arith.constant 0 : i32
    %c0_i32_1 = arith.constant 0 : i32
    %c0_i32_2 = arith.constant 0 : i32
    return %c0_i32, %c0_i32_0, %c0_i32_1 : i32, i32, i32
  }
  func.func @transform_6(%arg0: i32) -> (i32, i32) {
    %c0_i32 = arith.constant 0 : i32
    %c0_i32_0 = arith.constant 0 : i32
    %c0_i32_1 = arith.constant 0 : i32
    return %c0_i32, %c0_i32_0 : i32, i32
  }
  func.func @transform_7(%arg0: i32) -> (i32, i32, i32) {
    %c0_i32 = arith.constant 0 : i32
    %c0_i32_0 = arith.constant 0 : i32
    %c0_i32_1 = arith.constant 0 : i32
    %c0_i32_2 = arith.constant 0 : i32
    return %c0_i32, %c0_i32_0, %c0_i32_1 : i32, i32, i32
  }
  func.func @transform_8(%arg0: i32) -> (i32, i32) {
    %c0_i32 = arith.constant 0 : i32
    %c0_i32_0 = arith.constant 0 : i32
    %c0_i32_1 = arith.constant 0 : i32
    return %c0_i32, %c0_i32_0 : i32, i32
  }
  func.func @transform_9(%arg0: i32) -> (i32, i32, i32) {
    %c0_i32 = arith.constant 0 : i32
    %c0_i32_0 = arith.constant 0 : i32
    %c0_i32_1 = arith.constant 0 : i32
    %c0_i32_2 = arith.constant 0 : i32
    return %c0_i32, %c0_i32_0, %c0_i32_1 : i32, i32, i32
  }
  func.func @transform_10(%arg0: i32) -> (i32, i32) {
    %c0_i32 = arith.constant 0 : i32
    %c0_i32_0 = arith.constant 0 : i32
    %c0_i32_1 = arith.constant 0 : i32
    return %c0_i32, %c0_i32_0 : i32, i32
  }
  func.func @transform_11(%arg0: i32) -> (i32, i32, i32) {
    %c0_i32 = arith.constant 0 : i32
    %c0_i32_0 = arith.constant 0 : i32
    %c0_i32_1 = arith.constant 0 : i32
    %c0_i32_2 = arith.constant 0 : i32
    return %c0_i32, %c0_i32_0, %c0_i32_1 : i32, i32, i32
  }
  func.func @transform_12(%arg0: i32) -> (i32, i32) {
    %c0_i32 = arith.constant 0 : i32
    %c0_i32_0 = arith.constant 0 : i32
    %c0_i32_1 = arith.constant 0 : i32
    return %c0_i32, %c0_i32_0 : i32, i32
  }
  func.func @transform_13(%arg0: i32) -> (i32, i32, i32) {
    %c0_i32 = arith.constant 0 : i32
    %c0_i32_0 = arith.constant 0 : i32
    %c0_i32_1 = arith.constant 0 : i32
    %c0_i32_2 = arith.constant 0 : i32
    return %c0_i32, %c0_i32_0, %c0_i32_1 : i32, i32, i32
  }
  func.func @transform_14(%arg0: i32) -> (i32, i32) {
    %c0_i32 = arith.constant 0 : i32
    %c0_i32_0 = arith.constant 0 : i32
    %c0_i32_1 = arith.constant 0 : i32
    return %c0_i32, %c0_i32_0 : i32, i32
  }
  func.func @transform_15(%arg0: i32) -> (i32, i32, i32) {
    %c0_i32 = arith.constant 0 : i32
    %c0_i32_0 = arith.constant 0 : i32
    %c0_i32_1 = arith.constant 0 : i32
    %c0_i32_2 = arith.constant 0 : i32
    return %c0_i32, %c0_i32_0, %c0_i32_1 : i32, i32, i32
  }
  func.func @transform_16(%arg0: i32) -> (i32, i32) {
    %c0_i32 = arith.constant 0 : i32
    %c0_i32_0 = arith.constant 0 : i32
    %c0_i32_1 = arith.constant 0 : i32
    return %c0_i32, %c0_i32_0 : i32, i32
  }
  func.func @transform_17(%arg0: i32) -> (i32, i32) {
    %c0_i32 = arith.constant 0 : i32
    %c0_i32_0 = arith.constant 0 : i32
    %c0_i32_1 = arith.constant 0 : i32
    return %c0_i32, %c0_i32_0 : i32, i32
  }
  func.func @transform_18(%arg0: i32) -> (i32, i32) {
    %c0_i32 = arith.constant 0 : i32
    %c0_i32_0 = arith.constant 0 : i32
    %c0_i32_1 = arith.constant 0 : i32
    return %c0_i32, %c0_i32_0 : i32, i32
  }
  func.func @transform_19(%arg0: i32) -> (i32, i32, i32) {
    %c0_i32 = arith.constant 0 : i32
    %c0_i32_0 = arith.constant 0 : i32
    %c0_i32_1 = arith.constant 0 : i32
    %c0_i32_2 = arith.constant 0 : i32
    return %c0_i32, %c0_i32_0, %c0_i32_1 : i32, i32, i32
  }
  func.func @transform_20(%arg0: i32) -> (i32, i32) {
    %c0_i32 = arith.constant 0 : i32
    %c0_i32_0 = arith.constant 0 : i32
    %c0_i32_1 = arith.constant 0 : i32
    return %c0_i32, %c0_i32_0 : i32, i32
  }
  func.func @transform_21(%arg0: i32) -> (i32, i32, i32) {
    %c0_i32 = arith.constant 0 : i32
    %c0_i32_0 = arith.constant 0 : i32
    %c0_i32_1 = arith.constant 0 : i32
    %c0_i32_2 = arith.constant 0 : i32
    return %c0_i32, %c0_i32_0, %c0_i32_1 : i32, i32, i32
  }
  func.func @transform_22(%arg0: i32) -> (i32, i32) {
    %c0_i32 = arith.constant 0 : i32
    %c0_i32_0 = arith.constant 0 : i32
    %c0_i32_1 = arith.constant 0 : i32
    return %c0_i32, %c0_i32_0 : i32, i32
  }
  func.func @transform_23(%arg0: i32) -> (i32, i32) {
    %c0_i32 = arith.constant 0 : i32
    %c0_i32_0 = arith.constant 0 : i32
    %c0_i32_1 = arith.constant 0 : i32
    return %c0_i32, %c0_i32_0 : i32, i32
  }
  func.func @transform_24(%arg0: i32) -> (i32, i32, i32) {
    %c0_i32 = arith.constant 0 : i32
    %c0_i32_0 = arith.constant 0 : i32
    %c0_i32_1 = arith.constant 0 : i32
    return %arg0, %c0_i32, %c0_i32_0 : i32, i32, i32
  }
}

</mosaic_0001>

<llo_original>
// kernel: fwd.1
$region0: #{fwd.1}
  #allocation0 [shape = 'u32[]', space=smem, size = 0x4, offset = 0x4, fixed_abs, tag = 'smem constant byte address 0x4 - core index']
  #allocation1 [shape = 'u32[72,128]{1,0:T(1,128)}', space=vmem, size = 0x9000, scoped, tag = 'internal scratch']
  %s0 = inlined_call_operand.vmem [shape: f32[2,3,256], index: 0, kind: input, shape index: {}]
  %s1 = inlined_call_operand.hbm [shape: bf16[9,256,256], index: 1, kind: input, shape index: {}]
  %s2 = inlined_call_operand.hbm [shape: bf16[9,256,64], index: 2, kind: input, shape index: {}]
  %s3 = inlined_call_operand.hbm [shape: bf16[9,64,64], index: 3, kind: input, shape index: {}]
  %s4 = inlined_call_operand.hbm [shape: bf16[9,64,16], index: 4, kind: input, shape index: {}]
  %s5 = inlined_call_operand.hbm [shape: bf16[9,16,16], index: 5, kind: input, shape index: {}]
  %s6 = inlined_call_operand.hbm [shape: f32[16,1], index: 6, kind: input, shape index: {}]
  %s7 = inlined_call_operand.hbm [shape: bf16[9,16,3], index: 7, kind: input, shape index: {}]
  %s8 = inlined_call_operand.hbm [shape: f32[16,1], index: 8, kind: input, shape index: {}]
  %s9 = inlined_call_operand.hbm [shape: bf16[9,16,16], index: 9, kind: input, shape index: {}]
  %s10 = inlined_call_operand.hbm [shape: f32[16,1], index: 10, kind: input, shape index: {}]
  %s11 = inlined_call_operand.hbm [shape: bf16[9,16,16], index: 11, kind: input, shape index: {}]
  %s12 = inlined_call_operand.hbm [shape: f32[16,1], index: 12, kind: input, shape index: {}]
  %s13 = inlined_call_operand.hbm [shape: bf16[9,16,16], index: 13, kind: input, shape index: {}]
  %s14 = inlined_call_operand.hbm [shape: f32[16,1], index: 14, kind: input, shape index: {}]
  %s15 = inlined_call_operand.hbm [shape: bf16[9,16,16], index: 15, kind: input, shape index: {}]
  %s16 = inlined_call_operand.hbm [shape: f32[16,1], index: 16, kind: input, shape index: {}]
  %s17 = inlined_call_operand.hbm [shape: bf16[16,16], index: 17, kind: input, shape index: {}]
  %s18 = inlined_call_operand.hbm [shape: f32[32,1], index: 18, kind: input, shape index: {}]
  %s19 = inlined_call_operand.hbm [shape: bf16[9,32,16], index: 19, kind: input, shape index: {}]
  %s20 = inlined_call_operand.hbm [shape: f32[32,1], index: 20, kind: input, shape index: {}]
  %s21 = inlined_call_operand.hbm [shape: bf16[9,32,32], index: 21, kind: input, shape index: {}]
  %s22 = inlined_call_operand.hbm [shape: f32[32,1], index: 22, kind: input, shape index: {}]
  %s23 = inlined_call_operand.hbm [shape: bf16[32,16], index: 23, kind: input, shape index: {}]
  %s24 = inlined_call_operand.vmem [shape: f32[2,32,16], index: 24, kind: output, shape index: {}]
  %s25 = sld [smem:[#allocation0]]
  $region221: #{fwd.1} parent=0
    _
  %s27 = ssub.s32 1, %s25
  %s28 = scalar_select 0, %s27, %s25
  $region1: #{fwd.1} parent=0
    #allocation2 [shape = 'u8[1179648]{0}', space=vmem, size = 0x120000, scoped, tag = 'input window, operand 1, single buffered']
    #allocation3 [shape = 's32[2]{0}', space=sflag, size = 0x8, scoped, tag = 'scoped memory for fwd.1']
    #allocation4 [shape = 'u8[589824]{0}', space=vmem, size = 0x90000, scoped, tag = 'input window, operand 2, single buffered']
    #allocation5 [shape = 's32[1]{0}', space=sflag, size = 0x4, scoped, tag = 'scoped memory for fwd.1']
    #allocation6 [shape = 'u8[147456]{0}', space=vmem, size = 0x24000, scoped, tag = 'input window, operand 3, single buffered']
    #allocation7 [shape = 'u8[147456]{0}', space=vmem, size = 0x24000, scoped, tag = 'input window, operand 4, single buffered']
    #allocation8 [shape = 's32[1]{0}', space=sflag, size = 0x4, scoped, tag = 'scoped memory for fwd.1']
    #allocation9 [shape = 'u8[36864]{0}', space=vmem, size = 0x9000, scoped, tag = 'input window, operand 5, single buffered']
    #allocation10 [shape = 'u8[8192]{0}', space=vmem, size = 0x2000, scoped, tag = 'input window, operand 6, single buffered']
    #allocation11 [shape = 's32[1]{0}', space=sflag, size = 0x4, scoped, tag = 'scoped memory for fwd.1']
    #allocation12 [shape = 'u8[36864]{0}', space=vmem, size = 0x9000, scoped, tag = 'input window, operand 7, single buffered']
    #allocation13 [shape = 'u8[8192]{0}', space=vmem, size = 0x2000, scoped, tag = 'input window, operand 8, single buffered']
    #allocation14 [shape = 's32[1]{0}', space=sflag, size = 0x4, scoped, tag = 'scoped memory for fwd.1']
    #allocation15 [shape = 'u8[36864]{0}', space=vmem, size = 0x9000, scoped, tag = 'input window, operand 9, single buffered']
    #allocation16 [shape = 'u8[8192]{0}', space=vmem, size = 0x2000, scoped, tag = 'input window, operand 10, single buffered']
    #allocation17 [shape = 's32[1]{0}', space=sflag, size = 0x4, scoped, tag = 'scoped memory for fwd.1']
    #allocation18 [shape = 'u8[36864]{0}', space=vmem, size = 0x9000, scoped, tag = 'input window, operand 11, single buffered']
    #allocation19 [shape = 'u8[8192]{0}', space=vmem, size = 0x2000, scoped, tag = 'input window, operand 12, single buffered']
    #allocation20 [shape = 's32[1]{0}', space=sflag, size = 0x4, scoped, tag = 'scoped memory for fwd.1']
    #allocation21 [shape = 'u8[36864]{0}', space=vmem, size = 0x9000, scoped, tag = 'input window, operand 13, single buffered']
    #allocation22 [shape = 'u8[8192]{0}', space=vmem, size = 0x2000, scoped, tag = 'input window, operand 14, single buffered']
    #allocation23 [shape = 's32[1]{0}', space=sflag, size = 0x4, scoped, tag = 'scoped memory for fwd.1']
    #allocation24 [shape = 'u8[36864]{0}', space=vmem, size = 0x9000, scoped, tag = 'input window, operand 15, single buffered']
    #allocation25 [shape = 'u8[8192]{0}', space=vmem, size = 0x2000, scoped, tag = 'input window, operand 16, single buffered']
    #allocation26 [shape = 's32[1]{0}', space=sflag, size = 0x4, scoped, tag = 'scoped memory for fwd.1']
    #allocation27 [shape = 'u8[4096]{0}', space=vmem, size = 0x1000, scoped, tag = 'input window, operand 17, single buffered']
    #allocation28 [shape = 'u8[16384]{0}', space=vmem, size = 0x4000, scoped, tag = 'input window, operand 18, single buffered']
    #allocation29 [shape = 's32[1]{0}', space=sflag, size = 0x4, scoped, tag = 'scoped memory for fwd.1']
    #allocation30 [shape = 'u8[73728]{0}', space=vmem, size = 0x12000, scoped, tag = 'input window, operand 19, single buffered']
    #allocation31 [shape = 'u8[16384]{0}', space=vmem, size = 0x4000, scoped, tag = 'input window, operand 20, single buffered']
    #allocation32 [shape = 's32[1]{0}', space=sflag, size = 0x4, scoped, tag = 'scoped memory for fwd.1']
    #allocation33 [shape = 'u8[73728]{0}', space=vmem, size = 0x12000, scoped, tag = 'input window, operand 21, single buffered']
    #allocation34 [shape = 'u8[16384]{0}', space=vmem, size = 0x4000, scoped, tag = 'input window, operand 22, single buffered']
    #allocation35 [shape = 's32[1]{0}', space=sflag, size = 0x4, scoped, tag = 'scoped memory for fwd.1']
    #allocation36 [shape = 'u8[8192]{0}', space=vmem, size = 0x2000, scoped, tag = 'input window, operand 23, single buffered']
    %29 = vsyncpa [#allocation3], 0
    %30 = vsyncpa [#allocation5], 0
    %31 = vsyncpa [#allocation8], 0
    %32 = vsyncpa [#allocation11], 0
    %33 = vsyncpa [#allocation14], 0
    %34 = vsyncpa [#allocation17], 0
    %35 = vsyncpa [#allocation20], 0
    %36 = vsyncpa [#allocation23], 0
    %37 = vsyncpa [#allocation26], 0
    %38 = vsyncpa [#allocation29], 0
    %39 = vsyncpa [#allocation32], 0
    %40 = vsyncpa [#allocation35], 0
    loop: start=0, step=1, limit=4
    $region2: #{fwd.1} parent=1 // loop_pre_header
      _
    $region3: #{fwd.1} parent=1 // loop_header
      %s42 = sphi 0, %s46
      %p43 = scmp.ge.s32.totalorder %s42, 4
      %s52 = sphi 0, %s54
      %s55 = sphi 0, %s52
      %s56 = sphi 0, %s55
      %s72 = sphi 0, %s56
      %s76 = sphi 0, %s76
      %s78 = sphi 0, %s76
      %s79 = sphi 0, %s78
      %s93 = sphi 0, %s79
      %s97 = sphi 0, %s97
      %s99 = sphi 0, %s97
      %s100 = sphi 0, %s99
      %s114 = sphi 0, %s100
      %s118 = sphi 0, %s118
      %s120 = sphi 0, %s118
      %s121 = sphi 0, %s120
      %s135 = sphi 0, %s121
      %s139 = sphi 0, %s139
      %s141 = sphi 0, %s139
      %s142 = sphi 0, %s141
      %s156 = sphi 0, %s142
      %s160 = sphi 0, %s160
      %s162 = sphi 0, %s160
      %s163 = sphi 0, %s162
      %s177 = sphi 0, %s163
      %s181 = sphi 0, %s181
      %s183 = sphi 0, %s181
      %s184 = sphi 0, %s183
      %s198 = sphi 0, %s184
      %s202 = sphi 0, %s202
      %s204 = sphi 0, %s202
      %s205 = sphi 0, %s204
      %s219 = sphi 0, %s205
      %s223 = sphi 0, %s223
      %s225 = sphi 0, %s223
      %s226 = sphi 0, %s225
      %s240 = sphi 0, %s226
      %s244 = sphi 0, %s244
      %s246 = sphi 0, %s244
      %s247 = sphi 0, %s246
      %s261 = sphi 0, %s247
      %s265 = sphi 0, %s265
      %s267 = sphi 0, %s265
      %s268 = sphi 0, %s267
      %s282 = sphi 0, %s268
      %s286 = sphi 0, %s286
      %s288 = sphi 0, %s286
      %s289 = sphi 0, %s288
      %s303 = sphi 0, %s289
      %s307 = sphi 0, %s307
      %s309 = sphi 0, %s307
      %s310 = sphi 0, %s309
      %s324 = sphi 0, %s310
      %s328 = sphi 0, %s328
      %s330 = sphi 0, %s328
      %s331 = sphi 0, %s330
      %s345 = sphi 0, %s331
      %s349 = sphi 0, %s349
      %s351 = sphi 0, %s349
      %s352 = sphi 0, %s351
      %s366 = sphi 0, %s352
      %s370 = sphi 0, %s370
      %s372 = sphi 0, %s370
      %s373 = sphi 0, %s372
      %s387 = sphi 0, %s373
      %s391 = sphi 0, %s391
      %s393 = sphi 0, %s391
      %s394 = sphi 0, %s393
      %s408 = sphi 0, %s394
      %s412 = sphi 0, %s412
      %s414 = sphi 0, %s412
      %s415 = sphi 0, %s414
      %s429 = sphi 0, %s415
      %s433 = sphi 0, %s433
      %s435 = sphi 0, %s433
      %s436 = sphi 0, %s435
      %s450 = sphi 0, %s436
      %s454 = sphi 0, %s454
      %s456 = sphi 0, %s454
      %s457 = sphi 0, %s456
      %s471 = sphi 0, %s457
      %s475 = sphi 0, %s475
      %s477 = sphi 0, %s475
      %s478 = sphi 0, %s477
      %s492 = sphi 0, %s478
      %s496 = sphi 0, %s496
      %s498 = sphi 0, %s496
      %s499 = sphi 0, %s498
      %s513 = sphi 0, %s499
      %s517 = sphi 0, %s517
      %s519 = sphi 0, %s517
      %s520 = sphi 0, %s519
      %s534 = sphi 0, %s520
      %s538 = sphi 0, %s538
      %s540 = sphi 0, %s538
      %s541 = sphi 0, %s540
      %s555 = sphi 0, %s541
      %s561 = sphi 0, %s563
      %s564 = sphi 0, %s561
      %s565 = sphi 0, %s564
      %s581 = sphi 0, %s565
    $region4: #{fwd.1} parent=1 // loop_header_branch
      %45 = sbr.rel (%p43) target = $region8
    $region5: #{fwd.1} parent=1 // loop_body
      %s47 = ssub.s32 %s42, 1
      %s48 = ssub.s32 %s42, 2
      %s49 = sadd.s32 %s42, 1
      %s50 = ssub.s32 %s42, %s49
      %p51 = scmp.eq.s32.totalorder %s50, 0
      %s53 = sadd.s32 %s52, 1
      %s54 = scalar_select %p51, %s52, %s53
      %p57 = pneg %p51
      %p58 = scmp.eq.s32.totalorder %s42, 1
      %p59 = por %p57, %p58
      %p60 = scmp.ne.s32.totalorder %s52, %s55
      %p61 = scmp.eq.s32.totalorder %s42, 0
      %p62 = por %p60, %p61
      %p63 = scmp.ne.s32.totalorder %s52, %s55
      %p64 = scmp.eq.s32.totalorder %s47, 1
      %p65 = por %p63, %p64
      %p66 = scmp.ne.s32.totalorder %s55, %s56
      %p67 = scmp.eq.s32.totalorder %s47, 0
      %p68 = por %p66, %p67
      %p69 = scmp.ne.s32.totalorder %s55, %s56
      %p70 = scmp.eq.s32.totalorder %s48, 1
      %p71 = por %p69, %p70
      %p73 = scmp.ne.s32.totalorder %s56, %s72
      %p74 = scmp.eq.s32.totalorder %s48, 0
      %p75 = por %p73, %p74
      %s77 = sadd.s32 %s76, 1
      %p80 = scmp.eq.s32.totalorder %s42, 1
      %p81 = scmp.ne.s32.totalorder %s76, %s78
      %p82 = scmp.eq.s32.totalorder %s42, 0
      %p83 = por %p81, %p82
      %p84 = scmp.ne.s32.totalorder %s76, %s78
      %p85 = scmp.eq.s32.totalorder %s47, 1
      %p86 = por %p84, %p85
      %p87 = scmp.ne.s32.totalorder %s78, %s79
      %p88 = scmp.eq.s32.totalorder %s47, 0
      %p89 = por %p87, %p88
      %p90 = scmp.ne.s32.totalorder %s78, %s79
      %p91 = scmp.eq.s32.totalorder %s48, 1
      %p92 = por %p90, %p91
      %p94 = scmp.ne.s32.totalorder %s79, %s93
      %p95 = scmp.eq.s32.totalorder %s48, 0
      %p96 = por %p94, %p95
      %s98 = sadd.s32 %s97, 1
      %p101 = scmp.eq.s32.totalorder %s42, 1
      %p102 = scmp.ne.s32.totalorder %s97, %s99
      %p103 = scmp.eq.s32.totalorder %s42, 0
      %p104 = por %p102, %p103
      %p105 = scmp.ne.s32.totalorder %s97, %s99
      %p106 = scmp.eq.s32.totalorder %s47, 1
      %p107 = por %p105, %p106
      %p108 = scmp.ne.s32.totalorder %s99, %s100
      %p109 = scmp.eq.s32.totalorder %s47, 0
      %p110 = por %p108, %p109
      %p111 = scmp.ne.s32.totalorder %s99, %s100
      %p112 = scmp.eq.s32.totalorder %s48, 1
      %p113 = por %p111, %p112
      %p115 = scmp.ne.s32.totalorder %s100, %s114
      %p116 = scmp.eq.s32.totalorder %s48, 0
      %p117 = por %p115, %p116
      %s119 = sadd.s32 %s118, 1
      %p122 = scmp.eq.s32.totalorder %s42, 1
      %p123 = scmp.ne.s32.totalorder %s118, %s120
      %p124 = scmp.eq.s32.totalorder %s42, 0
      %p125 = por %p123, %p124
      %p126 = scmp.ne.s32.totalorder %s118, %s120
      %p127 = scmp.eq.s32.totalorder %s47, 1
      %p128 = por %p126, %p127
      %p129 = scmp.ne.s32.totalorder %s120, %s121
      %p130 = scmp.eq.s32.totalorder %s47, 0
      %p131 = por %p129, %p130
      %p132 = scmp.ne.s32.totalorder %s120, %s121
      %p133 = scmp.eq.s32.totalorder %s48, 1
      %p134 = por %p132, %p133
      %p136 = scmp.ne.s32.totalorder %s121, %s135
      %p137 = scmp.eq.s32.totalorder %s48, 0
      %p138 = por %p136, %p137
      %s140 = sadd.s32 %s139, 1
      %p143 = scmp.eq.s32.totalorder %s42, 1
      %p144 = scmp.ne.s32.totalorder %s139, %s141
      %p145 = scmp.eq.s32.totalorder %s42, 0
      %p146 = por %p144, %p145
      %p147 = scmp.ne.s32.totalorder %s139, %s141
      %p148 = scmp.eq.s32.totalorder %s47, 1
      %p149 = por %p147, %p148
      %p150 = scmp.ne.s32.totalorder %s141, %s142
      %p151 = scmp.eq.s32.totalorder %s47, 0
      %p152 = por %p150, %p151
      %p153 = scmp.ne.s32.totalorder %s141, %s142
      %p154 = scmp.eq.s32.totalorder %s48, 1
      %p155 = por %p153, %p154
      %p157 = scmp.ne.s32.totalorder %s142, %s156
      %p158 = scmp.eq.s32.totalorder %s48, 0
      %p159 = por %p157, %p158
      %s161 = sadd.s32 %s160, 1
      %p164 = scmp.eq.s32.totalorder %s42, 1
      %p165 = scmp.ne.s32.totalorder %s160, %s162
      %p166 = scmp.eq.s32.totalorder %s42, 0
      %p167 = por %p165, %p166
      %p168 = scmp.ne.s32.totalorder %s160, %s162
      %p169 = scmp.eq.s32.totalorder %s47, 1
      %p170 = por %p168, %p169
      %p171 = scmp.ne.s32.totalorder %s162, %s163
      %p172 = scmp.eq.s32.totalorder %s47, 0
      %p173 = por %p171, %p172
      %p174 = scmp.ne.s32.totalorder %s162, %s163
      %p175 = scmp.eq.s32.totalorder %s48, 1
      %p176 = por %p174, %p175
      %p178 = scmp.ne.s32.totalorder %s163, %s177
      %p179 = scmp.eq.s32.totalorder %s48, 0
      %p180 = por %p178, %p179
      %s182 = sadd.s32 %s181, 1
      %p185 = scmp.eq.s32.totalorder %s42, 1
      %p186 = scmp.ne.s32.totalorder %s181, %s183
      %p187 = scmp.eq.s32.totalorder %s42, 0
      %p188 = por %p186, %p187
      %p189 = scmp.ne.s32.totalorder %s181, %s183
      %p190 = scmp.eq.s32.totalorder %s47, 1
      %p191 = por %p189, %p190
      %p192 = scmp.ne.s32.totalorder %s183, %s184
      %p193 = scmp.eq.s32.totalorder %s47, 0
      %p194 = por %p192, %p193
      %p195 = scmp.ne.s32.totalorder %s183, %s184
      %p196 = scmp.eq.s32.totalorder %s48, 1
      %p197 = por %p195, %p196
      %p199 = scmp.ne.s32.totalorder %s184, %s198
      %p200 = scmp.eq.s32.totalorder %s48, 0
      %p201 = por %p199, %p200
      %s203 = sadd.s32 %s202, 1
      %p206 = scmp.eq.s32.totalorder %s42, 1
      %p207 = scmp.ne.s32.totalorder %s202, %s204
      %p208 = scmp.eq.s32.totalorder %s42, 0
      %p209 = por %p207, %p208
      %p210 = scmp.ne.s32.totalorder %s202, %s204
      %p211 = scmp.eq.s32.totalorder %s47, 1
      %p212 = por %p210, %p211
      %p213 = scmp.ne.s32.totalorder %s204, %s205
      %p214 = scmp.eq.s32.totalorder %s47, 0
      %p215 = por %p213, %p214
      %p216 = scmp.ne.s32.totalorder %s204, %s205
      %p217 = scmp.eq.s32.totalorder %s48, 1
      %p218 = por %p216, %p217
      %p220 = scmp.ne.s32.totalorder %s205, %s219
      %p221 = scmp.eq.s32.totalorder %s48, 0
      %p222 = por %p220, %p221
      %s224 = sadd.s32 %s223, 1
      %p227 = scmp.eq.s32.totalorder %s42, 1
      %p228 = scmp.ne.s32.totalorder %s223, %s225
      %p229 = scmp.eq.s32.totalorder %s42, 0
      %p230 = por %p228, %p229
      %p231 = scmp.ne.s32.totalorder %s223, %s225
      %p232 = scmp.eq.s32.totalorder %s47, 1
      %p233 = por %p231, %p232
      %p234 = scmp.ne.s32.totalorder %s225, %s226
      %p235 = scmp.eq.s32.totalorder %s47, 0
      %p236 = por %p234, %p235
      %p237 = scmp.ne.s32.totalorder %s225, %s226
      %p238 = scmp.eq.s32.totalorder %s48, 1
      %p239 = por %p237, %p238
      %p241 = scmp.ne.s32.totalorder %s226, %s240
      %p242 = scmp.eq.s32.totalorder %s48, 0
      %p243 = por %p241, %p242
      %s245 = sadd.s32 %s244, 1
      %p248 = scmp.eq.s32.totalorder %s42, 1
      %p249 = scmp.ne.s32.totalorder %s244, %s246
      %p250 = scmp.eq.s32.totalorder %s42, 0
      %p251 = por %p249, %p250
      %p252 = scmp.ne.s32.totalorder %s244, %s246
      %p253 = scmp.eq.s32.totalorder %s47, 1
      %p254 = por %p252, %p253
      %p255 = scmp.ne.s32.totalorder %s246, %s247
      %p256 = scmp.eq.s32.totalorder %s47, 0
      %p257 = por %p255, %p256
      %p258 = scmp.ne.s32.totalorder %s246, %s247
      %p259 = scmp.eq.s32.totalorder %s48, 1
      %p260 = por %p258, %p259
      %p262 = scmp.ne.s32.totalorder %s247, %s261
      %p263 = scmp.eq.s32.totalorder %s48, 0
      %p264 = por %p262, %p263
      %s266 = sadd.s32 %s265, 1
      %p269 = scmp.eq.s32.totalorder %s42, 1
      %p270 = scmp.ne.s32.totalorder %s265, %s267
      %p271 = scmp.eq.s32.totalorder %s42, 0
      %p272 = por %p270, %p271
      %p273 = scmp.ne.s32.totalorder %s265, %s267
      %p274 = scmp.eq.s32.totalorder %s47, 1
      %p275 = por %p273, %p274
      %p276 = scmp.ne.s32.totalorder %s267, %s268
      %p277 = scmp.eq.s32.totalorder %s47, 0
      %p278 = por %p276, %p277
      %p279 = scmp.ne.s32.totalorder %s267, %s268
      %p280 = scmp.eq.s32.totalorder %s48, 1
      %p281 = por %p279, %p280
      %p283 = scmp.ne.s32.totalorder %s268, %s282
      %p284 = scmp.eq.s32.totalorder %s48, 0
      %p285 = por %p283, %p284
      %s287 = sadd.s32 %s286, 1
      %p290 = scmp.eq.s32.totalorder %s42, 1
      %p291 = scmp.ne.s32.totalorder %s286, %s288
      %p292 = scmp.eq.s32.totalorder %s42, 0
      %p293 = por %p291, %p292
      %p294 = scmp.ne.s32.totalorder %s286, %s288
      %p295 = scmp.eq.s32.totalorder %s47, 1
      %p296 = por %p294, %p295
      %p297 = scmp.ne.s32.totalorder %s288, %s289
      %p298 = scmp.eq.s32.totalorder %s47, 0
      %p299 = por %p297, %p298
      %p300 = scmp.ne.s32.totalorder %s288, %s289
      %p301 = scmp.eq.s32.totalorder %s48, 1
      %p302 = por %p300, %p301
      %p304 = scmp.ne.s32.totalorder %s289, %s303
      %p305 = scmp.eq.s32.totalorder %s48, 0
      %p306 = por %p304, %p305
      %s308 = sadd.s32 %s307, 1
      %p311 = scmp.eq.s32.totalorder %s42, 1
      %p312 = scmp.ne.s32.totalorder %s307, %s309
      %p313 = scmp.eq.s32.totalorder %s42, 0
      %p314 = por %p312, %p313
      %p315 = scmp.ne.s32.totalorder %s307, %s309
      %p316 = scmp.eq.s32.totalorder %s47, 1
      %p317 = por %p315, %p316
      %p318 = scmp.ne.s32.totalorder %s309, %s310
      %p319 = scmp.eq.s32.totalorder %s47, 0
      %p320 = por %p318, %p319
      %p321 = scmp.ne.s32.totalorder %s309, %s310
      %p322 = scmp.eq.s32.totalorder %s48, 1
      %p323 = por %p321, %p322
      %p325 = scmp.ne.s32.totalorder %s310, %s324
      %p326 = scmp.eq.s32.totalorder %s48, 0
      %p327 = por %p325, %p326
      %s329 = sadd.s32 %s328, 1
      %p332 = scmp.eq.s32.totalorder %s42, 1
      %p333 = scmp.ne.s32.totalorder %s328, %s330
      %p334 = scmp.eq.s32.totalorder %s42, 0
      %p335 = por %p333, %p334
      %p336 = scmp.ne.s32.totalorder %s328, %s330
      %p337 = scmp.eq.s32.totalorder %s47, 1
      %p338 = por %p336, %p337
      %p339 = scmp.ne.s32.totalorder %s330, %s331
      %p340 = scmp.eq.s32.totalorder %s47, 0
      %p341 = por %p339, %p340
      %p342 = scmp.ne.s32.totalorder %s330, %s331
      %p343 = scmp.eq.s32.totalorder %s48, 1
      %p344 = por %p342, %p343
      %p346 = scmp.ne.s32.totalorder %s331, %s345
      %p347 = scmp.eq.s32.totalorder %s48, 0
      %p348 = por %p346, %p347
      %s350 = sadd.s32 %s349, 1
      %p353 = scmp.eq.s32.totalorder %s42, 1
      %p354 = scmp.ne.s32.totalorder %s349, %s351
      %p355 = scmp.eq.s32.totalorder %s42, 0
      %p356 = por %p354, %p355
      %p357 = scmp.ne.s32.totalorder %s349, %s351
      %p358 = scmp.eq.s32.totalorder %s47, 1
      %p359 = por %p357, %p358
      %p360 = scmp.ne.s32.totalorder %s351, %s352
      %p361 = scmp.eq.s32.totalorder %s47, 0
      %p362 = por %p360, %p361
      %p363 = scmp.ne.s32.totalorder %s351, %s352
      %p364 = scmp.eq.s32.totalorder %s48, 1
      %p365 = por %p363, %p364
      %p367 = scmp.ne.s32.totalorder %s352, %s366
      %p368 = scmp.eq.s32.totalorder %s48, 0
      %p369 = por %p367, %p368
      %s371 = sadd.s32 %s370, 1
      %p374 = scmp.eq.s32.totalorder %s42, 1
      %p375 = scmp.ne.s32.totalorder %s370, %s372
      %p376 = scmp.eq.s32.totalorder %s42, 0
      %p377 = por %p375, %p376
      %p378 = scmp.ne.s32.totalorder %s370, %s372
      %p379 = scmp.eq.s32.totalorder %s47, 1
      %p380 = por %p378, %p379
      %p381 = scmp.ne.s32.totalorder %s372, %s373
      %p382 = scmp.eq.s32.totalorder %s47, 0
      %p383 = por %p381, %p382
      %p384 = scmp.ne.s32.totalorder %s372, %s373
      %p385 = scmp.eq.s32.totalorder %s48, 1
      %p386 = por %p384, %p385
      %p388 = scmp.ne.s32.totalorder %s373, %s387
      %p389 = scmp.eq.s32.totalorder %s48, 0
      %p390 = por %p388, %p389
      %s392 = sadd.s32 %s391, 1
      %p395 = scmp.eq.s32.totalorder %s42, 1
      %p396 = scmp.ne.s32.totalorder %s391, %s393
      %p397 = scmp.eq.s32.totalorder %s42, 0
      %p398 = por %p396, %p397
      %p399 = scmp.ne.s32.totalorder %s391, %s393
      %p400 = scmp.eq.s32.totalorder %s47, 1
      %p401 = por %p399, %p400
      %p402 = scmp.ne.s32.totalorder %s393, %s394
      %p403 = scmp.eq.s32.totalorder %s47, 0
      %p404 = por %p402, %p403
      %p405 = scmp.ne.s32.totalorder %s393, %s394
      %p406 = scmp.eq.s32.totalorder %s48, 1
      %p407 = por %p405, %p406
      %p409 = scmp.ne.s32.totalorder %s394, %s408
      %p410 = scmp.eq.s32.totalorder %s48, 0
      %p411 = por %p409, %p410
      %s413 = sadd.s32 %s412, 1
      %p416 = scmp.eq.s32.totalorder %s42, 1
      %p417 = scmp.ne.s32.totalorder %s412, %s414
      %p418 = scmp.eq.s32.totalorder %s42, 0
      %p419 = por %p417, %p418
      %p420 = scmp.ne.s32.totalorder %s412, %s414
      %p421 = scmp.eq.s32.totalorder %s47, 1
      %p422 = por %p420, %p421
      %p423 = scmp.ne.s32.totalorder %s414, %s415
      %p424 = scmp.eq.s32.totalorder %s47, 0
      %p425 = por %p423, %p424
      %p426 = scmp.ne.s32.totalorder %s414, %s415
      %p427 = scmp.eq.s32.totalorder %s48, 1
      %p428 = por %p426, %p427
      %p430 = scmp.ne.s32.totalorder %s415, %s429
      %p431 = scmp.eq.s32.totalorder %s48, 0
      %p432 = por %p430, %p431
      %s434 = sadd.s32 %s433, 1
      %p437 = scmp.eq.s32.totalorder %s42, 1
      %p438 = scmp.ne.s32.totalorder %s433, %s435
      %p439 = scmp.eq.s32.totalorder %s42, 0
      %p440 = por %p438, %p439
      %p441 = scmp.ne.s32.totalorder %s433, %s435
      %p442 = scmp.eq.s32.totalorder %s47, 1
      %p443 = por %p441, %p442
      %p444 = scmp.ne.s32.totalorder %s435, %s436
      %p445 = scmp.eq.s32.totalorder %s47, 0
      %p446 = por %p444, %p445
      %p447 = scmp.ne.s32.totalorder %s435, %s436
      %p448 = scmp.eq.s32.totalorder %s48, 1
      %p449 = por %p447, %p448
      %p451 = scmp.ne.s32.totalorder %s436, %s450
      %p452 = scmp.eq.s32.totalorder %s48, 0
      %p453 = por %p451, %p452
      %s455 = sadd.s32 %s454, 1
      %p458 = scmp.eq.s32.totalorder %s42, 1
      %p459 = scmp.ne.s32.totalorder %s454, %s456
      %p460 = scmp.eq.s32.totalorder %s42, 0
      %p461 = por %p459, %p460
      %p462 = scmp.ne.s32.totalorder %s454, %s456
      %p463 = scmp.eq.s32.totalorder %s47, 1
      %p464 = por %p462, %p463
      %p465 = scmp.ne.s32.totalorder %s456, %s457
      %p466 = scmp.eq.s32.totalorder %s47, 0
      %p467 = por %p465, %p466
      %p468 = scmp.ne.s32.totalorder %s456, %s457
      %p469 = scmp.eq.s32.totalorder %s48, 1
      %p470 = por %p468, %p469
      %p472 = scmp.ne.s32.totalorder %s457, %s471
      %p473 = scmp.eq.s32.totalorder %s48, 0
      %p474 = por %p472, %p473
      %s476 = sadd.s32 %s475, 1
      %p479 = scmp.eq.s32.totalorder %s42, 1
      %p480 = scmp.ne.s32.totalorder %s475, %s477
      %p481 = scmp.eq.s32.totalorder %s42, 0
      %p482 = por %p480, %p481
      %p483 = scmp.ne.s32.totalorder %s475, %s477
      %p484 = scmp.eq.s32.totalorder %s47, 1
      %p485 = por %p483, %p484
      %p486 = scmp.ne.s32.totalorder %s477, %s478
      %p487 = scmp.eq.s32.totalorder %s47, 0
      %p488 = por %p486, %p487
      %p489 = scmp.ne.s32.totalorder %s477, %s478
      %p490 = scmp.eq.s32.totalorder %s48, 1
      %p491 = por %p489, %p490
      %p493 = scmp.ne.s32.totalorder %s478, %s492
      %p494 = scmp.eq.s32.totalorder %s48, 0
      %p495 = por %p493, %p494
      %s497 = sadd.s32 %s496, 1
      %p500 = scmp.eq.s32.totalorder %s42, 1
      %p501 = scmp.ne.s32.totalorder %s496, %s498
      %p502 = scmp.eq.s32.totalorder %s42, 0
      %p503 = por %p501, %p502
      %p504 = scmp.ne.s32.totalorder %s496, %s498
      %p505 = scmp.eq.s32.totalorder %s47, 1
      %p506 = por %p504, %p505
      %p507 = scmp.ne.s32.totalorder %s498, %s499
      %p508 = scmp.eq.s32.totalorder %s47, 0
      %p509 = por %p507, %p508
      %p510 = scmp.ne.s32.totalorder %s498, %s499
      %p511 = scmp.eq.s32.totalorder %s48, 1
      %p512 = por %p510, %p511
      %p514 = scmp.ne.s32.totalorder %s499, %s513
      %p515 = scmp.eq.s32.totalorder %s48, 0
      %p516 = por %p514, %p515
      %s518 = sadd.s32 %s517, 1
      %p521 = scmp.eq.s32.totalorder %s42, 1
      %p522 = scmp.ne.s32.totalorder %s517, %s519
      %p523 = scmp.eq.s32.totalorder %s42, 0
      %p524 = por %p522, %p523
      %p525 = scmp.ne.s32.totalorder %s517, %s519
      %p526 = scmp.eq.s32.totalorder %s47, 1
      %p527 = por %p525, %p526
      %p528 = scmp.ne.s32.totalorder %s519, %s520
      %p529 = scmp.eq.s32.totalorder %s47, 0
      %p530 = por %p528, %p529
      %p531 = scmp.ne.s32.totalorder %s519, %s520
      %p532 = scmp.eq.s32.totalorder %s48, 1
      %p533 = por %p531, %p532
      %p535 = scmp.ne.s32.totalorder %s520, %s534
      %p536 = scmp.eq.s32.totalorder %s48, 0
      %p537 = por %p535, %p536
      %s539 = sadd.s32 %s538, 1
      %p542 = scmp.eq.s32.totalorder %s42, 1
      %p543 = scmp.ne.s32.totalorder %s538, %s540
      %p544 = scmp.eq.s32.totalorder %s42, 0
      %p545 = por %p543, %p544
      %p546 = scmp.ne.s32.totalorder %s538, %s540
      %p547 = scmp.eq.s32.totalorder %s47, 1
      %p548 = por %p546, %p547
      %p549 = scmp.ne.s32.totalorder %s540, %s541
      %p550 = scmp.eq.s32.totalorder %s47, 0
      %p551 = por %p549, %p550
      %p552 = scmp.ne.s32.totalorder %s540, %s541
      %p553 = scmp.eq.s32.totalorder %s48, 1
      %p554 = por %p552, %p553
      %p556 = scmp.ne.s32.totalorder %s541, %s555
      %p557 = scmp.eq.s32.totalorder %s48, 0
      %p558 = por %p556, %p557
      %s559 = ssub.s32 %s42, %s49
      %p560 = scmp.eq.s32.totalorder %s559, 0
      %s562 = sadd.s32 %s561, 1
      %s563 = scalar_select %p560, %s561, %s562
      %p566 = pneg %p560
      %p567 = scmp.eq.s32.totalorder %s42, 1
      %p568 = por %p566, %p567
      %p569 = scmp.ne.s32.totalorder %s561, %s564
      %p570 = scmp.eq.s32.totalorder %s42, 0
      %p571 = por %p569, %p570
      %p572 = scmp.ne.s32.totalorder %s561, %s564
      %p573 = scmp.eq.s32.totalorder %s47, 1
      %p574 = por %p572, %p573
      %p575 = scmp.ne.s32.totalorder %s564, %s565
      %p576 = scmp.eq.s32.totalorder %s47, 0
      %p577 = por %p575, %p576
      %p578 = scmp.ne.s32.totalorder %s564, %s565
      %p579 = scmp.eq.s32.totalorder %s48, 1
      %p580 = por %p578, %p579
      %p582 = scmp.ne.s32.totalorder %s565, %s581
      %p583 = scmp.eq.s32.totalorder %s48, 0
      %p584 = por %p582, %p583
      %p585 = scmp.le.s32.totalorder 1, %s42
      %p586 = scmp.lt.s32.totalorder %s42, 3
      %p587 = pnand %p585, %p586
      %p588 = pneg %p587
      // Predicated region
      $region9: #{fwd.1} parent=5 // pred_check
        _
      $region10: #{fwd.1} parent=5 // pred_check_branch
        %590 = sbr.rel (%p587) target = $region12
      $region11: #{fwd.1} parent=5 // pred_region
        %s591 = ssub.s32 %s42, 1
        // Predicated region
        $region13: #{fwd.1} parent=11 // pred_check
          %p592 = pneg %p89
        $region14: #{fwd.1} parent=11 // pred_check_branch
          %594 = sbr.rel (%p592) target = $region16
        $region15: #{fwd.1} parent=11 // pred_region
          %596 = vsyncadd [#allocation3], 0
          %s597 = sshll.u32 %s1, 4
          %s598 = int_to_ptr.hbm [resolvable:$true] %s597
          %s599 = sshll.u32 [#allocation2], 4
          %s600 = int_to_ptr.vmem [resolvable:$true] %s599
          %605 = dma.hbm_to_vmem [thread:$0]  %s598, 36864, %s600, [#allocation3], 128, 128, 8
        $region16: #{fwd.1} parent=11 // pred_fallthru
          _
        // Predicated region
        $region17: #{fwd.1} parent=11 // pred_check
          %p606 = pneg %p110
        $region18: #{fwd.1} parent=11 // pred_check_branch
          %608 = sbr.rel (%p606) target = $region20
        $region19: #{fwd.1} parent=11 // pred_region
          %610 = vsyncadd [#allocation5], 0
          %s611 = sshll.u32 %s2, 4
          %s612 = int_to_ptr.hbm [resolvable:$true] %s611
          %s613 = sshll.u32 [#allocation4], 4
          %s614 = int_to_ptr.vmem [resolvable:$true] %s613
          %619 = dma.hbm_to_vmem [thread:$0]  %s612, 18432, %s614, [#allocation5], 64, 64, 4
        $region20: #{fwd.1} parent=11 // pred_fallthru
          _
        // Predicated region
        $region21: #{fwd.1} parent=11 // pred_check
          %p620 = pneg %p131
        $region22: #{fwd.1} parent=11 // pred_check_branch
          %622 = sbr.rel (%p620) target = $region24
        $region23: #{fwd.1} parent=11 // pred_region
          %624 = vsyncadd [#allocation5], 0
          %s625 = sshll.u32 %s3, 4
          %s626 = int_to_ptr.hbm [resolvable:$true] %s625
          %s627 = sshll.u32 [#allocation6], 4
          %s628 = int_to_ptr.vmem [resolvable:$true] %s627
          %633 = dma.hbm_to_vmem [thread:$0]  %s626, 4608, %s628, [#allocation5], 64, 64, 4
        $region24: #{fwd.1} parent=11 // pred_fallthru
          _
        // Predicated region
        $region25: #{fwd.1} parent=11 // pred_check
          %p634 = pneg %p152
        $region26: #{fwd.1} parent=11 // pred_check_branch
          %636 = sbr.rel (%p634) target = $region28
        $region27: #{fwd.1} parent=11 // pred_region
          %638 = vsyncadd [#allocation8], 0
          %s639 = sshll.u32 %s4, 4
          %s640 = int_to_ptr.hbm [resolvable:$true] %s639
          %s641 = sshll.u32 [#allocation7], 4
          %s642 = int_to_ptr.vmem [resolvable:$true] %s641
          %647 = dma.hbm_to_vmem [thread:$0]  %s640, 4608, %s642, [#allocation8], 64, 64, 4
        $region28: #{fwd.1} parent=11 // pred_fallthru
          _
        // Predicated region
        $region29: #{fwd.1} parent=11 // pred_check
          %p648 = pneg %p173
        $region30: #{fwd.1} parent=11 // pred_check_branch
          %650 = sbr.rel (%p648) target = $region32
        $region31: #{fwd.1} parent=11 // pred_region
          %652 = vsyncadd [#allocation8], 0
          %s653 = sshll.u32 %s5, 4
          %s654 = int_to_ptr.hbm [resolvable:$true] %s653
          %s655 = sshll.u32 [#allocation9], 4
          %s656 = int_to_ptr.vmem [resolvable:$true] %s655
          %661 = dma.hbm_to_vmem [thread:$0]  %s654, 1152, %s656, [#allocation8], 64, 64, 4
        $region32: #{fwd.1} parent=11 // pred_fallthru
          _
        // Predicated region
        $region33: #{fwd.1} parent=11 // pred_check
          %p662 = pneg %p194
        $region34: #{fwd.1} parent=11 // pred_check_branch
          %664 = sbr.rel (%p662) target = $region36
        $region35: #{fwd.1} parent=11 // pred_region
          %666 = vsyncadd [#allocation11], 0
          %s667 = sshll.u32 %s6, 4
          %s668 = int_to_ptr.hbm [resolvable:$true] %s667
          %s669 = sshll.u32 [#allocation10], 4
          %s670 = int_to_ptr.vmem [resolvable:$true] %s669
          %675 = dma.hbm_to_vmem [thread:$0]  %s668, 256, %s670, [#allocation11], 128, 128, 8
        $region36: #{fwd.1} parent=11 // pred_fallthru
          _
        // Predicated region
        $region37: #{fwd.1} parent=11 // pred_check
          %p676 = pneg %p215
        $region38: #{fwd.1} parent=11 // pred_check_branch
          %678 = sbr.rel (%p676) target = $region40
        $region39: #{fwd.1} parent=11 // pred_region
          %680 = vsyncadd [#allocation11], 0
          %s681 = sshll.u32 %s7, 4
          %s682 = int_to_ptr.hbm [resolvable:$true] %s681
          %s683 = sshll.u32 [#allocation12], 4
          %s684 = int_to_ptr.vmem [resolvable:$true] %s683
          %689 = dma.hbm_to_vmem [thread:$0]  %s682, 1152, %s684, [#allocation11], 64, 64, 4
        $region40: #{fwd.1} parent=11 // pred_fallthru
          _
        // Predicated region
        $region41: #{fwd.1} parent=11 // pred_check
          %p690 = pneg %p236
        $region42: #{fwd.1} parent=11 // pred_check_branch
          %692 = sbr.rel (%p690) target = $region44
        $region43: #{fwd.1} parent=11 // pred_region
          %694 = vsyncadd [#allocation14], 0
          %s695 = sshll.u32 %s8, 4
          %s696 = int_to_ptr.hbm [resolvable:$true] %s695
          %s697 = sshll.u32 [#allocation13], 4
          %s698 = int_to_ptr.vmem [resolvable:$true] %s697
          %703 = dma.hbm_to_vmem [thread:$0]  %s696, 256, %s698, [#allocation14], 128, 128, 8
        $region44: #{fwd.1} parent=11 // pred_fallthru
          _
        // Predicated region
        $region45: #{fwd.1} parent=11 // pred_check
          %p704 = pneg %p257
        $region46: #{fwd.1} parent=11 // pred_check_branch
          %706 = sbr.rel (%p704) target = $region48
        $region47: #{fwd.1} parent=11 // pred_region
          %708 = vsyncadd [#allocation14], 0
          %s709 = sshll.u32 %s9, 4
          %s710 = int_to_ptr.hbm [resolvable:$true] %s709
          %s711 = sshll.u32 [#allocation15], 4
          %s712 = int_to_ptr.vmem [resolvable:$true] %s711
          %717 = dma.hbm_to_vmem [thread:$0]  %s710, 1152, %s712, [#allocation14], 64, 64, 4
        $region48: #{fwd.1} parent=11 // pred_fallthru
          _
        // Predicated region
        $region49: #{fwd.1} parent=11 // pred_check
          %p718 = pneg %p278
        $region50: #{fwd.1} parent=11 // pred_check_branch
          %720 = sbr.rel (%p718) target = $region52
        $region51: #{fwd.1} parent=11 // pred_region
          %722 = vsyncadd [#allocation17], 0
          %s723 = sshll.u32 %s10, 4
          %s724 = int_to_ptr.hbm [resolvable:$true] %s723
          %s725 = sshll.u32 [#allocation16], 4
          %s726 = int_to_ptr.vmem [resolvable:$true] %s725
          %731 = dma.hbm_to_vmem [thread:$0]  %s724, 256, %s726, [#allocation17], 128, 128, 8
        $region52: #{fwd.1} parent=11 // pred_fallthru
          _
        // Predicated region
        $region53: #{fwd.1} parent=11 // pred_check
          %p732 = pneg %p299
        $region54: #{fwd.1} parent=11 // pred_check_branch
          %734 = sbr.rel (%p732) target = $region56
        $region55: #{fwd.1} parent=11 // pred_region
          %736 = vsyncadd [#allocation17], 0
          %s737 = sshll.u32 %s11, 4
          %s738 = int_to_ptr.hbm [resolvable:$true] %s737
          %s739 = sshll.u32 [#allocation18], 4
          %s740 = int_to_ptr.vmem [resolvable:$true] %s739
          %745 = dma.hbm_to_vmem [thread:$0]  %s738, 1152, %s740, [#allocation17], 64, 64, 4
        $region56: #{fwd.1} parent=11 // pred_fallthru
          _
        // Predicated region
        $region57: #{fwd.1} parent=11 // pred_check
          %p746 = pneg %p320
        $region58: #{fwd.1} parent=11 // pred_check_branch
          %748 = sbr.rel (%p746) target = $region60
        $region59: #{fwd.1} parent=11 // pred_region
          %750 = vsyncadd [#allocation20], 0
          %s751 = sshll.u32 %s12, 4
          %s752 = int_to_ptr.hbm [resolvable:$true] %s751
          %s753 = sshll.u32 [#allocation19], 4
          %s754 = int_to_ptr.vmem [resolvable:$true] %s753
          %759 = dma.hbm_to_vmem [thread:$0]  %s752, 256, %s754, [#allocation20], 128, 128, 8
        $region60: #{fwd.1} parent=11 // pred_fallthru
          _
        // Predicated region
        $region61: #{fwd.1} parent=11 // pred_check
          %p760 = pneg %p341
        $region62: #{fwd.1} parent=11 // pred_check_branch
          %762 = sbr.rel (%p760) target = $region64
        $region63: #{fwd.1} parent=11 // pred_region
          %764 = vsyncadd [#allocation20], 0
          %s765 = sshll.u32 %s13, 4
          %s766 = int_to_ptr.hbm [resolvable:$true] %s765
          %s767 = sshll.u32 [#allocation21], 4
          %s768 = int_to_ptr.vmem [resolvable:$true] %s767
          %773 = dma.hbm_to_vmem [thread:$0]  %s766, 1152, %s768, [#allocation20], 64, 64, 4
        $region64: #{fwd.1} parent=11 // pred_fallthru
          _
        // Predicated region
        $region65: #{fwd.1} parent=11 // pred_check
          %p774 = pneg %p362
        $region66: #{fwd.1} parent=11 // pred_check_branch
          %776 = sbr.rel (%p774) target = $region68
        $region67: #{fwd.1} parent=11 // pred_region
          %778 = vsyncadd [#allocation23], 0
          %s779 = sshll.u32 %s14, 4
          %s780 = int_to_ptr.hbm [resolvable:$true] %s779
          %s781 = sshll.u32 [#allocation22], 4
          %s782 = int_to_ptr.vmem [resolvable:$true] %s781
          %787 = dma.hbm_to_vmem [thread:$0]  %s780, 256, %s782, [#allocation23], 128, 128, 8
        $region68: #{fwd.1} parent=11 // pred_fallthru
          _
        // Predicated region
        $region69: #{fwd.1} parent=11 // pred_check
          %p788 = pneg %p383
        $region70: #{fwd.1} parent=11 // pred_check_branch
          %790 = sbr.rel (%p788) target = $region72
        $region71: #{fwd.1} parent=11 // pred_region
          %792 = vsyncadd [#allocation23], 0
          %s793 = sshll.u32 %s15, 4
          %s794 = int_to_ptr.hbm [resolvable:$true] %s793
          %s795 = sshll.u32 [#allocation24], 4
          %s796 = int_to_ptr.vmem [resolvable:$true] %s795
          %801 = dma.hbm_to_vmem [thread:$0]  %s794, 1152, %s796, [#allocation23], 64, 64, 4
        $region72: #{fwd.1} parent=11 // pred_fallthru
          _
        // Predicated region
        $region73: #{fwd.1} parent=11 // pred_check
          %p802 = pneg %p404
        $region74: #{fwd.1} parent=11 // pred_check_branch
          %804 = sbr.rel (%p802) target = $region76
        $region75: #{fwd.1} parent=11 // pred_region
          %806 = vsyncadd [#allocation26], 0
          %s807 = sshll.u32 %s16, 4
          %s808 = int_to_ptr.hbm [resolvable:$true] %s807
          %s809 = sshll.u32 [#allocation25], 4
          %s810 = int_to_ptr.vmem [resolvable:$true] %s809
          %815 = dma.hbm_to_vmem [thread:$0]  %s808, 256, %s810, [#allocation26], 128, 128, 8
        $region76: #{fwd.1} parent=11 // pred_fallthru
          _
        // Predicated region
        $region77: #{fwd.1} parent=11 // pred_check
          %p816 = pneg %p425
        $region78: #{fwd.1} parent=11 // pred_check_branch
          %818 = sbr.rel (%p816) target = $region80
        $region79: #{fwd.1} parent=11 // pred_region
          %820 = vsyncadd [#allocation26], 0
          %s821 = sshll.u32 %s17, 4
          %s822 = int_to_ptr.hbm [resolvable:$true] %s821
          %s823 = sshll.u32 [#allocation27], 4
          %s824 = int_to_ptr.vmem [resolvable:$true] %s823
          %829 = dma.hbm_to_vmem [thread:$0]  %s822, 128, %s824, [#allocation26], 64, 64, 4
        $region80: #{fwd.1} parent=11 // pred_fallthru
          _
        // Predicated region
        $region81: #{fwd.1} parent=11 // pred_check
          %p830 = pneg %p446
        $region82: #{fwd.1} parent=11 // pred_check_branch
          %832 = sbr.rel (%p830) target = $region84
        $region83: #{fwd.1} parent=11 // pred_region
          %834 = vsyncadd [#allocation29], 0
          %s835 = sshll.u32 %s18, 4
          %s836 = int_to_ptr.hbm [resolvable:$true] %s835
          %s837 = sshll.u32 [#allocation28], 4
          %s838 = int_to_ptr.vmem [resolvable:$true] %s837
          %843 = dma.hbm_to_vmem [thread:$0]  %s836, 512, %s838, [#allocation29], 128, 128, 8
        $region84: #{fwd.1} parent=11 // pred_fallthru
          _
        // Predicated region
        $region85: #{fwd.1} parent=11 // pred_check
          %p844 = pneg %p467
        $region86: #{fwd.1} parent=11 // pred_check_branch
          %846 = sbr.rel (%p844) target = $region88
        $region87: #{fwd.1} parent=11 // pred_region
          %848 = vsyncadd [#allocation29], 0
          %s849 = sshll.u32 %s19, 4
          %s850 = int_to_ptr.hbm [resolvable:$true] %s849
          %s851 = sshll.u32 [#allocation30], 4
          %s852 = int_to_ptr.vmem [resolvable:$true] %s851
          %857 = dma.hbm_to_vmem [thread:$0]  %s850, 2304, %s852, [#allocation29], 64, 64, 4
        $region88: #{fwd.1} parent=11 // pred_fallthru
          _
        // Predicated region
        $region89: #{fwd.1} parent=11 // pred_check
          %p858 = pneg %p488
        $region90: #{fwd.1} parent=11 // pred_check_branch
          %860 = sbr.rel (%p858) target = $region92
        $region91: #{fwd.1} parent=11 // pred_region
          %862 = vsyncadd [#allocation32], 0
          %s863 = sshll.u32 %s20, 4
          %s864 = int_to_ptr.hbm [resolvable:$true] %s863
          %s865 = sshll.u32 [#allocation31], 4
          %s866 = int_to_ptr.vmem [resolvable:$true] %s865
          %871 = dma.hbm_to_vmem [thread:$0]  %s864, 512, %s866, [#allocation32], 128, 128, 8
        $region92: #{fwd.1} parent=11 // pred_fallthru
          _
        // Predicated region
        $region93: #{fwd.1} parent=11 // pred_check
          %p872 = pneg %p509
        $region94: #{fwd.1} parent=11 // pred_check_branch
          %874 = sbr.rel (%p872) target = $region96
        $region95: #{fwd.1} parent=11 // pred_region
          %876 = vsyncadd [#allocation32], 0
          %s877 = sshll.u32 %s21, 4
          %s878 = int_to_ptr.hbm [resolvable:$true] %s877
          %s879 = sshll.u32 [#allocation33], 4
          %s880 = int_to_ptr.vmem [resolvable:$true] %s879
          %885 = dma.hbm_to_vmem [thread:$0]  %s878, 2304, %s880, [#allocation32], 64, 64, 4
        $region96: #{fwd.1} parent=11 // pred_fallthru
          _
        // Predicated region
        $region97: #{fwd.1} parent=11 // pred_check
          %p886 = pneg %p530
        $region98: #{fwd.1} parent=11 // pred_check_branch
          %888 = sbr.rel (%p886) target = $region100
        $region99: #{fwd.1} parent=11 // pred_region
          %890 = vsyncadd [#allocation35], 0
          %s891 = sshll.u32 %s22, 4
          %s892 = int_to_ptr.hbm [resolvable:$true] %s891
          %s893 = sshll.u32 [#allocation34], 4
          %s894 = int_to_ptr.vmem [resolvable:$true] %s893
          %899 = dma.hbm_to_vmem [thread:$0]  %s892, 512, %s894, [#allocation35], 128, 128, 8
        $region100: #{fwd.1} parent=11 // pred_fallthru
          _
        // Predicated region
        $region101: #{fwd.1} parent=11 // pred_check
          %p900 = pneg %p551
        $region102: #{fwd.1} parent=11 // pred_check_branch
          %902 = sbr.rel (%p900) target = $region104
        $region103: #{fwd.1} parent=11 // pred_region
          %904 = vsyncadd [#allocation35], 0
          %s905 = sshll.u32 %s23, 4
          %s906 = int_to_ptr.hbm [resolvable:$true] %s905
          %s907 = sshll.u32 [#allocation36], 4
          %s908 = int_to_ptr.vmem [resolvable:$true] %s907
          %913 = dma.hbm_to_vmem [thread:$0]  %s906, 256, %s908, [#allocation35], 64, 64, 4
        $region104: #{fwd.1} parent=11 // pred_fallthru
          _
      $region12: #{fwd.1} parent=5 // pred_fallthru
        _
      %p914 = scmp.lt.s32.totalorder %s42, 2
      // Predicated region
      $region105: #{fwd.1} parent=5 // pred_check
        %p915 = pneg %p914
      $region106: #{fwd.1} parent=5 // pred_check_branch
        %917 = sbr.rel (%p915) target = $region108
      $region107: #{fwd.1} parent=5 // pred_region
        // Predicated region
        $region109: #{fwd.1} parent=107 // pred_check
          %p918 = pneg %p62
        $region110: #{fwd.1} parent=107 // pred_check_branch
          %920 = sbr.rel (%p918) target = $region112
        $region111: #{fwd.1} parent=107 // pred_region
          %p921 = scmp.lt.s32.totalorder %s42, 1
          %s922 = scalar_select %p921, %s42, 1
          %s923 = smul.addr %s922, 2
          %s924 = smul.addr %s923, 4
          %s925 = scalar_lea.vmem %s0, %s924
        $region112: #{fwd.1} parent=107 // pred_fallthru
          _
      $region108: #{fwd.1} parent=5 // pred_fallthru
        _
      %p926 = scmp.le.s32.totalorder 1, %s42
      %p927 = scmp.lt.s32.totalorder %s42, 3
      %p928 = pnand %p926, %p927
      %p929 = pneg %p928
      // Predicated region
      $region113: #{fwd.1} parent=5 // pred_check
        _
      $region114: #{fwd.1} parent=5 // pred_check_branch
        %931 = sbr.rel (%p928) target = $region116
      $region115: #{fwd.1} parent=5 // pred_region
        %s932 = ssub.s32 %s42, 1
        // Predicated region
        $region117: #{fwd.1} parent=115 // pred_check
          %p933 = pneg %p89
        $region118: #{fwd.1} parent=115 // pred_check_branch
          %935 = sbr.rel (%p933) target = $region120
        $region119: #{fwd.1} parent=115 // pred_region
          %937 = dma.done [#allocation3], 36864
        $region120: #{fwd.1} parent=115 // pred_fallthru
          _
        // Predicated region
        $region121: #{fwd.1} parent=115 // pred_check
          %p938 = pneg %p110
        $region122: #{fwd.1} parent=115 // pred_check_branch
          %940 = sbr.rel (%p938) target = $region124
        $region123: #{fwd.1} parent=115 // pred_region
          %942 = dma.done [#allocation5], 18432
        $region124: #{fwd.1} parent=115 // pred_fallthru
          _
        // Predicated region
        $region125: #{fwd.1} parent=115 // pred_check
          %p943 = pneg %p131
        $region126: #{fwd.1} parent=115 // pred_check_branch
          %945 = sbr.rel (%p943) target = $region128
        $region127: #{fwd.1} parent=115 // pred_region
          %947 = dma.done [#allocation5], 4608
        $region128: #{fwd.1} parent=115 // pred_fallthru
          _
        // Predicated region
        $region129: #{fwd.1} parent=115 // pred_check
          %p948 = pneg %p152
        $region130: #{fwd.1} parent=115 // pred_check_branch
          %950 = sbr.rel (%p948) target = $region132
        $region131: #{fwd.1} parent=115 // pred_region
          %952 = dma.done [#allocation8], 4608
        $region132: #{fwd.1} parent=115 // pred_fallthru
          _
        // Predicated region
        $region133: #{fwd.1} parent=115 // pred_check
          %p953 = pneg %p173
        $region134: #{fwd.1} parent=115 // pred_check_branch
          %955 = sbr.rel (%p953) target = $region136
        $region135: #{fwd.1} parent=115 // pred_region
          %957 = dma.done [#allocation8], 1152
        $region136: #{fwd.1} parent=115 // pred_fallthru
          _
        // Predicated region
        $region137: #{fwd.1} parent=115 // pred_check
          %p958 = pneg %p194
        $region138: #{fwd.1} parent=115 // pred_check_branch
          %960 = sbr.rel (%p958) target = $region140
        $region139: #{fwd.1} parent=115 // pred_region
          %962 = dma.done [#allocation11], 256
        $region140: #{fwd.1} parent=115 // pred_fallthru
          _
        // Predicated region
        $region141: #{fwd.1} parent=115 // pred_check
          %p963 = pneg %p215
        $region142: #{fwd.1} parent=115 // pred_check_branch
          %965 = sbr.rel (%p963) target = $region144
        $region143: #{fwd.1} parent=115 // pred_region
          %967 = dma.done [#allocation11], 1152
        $region144: #{fwd.1} parent=115 // pred_fallthru
          _
        // Predicated region
        $region145: #{fwd.1} parent=115 // pred_check
          %p968 = pneg %p236
        $region146: #{fwd.1} parent=115 // pred_check_branch
          %970 = sbr.rel (%p968) target = $region148
        $region147: #{fwd.1} parent=115 // pred_region
          %972 = dma.done [#allocation14], 256
        $region148: #{fwd.1} parent=115 // pred_fallthru
          _
        // Predicated region
        $region149: #{fwd.1} parent=115 // pred_check
          %p973 = pneg %p257
        $region150: #{fwd.1} parent=115 // pred_check_branch
          %975 = sbr.rel (%p973) target = $region152
        $region151: #{fwd.1} parent=115 // pred_region
          %977 = dma.done [#allocation14], 1152
        $region152: #{fwd.1} parent=115 // pred_fallthru
          _
        // Predicated region
        $region153: #{fwd.1} parent=115 // pred_check
          %p978 = pneg %p278
        $region154: #{fwd.1} parent=115 // pred_check_branch
          %980 = sbr.rel (%p978) target = $region156
        $region155: #{fwd.1} parent=115 // pred_region
          %982 = dma.done [#allocation17], 256
        $region156: #{fwd.1} parent=115 // pred_fallthru
          _
        // Predicated region
        $region157: #{fwd.1} parent=115 // pred_check
          %p983 = pneg %p299
        $region158: #{fwd.1} parent=115 // pred_check_branch
          %985 = sbr.rel (%p983) target = $region160
        $region159: #{fwd.1} parent=115 // pred_region
          %987 = dma.done [#allocation17], 1152
        $region160: #{fwd.1} parent=115 // pred_fallthru
          _
        // Predicated region
        $region161: #{fwd.1} parent=115 // pred_check
          %p988 = pneg %p320
        $region162: #{fwd.1} parent=115 // pred_check_branch
          %990 = sbr.rel (%p988) target = $region164
        $region163: #{fwd.1} parent=115 // pred_region
          %992 = dma.done [#allocation20], 256
        $region164: #{fwd.1} parent=115 // pred_fallthru
          _
        // Predicated region
        $region165: #{fwd.1} parent=115 // pred_check
          %p993 = pneg %p341
        $region166: #{fwd.1} parent=115 // pred_check_branch
          %995 = sbr.rel (%p993) target = $region168
        $region167: #{fwd.1} parent=115 // pred_region
          %997 = dma.done [#allocation20], 1152
        $region168: #{fwd.1} parent=115 // pred_fallthru
          _
        // Predicated region
        $region169: #{fwd.1} parent=115 // pred_check
          %p998 = pneg %p362
        $region170: #{fwd.1} parent=115 // pred_check_branch
          %1000 = sbr.rel (%p998) target = $region172
        $region171: #{fwd.1} parent=115 // pred_region
          %1002 = dma.done [#allocation23], 256
        $region172: #{fwd.1} parent=115 // pred_fallthru
          _
        // Predicated region
        $region173: #{fwd.1} parent=115 // pred_check
          %p1003 = pneg %p383
        $region174: #{fwd.1} parent=115 // pred_check_branch
          %1005 = sbr.rel (%p1003) target = $region176
        $region175: #{fwd.1} parent=115 // pred_region
          %1007 = dma.done [#allocation23], 1152
        $region176: #{fwd.1} parent=115 // pred_fallthru
          _
        // Predicated region
        $region177: #{fwd.1} parent=115 // pred_check
          %p1008 = pneg %p404
        $region178: #{fwd.1} parent=115 // pred_check_branch
          %1010 = sbr.rel (%p1008) target = $region180
        $region179: #{fwd.1} parent=115 // pred_region
          %1012 = dma.done [#allocation26], 256
        $region180: #{fwd.1} parent=115 // pred_fallthru
          _
        // Predicated region
        $region181: #{fwd.1} parent=115 // pred_check
          %p1013 = pneg %p425
        $region182: #{fwd.1} parent=115 // pred_check_branch
          %1015 = sbr.rel (%p1013) target = $region184
        $region183: #{fwd.1} parent=115 // pred_region
          %1017 = dma.done [#allocation26], 128
        $region184: #{fwd.1} parent=115 // pred_fallthru
          _
        // Predicated region
        $region185: #{fwd.1} parent=115 // pred_check
          %p1018 = pneg %p446
        $region186: #{fwd.1} parent=115 // pred_check_branch
          %1020 = sbr.rel (%p1018) target = $region188
        $region187: #{fwd.1} parent=115 // pred_region
          %1022 = dma.done [#allocation29], 512
        $region188: #{fwd.1} parent=115 // pred_fallthru
          _
        // Predicated region
        $region189: #{fwd.1} parent=115 // pred_check
          %p1023 = pneg %p467
        $region190: #{fwd.1} parent=115 // pred_check_branch
          %1025 = sbr.rel (%p1023) target = $region192
        $region191: #{fwd.1} parent=115 // pred_region
          %1027 = dma.done [#allocation29], 2304
        $region192: #{fwd.1} parent=115 // pred_fallthru
          _
        // Predicated region
        $region193: #{fwd.1} parent=115 // pred_check
          %p1028 = pneg %p488
        $region194: #{fwd.1} parent=115 // pred_check_branch
          %1030 = sbr.rel (%p1028) target = $region196
        $region195: #{fwd.1} parent=115 // pred_region
          %1032 = dma.done [#allocation32], 512
        $region196: #{fwd.1} parent=115 // pred_fallthru
          _
        // Predicated region
        $region197: #{fwd.1} parent=115 // pred_check
          %p1033 = pneg %p509
        $region198: #{fwd.1} parent=115 // pred_check_branch
          %1035 = sbr.rel (%p1033) target = $region200
        $region199: #{fwd.1} parent=115 // pred_region
          %1037 = dma.done [#allocation32], 2304
        $region200: #{fwd.1} parent=115 // pred_fallthru
          _
        // Predicated region
        $region201: #{fwd.1} parent=115 // pred_check
          %p1038 = pneg %p530
        $region202: #{fwd.1} parent=115 // pred_check_branch
          %1040 = sbr.rel (%p1038) target = $region204
        $region203: #{fwd.1} parent=115 // pred_region
          %1042 = dma.done [#allocation35], 512
        $region204: #{fwd.1} parent=115 // pred_fallthru
          _
        // Predicated region
        $region205: #{fwd.1} parent=115 // pred_check
          %p1043 = pneg %p551
        $region206: #{fwd.1} parent=115 // pred_check_branch
          %1045 = sbr.rel (%p1043) target = $region208
        $region207: #{fwd.1} parent=115 // pred_region
          %1047 = dma.done [#allocation35], 256
        $region208: #{fwd.1} parent=115 // pred_fallthru
          _
        %p1048 = scmp.lt.s32.totalorder %s47, 1
        %s1049 = scalar_select %p1048, %s47, 1
        %s1050 = smul.addr %s1049, 2
        %s1051 = smul.addr %s1050, 4
        %s1052 = scalar_lea.vmem %s0, %s1051
        %p1053 = pneg %p68
        %p1054 = pneg %p65
        %p1055 = pneg %p89
        %p1056 = pneg %p86
        %p1057 = pneg %p110
        %p1058 = pneg %p107
        %p1059 = pneg %p131
        %p1060 = pneg %p128
        %p1061 = pneg %p152
        %p1062 = pneg %p149
        %p1063 = pneg %p173
        %p1064 = pneg %p170
        %p1065 = pneg %p194
        %p1066 = pneg %p191
        %p1067 = pneg %p215
        %p1068 = pneg %p212
        %p1069 = pneg %p236
        %p1070 = pneg %p233
        %p1071 = pneg %p257
        %p1072 = pneg %p254
        %p1073 = pneg %p278
        %p1074 = pneg %p275
        %p1075 = pneg %p299
        %p1076 = pneg %p296
        %p1077 = pneg %p320
        %p1078 = pneg %p317
        %p1079 = pneg %p341
        %p1080 = pneg %p338
        %p1081 = pneg %p362
        %p1082 = pneg %p359
        %p1083 = pneg %p383
        %p1084 = pneg %p380
        %p1085 = pneg %p404
        %p1086 = pneg %p401
        %p1087 = pneg %p425
        %p1088 = pneg %p422
        %p1089 = pneg %p446
        %p1090 = pneg %p443
        %p1091 = pneg %p467
        %p1092 = pneg %p464
        %p1093 = pneg %p488
        %p1094 = pneg %p485
        %p1095 = pneg %p509
        %p1096 = pneg %p506
        %p1097 = pneg %p530
        %p1098 = pneg %p527
        %p1099 = pneg %p551
        %p1100 = pneg %p548
        %p1101 = pneg %p577
        %p1102 = pneg %p574
        %p1103 = scmp.lt.s32.totalorder %s47, 1
        %s1104 = scalar_select %p1103, %s47, 1
        %s1105 = smul.addr %s1104, 4
        %s1106 = smul.addr %s1105, 8
        %s1107 = scalar_lea.vmem %s24, %s1106
        %p1108 = scmp.lt.s32.totalorder %s47, 1
        %s1109 = scalar_select %p1108, %s47, 1
        %s1110 = smul.addr %s1109, 2
        %s1111 = smul.addr %s1110, 4
        %s1112 = scalar_lea.vmem %s0, %s1111
        %p1113 = scmp.lt.s32.totalorder %s47, 1
        %s1114 = scalar_select %p1113, %s47, 1
        %s1115 = smul.addr %s1114, 4
        %s1116 = smul.addr %s1115, 8
        %s1117 = scalar_lea.vmem %s24, %s1116
        %v1119 = vld [vmem:[%s1112] sm:$0x77]
        %1121 = vst [vmem:[#allocation1] ss:$2 sm:$0xff] %v1119
        %v1122 = vld.sshfl [vmem:[#allocation1] sm:$0xff pattern:$0x75316420]
        %v1123 = vld.sshfl [vmem:[#allocation1 + $0x8] sm:$0xff pattern:$0x75316420]
        %v1126 = vpack.c.bf16 %v1122, %v1122
        %v1127 = vpack.c.bf16 %v1123, %v1123
        %v1128 = vld [vmem:[#allocation2] sm:$0xff]
        %v1129 = vld [vmem:[#allocation2 + $0x8] sm:$0xff]
        %v1130 = vld [vmem:[#allocation2 + $0x10] sm:$0xff]
        %v1131 = vld [vmem:[#allocation2 + $0x18] sm:$0xff]
        %v1132 = vld [vmem:[#allocation2 + $0x20] sm:$0xff]
        %v1133 = vld [vmem:[#allocation2 + $0x28] sm:$0xff]
        %v1134 = vld [vmem:[#allocation2 + $0x30] sm:$0xff]
        %v1135 = vld [vmem:[#allocation2 + $0x38] sm:$0xff]
        %v1136 = vld [vmem:[#allocation2 + $0x40] sm:$0xff]
        %v1137 = vld [vmem:[#allocation2 + $0x48] sm:$0xff]
        %v1138 = vld [vmem:[#allocation2 + $0x50] sm:$0xff]
        %v1139 = vld [vmem:[#allocation2 + $0x58] sm:$0xff]
        %v1140 = vld [vmem:[#allocation2 + $0x60] sm:$0xff]
        %v1141 = vld [vmem:[#allocation2 + $0x68] sm:$0xff]
        %v1142 = vld [vmem:[#allocation2 + $0x70] sm:$0xff]
        %v1143 = vld [vmem:[#allocation2 + $0x78] sm:$0xff]
        %v1144 = vld [vmem:[#allocation2 + $0x80] sm:$0xff]
        %v1145 = vld [vmem:[#allocation2 + $0x88] sm:$0xff]
        %v1146 = vld [vmem:[#allocation2 + $0x90] sm:$0xff]
        %v1147 = vld [vmem:[#allocation2 + $0x98] sm:$0xff]
        %v1148 = vld [vmem:[#allocation2 + $0xa0] sm:$0xff]
        %v1149 = vld [vmem:[#allocation2 + $0xa8] sm:$0xff]
        %v1150 = vld [vmem:[#allocation2 + $0xb0] sm:$0xff]
        %v1151 = vld [vmem:[#allocation2 + $0xb8] sm:$0xff]
        %v1152 = vld [vmem:[#allocation2 + $0xc0] sm:$0xff]
        %v1153 = vld [vmem:[#allocation2 + $0xc8] sm:$0xff]
        %v1154 = vld [vmem:[#allocation2 + $0xd0] sm:$0xff]
        %v1155 = vld [vmem:[#allocation2 + $0xd8] sm:$0xff]
        %v1156 = vld [vmem:[#allocation2 + $0xe0] sm:$0xff]
        %v1157 = vld [vmem:[#allocation2 + $0xe8] sm:$0xff]
        %v1158 = vld [vmem:[#allocation2 + $0xf0] sm:$0xff]
        %v1159 = vld [vmem:[#allocation2 + $0xf8] sm:$0xff]
        %v1192 = vunpack.c.l.b16 %v1128
        %v1193 = vunpack.c.h.b16 %v1128
        %v1194 = vunpack.c.l.b16 %v1129
        %v1195 = vunpack.c.h.b16 %v1129
        %v1196 = vunpack.c.l.b16 %v1130
        %v1197 = vunpack.c.h.b16 %v1130
        %v1198 = vunpack.c.l.b16 %v1131
        %v1199 = vunpack.c.h.b16 %v1131
        %v1200 = vunpack.c.l.b16 %v1132
        %v1201 = vunpack.c.h.b16 %v1132
        %v1202 = vunpack.c.l.b16 %v1133
        %v1203 = vunpack.c.h.b16 %v1133
        %v1204 = vunpack.c.l.b16 %v1134
        %v1205 = vunpack.c.h.b16 %v1134
        %v1206 = vunpack.c.l.b16 %v1135
        %v1207 = vunpack.c.h.b16 %v1135
        %v1208 = vunpack.c.l.b16 %v1136
        %v1209 = vunpack.c.h.b16 %v1136
        %v1210 = vunpack.c.l.b16 %v1137
        %v1211 = vunpack.c.h.b16 %v1137
        %v1212 = vunpack.c.l.b16 %v1138
        %v1213 = vunpack.c.h.b16 %v1138
        %v1214 = vunpack.c.l.b16 %v1139
        %v1215 = vunpack.c.h.b16 %v1139
        %v1216 = vunpack.c.l.b16 %v1140
        %v1217 = vunpack.c.h.b16 %v1140
        %v1218 = vunpack.c.l.b16 %v1141
        %v1219 = vunpack.c.h.b16 %v1141
        %v1220 = vunpack.c.l.b16 %v1142
        %v1221 = vunpack.c.h.b16 %v1142
        %v1222 = vunpack.c.l.b16 %v1143
        %v1223 = vunpack.c.h.b16 %v1143
        %v1224 = vunpack.c.l.b16 %v1144
        %v1225 = vunpack.c.h.b16 %v1144
        %v1226 = vunpack.c.l.b16 %v1145
        %v1227 = vunpack.c.h.b16 %v1145
        %v1228 = vunpack.c.l.b16 %v1146
        %v1229 = vunpack.c.h.b16 %v1146
        %v1230 = vunpack.c.l.b16 %v1147
        %v1231 = vunpack.c.h.b16 %v1147
        %v1232 = vunpack.c.l.b16 %v1148
        %v1233 = vunpack.c.h.b16 %v1148
        %v1234 = vunpack.c.l.b16 %v1149
        %v1235 = vunpack.c.h.b16 %v1149
        %v1236 = vunpack.c.l.b16 %v1150
        %v1237 = vunpack.c.h.b16 %v1150
        %v1238 = vunpack.c.l.b16 %v1151
        %v1239 = vunpack.c.h.b16 %v1151
        %v1240 = vunpack.c.l.b16 %v1152
        %v1241 = vunpack.c.h.b16 %v1152
        %v1242 = vunpack.c.l.b16 %v1153
        %v1243 = vunpack.c.h.b16 %v1153
        %v1244 = vunpack.c.l.b16 %v1154
        %v1245 = vunpack.c.h.b16 %v1154
        %v1246 = vunpack.c.l.b16 %v1155
        %v1247 = vunpack.c.h.b16 %v1155
        %v1248 = vunpack.c.l.b16 %v1156
        %v1249 = vunpack.c.h.b16 %v1156
        %v1250 = vunpack.c.l.b16 %v1157
        %v1251 = vunpack.c.h.b16 %v1157
        %v1252 = vunpack.c.l.b16 %v1158
        %v1253 = vunpack.c.h.b16 %v1158
        %v1254 = vunpack.c.l.b16 %v1159
        %v1255 = vunpack.c.h.b16 %v1159
        %v1256 = vpack.c.b16 %v1194, %v1192
        %v1257 = vpack.c.b16 %v1195, %v1193
        %v1258 = vpack.c.b16 %v1198, %v1196
        %v1259 = vpack.c.b16 %v1199, %v1197
        %v1260 = vpack.c.b16 %v1202, %v1200
        %v1261 = vpack.c.b16 %v1203, %v1201
        %v1262 = vpack.c.b16 %v1206, %v1204
        %v1263 = vpack.c.b16 %v1207, %v1205
        %v1264 = vpack.c.b16 %v1210, %v1208
        %v1265 = vpack.c.b16 %v1211, %v1209
        %v1266 = vpack.c.b16 %v1214, %v1212
        %v1267 = vpack.c.b16 %v1215, %v1213
        %v1268 = vpack.c.b16 %v1218, %v1216
        %v1269 = vpack.c.b16 %v1219, %v1217
        %v1270 = vpack.c.b16 %v1222, %v1220
        %v1271 = vpack.c.b16 %v1223, %v1221
        %v1272 = vpack.c.b16 %v1226, %v1224
        %v1273 = vpack.c.b16 %v1227, %v1225
        %v1274 = vpack.c.b16 %v1230, %v1228
        %v1275 = vpack.c.b16 %v1231, %v1229
        %v1276 = vpack.c.b16 %v1234, %v1232
        %v1277 = vpack.c.b16 %v1235, %v1233
        %v1278 = vpack.c.b16 %v1238, %v1236
        %v1279 = vpack.c.b16 %v1239, %v1237
        %v1280 = vpack.c.b16 %v1242, %v1240
        %v1281 = vpack.c.b16 %v1243, %v1241
        %v1282 = vpack.c.b16 %v1246, %v1244
        %v1283 = vpack.c.b16 %v1247, %v1245
        %v1284 = vpack.c.b16 %v1250, %v1248
        %v1285 = vpack.c.b16 %v1251, %v1249
        %v1286 = vpack.c.b16 %v1254, %v1252
        %v1287 = vpack.c.b16 %v1255, %v1253
        %1320 = vmatpush.bf16.msra.mxu0 %v1270
        %1321 = vmatpush.bf16.msra.mxu0 %v1268
        %1322 = vmatpush.bf16.msra.mxu0 %v1266
        %1323 = vmatpush.bf16.msra.mxu0 %v1264
        %1324 = vmatpush.bf16.msra.mxu0 %v1262
        %1325 = vmatpush.bf16.msra.mxu0 %v1260
        %1326 = vmatpush.bf16.msra.mxu0 %v1258
        %1327 = vmatpush.bf16.msra.mxu0 %v1256
        %1328 = vmatmul.bf16.gmra.mxu0 %v1126
        %v1329 = vpop.f32.mrf.mxu0
        %v1330 = vadd.f32 0.0, %v1329
        %v1331 = vpop.f32.mrf.mxu0
        %1332 = vdwg.mxu0
        %1333 = vmatpush.bf16.msra.mxu0 %v1286
        %1334 = vmatpush.bf16.msra.mxu0 %v1284
        %1335 = vmatpush.bf16.msra.mxu0 %v1282
        %1336 = vmatpush.bf16.msra.mxu0 %v1280
        %1337 = vmatpush.bf16.msra.mxu0 %v1278
        %1338 = vmatpush.bf16.msra.mxu0 %v1276
        %1339 = vmatpush.bf16.msra.mxu0 %v1274
        %1340 = vmatpush.bf16.msra.mxu0 %v1272
        %1341 = vmatmul.bf16.gmra.mxu0 %v1127
        %v1342 = vpop.f32.mrf.mxu0
        %v1343 = vadd.f32 %v1330, %v1342
        %v1344 = vpop.f32.mrf.mxu0
        %1345 = vdwg.mxu0
        %1346 = vmatpush.bf16.msra.mxu0 %v1271
        %1347 = vmatpush.bf16.msra.mxu0 %v1269
        %1348 = vmatpush.bf16.msra.mxu0 %v1267
        %1349 = vmatpush.bf16.msra.mxu0 %v1265
        %1350 = vmatpush.bf16.msra.mxu0 %v1263
        %1351 = vmatpush.bf16.msra.mxu0 %v1261
        %1352 = vmatpush.bf16.msra.mxu0 %v1259
        %1353 = vmatpush.bf16.msra.mxu0 %v1257
        %1354 = vmatmul.bf16.gmra.mxu0 %v1126
        %v1355 = vpop.f32.mrf.mxu0
        %v1356 = vadd.f32 0.0, %v1355
        %v1357 = vpop.f32.mrf.mxu0
        %1358 = vdwg.mxu0
        %1359 = vmatpush.bf16.msra.mxu0 %v1287
        %1360 = vmatpush.bf16.msra.mxu0 %v1285
        %1361 = vmatpush.bf16.msra.mxu0 %v1283
        %1362 = vmatpush.bf16.msra.mxu0 %v1281
        %1363 = vmatpush.bf16.msra.mxu0 %v1279
        %1364 = vmatpush.bf16.msra.mxu0 %v1277
        %1365 = vmatpush.bf16.msra.mxu0 %v1275
        %1366 = vmatpush.bf16.msra.mxu0 %v1273
        %1367 = vmatmul.bf16.gmra.mxu0 %v1127
        %v1368 = vpop.f32.mrf.mxu0
        %v1369 = vadd.f32 %v1356, %v1368
        %v1370 = vpop.f32.mrf.mxu0
        %1371 = vdwg.mxu0
        %v1372 = vld [vmem:[#allocation12] sm:$0xf]
        %v1373 = vld [vmem:[#allocation12 + $0x4] sm:$0xf]
        %v1374 = vpack.c.bf16 %v1343, %v1343
        %v1375 = vpack.c.bf16 %v1369, %v1369
        %s1376 = scalar_lea.vmem [#allocation2], 256
        %v1377 = vld [vmem:[%s1376] sm:$0xff]
        %v1378 = vld [vmem:[%s1376 + $0x8] sm:$0xff]
        %v1379 = vld [vmem:[%s1376 + $0x10] sm:$0xff]
        %v1380 = vld [vmem:[%s1376 + $0x18] sm:$0xff]
        %v1381 = vld [vmem:[%s1376 + $0x20] sm:$0xff]
        %v1382 = vld [vmem:[%s1376 + $0x28] sm:$0xff]
        %v1383 = vld [vmem:[%s1376 + $0x30] sm:$0xff]
        %v1384 = vld [vmem:[%s1376 + $0x38] sm:$0xff]
        %v1385 = vld [vmem:[%s1376 + $0x40] sm:$0xff]
        %v1386 = vld [vmem:[%s1376 + $0x48] sm:$0xff]
        %v1387 = vld [vmem:[%s1376 + $0x50] sm:$0xff]
        %v1388 = vld [vmem:[%s1376 + $0x58] sm:$0xff]
        %v1389 = vld [vmem:[%s1376 + $0x60] sm:$0xff]
        %v1390 = vld [vmem:[%s1376 + $0x68] sm:$0xff]
        %v1391 = vld [vmem:[%s1376 + $0x70] sm:$0xff]
        %v1392 = vld [vmem:[%s1376 + $0x78] sm:$0xff]
        %v1393 = vld [vmem:[%s1376 + $0x80] sm:$0xff]
        %v1394 = vld [vmem:[%s1376 + $0x88] sm:$0xff]
        %v1395 = vld [vmem:[%s1376 + $0x90] sm:$0xff]
        %v1396 = vld [vmem:[%s1376 + $0x98] sm:$0xff]
        %v1397 = vld [vmem:[%s1376 + $0xa0] sm:$0xff]
        %v1398 = vld [vmem:[%s1376 + $0xa8] sm:$0xff]
        %v1399 = vld [vmem:[%s1376 + $0xb0] sm:$0xff]
        %v1400 = vld [vmem:[%s1376 + $0xb8] sm:$0xff]
        %v1401 = vld [vmem:[%s1376 + $0xc0] sm:$0xff]
        %v1402 = vld [vmem:[%s1376 + $0xc8] sm:$0xff]
        %v1403 = vld [vmem:[%s1376 + $0xd0] sm:$0xff]
        %v1404 = vld [vmem:[%s1376 + $0xd8] sm:$0xff]
        %v1405 = vld [vmem:[%s1376 + $0xe0] sm:$0xff]
        %v1406 = vld [vmem:[%s1376 + $0xe8] sm:$0xff]
        %v1407 = vld [vmem:[%s1376 + $0xf0] sm:$0xff]
        %v1408 = vld [vmem:[%s1376 + $0xf8] sm:$0xff]
        %v1441 = vunpack.c.l.b16 %v1377
        %v1442 = vunpack.c.h.b16 %v1377
        %v1443 = vunpack.c.l.b16 %v1378
        %v1444 = vunpack.c.h.b16 %v1378
        %v1445 = vunpack.c.l.b16 %v1379
        %v1446 = vunpack.c.h.b16 %v1379
        %v1447 = vunpack.c.l.b16 %v1380
        %v1448 = vunpack.c.h.b16 %v1380
        %v1449 = vunpack.c.l.b16 %v1381
        %v1450 = vunpack.c.h.b16 %v1381
        %v1451 = vunpack.c.l.b16 %v1382
        %v1452 = vunpack.c.h.b16 %v1382
        %v1453 = vunpack.c.l.b16 %v1383
        %v1454 = vunpack.c.h.b16 %v1383
        %v1455 = vunpack.c.l.b16 %v1384
        %v1456 = vunpack.c.h.b16 %v1384
        %v1457 = vunpack.c.l.b16 %v1385
        %v1458 = vunpack.c.h.b16 %v1385
        %v1459 = vunpack.c.l.b16 %v1386
        %v1460 = vunpack.c.h.b16 %v1386
        %v1461 = vunpack.c.l.b16 %v1387
        %v1462 = vunpack.c.h.b16 %v1387
        %v1463 = vunpack.c.l.b16 %v1388
        %v1464 = vunpack.c.h.b16 %v1388
        %v1465 = vunpack.c.l.b16 %v1389
        %v1466 = vunpack.c.h.b16 %v1389
        %v1467 = vunpack.c.l.b16 %v1390
        %v1468 = vunpack.c.h.b16 %v1390
        %v1469 = vunpack.c.l.b16 %v1391
        %v1470 = vunpack.c.h.b16 %v1391
        %v1471 = vunpack.c.l.b16 %v1392
        %v1472 = vunpack.c.h.b16 %v1392
        %v1473 = vunpack.c.l.b16 %v1393
        %v1474 = vunpack.c.h.b16 %v1393
        %v1475 = vunpack.c.l.b16 %v1394
        %v1476 = vunpack.c.h.b16 %v1394
        %v1477 = vunpack.c.l.b16 %v1395
        %v1478 = vunpack.c.h.b16 %v1395
        %v1479 = vunpack.c.l.b16 %v1396
        %v1480 = vunpack.c.h.b16 %v1396
        %v1481 = vunpack.c.l.b16 %v1397
        %v1482 = vunpack.c.h.b16 %v1397
        %v1483 = vunpack.c.l.b16 %v1398
        %v1484 = vunpack.c.h.b16 %v1398
        %v1485 = vunpack.c.l.b16 %v1399
        %v1486 = vunpack.c.h.b16 %v1399
        %v1487 = vunpack.c.l.b16 %v1400
        %v1488 = vunpack.c.h.b16 %v1400
        %v1489 = vunpack.c.l.b16 %v1401
        %v1490 = vunpack.c.h.b16 %v1401
        %v1491 = vunpack.c.l.b16 %v1402
        %v1492 = vunpack.c.h.b16 %v1402
        %v1493 = vunpack.c.l.b16 %v1403
        %v1494 = vunpack.c.h.b16 %v1403
        %v1495 = vunpack.c.l.b16 %v1404
        %v1496 = vunpack.c.h.b16 %v1404
        %v1497 = vunpack.c.l.b16 %v1405
        %v1498 = vunpack.c.h.b16 %v1405
        %v1499 = vunpack.c.l.b16 %v1406
        %v1500 = vunpack.c.h.b16 %v1406
        %v1501 = vunpack.c.l.b16 %v1407
        %v1502 = vunpack.c.h.b16 %v1407
        %v1503 = vunpack.c.l.b16 %v1408
        %v1504 = vunpack.c.h.b16 %v1408
        %v1505 = vpack.c.b16 %v1443, %v1441
        %v1506 = vpack.c.b16 %v1444, %v1442
        %v1507 = vpack.c.b16 %v1447, %v1445
        %v1508 = vpack.c.b16 %v1448, %v1446
        %v1509 = vpack.c.b16 %v1451, %v1449
        %v1510 = vpack.c.b16 %v1452, %v1450
        %v1511 = vpack.c.b16 %v1455, %v1453
        %v1512 = vpack.c.b16 %v1456, %v1454
        %v1513 = vpack.c.b16 %v1459, %v1457
        %v1514 = vpack.c.b16 %v1460, %v1458
        %v1515 = vpack.c.b16 %v1463, %v1461
        %v1516 = vpack.c.b16 %v1464, %v1462
        %v1517 = vpack.c.b16 %v1467, %v1465
        %v1518 = vpack.c.b16 %v1468, %v1466
        %v1519 = vpack.c.b16 %v1471, %v1469
        %v1520 = vpack.c.b16 %v1472, %v1470
        %v1521 = vpack.c.b16 %v1475, %v1473
        %v1522 = vpack.c.b16 %v1476, %v1474
        %v1523 = vpack.c.b16 %v1479, %v1477
        %v1524 = vpack.c.b16 %v1480, %v1478
        %v1525 = vpack.c.b16 %v1483, %v1481
        %v1526 = vpack.c.b16 %v1484, %v1482
        %v1527 = vpack.c.b16 %v1487, %v1485
        %v1528 = vpack.c.b16 %v1488, %v1486
        %v1529 = vpack.c.b16 %v1491, %v1489
        %v1530 = vpack.c.b16 %v1492, %v1490
        %v1531 = vpack.c.b16 %v1495, %v1493
        %v1532 = vpack.c.b16 %v1496, %v1494
        %v1533 = vpack.c.b16 %v1499, %v1497
        %v1534 = vpack.c.b16 %v1500, %v1498
        %v1535 = vpack.c.b16 %v1503, %v1501
        %v1536 = vpack.c.b16 %v1504, %v1502
        %1569 = vmatpush.bf16.msra.mxu0 %v1519
        %1570 = vmatpush.bf16.msra.mxu0 %v1517
        %1571 = vmatpush.bf16.msra.mxu0 %v1515
        %1572 = vmatpush.bf16.msra.mxu0 %v1513
        %1573 = vmatpush.bf16.msra.mxu0 %v1511
        %1574 = vmatpush.bf16.msra.mxu0 %v1509
        %1575 = vmatpush.bf16.msra.mxu0 %v1507
        %1576 = vmatpush.bf16.msra.mxu0 %v1505
        %1577 = vmatmul.bf16.gmra.mxu0 %v1126
        %v1578 = vpop.f32.mrf.mxu0
        %v1579 = vadd.f32 0.0, %v1578
        %v1580 = vpop.f32.mrf.mxu0
        %1581 = vdwg.mxu0
        %1582 = vmatpush.bf16.msra.mxu0 %v1535
        %1583 = vmatpush.bf16.msra.mxu0 %v1533
        %1584 = vmatpush.bf16.msra.mxu0 %v1531
        %1585 = vmatpush.bf16.msra.mxu0 %v1529
        %1586 = vmatpush.bf16.msra.mxu0 %v1527
        %1587 = vmatpush.bf16.msra.mxu0 %v1525
        %1588 = vmatpush.bf16.msra.mxu0 %v1523
        %1589 = vmatpush.bf16.msra.mxu0 %v1521
        %1590 = vmatmul.bf16.gmra.mxu0 %v1127
        %v1591 = vpop.f32.mrf.mxu0
        %v1592 = vadd.f32 %v1579, %v1591
        %v1593 = vpop.f32.mrf.mxu0
        %1594 = vdwg.mxu0
        %1595 = vmatpush.bf16.msra.mxu0 %v1520
        %1596 = vmatpush.bf16.msra.mxu0 %v1518
        %1597 = vmatpush.bf16.msra.mxu0 %v1516
        %1598 = vmatpush.bf16.msra.mxu0 %v1514
        %1599 = vmatpush.bf16.msra.mxu0 %v1512
        %1600 = vmatpush.bf16.msra.mxu0 %v1510
        %1601 = vmatpush.bf16.msra.mxu0 %v1508
        %1602 = vmatpush.bf16.msra.mxu0 %v1506
        %1603 = vmatmul.bf16.gmra.mxu0 %v1126
        %v1604 = vpop.f32.mrf.mxu0
        %v1605 = vadd.f32 0.0, %v1604
        %v1606 = vpop.f32.mrf.mxu0
        %1607 = vdwg.mxu0
        %1608 = vmatpush.bf16.msra.mxu0 %v1536
        %1609 = vmatpush.bf16.msra.mxu0 %v1534
        %1610 = vmatpush.bf16.msra.mxu0 %v1532
        %1611 = vmatpush.bf16.msra.mxu0 %v1530
        %1612 = vmatpush.bf16.msra.mxu0 %v1528
        %1613 = vmatpush.bf16.msra.mxu0 %v1526
        %1614 = vmatpush.bf16.msra.mxu0 %v1524
        %1615 = vmatpush.bf16.msra.mxu0 %v1522
        %1616 = vmatmul.bf16.gmra.mxu0 %v1127
        %v1617 = vpop.f32.mrf.mxu0
        %v1618 = vadd.f32 %v1605, %v1617
        %v1619 = vpop.f32.mrf.mxu0
        %1620 = vdwg.mxu0
        %s1621 = scalar_lea.vmem [#allocation12], 8
        %v1622 = vld [vmem:[%s1621] sm:$0xf]
        %v1623 = vld [vmem:[%s1621 + $0x4] sm:$0xf]
        %v1624 = vpack.c.bf16 %v1592, %v1592
        %v1625 = vpack.c.bf16 %v1618, %v1618
        %v1628 = vunpack.c.l.b16 %v1622
        %v1629 = vunpack.c.l.b16 %v1623
        %v1630 = vpack.c.b16 %v1629, %v1628
        %vm1631 = vcmask 23552
        %v1633 = vsel %vm1631, %v1630, 0
        %vm1635 = vcmask 1040384
        %vm1636 = vcmask 1041408
        %v1637 = vsel %vm1635, 4294967295, 65535
        %v1638 = vsel %vm1636, %v1637, 0
        %v1640 = vand.u32 %v1624, %v1638
        %v1643 = vand.u32 %v1625, %v1638
        %1645 = vmatpush.bf16.msra.mxu0 0
        %1646 = vmatpush.bf16.msra.mxu0 0
        %1647 = vmatpush.bf16.msra.mxu0 0
        %1648 = vmatpush.bf16.msra.mxu0 0
        %1649 = vmatpush.bf16.msra.mxu0 0
        %1650 = vmatpush.bf16.msra.mxu0 0
        %1651 = vmatpush.bf16.msra.mxu0 0
        %1652 = vmatpush.bf16.msra.mxu0 %v1640
        %1653 = vmatmul.bf16.gmra.mxu0 %v1633
        %v1654 = vpop.f32.mrf.mxu0
        %v1655 = vadd.f32 0.0, %v1654
        %v1656 = vpop.f32.mrf.mxu0
        %v1657 = vadd.f32 0.0, %v1656
        %1658 = vdwg.mxu0
        %1659 = vmatpush.bf16.msra.mxu0 0
        %1660 = vmatpush.bf16.msra.mxu0 0
        %1661 = vmatpush.bf16.msra.mxu0 0
        %1662 = vmatpush.bf16.msra.mxu0 0
        %1663 = vmatpush.bf16.msra.mxu0 0
        %1664 = vmatpush.bf16.msra.mxu0 0
        %1665 = vmatpush.bf16.msra.mxu0 0
        %1666 = vmatpush.bf16.msra.mxu0 %v1643
        %1667 = vmatmul.bf16.gmra.mxu0 %v1633
        %v1668 = vpop.f32.mrf.mxu0
        %v1669 = vadd.f32 0.0, %v1668
        %v1670 = vpop.f32.mrf.mxu0
        %v1671 = vadd.f32 0.0, %v1670
        %1672 = vdwg.mxu0
        %v1675 = vunpack.c.l.b16 %v1372
        %v1676 = vunpack.c.l.b16 %v1373
        %v1677 = vpack.c.b16 %v1676, %v1675
        %v1679 = vsel %vm1631, %v1677, 0
        %v1682 = vand.u32 %v1374, %v1638
        %v1685 = vand.u32 %v1375, %v1638
        %1687 = vmatpush.bf16.msra.mxu0 0
        %1688 = vmatpush.bf16.msra.mxu0 0
        %1689 = vmatpush.bf16.msra.mxu0 0
        %1690 = vmatpush.bf16.msra.mxu0 0
        %1691 = vmatpush.bf16.msra.mxu0 0
        %1692 = vmatpush.bf16.msra.mxu0 0
        %1693 = vmatpush.bf16.msra.mxu0 0
        %1694 = vmatpush.bf16.msra.mxu0 %v1682
        %1695 = vmatmul.bf16.gmra.mxu0 %v1679
        %v1696 = vpop.f32.mrf.mxu0
        %v1697 = vadd.f32 %v1655, %v1696
        %v1698 = vpop.f32.mrf.mxu0
        %v1699 = vadd.f32 %v1657, %v1698
        %1700 = vdwg.mxu0
        %1701 = vmatpush.bf16.msra.mxu0 0
        %1702 = vmatpush.bf16.msra.mxu0 0
        %1703 = vmatpush.bf16.msra.mxu0 0
        %1704 = vmatpush.bf16.msra.mxu0 0
        %1705 = vmatpush.bf16.msra.mxu0 0
        %1706 = vmatpush.bf16.msra.mxu0 0
        %1707 = vmatpush.bf16.msra.mxu0 0
        %1708 = vmatpush.bf16.msra.mxu0 %v1685
        %1709 = vmatmul.bf16.gmra.mxu0 %v1679
        %v1710 = vpop.f32.mrf.mxu0
        %v1711 = vadd.f32 %v1669, %v1710
        %v1712 = vpop.f32.mrf.mxu0
        %v1713 = vadd.f32 %v1671, %v1712
        %1714 = vdwg.mxu0
        %s1715 = scalar_lea.vmem [#allocation2], 512
        %v1716 = vld [vmem:[%s1715] sm:$0xff]
        %v1717 = vld [vmem:[%s1715 + $0x8] sm:$0xff]
        %v1718 = vld [vmem:[%s1715 + $0x10] sm:$0xff]
        %v1719 = vld [vmem:[%s1715 + $0x18] sm:$0xff]
        %v1720 = vld [vmem:[%s1715 + $0x20] sm:$0xff]
        %v1721 = vld [vmem:[%s1715 + $0x28] sm:$0xff]
        %v1722 = vld [vmem:[%s1715 + $0x30] sm:$0xff]
        %v1723 = vld [vmem:[%s1715 + $0x38] sm:$0xff]
        %v1724 = vld [vmem:[%s1715 + $0x40] sm:$0xff]
        %v1725 = vld [vmem:[%s1715 + $0x48] sm:$0xff]
        %v1726 = vld [vmem:[%s1715 + $0x50] sm:$0xff]
        %v1727 = vld [vmem:[%s1715 + $0x58] sm:$0xff]
        %v1728 = vld [vmem:[%s1715 + $0x60] sm:$0xff]
        %v1729 = vld [vmem:[%s1715 + $0x68] sm:$0xff]
        %v1730 = vld [vmem:[%s1715 + $0x70] sm:$0xff]
        %v1731 = vld [vmem:[%s1715 + $0x78] sm:$0xff]
        %v1732 = vld [vmem:[%s1715 + $0x80] sm:$0xff]
        %v1733 = vld [vmem:[%s1715 + $0x88] sm:$0xff]
        %v1734 = vld [vmem:[%s1715 + $0x90] sm:$0xff]
        %v1735 = vld [vmem:[%s1715 + $0x98] sm:$0xff]
        %v1736 = vld [vmem:[%s1715 + $0xa0] sm:$0xff]
        %v1737 = vld [vmem:[%s1715 + $0xa8] sm:$0xff]
        %v1738 = vld [vmem:[%s1715 + $0xb0] sm:$0xff]
        %v1739 = vld [vmem:[%s1715 + $0xb8] sm:$0xff]
        %v1740 = vld [vmem:[%s1715 + $0xc0] sm:$0xff]
        %v1741 = vld [vmem:[%s1715 + $0xc8] sm:$0xff]
        %v1742 = vld [vmem:[%s1715 + $0xd0] sm:$0xff]
        %v1743 = vld [vmem:[%s1715 + $0xd8] sm:$0xff]
        %v1744 = vld [vmem:[%s1715 + $0xe0] sm:$0xff]
        %v1745 = vld [vmem:[%s1715 + $0xe8] sm:$0xff]
        %v1746 = vld [vmem:[%s1715 + $0xf0] sm:$0xff]
        %v1747 = vld [vmem:[%s1715 + $0xf8] sm:$0xff]
        %v1780 = vunpack.c.l.b16 %v1716
        %v1781 = vunpack.c.h.b16 %v1716
        %v1782 = vunpack.c.l.b16 %v1717
        %v1783 = vunpack.c.h.b16 %v1717
        %v1784 = vunpack.c.l.b16 %v1718
        %v1785 = vunpack.c.h.b16 %v1718
        %v1786 = vunpack.c.l.b16 %v1719
        %v1787 = vunpack.c.h.b16 %v1719
        %v1788 = vunpack.c.l.b16 %v1720
        %v1789 = vunpack.c.h.b16 %v1720
        %v1790 = vunpack.c.l.b16 %v1721
        %v1791 = vunpack.c.h.b16 %v1721
        %v1792 = vunpack.c.l.b16 %v1722
        %v1793 = vunpack.c.h.b16 %v1722
        %v1794 = vunpack.c.l.b16 %v1723
        %v1795 = vunpack.c.h.b16 %v1723
        %v1796 = vunpack.c.l.b16 %v1724
        %v1797 = vunpack.c.h.b16 %v1724
        %v1798 = vunpack.c.l.b16 %v1725
        %v1799 = vunpack.c.h.b16 %v1725
        %v1800 = vunpack.c.l.b16 %v1726
        %v1801 = vunpack.c.h.b16 %v1726
        %v1802 = vunpack.c.l.b16 %v1727
        %v1803 = vunpack.c.h.b16 %v1727
        %v1804 = vunpack.c.l.b16 %v1728
        %v1805 = vunpack.c.h.b16 %v1728
        %v1806 = vunpack.c.l.b16 %v1729
        %v1807 = vunpack.c.h.b16 %v1729
        %v1808 = vunpack.c.l.b16 %v1730
        %v1809 = vunpack.c.h.b16 %v1730
        %v1810 = vunpack.c.l.b16 %v1731
        %v1811 = vunpack.c.h.b16 %v1731
        %v1812 = vunpack.c.l.b16 %v1732
        %v1813 = vunpack.c.h.b16 %v1732
        %v1814 = vunpack.c.l.b16 %v1733
        %v1815 = vunpack.c.h.b16 %v1733
        %v1816 = vunpack.c.l.b16 %v1734
        %v1817 = vunpack.c.h.b16 %v1734
        %v1818 = vunpack.c.l.b16 %v1735
        %v1819 = vunpack.c.h.b16 %v1735
        %v1820 = vunpack.c.l.b16 %v1736
        %v1821 = vunpack.c.h.b16 %v1736
        %v1822 = vunpack.c.l.b16 %v1737
        %v1823 = vunpack.c.h.b16 %v1737
        %v1824 = vunpack.c.l.b16 %v1738
        %v1825 = vunpack.c.h.b16 %v1738
        %v1826 = vunpack.c.l.b16 %v1739
        %v1827 = vunpack.c.h.b16 %v1739
        %v1828 = vunpack.c.l.b16 %v1740
        %v1829 = vunpack.c.h.b16 %v1740
        %v1830 = vunpack.c.l.b16 %v1741
        %v1831 = vunpack.c.h.b16 %v1741
        %v1832 = vunpack.c.l.b16 %v1742
        %v1833 = vunpack.c.h.b16 %v1742
        %v1834 = vunpack.c.l.b16 %v1743
        %v1835 = vunpack.c.h.b16 %v1743
        %v1836 = vunpack.c.l.b16 %v1744
        %v1837 = vunpack.c.h.b16 %v1744
        %v1838 = vunpack.c.l.b16 %v1745
        %v1839 = vunpack.c.h.b16 %v1745
        %v1840 = vunpack.c.l.b16 %v1746
        %v1841 = vunpack.c.h.b16 %v1746
        %v1842 = vunpack.c.l.b16 %v1747
        %v1843 = vunpack.c.h.b16 %v1747
        %v1844 = vpack.c.b16 %v1782, %v1780
        %v1845 = vpack.c.b16 %v1783, %v1781
        %v1846 = vpack.c.b16 %v1786, %v1784
        %v1847 = vpack.c.b16 %v1787, %v1785
        %v1848 = vpack.c.b16 %v1790, %v1788
        %v1849 = vpack.c.b16 %v1791, %v1789
        %v1850 = vpack.c.b16 %v1794, %v1792
        %v1851 = vpack.c.b16 %v1795, %v1793
        %v1852 = vpack.c.b16 %v1798, %v1796
        %v1853 = vpack.c.b16 %v1799, %v1797
        %v1854 = vpack.c.b16 %v1802, %v1800
        %v1855 = vpack.c.b16 %v1803, %v1801
        %v1856 = vpack.c.b16 %v1806, %v1804
        %v1857 = vpack.c.b16 %v1807, %v1805
        %v1858 = vpack.c.b16 %v1810, %v1808
        %v1859 = vpack.c.b16 %v1811, %v1809
        %v1860 = vpack.c.b16 %v1814, %v1812
        %v1861 = vpack.c.b16 %v1815, %v1813
        %v1862 = vpack.c.b16 %v1818, %v1816
        %v1863 = vpack.c.b16 %v1819, %v1817
        %v1864 = vpack.c.b16 %v1822, %v1820
        %v1865 = vpack.c.b16 %v1823, %v1821
        %v1866 = vpack.c.b16 %v1826, %v1824
        %v1867 = vpack.c.b16 %v1827, %v1825
        %v1868 = vpack.c.b16 %v1830, %v1828
        %v1869 = vpack.c.b16 %v1831, %v1829
        %v1870 = vpack.c.b16 %v1834, %v1832
        %v1871 = vpack.c.b16 %v1835, %v1833
        %v1872 = vpack.c.b16 %v1838, %v1836
        %v1873 = vpack.c.b16 %v1839, %v1837
        %v1874 = vpack.c.b16 %v1842, %v1840
        %v1875 = vpack.c.b16 %v1843, %v1841
        %1908 = vmatpush.bf16.msra.mxu0 %v1858
        %1909 = vmatpush.bf16.msra.mxu0 %v1856
        %1910 = vmatpush.bf16.msra.mxu0 %v1854
        %1911 = vmatpush.bf16.msra.mxu0 %v1852
        %1912 = vmatpush.bf16.msra.mxu0 %v1850
        %1913 = vmatpush.bf16.msra.mxu0 %v1848
        %1914 = vmatpush.bf16.msra.mxu0 %v1846
        %1915 = vmatpush.bf16.msra.mxu0 %v1844
        %1916 = vmatmul.bf16.gmra.mxu0 %v1126
        %v1917 = vpop.f32.mrf.mxu0
        %v1918 = vadd.f32 0.0, %v1917
        %v1919 = vpop.f32.mrf.mxu0
        %1920 = vdwg.mxu0
        %1921 = vmatpush.bf16.msra.mxu0 %v1874
        %1922 = vmatpush.bf16.msra.mxu0 %v1872
        %1923 = vmatpush.bf16.msra.mxu0 %v1870
        %1924 = vmatpush.bf16.msra.mxu0 %v1868
        %1925 = vmatpush.bf16.msra.mxu0 %v1866
        %1926 = vmatpush.bf16.msra.mxu0 %v1864
        %1927 = vmatpush.bf16.msra.mxu0 %v1862
        %1928 = vmatpush.bf16.msra.mxu0 %v1860
        %1929 = vmatmul.bf16.gmra.mxu0 %v1127
        %v1930 = vpop.f32.mrf.mxu0
        %v1931 = vadd.f32 %v1918, %v1930
        %v1932 = vpop.f32.mrf.mxu0
        %1933 = vdwg.mxu0
        %1934 = vmatpush.bf16.msra.mxu0 %v1859
        %1935 = vmatpush.bf16.msra.mxu0 %v1857
        %1936 = vmatpush.bf16.msra.mxu0 %v1855
        %1937 = vmatpush.bf16.msra.mxu0 %v1853
        %1938 = vmatpush.bf16.msra.mxu0 %v1851
        %1939 = vmatpush.bf16.msra.mxu0 %v1849
        %1940 = vmatpush.bf16.msra.mxu0 %v1847
        %1941 = vmatpush.bf16.msra.mxu0 %v1845
        %1942 = vmatmul.bf16.gmra.mxu0 %v1126
        %v1943 = vpop.f32.mrf.mxu0
        %v1944 = vadd.f32 0.0, %v1943
        %v1945 = vpop.f32.mrf.mxu0
        %1946 = vdwg.mxu0
        %1947 = vmatpush.bf16.msra.mxu0 %v1875
        %1948 = vmatpush.bf16.msra.mxu0 %v1873
        %1949 = vmatpush.bf16.msra.mxu0 %v1871
        %1950 = vmatpush.bf16.msra.mxu0 %v1869
        %1951 = vmatpush.bf16.msra.mxu0 %v1867
        %1952 = vmatpush.bf16.msra.mxu0 %v1865
        %1953 = vmatpush.bf16.msra.mxu0 %v1863
        %1954 = vmatpush.bf16.msra.mxu0 %v1861
        %1955 = vmatmul.bf16.gmra.mxu0 %v1127
        %v1956 = vpop.f32.mrf.mxu0
        %v1957 = vadd.f32 %v1944, %v1956
        %v1958 = vpop.f32.mrf.mxu0
        %1959 = vdwg.mxu0
        %s1960 = scalar_lea.vmem [#allocation12], 16
        %v1961 = vld [vmem:[%s1960] sm:$0xf]
        %v1962 = vld [vmem:[%s1960 + $0x4] sm:$0xf]
        %v1963 = vpack.c.bf16 %v1931, %v1931
        %v1964 = vpack.c.bf16 %v1957, %v1957
        %v1967 = vunpack.c.l.b16 %v1961
        %v1968 = vunpack.c.l.b16 %v1962
        %v1969 = vpack.c.b16 %v1968, %v1967
        %v1971 = vsel %vm1631, %v1969, 0
        %v1974 = vand.u32 %v1963, %v1638
        %v1977 = vand.u32 %v1964, %v1638
        %1979 = vmatpush.bf16.msra.mxu0 0
        %1980 = vmatpush.bf16.msra.mxu0 0
        %1981 = vmatpush.bf16.msra.mxu0 0
        %1982 = vmatpush.bf16.msra.mxu0 0
        %1983 = vmatpush.bf16.msra.mxu0 0
        %1984 = vmatpush.bf16.msra.mxu0 0
        %1985 = vmatpush.bf16.msra.mxu0 0
        %1986 = vmatpush.bf16.msra.mxu0 %v1974
        %1987 = vmatmul.bf16.gmra.mxu0 %v1971
        %v1988 = vpop.f32.mrf.mxu0
        %v1989 = vadd.f32 0.0, %v1988
        %v1990 = vpop.f32.mrf.mxu0
        %v1991 = vadd.f32 0.0, %v1990
        %1992 = vdwg.mxu0
        %1993 = vmatpush.bf16.msra.mxu0 0
        %1994 = vmatpush.bf16.msra.mxu0 0
        %1995 = vmatpush.bf16.msra.mxu0 0
        %1996 = vmatpush.bf16.msra.mxu0 0
        %1997 = vmatpush.bf16.msra.mxu0 0
        %1998 = vmatpush.bf16.msra.mxu0 0
        %1999 = vmatpush.bf16.msra.mxu0 0
        %2000 = vmatpush.bf16.msra.mxu0 %v1977
        %2001 = vmatmul.bf16.gmra.mxu0 %v1971
        %v2002 = vpop.f32.mrf.mxu0
        %v2003 = vadd.f32 0.0, %v2002
        %v2004 = vpop.f32.mrf.mxu0
        %v2005 = vadd.f32 0.0, %v2004
        %2006 = vdwg.mxu0
        %v2007 = vadd.f32 %v1697, %v1989
        %v2008 = vadd.f32 %v1711, %v2003
        %v2009 = vadd.f32 %v1699, %v1991
        %v2010 = vadd.f32 %v1713, %v2005
        %s2011 = scalar_lea.vmem [#allocation2], 768
        %v2012 = vld [vmem:[%s2011] sm:$0xff]
        %v2013 = vld [vmem:[%s2011 + $0x8] sm:$0xff]
        %v2014 = vld [vmem:[%s2011 + $0x10] sm:$0xff]
        %v2015 = vld [vmem:[%s2011 + $0x18] sm:$0xff]
        %v2016 = vld [vmem:[%s2011 + $0x20] sm:$0xff]
        %v2017 = vld [vmem:[%s2011 + $0x28] sm:$0xff]
        %v2018 = vld [vmem:[%s2011 + $0x30] sm:$0xff]
        %v2019 = vld [vmem:[%s2011 + $0x38] sm:$0xff]
        %v2020 = vld [vmem:[%s2011 + $0x40] sm:$0xff]
        %v2021 = vld [vmem:[%s2011 + $0x48] sm:$0xff]
        %v2022 = vld [vmem:[%s2011 + $0x50] sm:$0xff]
        %v2023 = vld [vmem:[%s2011 + $0x58] sm:$0xff]
        %v2024 = vld [vmem:[%s2011 + $0x60] sm:$0xff]
        %v2025 = vld [vmem:[%s2011 + $0x68] sm:$0xff]
        %v2026 = vld [vmem:[%s2011 + $0x70] sm:$0xff]
        %v2027 = vld [vmem:[%s2011 + $0x78] sm:$0xff]
        %v2028 = vld [vmem:[%s2011 + $0x80] sm:$0xff]
        %v2029 = vld [vmem:[%s2011 + $0x88] sm:$0xff]
        %v2030 = vld [vmem:[%s2011 + $0x90] sm:$0xff]
        %v2031 = vld [vmem:[%s2011 + $0x98] sm:$0xff]
        %v2032 = vld [vmem:[%s2011 + $0xa0] sm:$0xff]
        %v2033 = vld [vmem:[%s2011 + $0xa8] sm:$0xff]
        %v2034 = vld [vmem:[%s2011 + $0xb0] sm:$0xff]
        %v2035 = vld [vmem:[%s2011 + $0xb8] sm:$0xff]
        %v2036 = vld [vmem:[%s2011 + $0xc0] sm:$0xff]
        %v2037 = vld [vmem:[%s2011 + $0xc8] sm:$0xff]
        %v2038 = vld [vmem:[%s2011 + $0xd0] sm:$0xff]
        %v2039 = vld [vmem:[%s2011 + $0xd8] sm:$0xff]
        %v2040 = vld [vmem:[%s2011 + $0xe0] sm:$0xff]
        %v2041 = vld [vmem:[%s2011 + $0xe8] sm:$0xff]
        %v2042 = vld [vmem:[%s2011 + $0xf0] sm:$0xff]
        %v2043 = vld [vmem:[%s2011 + $0xf8] sm:$0xff]
        %v2076 = vunpack.c.l.b16 %v2012
        %v2077 = vunpack.c.h.b16 %v2012
        %v2078 = vunpack.c.l.b16 %v2013
        %v2079 = vunpack.c.h.b16 %v2013
        %v2080 = vunpack.c.l.b16 %v2014
        %v2081 = vunpack.c.h.b16 %v2014
        %v2082 = vunpack.c.l.b16 %v2015
        %v2083 = vunpack.c.h.b16 %v2015
        %v2084 = vunpack.c.l.b16 %v2016
        %v2085 = vunpack.c.h.b16 %v2016
        %v2086 = vunpack.c.l.b16 %v2017
        %v2087 = vunpack.c.h.b16 %v2017
        %v2088 = vunpack.c.l.b16 %v2018
        %v2089 = vunpack.c.h.b16 %v2018
        %v2090 = vunpack.c.l.b16 %v2019
        %v2091 = vunpack.c.h.b16 %v2019
        %v2092 = vunpack.c.l.b16 %v2020
        %v2093 = vunpack.c.h.b16 %v2020
        %v2094 = vunpack.c.l.b16 %v2021
        %v2095 = vunpack.c.h.b16 %v2021
        %v2096 = vunpack.c.l.b16 %v2022
        %v2097 = vunpack.c.h.b16 %v2022
        %v2098 = vunpack.c.l.b16 %v2023
        %v2099 = vunpack.c.h.b16 %v2023
        %v2100 = vunpack.c.l.b16 %v2024
        %v2101 = vunpack.c.h.b16 %v2024
        %v2102 = vunpack.c.l.b16 %v2025
        %v2103 = vunpack.c.h.b16 %v2025
        %v2104 = vunpack.c.l.b16 %v2026
        %v2105 = vunpack.c.h.b16 %v2026
        %v2106 = vunpack.c.l.b16 %v2027
        %v2107 = vunpack.c.h.b16 %v2027
        %v2108 = vunpack.c.l.b16 %v2028
        %v2109 = vunpack.c.h.b16 %v2028
        %v2110 = vunpack.c.l.b16 %v2029
        %v2111 = vunpack.c.h.b16 %v2029
        %v2112 = vunpack.c.l.b16 %v2030
        %v2113 = vunpack.c.h.b16 %v2030
        %v2114 = vunpack.c.l.b16 %v2031
        %v2115 = vunpack.c.h.b16 %v2031
        %v2116 = vunpack.c.l.b16 %v2032
        %v2117 = vunpack.c.h.b16 %v2032
        %v2118 = vunpack.c.l.b16 %v2033
        %v2119 = vunpack.c.h.b16 %v2033
        %v2120 = vunpack.c.l.b16 %v2034
        %v2121 = vunpack.c.h.b16 %v2034
        %v2122 = vunpack.c.l.b16 %v2035
        %v2123 = vunpack.c.h.b16 %v2035
        %v2124 = vunpack.c.l.b16 %v2036
        %v2125 = vunpack.c.h.b16 %v2036
        %v2126 = vunpack.c.l.b16 %v2037
        %v2127 = vunpack.c.h.b16 %v2037
        %v2128 = vunpack.c.l.b16 %v2038
        %v2129 = vunpack.c.h.b16 %v2038
        %v2130 = vunpack.c.l.b16 %v2039
        %v2131 = vunpack.c.h.b16 %v2039
        %v2132 = vunpack.c.l.b16 %v2040
        %v2133 = vunpack.c.h.b16 %v2040
        %v2134 = vunpack.c.l.b16 %v2041
        %v2135 = vunpack.c.h.b16 %v2041
        %v2136 = vunpack.c.l.b16 %v2042
        %v2137 = vunpack.c.h.b16 %v2042
        %v2138 = vunpack.c.l.b16 %v2043
        %v2139 = vunpack.c.h.b16 %v2043
        %v2140 = vpack.c.b16 %v2078, %v2076
        %v2141 = vpack.c.b16 %v2079, %v2077
        %v2142 = vpack.c.b16 %v2082, %v2080
        %v2143 = vpack.c.b16 %v2083, %v2081
        %v2144 = vpack.c.b16 %v2086, %v2084
        %v2145 = vpack.c.b16 %v2087, %v2085
        %v2146 = vpack.c.b16 %v2090, %v2088
        %v2147 = vpack.c.b16 %v2091, %v2089
        %v2148 = vpack.c.b16 %v2094, %v2092
        %v2149 = vpack.c.b16 %v2095, %v2093
        %v2150 = vpack.c.b16 %v2098, %v2096
        %v2151 = vpack.c.b16 %v2099, %v2097
        %v2152 = vpack.c.b16 %v2102, %v2100
        %v2153 = vpack.c.b16 %v2103, %v2101
        %v2154 = vpack.c.b16 %v2106, %v2104
        %v2155 = vpack.c.b16 %v2107, %v2105
        %v2156 = vpack.c.b16 %v2110, %v2108
        %v2157 = vpack.c.b16 %v2111, %v2109
        %v2158 = vpack.c.b16 %v2114, %v2112
        %v2159 = vpack.c.b16 %v2115, %v2113
        %v2160 = vpack.c.b16 %v2118, %v2116
        %v2161 = vpack.c.b16 %v2119, %v2117
        %v2162 = vpack.c.b16 %v2122, %v2120
        %v2163 = vpack.c.b16 %v2123, %v2121
        %v2164 = vpack.c.b16 %v2126, %v2124
        %v2165 = vpack.c.b16 %v2127, %v2125
        %v2166 = vpack.c.b16 %v2130, %v2128
        %v2167 = vpack.c.b16 %v2131, %v2129
        %v2168 = vpack.c.b16 %v2134, %v2132
        %v2169 = vpack.c.b16 %v2135, %v2133
        %v2170 = vpack.c.b16 %v2138, %v2136
        %v2171 = vpack.c.b16 %v2139, %v2137
        %2204 = vmatpush.bf16.msra.mxu0 %v2154
        %2205 = vmatpush.bf16.msra.mxu0 %v2152
        %2206 = vmatpush.bf16.msra.mxu0 %v2150
        %2207 = vmatpush.bf16.msra.mxu0 %v2148
        %2208 = vmatpush.bf16.msra.mxu0 %v2146
        %2209 = vmatpush.bf16.msra.mxu0 %v2144
        %2210 = vmatpush.bf16.msra.mxu0 %v2142
        %2211 = vmatpush.bf16.msra.mxu0 %v2140
        %2212 = vmatmul.bf16.gmra.mxu0 %v1126
        %v2213 = vpop.f32.mrf.mxu0
        %v2214 = vadd.f32 0.0, %v2213
        %v2215 = vpop.f32.mrf.mxu0
        %2216 = vdwg.mxu0
        %2217 = vmatpush.bf16.msra.mxu0 %v2170
        %2218 = vmatpush.bf16.msra.mxu0 %v2168
        %2219 = vmatpush.bf16.msra.mxu0 %v2166
        %2220 = vmatpush.bf16.msra.mxu0 %v2164
        %2221 = vmatpush.bf16.msra.mxu0 %v2162
        %2222 = vmatpush.bf16.msra.mxu0 %v2160
        %2223 = vmatpush.bf16.msra.mxu0 %v2158
        %2224 = vmatpush.bf16.msra.mxu0 %v2156
        %2225 = vmatmul.bf16.gmra.mxu0 %v1127
        %v2226 = vpop.f32.mrf.mxu0
        %v2227 = vadd.f32 %v2214, %v2226
        %v2228 = vpop.f32.mrf.mxu0
        %2229 = vdwg.mxu0
        %2230 = vmatpush.bf16.msra.mxu0 %v2155
        %2231 = vmatpush.bf16.msra.mxu0 %v2153
        %2232 = vmatpush.bf16.msra.mxu0 %v2151
        %2233 = vmatpush.bf16.msra.mxu0 %v2149
        %2234 = vmatpush.bf16.msra.mxu0 %v2147
        %2235 = vmatpush.bf16.msra.mxu0 %v2145
        %2236 = vmatpush.bf16.msra.mxu0 %v2143
        %2237 = vmatpush.bf16.msra.mxu0 %v2141
        %2238 = vmatmul.bf16.gmra.mxu0 %v1126
        %v2239 = vpop.f32.mrf.mxu0
        %v2240 = vadd.f32 0.0, %v2239
        %v2241 = vpop.f32.mrf.mxu0
        %2242 = vdwg.mxu0
        %2243 = vmatpush.bf16.msra.mxu0 %v2171
        %2244 = vmatpush.bf16.msra.mxu0 %v2169
        %2245 = vmatpush.bf16.msra.mxu0 %v2167
        %2246 = vmatpush.bf16.msra.mxu0 %v2165
        %2247 = vmatpush.bf16.msra.mxu0 %v2163
        %2248 = vmatpush.bf16.msra.mxu0 %v2161
        %2249 = vmatpush.bf16.msra.mxu0 %v2159
        %2250 = vmatpush.bf16.msra.mxu0 %v2157
        %2251 = vmatmul.bf16.gmra.mxu0 %v1127
        %v2252 = vpop.f32.mrf.mxu0
        %v2253 = vadd.f32 %v2240, %v2252
        %v2254 = vpop.f32.mrf.mxu0
        %2255 = vdwg.mxu0
        %s2256 = scalar_lea.vmem [#allocation12], 24
        %v2257 = vld [vmem:[%s2256] sm:$0xf]
        %v2258 = vld [vmem:[%s2256 + $0x4] sm:$0xf]
        %v2259 = vpack.c.bf16 %v2227, %v2227
        %v2260 = vpack.c.bf16 %v2253, %v2253
        %v2263 = vunpack.c.l.b16 %v2257
        %v2264 = vunpack.c.l.b16 %v2258
        %v2265 = vpack.c.b16 %v2264, %v2263
        %v2267 = vsel %vm1631, %v2265, 0
        %v2270 = vand.u32 %v2259, %v1638
        %v2273 = vand.u32 %v2260, %v1638
        %2275 = vmatpush.bf16.msra.mxu0 0
        %2276 = vmatpush.bf16.msra.mxu0 0
        %2277 = vmatpush.bf16.msra.mxu0 0
        %2278 = vmatpush.bf16.msra.mxu0 0
        %2279 = vmatpush.bf16.msra.mxu0 0
        %2280 = vmatpush.bf16.msra.mxu0 0
        %2281 = vmatpush.bf16.msra.mxu0 0
        %2282 = vmatpush.bf16.msra.mxu0 %v2270
        %2283 = vmatmul.bf16.gmra.mxu0 %v2267
        %v2284 = vpop.f32.mrf.mxu0
        %v2285 = vadd.f32 0.0, %v2284
        %v2286 = vpop.f32.mrf.mxu0
        %v2287 = vadd.f32 0.0, %v2286
        %2288 = vdwg.mxu0
        %2289 = vmatpush.bf16.msra.mxu0 0
        %2290 = vmatpush.bf16.msra.mxu0 0
        %2291 = vmatpush.bf16.msra.mxu0 0
        %2292 = vmatpush.bf16.msra.mxu0 0
        %2293 = vmatpush.bf16.msra.mxu0 0
        %2294 = vmatpush.bf16.msra.mxu0 0
        %2295 = vmatpush.bf16.msra.mxu0 0
        %2296 = vmatpush.bf16.msra.mxu0 %v2273
        %2297 = vmatmul.bf16.gmra.mxu0 %v2267
        %v2298 = vpop.f32.mrf.mxu0
        %v2299 = vadd.f32 0.0, %v2298
        %v2300 = vpop.f32.mrf.mxu0
        %v2301 = vadd.f32 0.0, %v2300
        %2302 = vdwg.mxu0
        %v2303 = vadd.f32 %v2007, %v2285
        %v2304 = vadd.f32 %v2008, %v2299
        %v2305 = vadd.f32 %v2009, %v2287
        %v2306 = vadd.f32 %v2010, %v2301
        %s2307 = scalar_lea.vmem [#allocation2], 1024
        %v2308 = vld [vmem:[%s2307] sm:$0xff]
        %v2309 = vld [vmem:[%s2307 + $0x8] sm:$0xff]
        %v2310 = vld [vmem:[%s2307 + $0x10] sm:$0xff]
        %v2311 = vld [vmem:[%s2307 + $0x18] sm:$0xff]
        %v2312 = vld [vmem:[%s2307 + $0x20] sm:$0xff]
        %v2313 = vld [vmem:[%s2307 + $0x28] sm:$0xff]
        %v2314 = vld [vmem:[%s2307 + $0x30] sm:$0xff]
        %v2315 = vld [vmem:[%s2307 + $0x38] sm:$0xff]
        %v2316 = vld [vmem:[%s2307 + $0x40] sm:$0xff]
        %v2317 = vld [vmem:[%s2307 + $0x48] sm:$0xff]
        %v2318 = vld [vmem:[%s2307 + $0x50] sm:$0xff]
        %v2319 = vld [vmem:[%s2307 + $0x58] sm:$0xff]
        %v2320 = vld [vmem:[%s2307 + $0x60] sm:$0xff]
        %v2321 = vld [vmem:[%s2307 + $0x68] sm:$0xff]
        %v2322 = vld [vmem:[%s2307 + $0x70] sm:$0xff]
        %v2323 = vld [vmem:[%s2307 + $0x78] sm:$0xff]
        %v2324 = vld [vmem:[%s2307 + $0x80] sm:$0xff]
        %v2325 = vld [vmem:[%s2307 + $0x88] sm:$0xff]
        %v2326 = vld [vmem:[%s2307 + $0x90] sm:$0xff]
        %v2327 = vld [vmem:[%s2307 + $0x98] sm:$0xff]
        %v2328 = vld [vmem:[%s2307 + $0xa0] sm:$0xff]
        %v2329 = vld [vmem:[%s2307 + $0xa8] sm:$0xff]
        %v2330 = vld [vmem:[%s2307 + $0xb0] sm:$0xff]
        %v2331 = vld [vmem:[%s2307 + $0xb8] sm:$0xff]
        %v2332 = vld [vmem:[%s2307 + $0xc0] sm:$0xff]
        %v2333 = vld [vmem:[%s2307 + $0xc8] sm:$0xff]
        %v2334 = vld [vmem:[%s2307 + $0xd0] sm:$0xff]
        %v2335 = vld [vmem:[%s2307 + $0xd8] sm:$0xff]
        %v2336 = vld [vmem:[%s2307 + $0xe0] sm:$0xff]
        %v2337 = vld [vmem:[%s2307 + $0xe8] sm:$0xff]
        %v2338 = vld [vmem:[%s2307 + $0xf0] sm:$0xff]
        %v2339 = vld [vmem:[%s2307 + $0xf8] sm:$0xff]
        %v2372 = vunpack.c.l.b16 %v2308
        %v2373 = vunpack.c.h.b16 %v2308
        %v2374 = vunpack.c.l.b16 %v2309
        %v2375 = vunpack.c.h.b16 %v2309
        %v2376 = vunpack.c.l.b16 %v2310
        %v2377 = vunpack.c.h.b16 %v2310
        %v2378 = vunpack.c.l.b16 %v2311
        %v2379 = vunpack.c.h.b16 %v2311
        %v2380 = vunpack.c.l.b16 %v2312
        %v2381 = vunpack.c.h.b16 %v2312
        %v2382 = vunpack.c.l.b16 %v2313
        %v2383 = vunpack.c.h.b16 %v2313
        %v2384 = vunpack.c.l.b16 %v2314
        %v2385 = vunpack.c.h.b16 %v2314
        %v2386 = vunpack.c.l.b16 %v2315
        %v2387 = vunpack.c.h.b16 %v2315
        %v2388 = vunpack.c.l.b16 %v2316
        %v2389 = vunpack.c.h.b16 %v2316
        %v2390 = vunpack.c.l.b16 %v2317
        %v2391 = vunpack.c.h.b16 %v2317
        %v2392 = vunpack.c.l.b16 %v2318
        %v2393 = vunpack.c.h.b16 %v2318
        %v2394 = vunpack.c.l.b16 %v2319
        %v2395 = vunpack.c.h.b16 %v2319
        %v2396 = vunpack.c.l.b16 %v2320
        %v2397 = vunpack.c.h.b16 %v2320
        %v2398 = vunpack.c.l.b16 %v2321
        %v2399 = vunpack.c.h.b16 %v2321
        %v2400 = vunpack.c.l.b16 %v2322
        %v2401 = vunpack.c.h.b16 %v2322
        %v2402 = vunpack.c.l.b16 %v2323
        %v2403 = vunpack.c.h.b16 %v2323
        %v2404 = vunpack.c.l.b16 %v2324
        %v2405 = vunpack.c.h.b16 %v2324
        %v2406 = vunpack.c.l.b16 %v2325
        %v2407 = vunpack.c.h.b16 %v2325
        %v2408 = vunpack.c.l.b16 %v2326
        %v2409 = vunpack.c.h.b16 %v2326
        %v2410 = vunpack.c.l.b16 %v2327
        %v2411 = vunpack.c.h.b16 %v2327
        %v2412 = vunpack.c.l.b16 %v2328
        %v2413 = vunpack.c.h.b16 %v2328
        %v2414 = vunpack.c.l.b16 %v2329
        %v2415 = vunpack.c.h.b16 %v2329
        %v2416 = vunpack.c.l.b16 %v2330
        %v2417 = vunpack.c.h.b16 %v2330
        %v2418 = vunpack.c.l.b16 %v2331
        %v2419 = vunpack.c.h.b16 %v2331
        %v2420 = vunpack.c.l.b16 %v2332
        %v2421 = vunpack.c.h.b16 %v2332
        %v2422 = vunpack.c.l.b16 %v2333
        %v2423 = vunpack.c.h.b16 %v2333
        %v2424 = vunpack.c.l.b16 %v2334
        %v2425 = vunpack.c.h.b16 %v2334
        %v2426 = vunpack.c.l.b16 %v2335
        %v2427 = vunpack.c.h.b16 %v2335
        %v2428 = vunpack.c.l.b16 %v2336
        %v2429 = vunpack.c.h.b16 %v2336
        %v2430 = vunpack.c.l.b16 %v2337
        %v2431 = vunpack.c.h.b16 %v2337
        %v2432 = vunpack.c.l.b16 %v2338
        %v2433 = vunpack.c.h.b16 %v2338
        %v2434 = vunpack.c.l.b16 %v2339
        %v2435 = vunpack.c.h.b16 %v2339
        %v2436 = vpack.c.b16 %v2374, %v2372
        %v2437 = vpack.c.b16 %v2375, %v2373
        %v2438 = vpack.c.b16 %v2378, %v2376
        %v2439 = vpack.c.b16 %v2379, %v2377
        %v2440 = vpack.c.b16 %v2382, %v2380
        %v2441 = vpack.c.b16 %v2383, %v2381
        %v2442 = vpack.c.b16 %v2386, %v2384
        %v2443 = vpack.c.b16 %v2387, %v2385
        %v2444 = vpack.c.b16 %v2390, %v2388
        %v2445 = vpack.c.b16 %v2391, %v2389
        %v2446 = vpack.c.b16 %v2394, %v2392
        %v2447 = vpack.c.b16 %v2395, %v2393
        %v2448 = vpack.c.b16 %v2398, %v2396
        %v2449 = vpack.c.b16 %v2399, %v2397
        %v2450 = vpack.c.b16 %v2402, %v2400
        %v2451 = vpack.c.b16 %v2403, %v2401
        %v2452 = vpack.c.b16 %v2406, %v2404
        %v2453 = vpack.c.b16 %v2407, %v2405
        %v2454 = vpack.c.b16 %v2410, %v2408
        %v2455 = vpack.c.b16 %v2411, %v2409
        %v2456 = vpack.c.b16 %v2414, %v2412
        %v2457 = vpack.c.b16 %v2415, %v2413
        %v2458 = vpack.c.b16 %v2418, %v2416
        %v2459 = vpack.c.b16 %v2419, %v2417
        %v2460 = vpack.c.b16 %v2422, %v2420
        %v2461 = vpack.c.b16 %v2423, %v2421
        %v2462 = vpack.c.b16 %v2426, %v2424
        %v2463 = vpack.c.b16 %v2427, %v2425
        %v2464 = vpack.c.b16 %v2430, %v2428
        %v2465 = vpack.c.b16 %v2431, %v2429
        %v2466 = vpack.c.b16 %v2434, %v2432
        %v2467 = vpack.c.b16 %v2435, %v2433
        %2500 = vmatpush.bf16.msra.mxu0 %v2450
        %2501 = vmatpush.bf16.msra.mxu0 %v2448
        %2502 = vmatpush.bf16.msra.mxu0 %v2446
        %2503 = vmatpush.bf16.msra.mxu0 %v2444
        %2504 = vmatpush.bf16.msra.mxu0 %v2442
        %2505 = vmatpush.bf16.msra.mxu0 %v2440
        %2506 = vmatpush.bf16.msra.mxu0 %v2438
        %2507 = vmatpush.bf16.msra.mxu0 %v2436
        %2508 = vmatmul.bf16.gmra.mxu0 %v1126
        %v2509 = vpop.f32.mrf.mxu0
        %v2510 = vadd.f32 0.0, %v2509
        %v2511 = vpop.f32.mrf.mxu0
        %2512 = vdwg.mxu0
        %2513 = vmatpush.bf16.msra.mxu0 %v2466
        %2514 = vmatpush.bf16.msra.mxu0 %v2464
        %2515 = vmatpush.bf16.msra.mxu0 %v2462
        %2516 = vmatpush.bf16.msra.mxu0 %v2460
        %2517 = vmatpush.bf16.msra.mxu0 %v2458
        %2518 = vmatpush.bf16.msra.mxu0 %v2456
        %2519 = vmatpush.bf16.msra.mxu0 %v2454
        %2520 = vmatpush.bf16.msra.mxu0 %v2452
        %2521 = vmatmul.bf16.gmra.mxu0 %v1127
        %v2522 = vpop.f32.mrf.mxu0
        %v2523 = vadd.f32 %v2510, %v2522
        %v2524 = vpop.f32.mrf.mxu0
        %2525 = vdwg.mxu0
        %2526 = vmatpush.bf16.msra.mxu0 %v2451
        %2527 = vmatpush.bf16.msra.mxu0 %v2449
        %2528 = vmatpush.bf16.msra.mxu0 %v2447
        %2529 = vmatpush.bf16.msra.mxu0 %v2445
        %2530 = vmatpush.bf16.msra.mxu0 %v2443
        %2531 = vmatpush.bf16.msra.mxu0 %v2441
        %2532 = vmatpush.bf16.msra.mxu0 %v2439
        %2533 = vmatpush.bf16.msra.mxu0 %v2437
        %2534 = vmatmul.bf16.gmra.mxu0 %v1126
        %v2535 = vpop.f32.mrf.mxu0
        %v2536 = vadd.f32 0.0, %v2535
        %v2537 = vpop.f32.mrf.mxu0
        %2538 = vdwg.mxu0
        %2539 = vmatpush.bf16.msra.mxu0 %v2467
        %2540 = vmatpush.bf16.msra.mxu0 %v2465
        %2541 = vmatpush.bf16.msra.mxu0 %v2463
        %2542 = vmatpush.bf16.msra.mxu0 %v2461
        %2543 = vmatpush.bf16.msra.mxu0 %v2459
        %2544 = vmatpush.bf16.msra.mxu0 %v2457
        %2545 = vmatpush.bf16.msra.mxu0 %v2455
        %2546 = vmatpush.bf16.msra.mxu0 %v2453
        %2547 = vmatmul.bf16.gmra.mxu0 %v1127
        %v2548 = vpop.f32.mrf.mxu0
        %v2549 = vadd.f32 %v2536, %v2548
        %v2550 = vpop.f32.mrf.mxu0
        %2551 = vdwg.mxu0
        %s2552 = scalar_lea.vmem [#allocation12], 32
        %v2553 = vld [vmem:[%s2552] sm:$0xf]
        %v2554 = vld [vmem:[%s2552 + $0x4] sm:$0xf]
        %v2555 = vpack.c.bf16 %v2523, %v2523
        %v2556 = vpack.c.bf16 %v2549, %v2549
        %v2559 = vunpack.c.l.b16 %v2553
        %v2560 = vunpack.c.l.b16 %v2554
        %v2561 = vpack.c.b16 %v2560, %v2559
        %v2563 = vsel %vm1631, %v2561, 0
        %v2566 = vand.u32 %v2555, %v1638
        %v2569 = vand.u32 %v2556, %v1638
        %2571 = vmatpush.bf16.msra.mxu0 0
        %2572 = vmatpush.bf16.msra.mxu0 0
        %2573 = vmatpush.bf16.msra.mxu0 0
        %2574 = vmatpush.bf16.msra.mxu0 0
        %2575 = vmatpush.bf16.msra.mxu0 0
        %2576 = vmatpush.bf16.msra.mxu0 0
        %2577 = vmatpush.bf16.msra.mxu0 0
        %2578 = vmatpush.bf16.msra.mxu0 %v2566
        %2579 = vmatmul.bf16.gmra.mxu0 %v2563
        %v2580 = vpop.f32.mrf.mxu0
        %v2581 = vadd.f32 0.0, %v2580
        %v2582 = vpop.f32.mrf.mxu0
        %v2583 = vadd.f32 0.0, %v2582
        %2584 = vdwg.mxu0
        %2585 = vmatpush.bf16.msra.mxu0 0
        %2586 = vmatpush.bf16.msra.mxu0 0
        %2587 = vmatpush.bf16.msra.mxu0 0
        %2588 = vmatpush.bf16.msra.mxu0 0
        %2589 = vmatpush.bf16.msra.mxu0 0
        %2590 = vmatpush.bf16.msra.mxu0 0
        %2591 = vmatpush.bf16.msra.mxu0 0
        %2592 = vmatpush.bf16.msra.mxu0 %v2569
        %2593 = vmatmul.bf16.gmra.mxu0 %v2563
        %v2594 = vpop.f32.mrf.mxu0
        %v2595 = vadd.f32 0.0, %v2594
        %v2596 = vpop.f32.mrf.mxu0
        %v2597 = vadd.f32 0.0, %v2596
        %2598 = vdwg.mxu0
        %v2599 = vadd.f32 %v2303, %v2581
        %v2600 = vadd.f32 %v2304, %v2595
        %v2601 = vadd.f32 %v2305, %v2583
        %v2602 = vadd.f32 %v2306, %v2597
        %s2603 = scalar_lea.vmem [#allocation2], 1280
        %v2604 = vld [vmem:[%s2603] sm:$0xff]
        %v2605 = vld [vmem:[%s2603 + $0x8] sm:$0xff]
        %v2606 = vld [vmem:[%s2603 + $0x10] sm:$0xff]
        %v2607 = vld [vmem:[%s2603 + $0x18] sm:$0xff]
        %v2608 = vld [vmem:[%s2603 + $0x20] sm:$0xff]
        %v2609 = vld [vmem:[%s2603 + $0x28] sm:$0xff]
        %v2610 = vld [vmem:[%s2603 + $0x30] sm:$0xff]
        %v2611 = vld [vmem:[%s2603 + $0x38] sm:$0xff]
        %v2612 = vld [vmem:[%s2603 + $0x40] sm:$0xff]
        %v2613 = vld [vmem:[%s2603 + $0x48] sm:$0xff]
        %v2614 = vld [vmem:[%s2603 + $0x50] sm:$0xff]
        %v2615 = vld [vmem:[%s2603 + $0x58] sm:$0xff]
        %v2616 = vld [vmem:[%s2603 + $0x60] sm:$0xff]
        %v2617 = vld [vmem:[%s2603 + $0x68] sm:$0xff]
        %v2618 = vld [vmem:[%s2603 + $0x70] sm:$0xff]
        %v2619 = vld [vmem:[%s2603 + $0x78] sm:$0xff]
        %v2620 = vld [vmem:[%s2603 + $0x80] sm:$0xff]
        %v2621 = vld [vmem:[%s2603 + $0x88] sm:$0xff]
        %v2622 = vld [vmem:[%s2603 + $0x90] sm:$0xff]
        %v2623 = vld [vmem:[%s2603 + $0x98] sm:$0xff]
        %v2624 = vld [vmem:[%s2603 + $0xa0] sm:$0xff]
        %v2625 = vld [vmem:[%s2603 + $0xa8] sm:$0xff]
        %v2626 = vld [vmem:[%s2603 + $0xb0] sm:$0xff]
        %v2627 = vld [vmem:[%s2603 + $0xb8] sm:$0xff]
        %v2628 = vld [vmem:[%s2603 + $0xc0] sm:$0xff]
        %v2629 = vld [vmem:[%s2603 + $0xc8] sm:$0xff]
        %v2630 = vld [vmem:[%s2603 + $0xd0] sm:$0xff]
        %v2631 = vld [vmem:[%s2603 + $0xd8] sm:$0xff]
        %v2632 = vld [vmem:[%s2603 + $0xe0] sm:$0xff]
        %v2633 = vld [vmem:[%s2603 + $0xe8] sm:$0xff]
        %v2634 = vld [vmem:[%s2603 + $0xf0] sm:$0xff]
        %v2635 = vld [vmem:[%s2603 + $0xf8] sm:$0xff]
        %v2668 = vunpack.c.l.b16 %v2604
        %v2669 = vunpack.c.h.b16 %v2604
        %v2670 = vunpack.c.l.b16 %v2605
        %v2671 = vunpack.c.h.b16 %v2605
        %v2672 = vunpack.c.l.b16 %v2606
        %v2673 = vunpack.c.h.b16 %v2606
        %v2674 = vunpack.c.l.b16 %v2607
        %v2675 = vunpack.c.h.b16 %v2607
        %v2676 = vunpack.c.l.b16 %v2608
        %v2677 = vunpack.c.h.b16 %v2608
        %v2678 = vunpack.c.l.b16 %v2609
        %v2679 = vunpack.c.h.b16 %v2609
        %v2680 = vunpack.c.l.b16 %v2610
        %v2681 = vunpack.c.h.b16 %v2610
        %v2682 = vunpack.c.l.b16 %v2611
        %v2683 = vunpack.c.h.b16 %v2611
        %v2684 = vunpack.c.l.b16 %v2612
        %v2685 = vunpack.c.h.b16 %v2612
        %v2686 = vunpack.c.l.b16 %v2613
        %v2687 = vunpack.c.h.b16 %v2613
        %v2688 = vunpack.c.l.b16 %v2614
        %v2689 = vunpack.c.h.b16 %v2614
        %v2690 = vunpack.c.l.b16 %v2615
        %v2691 = vunpack.c.h.b16 %v2615
        %v2692 = vunpack.c.l.b16 %v2616
        %v2693 = vunpack.c.h.b16 %v2616
        %v2694 = vunpack.c.l.b16 %v2617
        %v2695 = vunpack.c.h.b16 %v2617
        %v2696 = vunpack.c.l.b16 %v2618
        %v2697 = vunpack.c.h.b16 %v2618
        %v2698 = vunpack.c.l.b16 %v2619
        %v2699 = vunpack.c.h.b16 %v2619
        %v2700 = vunpack.c.l.b16 %v2620
        %v2701 = vunpack.c.h.b16 %v2620
        %v2702 = vunpack.c.l.b16 %v2621
        %v2703 = vunpack.c.h.b16 %v2621
        %v2704 = vunpack.c.l.b16 %v2622
        %v2705 = vunpack.c.h.b16 %v2622
        %v2706 = vunpack.c.l.b16 %v2623
        %v2707 = vunpack.c.h.b16 %v2623
        %v2708 = vunpack.c.l.b16 %v2624
        %v2709 = vunpack.c.h.b16 %v2624
        %v2710 = vunpack.c.l.b16 %v2625
        %v2711 = vunpack.c.h.b16 %v2625
        %v2712 = vunpack.c.l.b16 %v2626
        %v2713 = vunpack.c.h.b16 %v2626
        %v2714 = vunpack.c.l.b16 %v2627
        %v2715 = vunpack.c.h.b16 %v2627
        %v2716 = vunpack.c.l.b16 %v2628
        %v2717 = vunpack.c.h.b16 %v2628
        %v2718 = vunpack.c.l.b16 %v2629
        %v2719 = vunpack.c.h.b16 %v2629
        %v2720 = vunpack.c.l.b16 %v2630
        %v2721 = vunpack.c.h.b16 %v2630
        %v2722 = vunpack.c.l.b16 %v2631
        %v2723 = vunpack.c.h.b16 %v2631
        %v2724 = vunpack.c.l.b16 %v2632
        %v2725 = vunpack.c.h.b16 %v2632
        %v2726 = vunpack.c.l.b16 %v2633
        %v2727 = vunpack.c.h.b16 %v2633
        %v2728 = vunpack.c.l.b16 %v2634
        %v2729 = vunpack.c.h.b16 %v2634
        %v2730 = vunpack.c.l.b16 %v2635
        %v2731 = vunpack.c.h.b16 %v2635
        %v2732 = vpack.c.b16 %v2670, %v2668
        %v2733 = vpack.c.b16 %v2671, %v2669
        %v2734 = vpack.c.b16 %v2674, %v2672
        %v2735 = vpack.c.b16 %v2675, %v2673
        %v2736 = vpack.c.b16 %v2678, %v2676
        %v2737 = vpack.c.b16 %v2679, %v2677
        %v2738 = vpack.c.b16 %v2682, %v2680
        %v2739 = vpack.c.b16 %v2683, %v2681
        %v2740 = vpack.c.b16 %v2686, %v2684
        %v2741 = vpack.c.b16 %v2687, %v2685
        %v2742 = vpack.c.b16 %v2690, %v2688
        %v2743 = vpack.c.b16 %v2691, %v2689
        %v2744 = vpack.c.b16 %v2694, %v2692
        %v2745 = vpack.c.b16 %v2695, %v2693
        %v2746 = vpack.c.b16 %v2698, %v2696
        %v2747 = vpack.c.b16 %v2699, %v2697
        %v2748 = vpack.c.b16 %v2702, %v2700
        %v2749 = vpack.c.b16 %v2703, %v2701
        %v2750 = vpack.c.b16 %v2706, %v2704
        %v2751 = vpack.c.b16 %v2707, %v2705
        %v2752 = vpack.c.b16 %v2710, %v2708
        %v2753 = vpack.c.b16 %v2711, %v2709
        %v2754 = vpack.c.b16 %v2714, %v2712
        %v2755 = vpack.c.b16 %v2715, %v2713
        %v2756 = vpack.c.b16 %v2718, %v2716
        %v2757 = vpack.c.b16 %v2719, %v2717
        %v2758 = vpack.c.b16 %v2722, %v2720
        %v2759 = vpack.c.b16 %v2723, %v2721
        %v2760 = vpack.c.b16 %v2726, %v2724
        %v2761 = vpack.c.b16 %v2727, %v2725
        %v2762 = vpack.c.b16 %v2730, %v2728
        %v2763 = vpack.c.b16 %v2731, %v2729
        %2796 = vmatpush.bf16.msra.mxu0 %v2746
        %2797 = vmatpush.bf16.msra.mxu0 %v2744
        %2798 = vmatpush.bf16.msra.mxu0 %v2742
        %2799 = vmatpush.bf16.msra.mxu0 %v2740
        %2800 = vmatpush.bf16.msra.mxu0 %v2738
        %2801 = vmatpush.bf16.msra.mxu0 %v2736
        %2802 = vmatpush.bf16.msra.mxu0 %v2734
        %2803 = vmatpush.bf16.msra.mxu0 %v2732
        %2804 = vmatmul.bf16.gmra.mxu0 %v1126
        %v2805 = vpop.f32.mrf.mxu0
        %v2806 = vadd.f32 0.0, %v2805
        %v2807 = vpop.f32.mrf.mxu0
        %2808 = vdwg.mxu0
        %2809 = vmatpush.bf16.msra.mxu0 %v2762
        %2810 = vmatpush.bf16.msra.mxu0 %v2760
        %2811 = vmatpush.bf16.msra.mxu0 %v2758
        %2812 = vmatpush.bf16.msra.mxu0 %v2756
        %2813 = vmatpush.bf16.msra.mxu0 %v2754
        %2814 = vmatpush.bf16.msra.mxu0 %v2752
        %2815 = vmatpush.bf16.msra.mxu0 %v2750
        %2816 = vmatpush.bf16.msra.mxu0 %v2748
        %2817 = vmatmul.bf16.gmra.mxu0 %v1127
        %v2818 = vpop.f32.mrf.mxu0
        %v2819 = vadd.f32 %v2806, %v2818
        %v2820 = vpop.f32.mrf.mxu0
        %2821 = vdwg.mxu0
        %2822 = vmatpush.bf16.msra.mxu0 %v2747
        %2823 = vmatpush.bf16.msra.mxu0 %v2745
        %2824 = vmatpush.bf16.msra.mxu0 %v2743
        %2825 = vmatpush.bf16.msra.mxu0 %v2741
        %2826 = vmatpush.bf16.msra.mxu0 %v2739
        %2827 = vmatpush.bf16.msra.mxu0 %v2737
        %2828 = vmatpush.bf16.msra.mxu0 %v2735
        %2829 = vmatpush.bf16.msra.mxu0 %v2733
        %2830 = vmatmul.bf16.gmra.mxu0 %v1126
        %v2831 = vpop.f32.mrf.mxu0
        %v2832 = vadd.f32 0.0, %v2831
        %v2833 = vpop.f32.mrf.mxu0
        %2834 = vdwg.mxu0
        %2835 = vmatpush.bf16.msra.mxu0 %v2763
        %2836 = vmatpush.bf16.msra.mxu0 %v2761
        %2837 = vmatpush.bf16.msra.mxu0 %v2759
        %2838 = vmatpush.bf16.msra.mxu0 %v2757
        %2839 = vmatpush.bf16.msra.mxu0 %v2755
        %2840 = vmatpush.bf16.msra.mxu0 %v2753
        %2841 = vmatpush.bf16.msra.mxu0 %v2751
        %2842 = vmatpush.bf16.msra.mxu0 %v2749
        %2843 = vmatmul.bf16.gmra.mxu0 %v1127
        %v2844 = vpop.f32.mrf.mxu0
        %v2845 = vadd.f32 %v2832, %v2844
        %v2846 = vpop.f32.mrf.mxu0
        %2847 = vdwg.mxu0
        %s2848 = scalar_lea.vmem [#allocation12], 40
        %v2849 = vld [vmem:[%s2848] sm:$0xf]
        %v2850 = vld [vmem:[%s2848 + $0x4] sm:$0xf]
        %v2851 = vpack.c.bf16 %v2819, %v2819
        %v2852 = vpack.c.bf16 %v2845, %v2845
        %v2855 = vunpack.c.l.b16 %v2849
        %v2856 = vunpack.c.l.b16 %v2850
        %v2857 = vpack.c.b16 %v2856, %v2855
        %v2859 = vsel %vm1631, %v2857, 0
        %v2862 = vand.u32 %v2851, %v1638
        %v2865 = vand.u32 %v2852, %v1638
        %2867 = vmatpush.bf16.msra.mxu0 0
        %2868 = vmatpush.bf16.msra.mxu0 0
        %2869 = vmatpush.bf16.msra.mxu0 0
        %2870 = vmatpush.bf16.msra.mxu0 0
        %2871 = vmatpush.bf16.msra.mxu0 0
        %2872 = vmatpush.bf16.msra.mxu0 0
        %2873 = vmatpush.bf16.msra.mxu0 0
        %2874 = vmatpush.bf16.msra.mxu0 %v2862
        %2875 = vmatmul.bf16.gmra.mxu0 %v2859
        %v2876 = vpop.f32.mrf.mxu0
        %v2877 = vadd.f32 0.0, %v2876
        %v2878 = vpop.f32.mrf.mxu0
        %v2879 = vadd.f32 0.0, %v2878
        %2880 = vdwg.mxu0
        %2881 = vmatpush.bf16.msra.mxu0 0
        %2882 = vmatpush.bf16.msra.mxu0 0
        %2883 = vmatpush.bf16.msra.mxu0 0
        %2884 = vmatpush.bf16.msra.mxu0 0
        %2885 = vmatpush.bf16.msra.mxu0 0
        %2886 = vmatpush.bf16.msra.mxu0 0
        %2887 = vmatpush.bf16.msra.mxu0 0
        %2888 = vmatpush.bf16.msra.mxu0 %v2865
        %2889 = vmatmul.bf16.gmra.mxu0 %v2859
        %v2890 = vpop.f32.mrf.mxu0
        %v2891 = vadd.f32 0.0, %v2890
        %v2892 = vpop.f32.mrf.mxu0
        %v2893 = vadd.f32 0.0, %v2892
        %2894 = vdwg.mxu0
        %v2895 = vadd.f32 %v2599, %v2877
        %v2896 = vadd.f32 %v2600, %v2891
        %v2897 = vadd.f32 %v2601, %v2879
        %v2898 = vadd.f32 %v2602, %v2893
        %s2899 = scalar_lea.vmem [#allocation2], 1536
        %v2900 = vld [vmem:[%s2899] sm:$0xff]
        %v2901 = vld [vmem:[%s2899 + $0x8] sm:$0xff]
        %v2902 = vld [vmem:[%s2899 + $0x10] sm:$0xff]
        %v2903 = vld [vmem:[%s2899 + $0x18] sm:$0xff]
        %v2904 = vld [vmem:[%s2899 + $0x20] sm:$0xff]
        %v2905 = vld [vmem:[%s2899 + $0x28] sm:$0xff]
        %v2906 = vld [vmem:[%s2899 + $0x30] sm:$0xff]
        %v2907 = vld [vmem:[%s2899 + $0x38] sm:$0xff]
        %v2908 = vld [vmem:[%s2899 + $0x40] sm:$0xff]
        %v2909 = vld [vmem:[%s2899 + $0x48] sm:$0xff]
        %v2910 = vld [vmem:[%s2899 + $0x50] sm:$0xff]
        %v2911 = vld [vmem:[%s2899 + $0x58] sm:$0xff]
        %v2912 = vld [vmem:[%s2899 + $0x60] sm:$0xff]
        %v2913 = vld [vmem:[%s2899 + $0x68] sm:$0xff]
        %v2914 = vld [vmem:[%s2899 + $0x70] sm:$0xff]
        %v2915 = vld [vmem:[%s2899 + $0x78] sm:$0xff]
        %v2916 = vld [vmem:[%s2899 + $0x80] sm:$0xff]
        %v2917 = vld [vmem:[%s2899 + $0x88] sm:$0xff]
        %v2918 = vld [vmem:[%s2899 + $0x90] sm:$0xff]
        %v2919 = vld [vmem:[%s2899 + $0x98] sm:$0xff]
        %v2920 = vld [vmem:[%s2899 + $0xa0] sm:$0xff]
        %v2921 = vld [vmem:[%s2899 + $0xa8] sm:$0xff]
        %v2922 = vld [vmem:[%s2899 + $0xb0] sm:$0xff]
        %v2923 = vld [vmem:[%s2899 + $0xb8] sm:$0xff]
        %v2924 = vld [vmem:[%s2899 + $0xc0] sm:$0xff]
        %v2925 = vld [vmem:[%s2899 + $0xc8] sm:$0xff]
        %v2926 = vld [vmem:[%s2899 + $0xd0] sm:$0xff]
        %v2927 = vld [vmem:[%s2899 + $0xd8] sm:$0xff]
        %v2928 = vld [vmem:[%s2899 + $0xe0] sm:$0xff]
        %v2929 = vld [vmem:[%s2899 + $0xe8] sm:$0xff]
        %v2930 = vld [vmem:[%s2899 + $0xf0] sm:$0xff]
        %v2931 = vld [vmem:[%s2899 + $0xf8] sm:$0xff]
        %v2964 = vunpack.c.l.b16 %v2900
        %v2965 = vunpack.c.h.b16 %v2900
        %v2966 = vunpack.c.l.b16 %v2901
        %v2967 = vunpack.c.h.b16 %v2901
        %v2968 = vunpack.c.l.b16 %v2902
        %v2969 = vunpack.c.h.b16 %v2902
        %v2970 = vunpack.c.l.b16 %v2903
        %v2971 = vunpack.c.h.b16 %v2903
        %v2972 = vunpack.c.l.b16 %v2904
        %v2973 = vunpack.c.h.b16 %v2904
        %v2974 = vunpack.c.l.b16 %v2905
        %v2975 = vunpack.c.h.b16 %v2905
        %v2976 = vunpack.c.l.b16 %v2906
        %v2977 = vunpack.c.h.b16 %v2906
        %v2978 = vunpack.c.l.b16 %v2907
        %v2979 = vunpack.c.h.b16 %v2907
        %v2980 = vunpack.c.l.b16 %v2908
        %v2981 = vunpack.c.h.b16 %v2908
        %v2982 = vunpack.c.l.b16 %v2909
        %v2983 = vunpack.c.h.b16 %v2909
        %v2984 = vunpack.c.l.b16 %v2910
        %v2985 = vunpack.c.h.b16 %v2910
        %v2986 = vunpack.c.l.b16 %v2911
        %v2987 = vunpack.c.h.b16 %v2911
        %v2988 = vunpack.c.l.b16 %v2912
        %v2989 = vunpack.c.h.b16 %v2912
        %v2990 = vunpack.c.l.b16 %v2913
        %v2991 = vunpack.c.h.b16 %v2913
        %v2992 = vunpack.c.l.b16 %v2914
        %v2993 = vunpack.c.h.b16 %v2914
        %v2994 = vunpack.c.l.b16 %v2915
        %v2995 = vunpack.c.h.b16 %v2915
        %v2996 = vunpack.c.l.b16 %v2916
        %v2997 = vunpack.c.h.b16 %v2916
        %v2998 = vunpack.c.l.b16 %v2917
        %v2999 = vunpack.c.h.b16 %v2917
        %v3000 = vunpack.c.l.b16 %v2918
        %v3001 = vunpack.c.h.b16 %v2918
        %v3002 = vunpack.c.l.b16 %v2919
        %v3003 = vunpack.c.h.b16 %v2919
        %v3004 = vunpack.c.l.b16 %v2920
        %v3005 = vunpack.c.h.b16 %v2920
        %v3006 = vunpack.c.l.b16 %v2921
        %v3007 = vunpack.c.h.b16 %v2921
        %v3008 = vunpack.c.l.b16 %v2922
        %v3009 = vunpack.c.h.b16 %v2922
        %v3010 = vunpack.c.l.b16 %v2923
        %v3011 = vunpack.c.h.b16 %v2923
        %v3012 = vunpack.c.l.b16 %v2924
        %v3013 = vunpack.c.h.b16 %v2924
        %v3014 = vunpack.c.l.b16 %v2925
        %v3015 = vunpack.c.h.b16 %v2925
        %v3016 = vunpack.c.l.b16 %v2926
        %v3017 = vunpack.c.h.b16 %v2926
        %v3018 = vunpack.c.l.b16 %v2927
        %v3019 = vunpack.c.h.b16 %v2927
        %v3020 = vunpack.c.l.b16 %v2928
        %v3021 = vunpack.c.h.b16 %v2928
        %v3022 = vunpack.c.l.b16 %v2929
        %v3023 = vunpack.c.h.b16 %v2929
        %v3024 = vunpack.c.l.b16 %v2930
        %v3025 = vunpack.c.h.b16 %v2930
        %v3026 = vunpack.c.l.b16 %v2931
        %v3027 = vunpack.c.h.b16 %v2931
        %v3028 = vpack.c.b16 %v2966, %v2964
        %v3029 = vpack.c.b16 %v2967, %v2965
        %v3030 = vpack.c.b16 %v2970, %v2968
        %v3031 = vpack.c.b16 %v2971, %v2969
        %v3032 = vpack.c.b16 %v2974, %v2972
        %v3033 = vpack.c.b16 %v2975, %v2973
        %v3034 = vpack.c.b16 %v2978, %v2976
        %v3035 = vpack.c.b16 %v2979, %v2977
        %v3036 = vpack.c.b16 %v2982, %v2980
        %v3037 = vpack.c.b16 %v2983, %v2981
        %v3038 = vpack.c.b16 %v2986, %v2984
        %v3039 = vpack.c.b16 %v2987, %v2985
        %v3040 = vpack.c.b16 %v2990, %v2988
        %v3041 = vpack.c.b16 %v2991, %v2989
        %v3042 = vpack.c.b16 %v2994, %v2992
        %v3043 = vpack.c.b16 %v2995, %v2993
        %v3044 = vpack.c.b16 %v2998, %v2996
        %v3045 = vpack.c.b16 %v2999, %v2997
        %v3046 = vpack.c.b16 %v3002, %v3000
        %v3047 = vpack.c.b16 %v3003, %v3001
        %v3048 = vpack.c.b16 %v3006, %v3004
        %v3049 = vpack.c.b16 %v3007, %v3005
        %v3050 = vpack.c.b16 %v3010, %v3008
        %v3051 = vpack.c.b16 %v3011, %v3009
        %v3052 = vpack.c.b16 %v3014, %v3012
        %v3053 = vpack.c.b16 %v3015, %v3013
        %v3054 = vpack.c.b16 %v3018, %v3016
        %v3055 = vpack.c.b16 %v3019, %v3017
        %v3056 = vpack.c.b16 %v3022, %v3020
        %v3057 = vpack.c.b16 %v3023, %v3021
        %v3058 = vpack.c.b16 %v3026, %v3024
        %v3059 = vpack.c.b16 %v3027, %v3025
        %3092 = vmatpush.bf16.msra.mxu0 %v3042
        %3093 = vmatpush.bf16.msra.mxu0 %v3040
        %3094 = vmatpush.bf16.msra.mxu0 %v3038
        %3095 = vmatpush.bf16.msra.mxu0 %v3036
        %3096 = vmatpush.bf16.msra.mxu0 %v3034
        %3097 = vmatpush.bf16.msra.mxu0 %v3032
        %3098 = vmatpush.bf16.msra.mxu0 %v3030
        %3099 = vmatpush.bf16.msra.mxu0 %v3028
        %3100 = vmatmul.bf16.gmra.mxu0 %v1126
        %v3101 = vpop.f32.mrf.mxu0
        %v3102 = vadd.f32 0.0, %v3101
        %v3103 = vpop.f32.mrf.mxu0
        %3104 = vdwg.mxu0
        %3105 = vmatpush.bf16.msra.mxu0 %v3058
        %3106 = vmatpush.bf16.msra.mxu0 %v3056
        %3107 = vmatpush.bf16.msra.mxu0 %v3054
        %3108 = vmatpush.bf16.msra.mxu0 %v3052
        %3109 = vmatpush.bf16.msra.mxu0 %v3050
        %3110 = vmatpush.bf16.msra.mxu0 %v3048
        %3111 = vmatpush.bf16.msra.mxu0 %v3046
        %3112 = vmatpush.bf16.msra.mxu0 %v3044
        %3113 = vmatmul.bf16.gmra.mxu0 %v1127
        %v3114 = vpop.f32.mrf.mxu0
        %v3115 = vadd.f32 %v3102, %v3114
        %v3116 = vpop.f32.mrf.mxu0
        %3117 = vdwg.mxu0
        %3118 = vmatpush.bf16.msra.mxu0 %v3043
        %3119 = vmatpush.bf16.msra.mxu0 %v3041
        %3120 = vmatpush.bf16.msra.mxu0 %v3039
        %3121 = vmatpush.bf16.msra.mxu0 %v3037
        %3122 = vmatpush.bf16.msra.mxu0 %v3035
        %3123 = vmatpush.bf16.msra.mxu0 %v3033
        %3124 = vmatpush.bf16.msra.mxu0 %v3031
        %3125 = vmatpush.bf16.msra.mxu0 %v3029
        %3126 = vmatmul.bf16.gmra.mxu0 %v1126
        %v3127 = vpop.f32.mrf.mxu0
        %v3128 = vadd.f32 0.0, %v3127
        %v3129 = vpop.f32.mrf.mxu0
        %3130 = vdwg.mxu0
        %3131 = vmatpush.bf16.msra.mxu0 %v3059
        %3132 = vmatpush.bf16.msra.mxu0 %v3057
        %3133 = vmatpush.bf16.msra.mxu0 %v3055
        %3134 = vmatpush.bf16.msra.mxu0 %v3053
        %3135 = vmatpush.bf16.msra.mxu0 %v3051
        %3136 = vmatpush.bf16.msra.mxu0 %v3049
        %3137 = vmatpush.bf16.msra.mxu0 %v3047
        %3138 = vmatpush.bf16.msra.mxu0 %v3045
        %3139 = vmatmul.bf16.gmra.mxu0 %v1127
        %v3140 = vpop.f32.mrf.mxu0
        %v3141 = vadd.f32 %v3128, %v3140
        %v3142 = vpop.f32.mrf.mxu0
        %3143 = vdwg.mxu0
        %s3144 = scalar_lea.vmem [#allocation12], 48
        %v3145 = vld [vmem:[%s3144] sm:$0xf]
        %v3146 = vld [vmem:[%s3144 + $0x4] sm:$0xf]
        %v3147 = vpack.c.bf16 %v3115, %v3115
        %v3148 = vpack.c.bf16 %v3141, %v3141
        %v3151 = vunpack.c.l.b16 %v3145
        %v3152 = vunpack.c.l.b16 %v3146
        %v3153 = vpack.c.b16 %v3152, %v3151
        %v3155 = vsel %vm1631, %v3153, 0
        %v3158 = vand.u32 %v3147, %v1638
        %v3161 = vand.u32 %v3148, %v1638
        %3163 = vmatpush.bf16.msra.mxu0 0
        %3164 = vmatpush.bf16.msra.mxu0 0
        %3165 = vmatpush.bf16.msra.mxu0 0
        %3166 = vmatpush.bf16.msra.mxu0 0
        %3167 = vmatpush.bf16.msra.mxu0 0
        %3168 = vmatpush.bf16.msra.mxu0 0
        %3169 = vmatpush.bf16.msra.mxu0 0
        %3170 = vmatpush.bf16.msra.mxu0 %v3158
        %3171 = vmatmul.bf16.gmra.mxu0 %v3155
        %v3172 = vpop.f32.mrf.mxu0
        %v3173 = vadd.f32 0.0, %v3172
        %v3174 = vpop.f32.mrf.mxu0
        %v3175 = vadd.f32 0.0, %v3174
        %3176 = vdwg.mxu0
        %3177 = vmatpush.bf16.msra.mxu0 0
        %3178 = vmatpush.bf16.msra.mxu0 0
        %3179 = vmatpush.bf16.msra.mxu0 0
        %3180 = vmatpush.bf16.msra.mxu0 0
        %3181 = vmatpush.bf16.msra.mxu0 0
        %3182 = vmatpush.bf16.msra.mxu0 0
        %3183 = vmatpush.bf16.msra.mxu0 0
        %3184 = vmatpush.bf16.msra.mxu0 %v3161
        %3185 = vmatmul.bf16.gmra.mxu0 %v3155
        %v3186 = vpop.f32.mrf.mxu0
        %v3187 = vadd.f32 0.0, %v3186
        %v3188 = vpop.f32.mrf.mxu0
        %v3189 = vadd.f32 0.0, %v3188
        %3190 = vdwg.mxu0
        %v3191 = vadd.f32 %v2895, %v3173
        %v3192 = vadd.f32 %v2896, %v3187
        %v3193 = vadd.f32 %v2897, %v3175
        %v3194 = vadd.f32 %v2898, %v3189
        %s3195 = scalar_lea.vmem [#allocation2], 1792
        %v3196 = vld [vmem:[%s3195] sm:$0xff]
        %v3197 = vld [vmem:[%s3195 + $0x8] sm:$0xff]
        %v3198 = vld [vmem:[%s3195 + $0x10] sm:$0xff]
        %v3199 = vld [vmem:[%s3195 + $0x18] sm:$0xff]
        %v3200 = vld [vmem:[%s3195 + $0x20] sm:$0xff]
        %v3201 = vld [vmem:[%s3195 + $0x28] sm:$0xff]
        %v3202 = vld [vmem:[%s3195 + $0x30] sm:$0xff]
        %v3203 = vld [vmem:[%s3195 + $0x38] sm:$0xff]
        %v3204 = vld [vmem:[%s3195 + $0x40] sm:$0xff]
        %v3205 = vld [vmem:[%s3195 + $0x48] sm:$0xff]
        %v3206 = vld [vmem:[%s3195 + $0x50] sm:$0xff]
        %v3207 = vld [vmem:[%s3195 + $0x58] sm:$0xff]
        %v3208 = vld [vmem:[%s3195 + $0x60] sm:$0xff]
        %v3209 = vld [vmem:[%s3195 + $0x68] sm:$0xff]
        %v3210 = vld [vmem:[%s3195 + $0x70] sm:$0xff]
        %v3211 = vld [vmem:[%s3195 + $0x78] sm:$0xff]
        %v3212 = vld [vmem:[%s3195 + $0x80] sm:$0xff]
        %v3213 = vld [vmem:[%s3195 + $0x88] sm:$0xff]
        %v3214 = vld [vmem:[%s3195 + $0x90] sm:$0xff]
        %v3215 = vld [vmem:[%s3195 + $0x98] sm:$0xff]
        %v3216 = vld [vmem:[%s3195 + $0xa0] sm:$0xff]
        %v3217 = vld [vmem:[%s3195 + $0xa8] sm:$0xff]
        %v3218 = vld [vmem:[%s3195 + $0xb0] sm:$0xff]
        %v3219 = vld [vmem:[%s3195 + $0xb8] sm:$0xff]
        %v3220 = vld [vmem:[%s3195 + $0xc0] sm:$0xff]
        %v3221 = vld [vmem:[%s3195 + $0xc8] sm:$0xff]
        %v3222 = vld [vmem:[%s3195 + $0xd0] sm:$0xff]
        %v3223 = vld [vmem:[%s3195 + $0xd8] sm:$0xff]
        %v3224 = vld [vmem:[%s3195 + $0xe0] sm:$0xff]
        %v3225 = vld [vmem:[%s3195 + $0xe8] sm:$0xff]
        %v3226 = vld [vmem:[%s3195 + $0xf0] sm:$0xff]
        %v3227 = vld [vmem:[%s3195 + $0xf8] sm:$0xff]
        %v3260 = vunpack.c.l.b16 %v3196
        %v3261 = vunpack.c.h.b16 %v3196
        %v3262 = vunpack.c.l.b16 %v3197
        %v3263 = vunpack.c.h.b16 %v3197
        %v3264 = vunpack.c.l.b16 %v3198
        %v3265 = vunpack.c.h.b16 %v3198
        %v3266 = vunpack.c.l.b16 %v3199
        %v3267 = vunpack.c.h.b16 %v3199
        %v3268 = vunpack.c.l.b16 %v3200
        %v3269 = vunpack.c.h.b16 %v3200
        %v3270 = vunpack.c.l.b16 %v3201
        %v3271 = vunpack.c.h.b16 %v3201
        %v3272 = vunpack.c.l.b16 %v3202
        %v3273 = vunpack.c.h.b16 %v3202
        %v3274 = vunpack.c.l.b16 %v3203
        %v3275 = vunpack.c.h.b16 %v3203
        %v3276 = vunpack.c.l.b16 %v3204
        %v3277 = vunpack.c.h.b16 %v3204
        %v3278 = vunpack.c.l.b16 %v3205
        %v3279 = vunpack.c.h.b16 %v3205
        %v3280 = vunpack.c.l.b16 %v3206
        %v3281 = vunpack.c.h.b16 %v3206
        %v3282 = vunpack.c.l.b16 %v3207
        %v3283 = vunpack.c.h.b16 %v3207
        %v3284 = vunpack.c.l.b16 %v3208
        %v3285 = vunpack.c.h.b16 %v3208
        %v3286 = vunpack.c.l.b16 %v3209
        %v3287 = vunpack.c.h.b16 %v3209
        %v3288 = vunpack.c.l.b16 %v3210
        %v3289 = vunpack.c.h.b16 %v3210
        %v3290 = vunpack.c.l.b16 %v3211
        %v3291 = vunpack.c.h.b16 %v3211
        %v3292 = vunpack.c.l.b16 %v3212
        %v3293 = vunpack.c.h.b16 %v3212
        %v3294 = vunpack.c.l.b16 %v3213
        %v3295 = vunpack.c.h.b16 %v3213
        %v3296 = vunpack.c.l.b16 %v3214
        %v3297 = vunpack.c.h.b16 %v3214
        %v3298 = vunpack.c.l.b16 %v3215
        %v3299 = vunpack.c.h.b16 %v3215
        %v3300 = vunpack.c.l.b16 %v3216
        %v3301 = vunpack.c.h.b16 %v3216
        %v3302 = vunpack.c.l.b16 %v3217
        %v3303 = vunpack.c.h.b16 %v3217
        %v3304 = vunpack.c.l.b16 %v3218
        %v3305 = vunpack.c.h.b16 %v3218
        %v3306 = vunpack.c.l.b16 %v3219
        %v3307 = vunpack.c.h.b16 %v3219
        %v3308 = vunpack.c.l.b16 %v3220
        %v3309 = vunpack.c.h.b16 %v3220
        %v3310 = vunpack.c.l.b16 %v3221
        %v3311 = vunpack.c.h.b16 %v3221
        %v3312 = vunpack.c.l.b16 %v3222
        %v3313 = vunpack.c.h.b16 %v3222
        %v3314 = vunpack.c.l.b16 %v3223
        %v3315 = vunpack.c.h.b16 %v3223
        %v3316 = vunpack.c.l.b16 %v3224
        %v3317 = vunpack.c.h.b16 %v3224
        %v3318 = vunpack.c.l.b16 %v3225
        %v3319 = vunpack.c.h.b16 %v3225
        %v3320 = vunpack.c.l.b16 %v3226
        %v3321 = vunpack.c.h.b16 %v3226
        %v3322 = vunpack.c.l.b16 %v3227
        %v3323 = vunpack.c.h.b16 %v3227
        %v3324 = vpack.c.b16 %v3262, %v3260
        %v3325 = vpack.c.b16 %v3263, %v3261
        %v3326 = vpack.c.b16 %v3266, %v3264
        %v3327 = vpack.c.b16 %v3267, %v3265
        %v3328 = vpack.c.b16 %v3270, %v3268
        %v3329 = vpack.c.b16 %v3271, %v3269
        %v3330 = vpack.c.b16 %v3274, %v3272
        %v3331 = vpack.c.b16 %v3275, %v3273
        %v3332 = vpack.c.b16 %v3278, %v3276
        %v3333 = vpack.c.b16 %v3279, %v3277
        %v3334 = vpack.c.b16 %v3282, %v3280
        %v3335 = vpack.c.b16 %v3283, %v3281
        %v3336 = vpack.c.b16 %v3286, %v3284
        %v3337 = vpack.c.b16 %v3287, %v3285
        %v3338 = vpack.c.b16 %v3290, %v3288
        %v3339 = vpack.c.b16 %v3291, %v3289
        %v3340 = vpack.c.b16 %v3294, %v3292
        %v3341 = vpack.c.b16 %v3295, %v3293
        %v3342 = vpack.c.b16 %v3298, %v3296
        %v3343 = vpack.c.b16 %v3299, %v3297
        %v3344 = vpack.c.b16 %v3302, %v3300
        %v3345 = vpack.c.b16 %v3303, %v3301
        %v3346 = vpack.c.b16 %v3306, %v3304
        %v3347 = vpack.c.b16 %v3307, %v3305
        %v3348 = vpack.c.b16 %v3310, %v3308
        %v3349 = vpack.c.b16 %v3311, %v3309
        %v3350 = vpack.c.b16 %v3314, %v3312
        %v3351 = vpack.c.b16 %v3315, %v3313
        %v3352 = vpack.c.b16 %v3318, %v3316
        %v3353 = vpack.c.b16 %v3319, %v3317
        %v3354 = vpack.c.b16 %v3322, %v3320
        %v3355 = vpack.c.b16 %v3323, %v3321
        %3388 = vmatpush.bf16.msra.mxu0 %v3338
        %3389 = vmatpush.bf16.msra.mxu0 %v3336
        %3390 = vmatpush.bf16.msra.mxu0 %v3334
        %3391 = vmatpush.bf16.msra.mxu0 %v3332
        %3392 = vmatpush.bf16.msra.mxu0 %v3330
        %3393 = vmatpush.bf16.msra.mxu0 %v3328
        %3394 = vmatpush.bf16.msra.mxu0 %v3326
        %3395 = vmatpush.bf16.msra.mxu0 %v3324
        %3396 = vmatmul.bf16.gmra.mxu0 %v1126
        %v3397 = vpop.f32.mrf.mxu0
        %v3398 = vadd.f32 0.0, %v3397
        %v3399 = vpop.f32.mrf.mxu0
        %3400 = vdwg.mxu0
        %3401 = vmatpush.bf16.msra.mxu0 %v3354
        %3402 = vmatpush.bf16.msra.mxu0 %v3352
        %3403 = vmatpush.bf16.msra.mxu0 %v3350
        %3404 = vmatpush.bf16.msra.mxu0 %v3348
        %3405 = vmatpush.bf16.msra.mxu0 %v3346
        %3406 = vmatpush.bf16.msra.mxu0 %v3344
        %3407 = vmatpush.bf16.msra.mxu0 %v3342
        %3408 = vmatpush.bf16.msra.mxu0 %v3340
        %3409 = vmatmul.bf16.gmra.mxu0 %v1127
        %v3410 = vpop.f32.mrf.mxu0
        %v3411 = vadd.f32 %v3398, %v3410
        %v3412 = vpop.f32.mrf.mxu0
        %3413 = vdwg.mxu0
        %3414 = vmatpush.bf16.msra.mxu0 %v3339
        %3415 = vmatpush.bf16.msra.mxu0 %v3337
        %3416 = vmatpush.bf16.msra.mxu0 %v3335
        %3417 = vmatpush.bf16.msra.mxu0 %v3333
        %3418 = vmatpush.bf16.msra.mxu0 %v3331
        %3419 = vmatpush.bf16.msra.mxu0 %v3329
        %3420 = vmatpush.bf16.msra.mxu0 %v3327
        %3421 = vmatpush.bf16.msra.mxu0 %v3325
        %3422 = vmatmul.bf16.gmra.mxu0 %v1126
        %v3423 = vpop.f32.mrf.mxu0
        %v3424 = vadd.f32 0.0, %v3423
        %v3425 = vpop.f32.mrf.mxu0
        %3426 = vdwg.mxu0
        %3427 = vmatpush.bf16.msra.mxu0 %v3355
        %3428 = vmatpush.bf16.msra.mxu0 %v3353
        %3429 = vmatpush.bf16.msra.mxu0 %v3351
        %3430 = vmatpush.bf16.msra.mxu0 %v3349
        %3431 = vmatpush.bf16.msra.mxu0 %v3347
        %3432 = vmatpush.bf16.msra.mxu0 %v3345
        %3433 = vmatpush.bf16.msra.mxu0 %v3343
        %3434 = vmatpush.bf16.msra.mxu0 %v3341
        %3435 = vmatmul.bf16.gmra.mxu0 %v1127
        %v3436 = vpop.f32.mrf.mxu0
        %v3437 = vadd.f32 %v3424, %v3436
        %v3438 = vpop.f32.mrf.mxu0
        %3439 = vdwg.mxu0
        %s3440 = scalar_lea.vmem [#allocation12], 56
        %v3441 = vld [vmem:[%s3440] sm:$0xf]
        %v3442 = vld [vmem:[%s3440 + $0x4] sm:$0xf]
        %v3443 = vpack.c.bf16 %v3411, %v3411
        %v3444 = vpack.c.bf16 %v3437, %v3437
        %v3447 = vunpack.c.l.b16 %v3441
        %v3448 = vunpack.c.l.b16 %v3442
        %v3449 = vpack.c.b16 %v3448, %v3447
        %v3451 = vsel %vm1631, %v3449, 0
        %v3454 = vand.u32 %v3443, %v1638
        %v3457 = vand.u32 %v3444, %v1638
        %3459 = vmatpush.bf16.msra.mxu0 0
        %3460 = vmatpush.bf16.msra.mxu0 0
        %3461 = vmatpush.bf16.msra.mxu0 0
        %3462 = vmatpush.bf16.msra.mxu0 0
        %3463 = vmatpush.bf16.msra.mxu0 0
        %3464 = vmatpush.bf16.msra.mxu0 0
        %3465 = vmatpush.bf16.msra.mxu0 0
        %3466 = vmatpush.bf16.msra.mxu0 %v3454
        %3467 = vmatmul.bf16.gmra.mxu0 %v3451
        %v3468 = vpop.f32.mrf.mxu0
        %v3469 = vadd.f32 0.0, %v3468
        %v3470 = vpop.f32.mrf.mxu0
        %v3471 = vadd.f32 0.0, %v3470
        %3472 = vdwg.mxu0
        %3473 = vmatpush.bf16.msra.mxu0 0
        %3474 = vmatpush.bf16.msra.mxu0 0
        %3475 = vmatpush.bf16.msra.mxu0 0
        %3476 = vmatpush.bf16.msra.mxu0 0
        %3477 = vmatpush.bf16.msra.mxu0 0
        %3478 = vmatpush.bf16.msra.mxu0 0
        %3479 = vmatpush.bf16.msra.mxu0 0
        %3480 = vmatpush.bf16.msra.mxu0 %v3457
        %3481 = vmatmul.bf16.gmra.mxu0 %v3451
        %v3482 = vpop.f32.mrf.mxu0
        %v3483 = vadd.f32 0.0, %v3482
        %v3484 = vpop.f32.mrf.mxu0
        %v3485 = vadd.f32 0.0, %v3484
        %3486 = vdwg.mxu0
        %v3487 = vadd.f32 %v3191, %v3469
        %v3488 = vadd.f32 %v3192, %v3483
        %v3489 = vadd.f32 %v3193, %v3471
        %v3490 = vadd.f32 %v3194, %v3485
        %s3491 = scalar_lea.vmem [#allocation2], 2048
        %v3492 = vld [vmem:[%s3491] sm:$0xff]
        %v3493 = vld [vmem:[%s3491 + $0x8] sm:$0xff]
        %v3494 = vld [vmem:[%s3491 + $0x10] sm:$0xff]
        %v3495 = vld [vmem:[%s3491 + $0x18] sm:$0xff]
        %v3496 = vld [vmem:[%s3491 + $0x20] sm:$0xff]
        %v3497 = vld [vmem:[%s3491 + $0x28] sm:$0xff]
        %v3498 = vld [vmem:[%s3491 + $0x30] sm:$0xff]
        %v3499 = vld [vmem:[%s3491 + $0x38] sm:$0xff]
        %v3500 = vld [vmem:[%s3491 + $0x40] sm:$0xff]
        %v3501 = vld [vmem:[%s3491 + $0x48] sm:$0xff]
        %v3502 = vld [vmem:[%s3491 + $0x50] sm:$0xff]
        %v3503 = vld [vmem:[%s3491 + $0x58] sm:$0xff]
        %v3504 = vld [vmem:[%s3491 + $0x60] sm:$0xff]
        %v3505 = vld [vmem:[%s3491 + $0x68] sm:$0xff]
        %v3506 = vld [vmem:[%s3491 + $0x70] sm:$0xff]
        %v3507 = vld [vmem:[%s3491 + $0x78] sm:$0xff]
        %v3508 = vld [vmem:[%s3491 + $0x80] sm:$0xff]
        %v3509 = vld [vmem:[%s3491 + $0x88] sm:$0xff]
        %v3510 = vld [vmem:[%s3491 + $0x90] sm:$0xff]
        %v3511 = vld [vmem:[%s3491 + $0x98] sm:$0xff]
        %v3512 = vld [vmem:[%s3491 + $0xa0] sm:$0xff]
        %v3513 = vld [vmem:[%s3491 + $0xa8] sm:$0xff]
        %v3514 = vld [vmem:[%s3491 + $0xb0] sm:$0xff]
        %v3515 = vld [vmem:[%s3491 + $0xb8] sm:$0xff]
        %v3516 = vld [vmem:[%s3491 + $0xc0] sm:$0xff]
        %v3517 = vld [vmem:[%s3491 + $0xc8] sm:$0xff]
        %v3518 = vld [vmem:[%s3491 + $0xd0] sm:$0xff]
        %v3519 = vld [vmem:[%s3491 + $0xd8] sm:$0xff]
        %v3520 = vld [vmem:[%s3491 + $0xe0] sm:$0xff]
        %v3521 = vld [vmem:[%s3491 + $0xe8] sm:$0xff]
        %v3522 = vld [vmem:[%s3491 + $0xf0] sm:$0xff]
        %v3523 = vld [vmem:[%s3491 + $0xf8] sm:$0xff]
        %v3556 = vunpack.c.l.b16 %v3492
        %v3557 = vunpack.c.h.b16 %v3492
        %v3558 = vunpack.c.l.b16 %v3493
        %v3559 = vunpack.c.h.b16 %v3493
        %v3560 = vunpack.c.l.b16 %v3494
        %v3561 = vunpack.c.h.b16 %v3494
        %v3562 = vunpack.c.l.b16 %v3495
        %v3563 = vunpack.c.h.b16 %v3495
        %v3564 = vunpack.c.l.b16 %v3496
        %v3565 = vunpack.c.h.b16 %v3496
        %v3566 = vunpack.c.l.b16 %v3497
        %v3567 = vunpack.c.h.b16 %v3497
        %v3568 = vunpack.c.l.b16 %v3498
        %v3569 = vunpack.c.h.b16 %v3498
        %v3570 = vunpack.c.l.b16 %v3499
        %v3571 = vunpack.c.h.b16 %v3499
        %v3572 = vunpack.c.l.b16 %v3500
        %v3573 = vunpack.c.h.b16 %v3500
        %v3574 = vunpack.c.l.b16 %v3501
        %v3575 = vunpack.c.h.b16 %v3501
        %v3576 = vunpack.c.l.b16 %v3502
        %v3577 = vunpack.c.h.b16 %v3502
        %v3578 = vunpack.c.l.b16 %v3503
        %v3579 = vunpack.c.h.b16 %v3503
        %v3580 = vunpack.c.l.b16 %v3504
        %v3581 = vunpack.c.h.b16 %v3504
        %v3582 = vunpack.c.l.b16 %v3505
        %v3583 = vunpack.c.h.b16 %v3505
        %v3584 = vunpack.c.l.b16 %v3506
        %v3585 = vunpack.c.h.b16 %v3506
        %v3586 = vunpack.c.l.b16 %v3507
        %v3587 = vunpack.c.h.b16 %v3507
        %v3588 = vunpack.c.l.b16 %v3508
        %v3589 = vunpack.c.h.b16 %v3508
        %v3590 = vunpack.c.l.b16 %v3509
        %v3591 = vunpack.c.h.b16 %v3509
        %v3592 = vunpack.c.l.b16 %v3510
        %v3593 = vunpack.c.h.b16 %v3510
        %v3594 = vunpack.c.l.b16 %v3511
        %v3595 = vunpack.c.h.b16 %v3511
        %v3596 = vunpack.c.l.b16 %v3512
        %v3597 = vunpack.c.h.b16 %v3512
        %v3598 = vunpack.c.l.b16 %v3513
        %v3599 = vunpack.c.h.b16 %v3513
        %v3600 = vunpack.c.l.b16 %v3514
        %v3601 = vunpack.c.h.b16 %v3514
        %v3602 = vunpack.c.l.b16 %v3515
        %v3603 = vunpack.c.h.b16 %v3515
        %v3604 = vunpack.c.l.b16 %v3516
        %v3605 = vunpack.c.h.b16 %v3516
        %v3606 = vunpack.c.l.b16 %v3517
        %v3607 = vunpack.c.h.b16 %v3517
        %v3608 = vunpack.c.l.b16 %v3518
        %v3609 = vunpack.c.h.b16 %v3518
        %v3610 = vunpack.c.l.b16 %v3519
        %v3611 = vunpack.c.h.b16 %v3519
        %v3612 = vunpack.c.l.b16 %v3520
        %v3613 = vunpack.c.h.b16 %v3520
        %v3614 = vunpack.c.l.b16 %v3521
        %v3615 = vunpack.c.h.b16 %v3521
        %v3616 = vunpack.c.l.b16 %v3522
        %v3617 = vunpack.c.h.b16 %v3522
        %v3618 = vunpack.c.l.b16 %v3523
        %v3619 = vunpack.c.h.b16 %v3523
        %v3620 = vpack.c.b16 %v3558, %v3556
        %v3621 = vpack.c.b16 %v3559, %v3557
        %v3622 = vpack.c.b16 %v3562, %v3560
        %v3623 = vpack.c.b16 %v3563, %v3561
        %v3624 = vpack.c.b16 %v3566, %v3564
        %v3625 = vpack.c.b16 %v3567, %v3565
        %v3626 = vpack.c.b16 %v3570, %v3568
        %v3627 = vpack.c.b16 %v3571, %v3569
        %v3628 = vpack.c.b16 %v3574, %v3572
        %v3629 = vpack.c.b16 %v3575, %v3573
        %v3630 = vpack.c.b16 %v3578, %v3576
        %v3631 = vpack.c.b16 %v3579, %v3577
        %v3632 = vpack.c.b16 %v3582, %v3580
        %v3633 = vpack.c.b16 %v3583, %v3581
        %v3634 = vpack.c.b16 %v3586, %v3584
        %v3635 = vpack.c.b16 %v3587, %v3585
        %v3636 = vpack.c.b16 %v3590, %v3588
        %v3637 = vpack.c.b16 %v3591, %v3589
        %v3638 = vpack.c.b16 %v3594, %v3592
        %v3639 = vpack.c.b16 %v3595, %v3593
        %v3640 = vpack.c.b16 %v3598, %v3596
        %v3641 = vpack.c.b16 %v3599, %v3597
        %v3642 = vpack.c.b16 %v3602, %v3600
        %v3643 = vpack.c.b16 %v3603, %v3601
        %v3644 = vpack.c.b16 %v3606, %v3604
        %v3645 = vpack.c.b16 %v3607, %v3605
        %v3646 = vpack.c.b16 %v3610, %v3608
        %v3647 = vpack.c.b16 %v3611, %v3609
        %v3648 = vpack.c.b16 %v3614, %v3612
        %v3649 = vpack.c.b16 %v3615, %v3613
        %v3650 = vpack.c.b16 %v3618, %v3616
        %v3651 = vpack.c.b16 %v3619, %v3617
        %3684 = vmatpush.bf16.msra.mxu0 %v3634
        %3685 = vmatpush.bf16.msra.mxu0 %v3632
        %3686 = vmatpush.bf16.msra.mxu0 %v3630
        %3687 = vmatpush.bf16.msra.mxu0 %v3628
        %3688 = vmatpush.bf16.msra.mxu0 %v3626
        %3689 = vmatpush.bf16.msra.mxu0 %v3624
        %3690 = vmatpush.bf16.msra.mxu0 %v3622
        %3691 = vmatpush.bf16.msra.mxu0 %v3620
        %3692 = vmatmul.bf16.gmra.mxu0 %v1126
        %v3693 = vpop.f32.mrf.mxu0
        %v3694 = vadd.f32 0.0, %v3693
        %v3695 = vpop.f32.mrf.mxu0
        %3696 = vdwg.mxu0
        %3697 = vmatpush.bf16.msra.mxu0 %v3650
        %3698 = vmatpush.bf16.msra.mxu0 %v3648
        %3699 = vmatpush.bf16.msra.mxu0 %v3646
        %3700 = vmatpush.bf16.msra.mxu0 %v3644
        %3701 = vmatpush.bf16.msra.mxu0 %v3642
        %3702 = vmatpush.bf16.msra.mxu0 %v3640
        %3703 = vmatpush.bf16.msra.mxu0 %v3638
        %3704 = vmatpush.bf16.msra.mxu0 %v3636
        %3705 = vmatmul.bf16.gmra.mxu0 %v1127
        %v3706 = vpop.f32.mrf.mxu0
        %v3707 = vadd.f32 %v3694, %v3706
        %v3708 = vpop.f32.mrf.mxu0
        %3709 = vdwg.mxu0
        %3710 = vmatpush.bf16.msra.mxu0 %v3635
        %3711 = vmatpush.bf16.msra.mxu0 %v3633
        %3712 = vmatpush.bf16.msra.mxu0 %v3631
        %3713 = vmatpush.bf16.msra.mxu0 %v3629
        %3714 = vmatpush.bf16.msra.mxu0 %v3627
        %3715 = vmatpush.bf16.msra.mxu0 %v3625
        %3716 = vmatpush.bf16.msra.mxu0 %v3623
        %3717 = vmatpush.bf16.msra.mxu0 %v3621
        %3718 = vmatmul.bf16.gmra.mxu0 %v1126
        %v3719 = vpop.f32.mrf.mxu0
        %v3720 = vadd.f32 0.0, %v3719
        %v3721 = vpop.f32.mrf.mxu0
        %3722 = vdwg.mxu0
        %3723 = vmatpush.bf16.msra.mxu0 %v3651
        %3724 = vmatpush.bf16.msra.mxu0 %v3649
        %3725 = vmatpush.bf16.msra.mxu0 %v3647
        %3726 = vmatpush.bf16.msra.mxu0 %v3645
        %3727 = vmatpush.bf16.msra.mxu0 %v3643
        %3728 = vmatpush.bf16.msra.mxu0 %v3641
        %3729 = vmatpush.bf16.msra.mxu0 %v3639
        %3730 = vmatpush.bf16.msra.mxu0 %v3637
        %3731 = vmatmul.bf16.gmra.mxu0 %v1127
        %v3732 = vpop.f32.mrf.mxu0
        %v3733 = vadd.f32 %v3720, %v3732
        %v3734 = vpop.f32.mrf.mxu0
        %3735 = vdwg.mxu0
        %s3736 = scalar_lea.vmem [#allocation12], 64
        %v3737 = vld [vmem:[%s3736] sm:$0xf]
        %v3738 = vld [vmem:[%s3736 + $0x4] sm:$0xf]
        %v3739 = vpack.c.bf16 %v3707, %v3707
        %v3740 = vpack.c.bf16 %v3733, %v3733
        %v3743 = vunpack.c.l.b16 %v3737
        %v3744 = vunpack.c.l.b16 %v3738
        %v3745 = vpack.c.b16 %v3744, %v3743
        %v3747 = vsel %vm1631, %v3745, 0
        %v3750 = vand.u32 %v3739, %v1638
        %v3753 = vand.u32 %v3740, %v1638
        %3755 = vmatpush.bf16.msra.mxu0 0
        %3756 = vmatpush.bf16.msra.mxu0 0
        %3757 = vmatpush.bf16.msra.mxu0 0
        %3758 = vmatpush.bf16.msra.mxu0 0
        %3759 = vmatpush.bf16.msra.mxu0 0
        %3760 = vmatpush.bf16.msra.mxu0 0
        %3761 = vmatpush.bf16.msra.mxu0 0
        %3762 = vmatpush.bf16.msra.mxu0 %v3750
        %3763 = vmatmul.bf16.gmra.mxu0 %v3747
        %v3764 = vpop.f32.mrf.mxu0
        %v3765 = vadd.f32 0.0, %v3764
        %v3766 = vpop.f32.mrf.mxu0
        %v3767 = vadd.f32 0.0, %v3766
        %3768 = vdwg.mxu0
        %3769 = vmatpush.bf16.msra.mxu0 0
        %3770 = vmatpush.bf16.msra.mxu0 0
        %3771 = vmatpush.bf16.msra.mxu0 0
        %3772 = vmatpush.bf16.msra.mxu0 0
        %3773 = vmatpush.bf16.msra.mxu0 0
        %3774 = vmatpush.bf16.msra.mxu0 0
        %3775 = vmatpush.bf16.msra.mxu0 0
        %3776 = vmatpush.bf16.msra.mxu0 %v3753
        %3777 = vmatmul.bf16.gmra.mxu0 %v3747
        %v3778 = vpop.f32.mrf.mxu0
        %v3779 = vadd.f32 0.0, %v3778
        %v3780 = vpop.f32.mrf.mxu0
        %v3781 = vadd.f32 0.0, %v3780
        %3782 = vdwg.mxu0
        %v3783 = vadd.f32 %v3487, %v3765
        %v3784 = vadd.f32 %v3488, %v3779
        %v3785 = vadd.f32 %v3489, %v3767
        %v3786 = vadd.f32 %v3490, %v3781
        %v3787 = vld [vmem:[#allocation10] sm:$0xff]
        %v3788 = vld [vmem:[#allocation10 + $0x8] sm:$0xff]
        %3790 = vset.pattern.permute.xlu0 0
        %3791 = vperm.xlu0 %3790, %v3787
        %v3792 = vpop.permute.xlu0 %3791
        %3795 = vset.pattern.permute.xlu0 0
        %3796 = vperm.xlu0 %3795, %v3788
        %v3797 = vpop.permute.xlu0 %3796
        %v3799 = vadd.f32 %v3783, %v3792
        %v3800 = vadd.f32 %v3784, %v3792
        %v3801 = vadd.f32 %v3785, %v3797
        %v3802 = vadd.f32 %v3786, %v3797
        %v3803 = vmax.f32 %v3799, 0.0
        %v3804 = vmax.f32 %v3800, 0.0
        %v3805 = vmax.f32 %v3801, 0.0
        %v3806 = vmax.f32 %v3802, 0.0
        %v3807 = vpack.c.bf16 %v3805, %v3803
        %v3808 = vpack.c.bf16 %v3806, %v3804
        %3809 = vmatpush.bf16.msra.mxu0 %v1270
        %3810 = vmatpush.bf16.msra.mxu0 %v1268
        %3811 = vmatpush.bf16.msra.mxu0 %v1266
        %3812 = vmatpush.bf16.msra.mxu0 %v1264
        %3813 = vmatpush.bf16.msra.mxu0 %v1262
        %3814 = vmatpush.bf16.msra.mxu0 %v1260
        %3815 = vmatpush.bf16.msra.mxu0 %v1258
        %3816 = vmatpush.bf16.msra.mxu0 %v1256
        %3817 = vmatmul.bf16.gmra.mxu0 %v3807
        %v3818 = vpop.f32.mrf.mxu0
        %v3819 = vadd.f32 0.0, %v3818
        %v3820 = vpop.f32.mrf.mxu0
        %v3821 = vadd.f32 0.0, %v3820
        %3822 = vdwg.mxu0
        %3823 = vmatpush.bf16.msra.mxu0 %v1286
        %3824 = vmatpush.bf16.msra.mxu0 %v1284
        %3825 = vmatpush.bf16.msra.mxu0 %v1282
        %3826 = vmatpush.bf16.msra.mxu0 %v1280
        %3827 = vmatpush.bf16.msra.mxu0 %v1278
        %3828 = vmatpush.bf16.msra.mxu0 %v1276
        %3829 = vmatpush.bf16.msra.mxu0 %v1274
        %3830 = vmatpush.bf16.msra.mxu0 %v1272
        %3831 = vmatmul.bf16.gmra.mxu0 %v3808
        %v3832 = vpop.f32.mrf.mxu0
        %v3833 = vadd.f32 %v3819, %v3832
        %v3834 = vpop.f32.mrf.mxu0
        %v3835 = vadd.f32 %v3821, %v3834
        %3836 = vdwg.mxu0
        %3837 = vmatpush.bf16.msra.mxu0 %v1271
        %3838 = vmatpush.bf16.msra.mxu0 %v1269
        %3839 = vmatpush.bf16.msra.mxu0 %v1267
        %3840 = vmatpush.bf16.msra.mxu0 %v1265
        %3841 = vmatpush.bf16.msra.mxu0 %v1263
        %3842 = vmatpush.bf16.msra.mxu0 %v1261
        %3843 = vmatpush.bf16.msra.mxu0 %v1259
        %3844 = vmatpush.bf16.msra.mxu0 %v1257
        %3845 = vmatmul.bf16.gmra.mxu0 %v3807
        %v3846 = vpop.f32.mrf.mxu0
        %v3847 = vadd.f32 0.0, %v3846
        %v3848 = vpop.f32.mrf.mxu0
        %v3849 = vadd.f32 0.0, %v3848
        %3850 = vdwg.mxu0
        %3851 = vmatpush.bf16.msra.mxu0 %v1287
        %3852 = vmatpush.bf16.msra.mxu0 %v1285
        %3853 = vmatpush.bf16.msra.mxu0 %v1283
        %3854 = vmatpush.bf16.msra.mxu0 %v1281
        %3855 = vmatpush.bf16.msra.mxu0 %v1279
        %3856 = vmatpush.bf16.msra.mxu0 %v1277
        %3857 = vmatpush.bf16.msra.mxu0 %v1275
        %3858 = vmatpush.bf16.msra.mxu0 %v1273
        %3859 = vmatmul.bf16.gmra.mxu0 %v3808
        %v3860 = vpop.f32.mrf.mxu0
        %v3861 = vadd.f32 %v3847, %v3860
        %v3862 = vpop.f32.mrf.mxu0
        %v3863 = vadd.f32 %v3849, %v3862
        %3864 = vdwg.mxu0
        %v3865 = vld [vmem:[#allocation15] sm:$0xf]
        %v3866 = vld [vmem:[#allocation15 + $0x4] sm:$0xf]
        %v3867 = vpack.c.bf16 %v3835, %v3833
        %v3868 = vpack.c.bf16 %v3863, %v3861
        %3869 = vmatpush.bf16.msra.mxu0 %v1519
        %3870 = vmatpush.bf16.msra.mxu0 %v1517
        %3871 = vmatpush.bf16.msra.mxu0 %v1515
        %3872 = vmatpush.bf16.msra.mxu0 %v1513
        %3873 = vmatpush.bf16.msra.mxu0 %v1511
        %3874 = vmatpush.bf16.msra.mxu0 %v1509
        %3875 = vmatpush.bf16.msra.mxu0 %v1507
        %3876 = vmatpush.bf16.msra.mxu0 %v1505
        %3877 = vmatmul.bf16.gmra.mxu0 %v3807
        %v3878 = vpop.f32.mrf.mxu0
        %v3879 = vadd.f32 0.0, %v3878
        %v3880 = vpop.f32.mrf.mxu0
        %v3881 = vadd.f32 0.0, %v3880
        %3882 = vdwg.mxu0
        %3883 = vmatpush.bf16.msra.mxu0 %v1535
        %3884 = vmatpush.bf16.msra.mxu0 %v1533
        %3885 = vmatpush.bf16.msra.mxu0 %v1531
        %3886 = vmatpush.bf16.msra.mxu0 %v1529
        %3887 = vmatpush.bf16.msra.mxu0 %v1527
        %3888 = vmatpush.bf16.msra.mxu0 %v1525
        %3889 = vmatpush.bf16.msra.mxu0 %v1523
        %3890 = vmatpush.bf16.msra.mxu0 %v1521
        %3891 = vmatmul.bf16.gmra.mxu0 %v3808
        %v3892 = vpop.f32.mrf.mxu0
        %v3893 = vadd.f32 %v3879, %v3892
        %v3894 = vpop.f32.mrf.mxu0
        %v3895 = vadd.f32 %v3881, %v3894
        %3896 = vdwg.mxu0
        %3897 = vmatpush.bf16.msra.mxu0 %v1520
        %3898 = vmatpush.bf16.msra.mxu0 %v1518
        %3899 = vmatpush.bf16.msra.mxu0 %v1516
        %3900 = vmatpush.bf16.msra.mxu0 %v1514
        %3901 = vmatpush.bf16.msra.mxu0 %v1512
        %3902 = vmatpush.bf16.msra.mxu0 %v1510
        %3903 = vmatpush.bf16.msra.mxu0 %v1508
        %3904 = vmatpush.bf16.msra.mxu0 %v1506
        %3905 = vmatmul.bf16.gmra.mxu0 %v3807
        %v3906 = vpop.f32.mrf.mxu0
        %v3907 = vadd.f32 0.0, %v3906
        %v3908 = vpop.f32.mrf.mxu0
        %v3909 = vadd.f32 0.0, %v3908
        %3910 = vdwg.mxu0
        %3911 = vmatpush.bf16.msra.mxu0 %v1536
        %3912 = vmatpush.bf16.msra.mxu0 %v1534
        %3913 = vmatpush.bf16.msra.mxu0 %v1532
        %3914 = vmatpush.bf16.msra.mxu0 %v1530
        %3915 = vmatpush.bf16.msra.mxu0 %v1528
        %3916 = vmatpush.bf16.msra.mxu0 %v1526
        %3917 = vmatpush.bf16.msra.mxu0 %v1524
        %3918 = vmatpush.bf16.msra.mxu0 %v1522
        %3919 = vmatmul.bf16.gmra.mxu0 %v3808
        %v3920 = vpop.f32.mrf.mxu0
        %v3921 = vadd.f32 %v3907, %v3920
        %v3922 = vpop.f32.mrf.mxu0
        %v3923 = vadd.f32 %v3909, %v3922
        %3924 = vdwg.mxu0
        %s3925 = scalar_lea.vmem [#allocation15], 8
        %v3926 = vld [vmem:[%s3925] sm:$0xf]
        %v3927 = vld [vmem:[%s3925 + $0x4] sm:$0xf]
        %v3928 = vpack.c.bf16 %v3895, %v3893
        %v3929 = vpack.c.bf16 %v3923, %v3921
        %v3932 = vunpack.c.l.b16 %v3926
        %v3933 = vunpack.c.l.b16 %v3927
        %v3934 = vpack.c.b16 %v3933, %v3932
        %vm3935 = vcmask 130048
        %v3937 = vsel %vm3935, %v3934, 0
        %3939 = vmatpush.bf16.msra.mxu0 0
        %3940 = vmatpush.bf16.msra.mxu0 0
        %3941 = vmatpush.bf16.msra.mxu0 0
        %3942 = vmatpush.bf16.msra.mxu0 0
        %3943 = vmatpush.bf16.msra.mxu0 0
        %3944 = vmatpush.bf16.msra.mxu0 0
        %3945 = vmatpush.bf16.msra.mxu0 0
        %3946 = vmatpush.bf16.msra.mxu0 %v3928
        %3947 = vmatmul.bf16.gmra.mxu0 %v3937
        %v3948 = vpop.f32.mrf.mxu0
        %v3949 = vadd.f32 0.0, %v3948
        %v3950 = vpop.f32.mrf.mxu0
        %v3951 = vadd.f32 0.0, %v3950
        %3952 = vdwg.mxu0
        %3953 = vmatpush.bf16.msra.mxu0 0
        %3954 = vmatpush.bf16.msra.mxu0 0
        %3955 = vmatpush.bf16.msra.mxu0 0
        %3956 = vmatpush.bf16.msra.mxu0 0
        %3957 = vmatpush.bf16.msra.mxu0 0
        %3958 = vmatpush.bf16.msra.mxu0 0
        %3959 = vmatpush.bf16.msra.mxu0 0
        %3960 = vmatpush.bf16.msra.mxu0 %v3929
        %3961 = vmatmul.bf16.gmra.mxu0 %v3937
        %v3962 = vpop.f32.mrf.mxu0
        %v3963 = vadd.f32 0.0, %v3962
        %v3964 = vpop.f32.mrf.mxu0
        %v3965 = vadd.f32 0.0, %v3964
        %3966 = vdwg.mxu0
        %v3969 = vunpack.c.l.b16 %v3865
        %v3970 = vunpack.c.l.b16 %v3866
        %v3971 = vpack.c.b16 %v3970, %v3969
        %v3973 = vsel %vm3935, %v3971, 0
        %3975 = vmatpush.bf16.msra.mxu0 0
        %3976 = vmatpush.bf16.msra.mxu0 0
        %3977 = vmatpush.bf16.msra.mxu0 0
        %3978 = vmatpush.bf16.msra.mxu0 0
        %3979 = vmatpush.bf16.msra.mxu0 0
        %3980 = vmatpush.bf16.msra.mxu0 0
        %3981 = vmatpush.bf16.msra.mxu0 0
        %3982 = vmatpush.bf16.msra.mxu0 %v3867
        %3983 = vmatmul.bf16.gmra.mxu0 %v3973
        %v3984 = vpop.f32.mrf.mxu0
        %v3985 = vadd.f32 %v3949, %v3984
        %v3986 = vpop.f32.mrf.mxu0
        %v3987 = vadd.f32 %v3951, %v3986
        %3988 = vdwg.mxu0
        %3989 = vmatpush.bf16.msra.mxu0 0
        %3990 = vmatpush.bf16.msra.mxu0 0
        %3991 = vmatpush.bf16.msra.mxu0 0
        %3992 = vmatpush.bf16.msra.mxu0 0
        %3993 = vmatpush.bf16.msra.mxu0 0
        %3994 = vmatpush.bf16.msra.mxu0 0
        %3995 = vmatpush.bf16.msra.mxu0 0
        %3996 = vmatpush.bf16.msra.mxu0 %v3868
        %3997 = vmatmul.bf16.gmra.mxu0 %v3973
        %v3998 = vpop.f32.mrf.mxu0
        %v3999 = vadd.f32 %v3963, %v3998
        %v4000 = vpop.f32.mrf.mxu0
        %v4001 = vadd.f32 %v3965, %v4000
        %4002 = vdwg.mxu0
        %4003 = vmatpush.bf16.msra.mxu0 %v1858
        %4004 = vmatpush.bf16.msra.mxu0 %v1856
        %4005 = vmatpush.bf16.msra.mxu0 %v1854
        %4006 = vmatpush.bf16.msra.mxu0 %v1852
        %4007 = vmatpush.bf16.msra.mxu0 %v1850
        %4008 = vmatpush.bf16.msra.mxu0 %v1848
        %4009 = vmatpush.bf16.msra.mxu0 %v1846
        %4010 = vmatpush.bf16.msra.mxu0 %v1844
        %4011 = vmatmul.bf16.gmra.mxu0 %v3807
        %v4012 = vpop.f32.mrf.mxu0
        %v4013 = vadd.f32 0.0, %v4012
        %v4014 = vpop.f32.mrf.mxu0
        %v4015 = vadd.f32 0.0, %v4014
        %4016 = vdwg.mxu0
        %4017 = vmatpush.bf16.msra.mxu0 %v1874
        %4018 = vmatpush.bf16.msra.mxu0 %v1872
        %4019 = vmatpush.bf16.msra.mxu0 %v1870
        %4020 = vmatpush.bf16.msra.mxu0 %v1868
        %4021 = vmatpush.bf16.msra.mxu0 %v1866
        %4022 = vmatpush.bf16.msra.mxu0 %v1864
        %4023 = vmatpush.bf16.msra.mxu0 %v1862
        %4024 = vmatpush.bf16.msra.mxu0 %v1860
        %4025 = vmatmul.bf16.gmra.mxu0 %v3808
        %v4026 = vpop.f32.mrf.mxu0
        %v4027 = vadd.f32 %v4013, %v4026
        %v4028 = vpop.f32.mrf.mxu0
        %v4029 = vadd.f32 %v4015, %v4028
        %4030 = vdwg.mxu0
        %4031 = vmatpush.bf16.msra.mxu0 %v1859
        %4032 = vmatpush.bf16.msra.mxu0 %v1857
        %4033 = vmatpush.bf16.msra.mxu0 %v1855
        %4034 = vmatpush.bf16.msra.mxu0 %v1853
        %4035 = vmatpush.bf16.msra.mxu0 %v1851
        %4036 = vmatpush.bf16.msra.mxu0 %v1849
        %4037 = vmatpush.bf16.msra.mxu0 %v1847
        %4038 = vmatpush.bf16.msra.mxu0 %v1845
        %4039 = vmatmul.bf16.gmra.mxu0 %v3807
        %v4040 = vpop.f32.mrf.mxu0
        %v4041 = vadd.f32 0.0, %v4040
        %v4042 = vpop.f32.mrf.mxu0
        %v4043 = vadd.f32 0.0, %v4042
        %4044 = vdwg.mxu0
        %4045 = vmatpush.bf16.msra.mxu0 %v1875
        %4046 = vmatpush.bf16.msra.mxu0 %v1873
        %4047 = vmatpush.bf16.msra.mxu0 %v1871
        %4048 = vmatpush.bf16.msra.mxu0 %v1869
        %4049 = vmatpush.bf16.msra.mxu0 %v1867
        %4050 = vmatpush.bf16.msra.mxu0 %v1865
        %4051 = vmatpush.bf16.msra.mxu0 %v1863
        %4052 = vmatpush.bf16.msra.mxu0 %v1861
        %4053 = vmatmul.bf16.gmra.mxu0 %v3808
        %v4054 = vpop.f32.mrf.mxu0
        %v4055 = vadd.f32 %v4041, %v4054
        %v4056 = vpop.f32.mrf.mxu0
        %v4057 = vadd.f32 %v4043, %v4056
        %4058 = vdwg.mxu0
        %s4059 = scalar_lea.vmem [#allocation15], 16
        %v4060 = vld [vmem:[%s4059] sm:$0xf]
        %v4061 = vld [vmem:[%s4059 + $0x4] sm:$0xf]
        %v4062 = vpack.c.bf16 %v4029, %v4027
        %v4063 = vpack.c.bf16 %v4057, %v4055
        %v4066 = vunpack.c.l.b16 %v4060
        %v4067 = vunpack.c.l.b16 %v4061
        %v4068 = vpack.c.b16 %v4067, %v4066
        %v4070 = vsel %vm3935, %v4068, 0
        %4072 = vmatpush.bf16.msra.mxu0 0
        %4073 = vmatpush.bf16.msra.mxu0 0
        %4074 = vmatpush.bf16.msra.mxu0 0
        %4075 = vmatpush.bf16.msra.mxu0 0
        %4076 = vmatpush.bf16.msra.mxu0 0
        %4077 = vmatpush.bf16.msra.mxu0 0
        %4078 = vmatpush.bf16.msra.mxu0 0
        %4079 = vmatpush.bf16.msra.mxu0 %v4062
        %4080 = vmatmul.bf16.gmra.mxu0 %v4070
        %v4081 = vpop.f32.mrf.mxu0
        %v4082 = vadd.f32 0.0, %v4081
        %v4083 = vpop.f32.mrf.mxu0
        %v4084 = vadd.f32 0.0, %v4083
        %4085 = vdwg.mxu0
        %4086 = vmatpush.bf16.msra.mxu0 0
        %4087 = vmatpush.bf16.msra.mxu0 0
        %4088 = vmatpush.bf16.msra.mxu0 0
        %4089 = vmatpush.bf16.msra.mxu0 0
        %4090 = vmatpush.bf16.msra.mxu0 0
        %4091 = vmatpush.bf16.msra.mxu0 0
        %4092 = vmatpush.bf16.msra.mxu0 0
        %4093 = vmatpush.bf16.msra.mxu0 %v4063
        %4094 = vmatmul.bf16.gmra.mxu0 %v4070
        %v4095 = vpop.f32.mrf.mxu0
        %v4096 = vadd.f32 0.0, %v4095
        %v4097 = vpop.f32.mrf.mxu0
        %v4098 = vadd.f32 0.0, %v4097
        %4099 = vdwg.mxu0
        %v4100 = vadd.f32 %v3985, %v4082
        %v4101 = vadd.f32 %v3999, %v4096
        %v4102 = vadd.f32 %v3987, %v4084
        %v4103 = vadd.f32 %v4001, %v4098
        %4104 = vmatpush.bf16.msra.mxu0 %v2154
        %4105 = vmatpush.bf16.msra.mxu0 %v2152
        %4106 = vmatpush.bf16.msra.mxu0 %v2150
        %4107 = vmatpush.bf16.msra.mxu0 %v2148
        %4108 = vmatpush.bf16.msra.mxu0 %v2146
        %4109 = vmatpush.bf16.msra.mxu0 %v2144
        %4110 = vmatpush.bf16.msra.mxu0 %v2142
        %4111 = vmatpush.bf16.msra.mxu0 %v2140
        %4112 = vmatmul.bf16.gmra.mxu0 %v3807
        %v4113 = vpop.f32.mrf.mxu0
        %v4114 = vadd.f32 0.0, %v4113
        %v4115 = vpop.f32.mrf.mxu0
        %v4116 = vadd.f32 0.0, %v4115
        %4117 = vdwg.mxu0
        %4118 = vmatpush.bf16.msra.mxu0 %v2170
        %4119 = vmatpush.bf16.msra.mxu0 %v2168
        %4120 = vmatpush.bf16.msra.mxu0 %v2166
        %4121 = vmatpush.bf16.msra.mxu0 %v2164
        %4122 = vmatpush.bf16.msra.mxu0 %v2162
        %4123 = vmatpush.bf16.msra.mxu0 %v2160
        %4124 = vmatpush.bf16.msra.mxu0 %v2158
        %4125 = vmatpush.bf16.msra.mxu0 %v2156
        %4126 = vmatmul.bf16.gmra.mxu0 %v3808
        %v4127 = vpop.f32.mrf.mxu0
        %v4128 = vadd.f32 %v4114, %v4127
        %v4129 = vpop.f32.mrf.mxu0
        %v4130 = vadd.f32 %v4116, %v4129
        %4131 = vdwg.mxu0
        %4132 = vmatpush.bf16.msra.mxu0 %v2155
        %4133 = vmatpush.bf16.msra.mxu0 %v2153
        %4134 = vmatpush.bf16.msra.mxu0 %v2151
        %4135 = vmatpush.bf16.msra.mxu0 %v2149
        %4136 = vmatpush.bf16.msra.mxu0 %v2147
        %4137 = vmatpush.bf16.msra.mxu0 %v2145
        %4138 = vmatpush.bf16.msra.mxu0 %v2143
        %4139 = vmatpush.bf16.msra.mxu0 %v2141
        %4140 = vmatmul.bf16.gmra.mxu0 %v3807
        %v4141 = vpop.f32.mrf.mxu0
        %v4142 = vadd.f32 0.0, %v4141
        %v4143 = vpop.f32.mrf.mxu0
        %v4144 = vadd.f32 0.0, %v4143
        %4145 = vdwg.mxu0
        %4146 = vmatpush.bf16.msra.mxu0 %v2171
        %4147 = vmatpush.bf16.msra.mxu0 %v2169
        %4148 = vmatpush.bf16.msra.mxu0 %v2167
        %4149 = vmatpush.bf16.msra.mxu0 %v2165
        %4150 = vmatpush.bf16.msra.mxu0 %v2163
        %4151 = vmatpush.bf16.msra.mxu0 %v2161
        %4152 = vmatpush.bf16.msra.mxu0 %v2159
        %4153 = vmatpush.bf16.msra.mxu0 %v2157
        %4154 = vmatmul.bf16.gmra.mxu0 %v3808
        %v4155 = vpop.f32.mrf.mxu0
        %v4156 = vadd.f32 %v4142, %v4155
        %v4157 = vpop.f32.mrf.mxu0
        %v4158 = vadd.f32 %v4144, %v4157
        %4159 = vdwg.mxu0
        %s4160 = scalar_lea.vmem [#allocation15], 24
        %v4161 = vld [vmem:[%s4160] sm:$0xf]
        %v4162 = vld [vmem:[%s4160 + $0x4] sm:$0xf]
        %v4163 = vpack.c.bf16 %v4130, %v4128
        %v4164 = vpack.c.bf16 %v4158, %v4156
        %v4167 = vunpack.c.l.b16 %v4161
        %v4168 = vunpack.c.l.b16 %v4162
        %v4169 = vpack.c.b16 %v4168, %v4167
        %v4171 = vsel %vm3935, %v4169, 0
        %4173 = vmatpush.bf16.msra.mxu0 0
        %4174 = vmatpush.bf16.msra.mxu0 0
        %4175 = vmatpush.bf16.msra.mxu0 0
        %4176 = vmatpush.bf16.msra.mxu0 0
        %4177 = vmatpush.bf16.msra.mxu0 0
        %4178 = vmatpush.bf16.msra.mxu0 0
        %4179 = vmatpush.bf16.msra.mxu0 0
        %4180 = vmatpush.bf16.msra.mxu0 %v4163
        %4181 = vmatmul.bf16.gmra.mxu0 %v4171
        %v4182 = vpop.f32.mrf.mxu0
        %v4183 = vadd.f32 0.0, %v4182
        %v4184 = vpop.f32.mrf.mxu0
        %v4185 = vadd.f32 0.0, %v4184
        %4186 = vdwg.mxu0
        %4187 = vmatpush.bf16.msra.mxu0 0
        %4188 = vmatpush.bf16.msra.mxu0 0
        %4189 = vmatpush.bf16.msra.mxu0 0
        %4190 = vmatpush.bf16.msra.mxu0 0
        %4191 = vmatpush.bf16.msra.mxu0 0
        %4192 = vmatpush.bf16.msra.mxu0 0
        %4193 = vmatpush.bf16.msra.mxu0 0
        %4194 = vmatpush.bf16.msra.mxu0 %v4164
        %4195 = vmatmul.bf16.gmra.mxu0 %v4171
        %v4196 = vpop.f32.mrf.mxu0
        %v4197 = vadd.f32 0.0, %v4196
        %v4198 = vpop.f32.mrf.mxu0
        %v4199 = vadd.f32 0.0, %v4198
        %4200 = vdwg.mxu0
        %v4201 = vadd.f32 %v4100, %v4183
        %v4202 = vadd.f32 %v4101, %v4197
        %v4203 = vadd.f32 %v4102, %v4185
        %v4204 = vadd.f32 %v4103, %v4199
        %4205 = vmatpush.bf16.msra.mxu0 %v2450
        %4206 = vmatpush.bf16.msra.mxu0 %v2448
        %4207 = vmatpush.bf16.msra.mxu0 %v2446
        %4208 = vmatpush.bf16.msra.mxu0 %v2444
        %4209 = vmatpush.bf16.msra.mxu0 %v2442
        %4210 = vmatpush.bf16.msra.mxu0 %v2440
        %4211 = vmatpush.bf16.msra.mxu0 %v2438
        %4212 = vmatpush.bf16.msra.mxu0 %v2436
        %4213 = vmatmul.bf16.gmra.mxu0 %v3807
        %v4214 = vpop.f32.mrf.mxu0
        %v4215 = vadd.f32 0.0, %v4214
        %v4216 = vpop.f32.mrf.mxu0
        %v4217 = vadd.f32 0.0, %v4216
        %4218 = vdwg.mxu0
        %4219 = vmatpush.bf16.msra.mxu0 %v2466
        %4220 = vmatpush.bf16.msra.mxu0 %v2464
        %4221 = vmatpush.bf16.msra.mxu0 %v2462
        %4222 = vmatpush.bf16.msra.mxu0 %v2460
        %4223 = vmatpush.bf16.msra.mxu0 %v2458
        %4224 = vmatpush.bf16.msra.mxu0 %v2456
        %4225 = vmatpush.bf16.msra.mxu0 %v2454
        %4226 = vmatpush.bf16.msra.mxu0 %v2452
        %4227 = vmatmul.bf16.gmra.mxu0 %v3808
        %v4228 = vpop.f32.mrf.mxu0
        %v4229 = vadd.f32 %v4215, %v4228
        %v4230 = vpop.f32.mrf.mxu0
        %v4231 = vadd.f32 %v4217, %v4230
        %4232 = vdwg.mxu0
        %4233 = vmatpush.bf16.msra.mxu0 %v2451
        %4234 = vmatpush.bf16.msra.mxu0 %v2449
        %4235 = vmatpush.bf16.msra.mxu0 %v2447
        %4236 = vmatpush.bf16.msra.mxu0 %v2445
        %4237 = vmatpush.bf16.msra.mxu0 %v2443
        %4238 = vmatpush.bf16.msra.mxu0 %v2441
        %4239 = vmatpush.bf16.msra.mxu0 %v2439
        %4240 = vmatpush.bf16.msra.mxu0 %v2437
        %4241 = vmatmul.bf16.gmra.mxu0 %v3807
        %v4242 = vpop.f32.mrf.mxu0
        %v4243 = vadd.f32 0.0, %v4242
        %v4244 = vpop.f32.mrf.mxu0
        %v4245 = vadd.f32 0.0, %v4244
        %4246 = vdwg.mxu0
        %4247 = vmatpush.bf16.msra.mxu0 %v2467
        %4248 = vmatpush.bf16.msra.mxu0 %v2465
        %4249 = vmatpush.bf16.msra.mxu0 %v2463
        %4250 = vmatpush.bf16.msra.mxu0 %v2461
        %4251 = vmatpush.bf16.msra.mxu0 %v2459
        %4252 = vmatpush.bf16.msra.mxu0 %v2457
        %4253 = vmatpush.bf16.msra.mxu0 %v2455
        %4254 = vmatpush.bf16.msra.mxu0 %v2453
        %4255 = vmatmul.bf16.gmra.mxu0 %v3808
        %v4256 = vpop.f32.mrf.mxu0
        %v4257 = vadd.f32 %v4243, %v4256
        %v4258 = vpop.f32.mrf.mxu0
        %v4259 = vadd.f32 %v4245, %v4258
        %4260 = vdwg.mxu0
        %s4261 = scalar_lea.vmem [#allocation15], 32
        %v4262 = vld [vmem:[%s4261] sm:$0xf]
        %v4263 = vld [vmem:[%s4261 + $0x4] sm:$0xf]
        %v4264 = vpack.c.bf16 %v4231, %v4229
        %v4265 = vpack.c.bf16 %v4259, %v4257
        %v4268 = vunpack.c.l.b16 %v4262
        %v4269 = vunpack.c.l.b16 %v4263
        %v4270 = vpack.c.b16 %v4269, %v4268
        %v4272 = vsel %vm3935, %v4270, 0
        %4274 = vmatpush.bf16.msra.mxu0 0
        %4275 = vmatpush.bf16.msra.mxu0 0
        %4276 = vmatpush.bf16.msra.mxu0 0
        %4277 = vmatpush.bf16.msra.mxu0 0
        %4278 = vmatpush.bf16.msra.mxu0 0
        %4279 = vmatpush.bf16.msra.mxu0 0
        %4280 = vmatpush.bf16.msra.mxu0 0
        %4281 = vmatpush.bf16.msra.mxu0 %v4264
        %4282 = vmatmul.bf16.gmra.mxu0 %v4272
        %v4283 = vpop.f32.mrf.mxu0
        %v4284 = vadd.f32 0.0, %v4283
        %v4285 = vpop.f32.mrf.mxu0
        %v4286 = vadd.f32 0.0, %v4285
        %4287 = vdwg.mxu0
        %4288 = vmatpush.bf16.msra.mxu0 0
        %4289 = vmatpush.bf16.msra.mxu0 0
        %4290 = vmatpush.bf16.msra.mxu0 0
        %4291 = vmatpush.bf16.msra.mxu0 0
        %4292 = vmatpush.bf16.msra.mxu0 0
        %4293 = vmatpush.bf16.msra.mxu0 0
        %4294 = vmatpush.bf16.msra.mxu0 0
        %4295 = vmatpush.bf16.msra.mxu0 %v4265
        %4296 = vmatmul.bf16.gmra.mxu0 %v4272
        %v4297 = vpop.f32.mrf.mxu0
        %v4298 = vadd.f32 0.0, %v4297
        %v4299 = vpop.f32.mrf.mxu0
        %v4300 = vadd.f32 0.0, %v4299
        %4301 = vdwg.mxu0
        %v4302 = vadd.f32 %v4201, %v4284
        %v4303 = vadd.f32 %v4202, %v4298
        %v4304 = vadd.f32 %v4203, %v4286
        %v4305 = vadd.f32 %v4204, %v4300
        %4306 = vmatpush.bf16.msra.mxu0 %v2746
        %4307 = vmatpush.bf16.msra.mxu0 %v2744
        %4308 = vmatpush.bf16.msra.mxu0 %v2742
        %4309 = vmatpush.bf16.msra.mxu0 %v2740
        %4310 = vmatpush.bf16.msra.mxu0 %v2738
        %4311 = vmatpush.bf16.msra.mxu0 %v2736
        %4312 = vmatpush.bf16.msra.mxu0 %v2734
        %4313 = vmatpush.bf16.msra.mxu0 %v2732
        %4314 = vmatmul.bf16.gmra.mxu0 %v3807
        %v4315 = vpop.f32.mrf.mxu0
        %v4316 = vadd.f32 0.0, %v4315
        %v4317 = vpop.f32.mrf.mxu0
        %v4318 = vadd.f32 0.0, %v4317
        %4319 = vdwg.mxu0
        %4320 = vmatpush.bf16.msra.mxu0 %v2762
        %4321 = vmatpush.bf16.msra.mxu0 %v2760
        %4322 = vmatpush.bf16.msra.mxu0 %v2758
        %4323 = vmatpush.bf16.msra.mxu0 %v2756
        %4324 = vmatpush.bf16.msra.mxu0 %v2754
        %4325 = vmatpush.bf16.msra.mxu0 %v2752
        %4326 = vmatpush.bf16.msra.mxu0 %v2750
        %4327 = vmatpush.bf16.msra.mxu0 %v2748
        %4328 = vmatmul.bf16.gmra.mxu0 %v3808
        %v4329 = vpop.f32.mrf.mxu0
        %v4330 = vadd.f32 %v4316, %v4329
        %v4331 = vpop.f32.mrf.mxu0
        %v4332 = vadd.f32 %v4318, %v4331
        %4333 = vdwg.mxu0
        %4334 = vmatpush.bf16.msra.mxu0 %v2747
        %4335 = vmatpush.bf16.msra.mxu0 %v2745
        %4336 = vmatpush.bf16.msra.mxu0 %v2743
        %4337 = vmatpush.bf16.msra.mxu0 %v2741
        %4338 = vmatpush.bf16.msra.mxu0 %v2739
        %4339 = vmatpush.bf16.msra.mxu0 %v2737
        %4340 = vmatpush.bf16.msra.mxu0 %v2735
        %4341 = vmatpush.bf16.msra.mxu0 %v2733
        %4342 = vmatmul.bf16.gmra.mxu0 %v3807
        %v4343 = vpop.f32.mrf.mxu0
        %v4344 = vadd.f32 0.0, %v4343
        %v4345 = vpop.f32.mrf.mxu0
        %v4346 = vadd.f32 0.0, %v4345
        %4347 = vdwg.mxu0
        %4348 = vmatpush.bf16.msra.mxu0 %v2763
        %4349 = vmatpush.bf16.msra.mxu0 %v2761
        %4350 = vmatpush.bf16.msra.mxu0 %v2759
        %4351 = vmatpush.bf16.msra.mxu0 %v2757
        %4352 = vmatpush.bf16.msra.mxu0 %v2755
        %4353 = vmatpush.bf16.msra.mxu0 %v2753
        %4354 = vmatpush.bf16.msra.mxu0 %v2751
        %4355 = vmatpush.bf16.msra.mxu0 %v2749
        %4356 = vmatmul.bf16.gmra.mxu0 %v3808
        %v4357 = vpop.f32.mrf.mxu0
        %v4358 = vadd.f32 %v4344, %v4357
        %v4359 = vpop.f32.mrf.mxu0
        %v4360 = vadd.f32 %v4346, %v4359
        %4361 = vdwg.mxu0
        %s4362 = scalar_lea.vmem [#allocation15], 40
        %v4363 = vld [vmem:[%s4362] sm:$0xf]
        %v4364 = vld [vmem:[%s4362 + $0x4] sm:$0xf]
        %v4365 = vpack.c.bf16 %v4332, %v4330
        %v4366 = vpack.c.bf16 %v4360, %v4358
        %v4369 = vunpack.c.l.b16 %v4363
        %v4370 = vunpack.c.l.b16 %v4364
        %v4371 = vpack.c.b16 %v4370, %v4369
        %v4373 = vsel %vm3935, %v4371, 0
        %4375 = vmatpush.bf16.msra.mxu0 0
        %4376 = vmatpush.bf16.msra.mxu0 0
        %4377 = vmatpush.bf16.msra.mxu0 0
        %4378 = vmatpush.bf16.msra.mxu0 0
        %4379 = vmatpush.bf16.msra.mxu0 0
        %4380 = vmatpush.bf16.msra.mxu0 0
        %4381 = vmatpush.bf16.msra.mxu0 0
        %4382 = vmatpush.bf16.msra.mxu0 %v4365
        %4383 = vmatmul.bf16.gmra.mxu0 %v4373
        %v4384 = vpop.f32.mrf.mxu0
        %v4385 = vadd.f32 0.0, %v4384
        %v4386 = vpop.f32.mrf.mxu0
        %v4387 = vadd.f32 0.0, %v4386
        %4388 = vdwg.mxu0
        %4389 = vmatpush.bf16.msra.mxu0 0
        %4390 = vmatpush.bf16.msra.mxu0 0
        %4391 = vmatpush.bf16.msra.mxu0 0
        %4392 = vmatpush.bf16.msra.mxu0 0
        %4393 = vmatpush.bf16.msra.mxu0 0
        %4394 = vmatpush.bf16.msra.mxu0 0
        %4395 = vmatpush.bf16.msra.mxu0 0
        %4396 = vmatpush.bf16.msra.mxu0 %v4366
        %4397 = vmatmul.bf16.gmra.mxu0 %v4373
        %v4398 = vpop.f32.mrf.mxu0
        %v4399 = vadd.f32 0.0, %v4398
        %v4400 = vpop.f32.mrf.mxu0
        %v4401 = vadd.f32 0.0, %v4400
        %4402 = vdwg.mxu0
        %v4403 = vadd.f32 %v4302, %v4385
        %v4404 = vadd.f32 %v4303, %v4399
        %v4405 = vadd.f32 %v4304, %v4387
        %v4406 = vadd.f32 %v4305, %v4401
        %4407 = vmatpush.bf16.msra.mxu0 %v3042
        %4408 = vmatpush.bf16.msra.mxu0 %v3040
        %4409 = vmatpush.bf16.msra.mxu0 %v3038
        %4410 = vmatpush.bf16.msra.mxu0 %v3036
        %4411 = vmatpush.bf16.msra.mxu0 %v3034
        %4412 = vmatpush.bf16.msra.mxu0 %v3032
        %4413 = vmatpush.bf16.msra.mxu0 %v3030
        %4414 = vmatpush.bf16.msra.mxu0 %v3028
        %4415 = vmatmul.bf16.gmra.mxu0 %v3807
        %v4416 = vpop.f32.mrf.mxu0
        %v4417 = vadd.f32 0.0, %v4416
        %v4418 = vpop.f32.mrf.mxu0
        %v4419 = vadd.f32 0.0, %v4418
        %4420 = vdwg.mxu0
        %4421 = vmatpush.bf16.msra.mxu0 %v3058
        %4422 = vmatpush.bf16.msra.mxu0 %v3056
        %4423 = vmatpush.bf16.msra.mxu0 %v3054
        %4424 = vmatpush.bf16.msra.mxu0 %v3052
        %4425 = vmatpush.bf16.msra.mxu0 %v3050
        %4426 = vmatpush.bf16.msra.mxu0 %v3048
        %4427 = vmatpush.bf16.msra.mxu0 %v3046
        %4428 = vmatpush.bf16.msra.mxu0 %v3044
        %4429 = vmatmul.bf16.gmra.mxu0 %v3808
        %v4430 = vpop.f32.mrf.mxu0
        %v4431 = vadd.f32 %v4417, %v4430
        %v4432 = vpop.f32.mrf.mxu0
        %v4433 = vadd.f32 %v4419, %v4432
        %4434 = vdwg.mxu0
        %4435 = vmatpush.bf16.msra.mxu0 %v3043
        %4436 = vmatpush.bf16.msra.mxu0 %v3041
        %4437 = vmatpush.bf16.msra.mxu0 %v3039
        %4438 = vmatpush.bf16.msra.mxu0 %v3037
        %4439 = vmatpush.bf16.msra.mxu0 %v3035
        %4440 = vmatpush.bf16.msra.mxu0 %v3033
        %4441 = vmatpush.bf16.msra.mxu0 %v3031
        %4442 = vmatpush.bf16.msra.mxu0 %v3029
        %4443 = vmatmul.bf16.gmra.mxu0 %v3807
        %v4444 = vpop.f32.mrf.mxu0
        %v4445 = vadd.f32 0.0, %v4444
        %v4446 = vpop.f32.mrf.mxu0
        %v4447 = vadd.f32 0.0, %v4446
        %4448 = vdwg.mxu0
        %4449 = vmatpush.bf16.msra.mxu0 %v3059
        %4450 = vmatpush.bf16.msra.mxu0 %v3057
        %4451 = vmatpush.bf16.msra.mxu0 %v3055
        %4452 = vmatpush.bf16.msra.mxu0 %v3053
        %4453 = vmatpush.bf16.msra.mxu0 %v3051
        %4454 = vmatpush.bf16.msra.mxu0 %v3049
        %4455 = vmatpush.bf16.msra.mxu0 %v3047
        %4456 = vmatpush.bf16.msra.mxu0 %v3045
        %4457 = vmatmul.bf16.gmra.mxu0 %v3808
        %v4458 = vpop.f32.mrf.mxu0
        %v4459 = vadd.f32 %v4445, %v4458
        %v4460 = vpop.f32.mrf.mxu0
        %v4461 = vadd.f32 %v4447, %v4460
        %4462 = vdwg.mxu0
        %s4463 = scalar_lea.vmem [#allocation15], 48
        %v4464 = vld [vmem:[%s4463] sm:$0xf]
        %v4465 = vld [vmem:[%s4463 + $0x4] sm:$0xf]
        %v4466 = vpack.c.bf16 %v4433, %v4431
        %v4467 = vpack.c.bf16 %v4461, %v4459
        %v4470 = vunpack.c.l.b16 %v4464
        %v4471 = vunpack.c.l.b16 %v4465
        %v4472 = vpack.c.b16 %v4471, %v4470
        %v4474 = vsel %vm3935, %v4472, 0
        %4476 = vmatpush.bf16.msra.mxu0 0
        %4477 = vmatpush.bf16.msra.mxu0 0
        %4478 = vmatpush.bf16.msra.mxu0 0
        %4479 = vmatpush.bf16.msra.mxu0 0
        %4480 = vmatpush.bf16.msra.mxu0 0
        %4481 = vmatpush.bf16.msra.mxu0 0
        %4482 = vmatpush.bf16.msra.mxu0 0
        %4483 = vmatpush.bf16.msra.mxu0 %v4466
        %4484 = vmatmul.bf16.gmra.mxu0 %v4474
        %v4485 = vpop.f32.mrf.mxu0
        %v4486 = vadd.f32 0.0, %v4485
        %v4487 = vpop.f32.mrf.mxu0
        %v4488 = vadd.f32 0.0, %v4487
        %4489 = vdwg.mxu0
        %4490 = vmatpush.bf16.msra.mxu0 0
        %4491 = vmatpush.bf16.msra.mxu0 0
        %4492 = vmatpush.bf16.msra.mxu0 0
        %4493 = vmatpush.bf16.msra.mxu0 0
        %4494 = vmatpush.bf16.msra.mxu0 0
        %4495 = vmatpush.bf16.msra.mxu0 0
        %4496 = vmatpush.bf16.msra.mxu0 0
        %4497 = vmatpush.bf16.msra.mxu0 %v4467
        %4498 = vmatmul.bf16.gmra.mxu0 %v4474
        %v4499 = vpop.f32.mrf.mxu0
        %v4500 = vadd.f32 0.0, %v4499
        %v4501 = vpop.f32.mrf.mxu0
        %v4502 = vadd.f32 0.0, %v4501
        %4503 = vdwg.mxu0
        %v4504 = vadd.f32 %v4403, %v4486
        %v4505 = vadd.f32 %v4404, %v4500
        %v4506 = vadd.f32 %v4405, %v4488
        %v4507 = vadd.f32 %v4406, %v4502
        %4508 = vmatpush.bf16.msra.mxu0 %v3338
        %4509 = vmatpush.bf16.msra.mxu0 %v3336
        %4510 = vmatpush.bf16.msra.mxu0 %v3334
        %4511 = vmatpush.bf16.msra.mxu0 %v3332
        %4512 = vmatpush.bf16.msra.mxu0 %v3330
        %4513 = vmatpush.bf16.msra.mxu0 %v3328
        %4514 = vmatpush.bf16.msra.mxu0 %v3326
        %4515 = vmatpush.bf16.msra.mxu0 %v3324
        %4516 = vmatmul.bf16.gmra.mxu0 %v3807
        %v4517 = vpop.f32.mrf.mxu0
        %v4518 = vadd.f32 0.0, %v4517
        %v4519 = vpop.f32.mrf.mxu0
        %v4520 = vadd.f32 0.0, %v4519
        %4521 = vdwg.mxu0
        %4522 = vmatpush.bf16.msra.mxu0 %v3354
        %4523 = vmatpush.bf16.msra.mxu0 %v3352
        %4524 = vmatpush.bf16.msra.mxu0 %v3350
        %4525 = vmatpush.bf16.msra.mxu0 %v3348
        %4526 = vmatpush.bf16.msra.mxu0 %v3346
        %4527 = vmatpush.bf16.msra.mxu0 %v3344
        %4528 = vmatpush.bf16.msra.mxu0 %v3342
        %4529 = vmatpush.bf16.msra.mxu0 %v3340
        %4530 = vmatmul.bf16.gmra.mxu0 %v3808
        %v4531 = vpop.f32.mrf.mxu0
        %v4532 = vadd.f32 %v4518, %v4531
        %v4533 = vpop.f32.mrf.mxu0
        %v4534 = vadd.f32 %v4520, %v4533
        %4535 = vdwg.mxu0
        %4536 = vmatpush.bf16.msra.mxu0 %v3339
        %4537 = vmatpush.bf16.msra.mxu0 %v3337
        %4538 = vmatpush.bf16.msra.mxu0 %v3335
        %4539 = vmatpush.bf16.msra.mxu0 %v3333
        %4540 = vmatpush.bf16.msra.mxu0 %v3331
        %4541 = vmatpush.bf16.msra.mxu0 %v3329
        %4542 = vmatpush.bf16.msra.mxu0 %v3327
        %4543 = vmatpush.bf16.msra.mxu0 %v3325
        %4544 = vmatmul.bf16.gmra.mxu0 %v3807
        %v4545 = vpop.f32.mrf.mxu0
        %v4546 = vadd.f32 0.0, %v4545
        %v4547 = vpop.f32.mrf.mxu0
        %v4548 = vadd.f32 0.0, %v4547
        %4549 = vdwg.mxu0
        %4550 = vmatpush.bf16.msra.mxu0 %v3355
        %4551 = vmatpush.bf16.msra.mxu0 %v3353
        %4552 = vmatpush.bf16.msra.mxu0 %v3351
        %4553 = vmatpush.bf16.msra.mxu0 %v3349
        %4554 = vmatpush.bf16.msra.mxu0 %v3347
        %4555 = vmatpush.bf16.msra.mxu0 %v3345
        %4556 = vmatpush.bf16.msra.mxu0 %v3343
        %4557 = vmatpush.bf16.msra.mxu0 %v3341
        %4558 = vmatmul.bf16.gmra.mxu0 %v3808
        %v4559 = vpop.f32.mrf.mxu0
        %v4560 = vadd.f32 %v4546, %v4559
        %v4561 = vpop.f32.mrf.mxu0
        %v4562 = vadd.f32 %v4548, %v4561
        %4563 = vdwg.mxu0
        %s4564 = scalar_lea.vmem [#allocation15], 56
        %v4565 = vld [vmem:[%s4564] sm:$0xf]
        %v4566 = vld [vmem:[%s4564 + $0x4] sm:$0xf]
        %v4567 = vpack.c.bf16 %v4534, %v4532
        %v4568 = vpack.c.bf16 %v4562, %v4560
        %v4571 = vunpack.c.l.b16 %v4565
        %v4572 = vunpack.c.l.b16 %v4566
        %v4573 = vpack.c.b16 %v4572, %v4571
        %v4575 = vsel %vm3935, %v4573, 0
        %4577 = vmatpush.bf16.msra.mxu0 0
        %4578 = vmatpush.bf16.msra.mxu0 0
        %4579 = vmatpush.bf16.msra.mxu0 0
        %4580 = vmatpush.bf16.msra.mxu0 0
        %4581 = vmatpush.bf16.msra.mxu0 0
        %4582 = vmatpush.bf16.msra.mxu0 0
        %4583 = vmatpush.bf16.msra.mxu0 0
        %4584 = vmatpush.bf16.msra.mxu0 %v4567
        %4585 = vmatmul.bf16.gmra.mxu0 %v4575
        %v4586 = vpop.f32.mrf.mxu0
        %v4587 = vadd.f32 0.0, %v4586
        %v4588 = vpop.f32.mrf.mxu0
        %v4589 = vadd.f32 0.0, %v4588
        %4590 = vdwg.mxu0
        %4591 = vmatpush.bf16.msra.mxu0 0
        %4592 = vmatpush.bf16.msra.mxu0 0
        %4593 = vmatpush.bf16.msra.mxu0 0
        %4594 = vmatpush.bf16.msra.mxu0 0
        %4595 = vmatpush.bf16.msra.mxu0 0
        %4596 = vmatpush.bf16.msra.mxu0 0
        %4597 = vmatpush.bf16.msra.mxu0 0
        %4598 = vmatpush.bf16.msra.mxu0 %v4568
        %4599 = vmatmul.bf16.gmra.mxu0 %v4575
        %v4600 = vpop.f32.mrf.mxu0
        %v4601 = vadd.f32 0.0, %v4600
        %v4602 = vpop.f32.mrf.mxu0
        %v4603 = vadd.f32 0.0, %v4602
        %4604 = vdwg.mxu0
        %v4605 = vadd.f32 %v4504, %v4587
        %v4606 = vadd.f32 %v4505, %v4601
        %v4607 = vadd.f32 %v4506, %v4589
        %v4608 = vadd.f32 %v4507, %v4603
        %4609 = vmatpush.bf16.msra.mxu0 %v3634
        %4610 = vmatpush.bf16.msra.mxu0 %v3632
        %4611 = vmatpush.bf16.msra.mxu0 %v3630
        %4612 = vmatpush.bf16.msra.mxu0 %v3628
        %4613 = vmatpush.bf16.msra.mxu0 %v3626
        %4614 = vmatpush.bf16.msra.mxu0 %v3624
        %4615 = vmatpush.bf16.msra.mxu0 %v3622
        %4616 = vmatpush.bf16.msra.mxu0 %v3620
        %4617 = vmatmul.bf16.gmra.mxu0 %v3807
        %v4618 = vpop.f32.mrf.mxu0
        %v4619 = vadd.f32 0.0, %v4618
        %v4620 = vpop.f32.mrf.mxu0
        %v4621 = vadd.f32 0.0, %v4620
        %4622 = vdwg.mxu0
        %4623 = vmatpush.bf16.msra.mxu0 %v3650
        %4624 = vmatpush.bf16.msra.mxu0 %v3648
        %4625 = vmatpush.bf16.msra.mxu0 %v3646
        %4626 = vmatpush.bf16.msra.mxu0 %v3644
        %4627 = vmatpush.bf16.msra.mxu0 %v3642
        %4628 = vmatpush.bf16.msra.mxu0 %v3640
        %4629 = vmatpush.bf16.msra.mxu0 %v3638
        %4630 = vmatpush.bf16.msra.mxu0 %v3636
        %4631 = vmatmul.bf16.gmra.mxu0 %v3808
        %v4632 = vpop.f32.mrf.mxu0
        %v4633 = vadd.f32 %v4619, %v4632
        %v4634 = vpop.f32.mrf.mxu0
        %v4635 = vadd.f32 %v4621, %v4634
        %4636 = vdwg.mxu0
        %4637 = vmatpush.bf16.msra.mxu0 %v3635
        %4638 = vmatpush.bf16.msra.mxu0 %v3633
        %4639 = vmatpush.bf16.msra.mxu0 %v3631
        %4640 = vmatpush.bf16.msra.mxu0 %v3629
        %4641 = vmatpush.bf16.msra.mxu0 %v3627
        %4642 = vmatpush.bf16.msra.mxu0 %v3625
        %4643 = vmatpush.bf16.msra.mxu0 %v3623
        %4644 = vmatpush.bf16.msra.mxu0 %v3621
        %4645 = vmatmul.bf16.gmra.mxu0 %v3807
        %v4646 = vpop.f32.mrf.mxu0
        %v4647 = vadd.f32 0.0, %v4646
        %v4648 = vpop.f32.mrf.mxu0
        %v4649 = vadd.f32 0.0, %v4648
        %4650 = vdwg.mxu0
        %4651 = vmatpush.bf16.msra.mxu0 %v3651
        %4652 = vmatpush.bf16.msra.mxu0 %v3649
        %4653 = vmatpush.bf16.msra.mxu0 %v3647
        %4654 = vmatpush.bf16.msra.mxu0 %v3645
        %4655 = vmatpush.bf16.msra.mxu0 %v3643
        %4656 = vmatpush.bf16.msra.mxu0 %v3641
        %4657 = vmatpush.bf16.msra.mxu0 %v3639
        %4658 = vmatpush.bf16.msra.mxu0 %v3637
        %4659 = vmatmul.bf16.gmra.mxu0 %v3808
        %v4660 = vpop.f32.mrf.mxu0
        %v4661 = vadd.f32 %v4647, %v4660
        %v4662 = vpop.f32.mrf.mxu0
        %v4663 = vadd.f32 %v4649, %v4662
        %4664 = vdwg.mxu0
        %s4665 = scalar_lea.vmem [#allocation15], 64
        %v4666 = vld [vmem:[%s4665] sm:$0xf]
        %v4667 = vld [vmem:[%s4665 + $0x4] sm:$0xf]
        %v4668 = vpack.c.bf16 %v4635, %v4633
        %v4669 = vpack.c.bf16 %v4663, %v4661
        %v4672 = vunpack.c.l.b16 %v4666
        %v4673 = vunpack.c.l.b16 %v4667
        %v4674 = vpack.c.b16 %v4673, %v4672
        %v4676 = vsel %vm3935, %v4674, 0
        %4678 = vmatpush.bf16.msra.mxu0 0
        %4679 = vmatpush.bf16.msra.mxu0 0
        %4680 = vmatpush.bf16.msra.mxu0 0
        %4681 = vmatpush.bf16.msra.mxu0 0
        %4682 = vmatpush.bf16.msra.mxu0 0
        %4683 = vmatpush.bf16.msra.mxu0 0
        %4684 = vmatpush.bf16.msra.mxu0 0
        %4685 = vmatpush.bf16.msra.mxu0 %v4668
        %4686 = vmatmul.bf16.gmra.mxu0 %v4676
        %v4687 = vpop.f32.mrf.mxu0
        %v4688 = vadd.f32 0.0, %v4687
        %v4689 = vpop.f32.mrf.mxu0
        %v4690 = vadd.f32 0.0, %v4689
        %4691 = vdwg.mxu0
        %4692 = vmatpush.bf16.msra.mxu0 0
        %4693 = vmatpush.bf16.msra.mxu0 0
        %4694 = vmatpush.bf16.msra.mxu0 0
        %4695 = vmatpush.bf16.msra.mxu0 0
        %4696 = vmatpush.bf16.msra.mxu0 0
        %4697 = vmatpush.bf16.msra.mxu0 0
        %4698 = vmatpush.bf16.msra.mxu0 0
        %4699 = vmatpush.bf16.msra.mxu0 %v4669
        %4700 = vmatmul.bf16.gmra.mxu0 %v4676
        %v4701 = vpop.f32.mrf.mxu0
        %v4702 = vadd.f32 0.0, %v4701
        %v4703 = vpop.f32.mrf.mxu0
        %v4704 = vadd.f32 0.0, %v4703
        %4705 = vdwg.mxu0
        %v4706 = vadd.f32 %v4605, %v4688
        %v4707 = vadd.f32 %v4606, %v4702
        %v4708 = vadd.f32 %v4607, %v4690
        %v4709 = vadd.f32 %v4608, %v4704
        %v4710 = vld [vmem:[#allocation13] sm:$0xff]
        %v4711 = vld [vmem:[#allocation13 + $0x8] sm:$0xff]
        %4713 = vset.pattern.permute.xlu0 0
        %4714 = vperm.xlu0 %4713, %v4710
        %v4715 = vpop.permute.xlu0 %4714
        %4718 = vset.pattern.permute.xlu0 0
        %4719 = vperm.xlu0 %4718, %v4711
        %v4720 = vpop.permute.xlu0 %4719
        %v4722 = vadd.f32 %v4706, %v4715
        %v4723 = vadd.f32 %v4707, %v4715
        %v4724 = vadd.f32 %v4708, %v4720
        %v4725 = vadd.f32 %v4709, %v4720
        %v4726 = vmax.f32 %v4722, 0.0
        %v4727 = vmax.f32 %v4723, 0.0
        %v4728 = vmax.f32 %v4724, 0.0
        %v4729 = vmax.f32 %v4725, 0.0
        %v4730 = vpack.c.bf16 %v4728, %v4726
        %v4731 = vpack.c.bf16 %v4729, %v4727
        %4732 = vmatpush.bf16.msra.mxu0 %v1270
        %4733 = vmatpush.bf16.msra.mxu0 %v1268
        %4734 = vmatpush.bf16.msra.mxu0 %v1266
        %4735 = vmatpush.bf16.msra.mxu0 %v1264
        %4736 = vmatpush.bf16.msra.mxu0 %v1262
        %4737 = vmatpush.bf16.msra.mxu0 %v1260
        %4738 = vmatpush.bf16.msra.mxu0 %v1258
        %4739 = vmatpush.bf16.msra.mxu0 %v1256
        %4740 = vmatmul.bf16.gmra.mxu0 %v4730
        %v4741 = vpop.f32.mrf.mxu0
        %v4742 = vadd.f32 0.0, %v4741
        %v4743 = vpop.f32.mrf.mxu0
        %v4744 = vadd.f32 0.0, %v4743
        %4745 = vdwg.mxu0
        %4746 = vmatpush.bf16.msra.mxu0 %v1286
        %4747 = vmatpush.bf16.msra.mxu0 %v1284
        %4748 = vmatpush.bf16.msra.mxu0 %v1282
        %4749 = vmatpush.bf16.msra.mxu0 %v1280
        %4750 = vmatpush.bf16.msra.mxu0 %v1278
        %4751 = vmatpush.bf16.msra.mxu0 %v1276
        %4752 = vmatpush.bf16.msra.mxu0 %v1274
        %4753 = vmatpush.bf16.msra.mxu0 %v1272
        %4754 = vmatmul.bf16.gmra.mxu0 %v4731
        %v4755 = vpop.f32.mrf.mxu0
        %v4756 = vadd.f32 %v4742, %v4755
        %v4757 = vpop.f32.mrf.mxu0
        %v4758 = vadd.f32 %v4744, %v4757
        %4759 = vdwg.mxu0
        %4760 = vmatpush.bf16.msra.mxu0 %v1271
        %4761 = vmatpush.bf16.msra.mxu0 %v1269
        %4762 = vmatpush.bf16.msra.mxu0 %v1267
        %4763 = vmatpush.bf16.msra.mxu0 %v1265
        %4764 = vmatpush.bf16.msra.mxu0 %v1263
        %4765 = vmatpush.bf16.msra.mxu0 %v1261
        %4766 = vmatpush.bf16.msra.mxu0 %v1259
        %4767 = vmatpush.bf16.msra.mxu0 %v1257
        %4768 = vmatmul.bf16.gmra.mxu0 %v4730
        %v4769 = vpop.f32.mrf.mxu0
        %v4770 = vadd.f32 0.0, %v4769
        %v4771 = vpop.f32.mrf.mxu0
        %v4772 = vadd.f32 0.0, %v4771
        %4773 = vdwg.mxu0
        %4774 = vmatpush.bf16.msra.mxu0 %v1287
        %4775 = vmatpush.bf16.msra.mxu0 %v1285
        %4776 = vmatpush.bf16.msra.mxu0 %v1283
        %4777 = vmatpush.bf16.msra.mxu0 %v1281
        %4778 = vmatpush.bf16.msra.mxu0 %v1279
        %4779 = vmatpush.bf16.msra.mxu0 %v1277
        %4780 = vmatpush.bf16.msra.mxu0 %v1275
        %4781 = vmatpush.bf16.msra.mxu0 %v1273
        %4782 = vmatmul.bf16.gmra.mxu0 %v4731
        %v4783 = vpop.f32.mrf.mxu0
        %v4784 = vadd.f32 %v4770, %v4783
        %v4785 = vpop.f32.mrf.mxu0
        %v4786 = vadd.f32 %v4772, %v4785
        %4787 = vdwg.mxu0
        %v4788 = vld [vmem:[#allocation18] sm:$0xf]
        %v4789 = vld [vmem:[#allocation18 + $0x4] sm:$0xf]
        %v4790 = vpack.c.bf16 %v4758, %v4756
        %v4791 = vpack.c.bf16 %v4786, %v4784
        %4792 = vmatpush.bf16.msra.mxu0 %v1519
        %4793 = vmatpush.bf16.msra.mxu0 %v1517
        %4794 = vmatpush.bf16.msra.mxu0 %v1515
        %4795 = vmatpush.bf16.msra.mxu0 %v1513
        %4796 = vmatpush.bf16.msra.mxu0 %v1511
        %4797 = vmatpush.bf16.msra.mxu0 %v1509
        %4798 = vmatpush.bf16.msra.mxu0 %v1507
        %4799 = vmatpush.bf16.msra.mxu0 %v1505
        %4800 = vmatmul.bf16.gmra.mxu0 %v4730
        %v4801 = vpop.f32.mrf.mxu0
        %v4802 = vadd.f32 0.0, %v4801
        %v4803 = vpop.f32.mrf.mxu0
        %v4804 = vadd.f32 0.0, %v4803
        %4805 = vdwg.mxu0
        %4806 = vmatpush.bf16.msra.mxu0 %v1535
        %4807 = vmatpush.bf16.msra.mxu0 %v1533
        %4808 = vmatpush.bf16.msra.mxu0 %v1531
        %4809 = vmatpush.bf16.msra.mxu0 %v1529
        %4810 = vmatpush.bf16.msra.mxu0 %v1527
        %4811 = vmatpush.bf16.msra.mxu0 %v1525
        %4812 = vmatpush.bf16.msra.mxu0 %v1523
        %4813 = vmatpush.bf16.msra.mxu0 %v1521
        %4814 = vmatmul.bf16.gmra.mxu0 %v4731
        %v4815 = vpop.f32.mrf.mxu0
        %v4816 = vadd.f32 %v4802, %v4815
        %v4817 = vpop.f32.mrf.mxu0
        %v4818 = vadd.f32 %v4804, %v4817
        %4819 = vdwg.mxu0
        %4820 = vmatpush.bf16.msra.mxu0 %v1520
        %4821 = vmatpush.bf16.msra.mxu0 %v1518
        %4822 = vmatpush.bf16.msra.mxu0 %v1516
        %4823 = vmatpush.bf16.msra.mxu0 %v1514
        %4824 = vmatpush.bf16.msra.mxu0 %v1512
        %4825 = vmatpush.bf16.msra.mxu0 %v1510
        %4826 = vmatpush.bf16.msra.mxu0 %v1508
        %4827 = vmatpush.bf16.msra.mxu0 %v1506
        %4828 = vmatmul.bf16.gmra.mxu0 %v4730
        %v4829 = vpop.f32.mrf.mxu0
        %v4830 = vadd.f32 0.0, %v4829
        %v4831 = vpop.f32.mrf.mxu0
        %v4832 = vadd.f32 0.0, %v4831
        %4833 = vdwg.mxu0
        %4834 = vmatpush.bf16.msra.mxu0 %v1536
        %4835 = vmatpush.bf16.msra.mxu0 %v1534
        %4836 = vmatpush.bf16.msra.mxu0 %v1532
        %4837 = vmatpush.bf16.msra.mxu0 %v1530
        %4838 = vmatpush.bf16.msra.mxu0 %v1528
        %4839 = vmatpush.bf16.msra.mxu0 %v1526
        %4840 = vmatpush.bf16.msra.mxu0 %v1524
        %4841 = vmatpush.bf16.msra.mxu0 %v1522
        %4842 = vmatmul.bf16.gmra.mxu0 %v4731
        %v4843 = vpop.f32.mrf.mxu0
        %v4844 = vadd.f32 %v4830, %v4843
        %v4845 = vpop.f32.mrf.mxu0
        %v4846 = vadd.f32 %v4832, %v4845
        %4847 = vdwg.mxu0
        %s4848 = scalar_lea.vmem [#allocation18], 8
        %v4849 = vld [vmem:[%s4848] sm:$0xf]
        %v4850 = vld [vmem:[%s4848 + $0x4] sm:$0xf]
        %v4851 = vpack.c.bf16 %v4818, %v4816
        %v4852 = vpack.c.bf16 %v4846, %v4844
        %v4855 = vunpack.c.l.b16 %v4849
        %v4856 = vunpack.c.l.b16 %v4850
        %v4857 = vpack.c.b16 %v4856, %v4855
        %v4859 = vsel %vm3935, %v4857, 0
        %4861 = vmatpush.bf16.msra.mxu0 0
        %4862 = vmatpush.bf16.msra.mxu0 0
        %4863 = vmatpush.bf16.msra.mxu0 0
        %4864 = vmatpush.bf16.msra.mxu0 0
        %4865 = vmatpush.bf16.msra.mxu0 0
        %4866 = vmatpush.bf16.msra.mxu0 0
        %4867 = vmatpush.bf16.msra.mxu0 0
        %4868 = vmatpush.bf16.msra.mxu0 %v4851
        %4869 = vmatmul.bf16.gmra.mxu0 %v4859
        %v4870 = vpop.f32.mrf.mxu0
        %v4871 = vadd.f32 0.0, %v4870
        %v4872 = vpop.f32.mrf.mxu0
        %v4873 = vadd.f32 0.0, %v4872
        %4874 = vdwg.mxu0
        %4875 = vmatpush.bf16.msra.mxu0 0
        %4876 = vmatpush.bf16.msra.mxu0 0
        %4877 = vmatpush.bf16.msra.mxu0 0
        %4878 = vmatpush.bf16.msra.mxu0 0
        %4879 = vmatpush.bf16.msra.mxu0 0
        %4880 = vmatpush.bf16.msra.mxu0 0
        %4881 = vmatpush.bf16.msra.mxu0 0
        %4882 = vmatpush.bf16.msra.mxu0 %v4852
        %4883 = vmatmul.bf16.gmra.mxu0 %v4859
        %v4884 = vpop.f32.mrf.mxu0
        %v4885 = vadd.f32 0.0, %v4884
        %v4886 = vpop.f32.mrf.mxu0
        %v4887 = vadd.f32 0.0, %v4886
        %4888 = vdwg.mxu0
        %v4891 = vunpack.c.l.b16 %v4788
        %v4892 = vunpack.c.l.b16 %v4789
        %v4893 = vpack.c.b16 %v4892, %v4891
        %v4895 = vsel %vm3935, %v4893, 0
        %4897 = vmatpush.bf16.msra.mxu0 0
        %4898 = vmatpush.bf16.msra.mxu0 0
        %4899 = vmatpush.bf16.msra.mxu0 0
        %4900 = vmatpush.bf16.msra.mxu0 0
        %4901 = vmatpush.bf16.msra.mxu0 0
        %4902 = vmatpush.bf16.msra.mxu0 0
        %4903 = vmatpush.bf16.msra.mxu0 0
        %4904 = vmatpush.bf16.msra.mxu0 %v4790
        %4905 = vmatmul.bf16.gmra.mxu0 %v4895
        %v4906 = vpop.f32.mrf.mxu0
        %v4907 = vadd.f32 %v4871, %v4906
        %v4908 = vpop.f32.mrf.mxu0
        %v4909 = vadd.f32 %v4873, %v4908
        %4910 = vdwg.mxu0
        %4911 = vmatpush.bf16.msra.mxu0 0
        %4912 = vmatpush.bf16.msra.mxu0 0
        %4913 = vmatpush.bf16.msra.mxu0 0
        %4914 = vmatpush.bf16.msra.mxu0 0
        %4915 = vmatpush.bf16.msra.mxu0 0
        %4916 = vmatpush.bf16.msra.mxu0 0
        %4917 = vmatpush.bf16.msra.mxu0 0
        %4918 = vmatpush.bf16.msra.mxu0 %v4791
        %4919 = vmatmul.bf16.gmra.mxu0 %v4895
        %v4920 = vpop.f32.mrf.mxu0
        %v4921 = vadd.f32 %v4885, %v4920
        %v4922 = vpop.f32.mrf.mxu0
        %v4923 = vadd.f32 %v4887, %v4922
        %4924 = vdwg.mxu0
        %4925 = vmatpush.bf16.msra.mxu0 %v1858
        %4926 = vmatpush.bf16.msra.mxu0 %v1856
        %4927 = vmatpush.bf16.msra.mxu0 %v1854
        %4928 = vmatpush.bf16.msra.mxu0 %v1852
        %4929 = vmatpush.bf16.msra.mxu0 %v1850
        %4930 = vmatpush.bf16.msra.mxu0 %v1848
        %4931 = vmatpush.bf16.msra.mxu0 %v1846
        %4932 = vmatpush.bf16.msra.mxu0 %v1844
        %4933 = vmatmul.bf16.gmra.mxu0 %v4730
        %v4934 = vpop.f32.mrf.mxu0
        %v4935 = vadd.f32 0.0, %v4934
        %v4936 = vpop.f32.mrf.mxu0
        %v4937 = vadd.f32 0.0, %v4936
        %4938 = vdwg.mxu0
        %4939 = vmatpush.bf16.msra.mxu0 %v1874
        %4940 = vmatpush.bf16.msra.mxu0 %v1872
        %4941 = vmatpush.bf16.msra.mxu0 %v1870
        %4942 = vmatpush.bf16.msra.mxu0 %v1868
        %4943 = vmatpush.bf16.msra.mxu0 %v1866
        %4944 = vmatpush.bf16.msra.mxu0 %v1864
        %4945 = vmatpush.bf16.msra.mxu0 %v1862
        %4946 = vmatpush.bf16.msra.mxu0 %v1860
        %4947 = vmatmul.bf16.gmra.mxu0 %v4731
        %v4948 = vpop.f32.mrf.mxu0
        %v4949 = vadd.f32 %v4935, %v4948
        %v4950 = vpop.f32.mrf.mxu0
        %v4951 = vadd.f32 %v4937, %v4950
        %4952 = vdwg.mxu0
        %4953 = vmatpush.bf16.msra.mxu0 %v1859
        %4954 = vmatpush.bf16.msra.mxu0 %v1857
        %4955 = vmatpush.bf16.msra.mxu0 %v1855
        %4956 = vmatpush.bf16.msra.mxu0 %v1853
        %4957 = vmatpush.bf16.msra.mxu0 %v1851
        %4958 = vmatpush.bf16.msra.mxu0 %v1849
        %4959 = vmatpush.bf16.msra.mxu0 %v1847
        %4960 = vmatpush.bf16.msra.mxu0 %v1845
        %4961 = vmatmul.bf16.gmra.mxu0 %v4730
        %v4962 = vpop.f32.mrf.mxu0
        %v4963 = vadd.f32 0.0, %v4962
        %v4964 = vpop.f32.mrf.mxu0
        %v4965 = vadd.f32 0.0, %v4964
        %4966 = vdwg.mxu0
        %4967 = vmatpush.bf16.msra.mxu0 %v1875
        %4968 = vmatpush.bf16.msra.mxu0 %v1873
        %4969 = vmatpush.bf16.msra.mxu0 %v1871
        %4970 = vmatpush.bf16.msra.mxu0 %v1869
        %4971 = vmatpush.bf16.msra.mxu0 %v1867
        %4972 = vmatpush.bf16.msra.mxu0 %v1865
        %4973 = vmatpush.bf16.msra.mxu0 %v1863
        %4974 = vmatpush.bf16.msra.mxu0 %v1861
        %4975 = vmatmul.bf16.gmra.mxu0 %v4731
        %v4976 = vpop.f32.mrf.mxu0
        %v4977 = vadd.f32 %v4963, %v4976
        %v4978 = vpop.f32.mrf.mxu0
        %v4979 = vadd.f32 %v4965, %v4978
        %4980 = vdwg.mxu0
        %s4981 = scalar_lea.vmem [#allocation18], 16
        %v4982 = vld [vmem:[%s4981] sm:$0xf]
        %v4983 = vld [vmem:[%s4981 + $0x4] sm:$0xf]
        %v4984 = vpack.c.bf16 %v4951, %v4949
        %v4985 = vpack.c.bf16 %v4979, %v4977
        %v4988 = vunpack.c.l.b16 %v4982
        %v4989 = vunpack.c.l.b16 %v4983
        %v4990 = vpack.c.b16 %v4989, %v4988
        %v4992 = vsel %vm3935, %v4990, 0
        %4994 = vmatpush.bf16.msra.mxu0 0
        %4995 = vmatpush.bf16.msra.mxu0 0
        %4996 = vmatpush.bf16.msra.mxu0 0
        %4997 = vmatpush.bf16.msra.mxu0 0
        %4998 = vmatpush.bf16.msra.mxu0 0
        %4999 = vmatpush.bf16.msra.mxu0 0
        %5000 = vmatpush.bf16.msra.mxu0 0
        %5001 = vmatpush.bf16.msra.mxu0 %v4984
        %5002 = vmatmul.bf16.gmra.mxu0 %v4992
        %v5003 = vpop.f32.mrf.mxu0
        %v5004 = vadd.f32 0.0, %v5003
        %v5005 = vpop.f32.mrf.mxu0
        %v5006 = vadd.f32 0.0, %v5005
        %5007 = vdwg.mxu0
        %5008 = vmatpush.bf16.msra.mxu0 0
        %5009 = vmatpush.bf16.msra.mxu0 0
        %5010 = vmatpush.bf16.msra.mxu0 0
        %5011 = vmatpush.bf16.msra.mxu0 0
        %5012 = vmatpush.bf16.msra.mxu0 0
        %5013 = vmatpush.bf16.msra.mxu0 0
        %5014 = vmatpush.bf16.msra.mxu0 0
        %5015 = vmatpush.bf16.msra.mxu0 %v4985
        %5016 = vmatmul.bf16.gmra.mxu0 %v4992
        %v5017 = vpop.f32.mrf.mxu0
        %v5018 = vadd.f32 0.0, %v5017
        %v5019 = vpop.f32.mrf.mxu0
        %v5020 = vadd.f32 0.0, %v5019
        %5021 = vdwg.mxu0
        %v5022 = vadd.f32 %v4907, %v5004
        %v5023 = vadd.f32 %v4921, %v5018
        %v5024 = vadd.f32 %v4909, %v5006
        %v5025 = vadd.f32 %v4923, %v5020
        %5026 = vmatpush.bf16.msra.mxu0 %v2154
        %5027 = vmatpush.bf16.msra.mxu0 %v2152
        %5028 = vmatpush.bf16.msra.mxu0 %v2150
        %5029 = vmatpush.bf16.msra.mxu0 %v2148
        %5030 = vmatpush.bf16.msra.mxu0 %v2146
        %5031 = vmatpush.bf16.msra.mxu0 %v2144
        %5032 = vmatpush.bf16.msra.mxu0 %v2142
        %5033 = vmatpush.bf16.msra.mxu0 %v2140
        %5034 = vmatmul.bf16.gmra.mxu0 %v4730
        %v5035 = vpop.f32.mrf.mxu0
        %v5036 = vadd.f32 0.0, %v5035
        %v5037 = vpop.f32.mrf.mxu0
        %v5038 = vadd.f32 0.0, %v5037
        %5039 = vdwg.mxu0
        %5040 = vmatpush.bf16.msra.mxu0 %v2170
        %5041 = vmatpush.bf16.msra.mxu0 %v2168
        %5042 = vmatpush.bf16.msra.mxu0 %v2166
        %5043 = vmatpush.bf16.msra.mxu0 %v2164
        %5044 = vmatpush.bf16.msra.mxu0 %v2162
        %5045 = vmatpush.bf16.msra.mxu0 %v2160
        %5046 = vmatpush.bf16.msra.mxu0 %v2158
        %5047 = vmatpush.bf16.msra.mxu0 %v2156
        %5048 = vmatmul.bf16.gmra.mxu0 %v4731
        %v5049 = vpop.f32.mrf.mxu0
        %v5050 = vadd.f32 %v5036, %v5049
        %v5051 = vpop.f32.mrf.mxu0
        %v5052 = vadd.f32 %v5038, %v5051
        %5053 = vdwg.mxu0
        %5054 = vmatpush.bf16.msra.mxu0 %v2155
        %5055 = vmatpush.bf16.msra.mxu0 %v2153
        %5056 = vmatpush.bf16.msra.mxu0 %v2151
        %5057 = vmatpush.bf16.msra.mxu0 %v2149
        %5058 = vmatpush.bf16.msra.mxu0 %v2147
        %5059 = vmatpush.bf16.msra.mxu0 %v2145
        %5060 = vmatpush.bf16.msra.mxu0 %v2143
        %5061 = vmatpush.bf16.msra.mxu0 %v2141
        %5062 = vmatmul.bf16.gmra.mxu0 %v4730
        %v5063 = vpop.f32.mrf.mxu0
        %v5064 = vadd.f32 0.0, %v5063
        %v5065 = vpop.f32.mrf.mxu0
        %v5066 = vadd.f32 0.0, %v5065
        %5067 = vdwg.mxu0
        %5068 = vmatpush.bf16.msra.mxu0 %v2171
        %5069 = vmatpush.bf16.msra.mxu0 %v2169
        %5070 = vmatpush.bf16.msra.mxu0 %v2167
        %5071 = vmatpush.bf16.msra.mxu0 %v2165
        %5072 = vmatpush.bf16.msra.mxu0 %v2163
        %5073 = vmatpush.bf16.msra.mxu0 %v2161
        %5074 = vmatpush.bf16.msra.mxu0 %v2159
        %5075 = vmatpush.bf16.msra.mxu0 %v2157
        %5076 = vmatmul.bf16.gmra.mxu0 %v4731
        %v5077 = vpop.f32.mrf.mxu0
        %v5078 = vadd.f32 %v5064, %v5077
        %v5079 = vpop.f32.mrf.mxu0
        %v5080 = vadd.f32 %v5066, %v5079
        %5081 = vdwg.mxu0
        %s5082 = scalar_lea.vmem [#allocation18], 24
        %v5083 = vld [vmem:[%s5082] sm:$0xf]
        %v5084 = vld [vmem:[%s5082 + $0x4] sm:$0xf]
        %v5085 = vpack.c.bf16 %v5052, %v5050
        %v5086 = vpack.c.bf16 %v5080, %v5078
        %v5089 = vunpack.c.l.b16 %v5083
        %v5090 = vunpack.c.l.b16 %v5084
        %v5091 = vpack.c.b16 %v5090, %v5089
        %v5093 = vsel %vm3935, %v5091, 0
        %5095 = vmatpush.bf16.msra.mxu0 0
        %5096 = vmatpush.bf16.msra.mxu0 0
        %5097 = vmatpush.bf16.msra.mxu0 0
        %5098 = vmatpush.bf16.msra.mxu0 0
        %5099 = vmatpush.bf16.msra.mxu0 0
        %5100 = vmatpush.bf16.msra.mxu0 0
        %5101 = vmatpush.bf16.msra.mxu0 0
        %5102 = vmatpush.bf16.msra.mxu0 %v5085
        %5103 = vmatmul.bf16.gmra.mxu0 %v5093
        %v5104 = vpop.f32.mrf.mxu0
        %v5105 = vadd.f32 0.0, %v5104
        %v5106 = vpop.f32.mrf.mxu0
        %v5107 = vadd.f32 0.0, %v5106
        %5108 = vdwg.mxu0
        %5109 = vmatpush.bf16.msra.mxu0 0
        %5110 = vmatpush.bf16.msra.mxu0 0
        %5111 = vmatpush.bf16.msra.mxu0 0
        %5112 = vmatpush.bf16.msra.mxu0 0
        %5113 = vmatpush.bf16.msra.mxu0 0
        %5114 = vmatpush.bf16.msra.mxu0 0
        %5115 = vmatpush.bf16.msra.mxu0 0
        %5116 = vmatpush.bf16.msra.mxu0 %v5086
        %5117 = vmatmul.bf16.gmra.mxu0 %v5093
        %v5118 = vpop.f32.mrf.mxu0
        %v5119 = vadd.f32 0.0, %v5118
        %v5120 = vpop.f32.mrf.mxu0
        %v5121 = vadd.f32 0.0, %v5120
        %5122 = vdwg.mxu0
        %v5123 = vadd.f32 %v5022, %v5105
        %v5124 = vadd.f32 %v5023, %v5119
        %v5125 = vadd.f32 %v5024, %v5107
        %v5126 = vadd.f32 %v5025, %v5121
        %5127 = vmatpush.bf16.msra.mxu0 %v2450
        %5128 = vmatpush.bf16.msra.mxu0 %v2448
        %5129 = vmatpush.bf16.msra.mxu0 %v2446
        %5130 = vmatpush.bf16.msra.mxu0 %v2444
        %5131 = vmatpush.bf16.msra.mxu0 %v2442
        %5132 = vmatpush.bf16.msra.mxu0 %v2440
        %5133 = vmatpush.bf16.msra.mxu0 %v2438
        %5134 = vmatpush.bf16.msra.mxu0 %v2436
        %5135 = vmatmul.bf16.gmra.mxu0 %v4730
        %v5136 = vpop.f32.mrf.mxu0
        %v5137 = vadd.f32 0.0, %v5136
        %v5138 = vpop.f32.mrf.mxu0
        %v5139 = vadd.f32 0.0, %v5138
        %5140 = vdwg.mxu0
        %5141 = vmatpush.bf16.msra.mxu0 %v2466
        %5142 = vmatpush.bf16.msra.mxu0 %v2464
        %5143 = vmatpush.bf16.msra.mxu0 %v2462
        %5144 = vmatpush.bf16.msra.mxu0 %v2460
        %5145 = vmatpush.bf16.msra.mxu0 %v2458
        %5146 = vmatpush.bf16.msra.mxu0 %v2456
        %5147 = vmatpush.bf16.msra.mxu0 %v2454
        %5148 = vmatpush.bf16.msra.mxu0 %v2452
        %5149 = vmatmul.bf16.gmra.mxu0 %v4731
        %v5150 = vpop.f32.mrf.mxu0
        %v5151 = vadd.f32 %v5137, %v5150
        %v5152 = vpop.f32.mrf.mxu0
        %v5153 = vadd.f32 %v5139, %v5152
        %5154 = vdwg.mxu0
        %5155 = vmatpush.bf16.msra.mxu0 %v2451
        %5156 = vmatpush.bf16.msra.mxu0 %v2449
        %5157 = vmatpush.bf16.msra.mxu0 %v2447
        %5158 = vmatpush.bf16.msra.mxu0 %v2445
        %5159 = vmatpush.bf16.msra.mxu0 %v2443
        %5160 = vmatpush.bf16.msra.mxu0 %v2441
        %5161 = vmatpush.bf16.msra.mxu0 %v2439
        %5162 = vmatpush.bf16.msra.mxu0 %v2437
        %5163 = vmatmul.bf16.gmra.mxu0 %v4730
        %v5164 = vpop.f32.mrf.mxu0
        %v5165 = vadd.f32 0.0, %v5164
        %v5166 = vpop.f32.mrf.mxu0
        %v5167 = vadd.f32 0.0, %v5166
        %5168 = vdwg.mxu0
        %5169 = vmatpush.bf16.msra.mxu0 %v2467
        %5170 = vmatpush.bf16.msra.mxu0 %v2465
        %5171 = vmatpush.bf16.msra.mxu0 %v2463
        %5172 = vmatpush.bf16.msra.mxu0 %v2461
        %5173 = vmatpush.bf16.msra.mxu0 %v2459
        %5174 = vmatpush.bf16.msra.mxu0 %v2457
        %5175 = vmatpush.bf16.msra.mxu0 %v2455
        %5176 = vmatpush.bf16.msra.mxu0 %v2453
        %5177 = vmatmul.bf16.gmra.mxu0 %v4731
        %v5178 = vpop.f32.mrf.mxu0
        %v5179 = vadd.f32 %v5165, %v5178
        %v5180 = vpop.f32.mrf.mxu0
        %v5181 = vadd.f32 %v5167, %v5180
        %5182 = vdwg.mxu0
        %s5183 = scalar_lea.vmem [#allocation18], 32
        %v5184 = vld [vmem:[%s5183] sm:$0xf]
        %v5185 = vld [vmem:[%s5183 + $0x4] sm:$0xf]
        %v5186 = vpack.c.bf16 %v5153, %v5151
        %v5187 = vpack.c.bf16 %v5181, %v5179
        %v5190 = vunpack.c.l.b16 %v5184
        %v5191 = vunpack.c.l.b16 %v5185
        %v5192 = vpack.c.b16 %v5191, %v5190
        %v5194 = vsel %vm3935, %v5192, 0
        %5196 = vmatpush.bf16.msra.mxu0 0
        %5197 = vmatpush.bf16.msra.mxu0 0
        %5198 = vmatpush.bf16.msra.mxu0 0
        %5199 = vmatpush.bf16.msra.mxu0 0
        %5200 = vmatpush.bf16.msra.mxu0 0
        %5201 = vmatpush.bf16.msra.mxu0 0
        %5202 = vmatpush.bf16.msra.mxu0 0
        %5203 = vmatpush.bf16.msra.mxu0 %v5186
        %5204 = vmatmul.bf16.gmra.mxu0 %v5194
        %v5205 = vpop.f32.mrf.mxu0
        %v5206 = vadd.f32 0.0, %v5205
        %v5207 = vpop.f32.mrf.mxu0
        %v5208 = vadd.f32 0.0, %v5207
        %5209 = vdwg.mxu0
        %5210 = vmatpush.bf16.msra.mxu0 0
        %5211 = vmatpush.bf16.msra.mxu0 0
        %5212 = vmatpush.bf16.msra.mxu0 0
        %5213 = vmatpush.bf16.msra.mxu0 0
        %5214 = vmatpush.bf16.msra.mxu0 0
        %5215 = vmatpush.bf16.msra.mxu0 0
        %5216 = vmatpush.bf16.msra.mxu0 0
        %5217 = vmatpush.bf16.msra.mxu0 %v5187
        %5218 = vmatmul.bf16.gmra.mxu0 %v5194
        %v5219 = vpop.f32.mrf.mxu0
        %v5220 = vadd.f32 0.0, %v5219
        %v5221 = vpop.f32.mrf.mxu0
        %v5222 = vadd.f32 0.0, %v5221
        %5223 = vdwg.mxu0
        %v5224 = vadd.f32 %v5123, %v5206
        %v5225 = vadd.f32 %v5124, %v5220
        %v5226 = vadd.f32 %v5125, %v5208
        %v5227 = vadd.f32 %v5126, %v5222
        %5228 = vmatpush.bf16.msra.mxu0 %v2746
        %5229 = vmatpush.bf16.msra.mxu0 %v2744
        %5230 = vmatpush.bf16.msra.mxu0 %v2742
        %5231 = vmatpush.bf16.msra.mxu0 %v2740
        %5232 = vmatpush.bf16.msra.mxu0 %v2738
        %5233 = vmatpush.bf16.msra.mxu0 %v2736
        %5234 = vmatpush.bf16.msra.mxu0 %v2734
        %5235 = vmatpush.bf16.msra.mxu0 %v2732
        %5236 = vmatmul.bf16.gmra.mxu0 %v4730
        %v5237 = vpop.f32.mrf.mxu0
        %v5238 = vadd.f32 0.0, %v5237
        %v5239 = vpop.f32.mrf.mxu0
        %v5240 = vadd.f32 0.0, %v5239
        %5241 = vdwg.mxu0
        %5242 = vmatpush.bf16.msra.mxu0 %v2762
        %5243 = vmatpush.bf16.msra.mxu0 %v2760
        %5244 = vmatpush.bf16.msra.mxu0 %v2758
        %5245 = vmatpush.bf16.msra.mxu0 %v2756
        %5246 = vmatpush.bf16.msra.mxu0 %v2754
        %5247 = vmatpush.bf16.msra.mxu0 %v2752
        %5248 = vmatpush.bf16.msra.mxu0 %v2750
        %5249 = vmatpush.bf16.msra.mxu0 %v2748
        %5250 = vmatmul.bf16.gmra.mxu0 %v4731
        %v5251 = vpop.f32.mrf.mxu0
        %v5252 = vadd.f32 %v5238, %v5251
        %v5253 = vpop.f32.mrf.mxu0
        %v5254 = vadd.f32 %v5240, %v5253
        %5255 = vdwg.mxu0
        %5256 = vmatpush.bf16.msra.mxu0 %v2747
        %5257 = vmatpush.bf16.msra.mxu0 %v2745
        %5258 = vmatpush.bf16.msra.mxu0 %v2743
        %5259 = vmatpush.bf16.msra.mxu0 %v2741
        %5260 = vmatpush.bf16.msra.mxu0 %v2739
        %5261 = vmatpush.bf16.msra.mxu0 %v2737
        %5262 = vmatpush.bf16.msra.mxu0 %v2735
        %5263 = vmatpush.bf16.msra.mxu0 %v2733
        %5264 = vmatmul.bf16.gmra.mxu0 %v4730
        %v5265 = vpop.f32.mrf.mxu0
        %v5266 = vadd.f32 0.0, %v5265
        %v5267 = vpop.f32.mrf.mxu0
        %v5268 = vadd.f32 0.0, %v5267
        %5269 = vdwg.mxu0
        %5270 = vmatpush.bf16.msra.mxu0 %v2763
        %5271 = vmatpush.bf16.msra.mxu0 %v2761
        %5272 = vmatpush.bf16.msra.mxu0 %v2759
        %5273 = vmatpush.bf16.msra.mxu0 %v2757
        %5274 = vmatpush.bf16.msra.mxu0 %v2755
        %5275 = vmatpush.bf16.msra.mxu0 %v2753
        %5276 = vmatpush.bf16.msra.mxu0 %v2751
        %5277 = vmatpush.bf16.msra.mxu0 %v2749
        %5278 = vmatmul.bf16.gmra.mxu0 %v4731
        %v5279 = vpop.f32.mrf.mxu0
        %v5280 = vadd.f32 %v5266, %v5279
        %v5281 = vpop.f32.mrf.mxu0
        %v5282 = vadd.f32 %v5268, %v5281
        %5283 = vdwg.mxu0
        %s5284 = scalar_lea.vmem [#allocation18], 40
        %v5285 = vld [vmem:[%s5284] sm:$0xf]
        %v5286 = vld [vmem:[%s5284 + $0x4] sm:$0xf]
        %v5287 = vpack.c.bf16 %v5254, %v5252
        %v5288 = vpack.c.bf16 %v5282, %v5280
        %v5291 = vunpack.c.l.b16 %v5285
        %v5292 = vunpack.c.l.b16 %v5286
        %v5293 = vpack.c.b16 %v5292, %v5291
        %v5295 = vsel %vm3935, %v5293, 0
        %5297 = vmatpush.bf16.msra.mxu0 0
        %5298 = vmatpush.bf16.msra.mxu0 0
        %5299 = vmatpush.bf16.msra.mxu0 0
        %5300 = vmatpush.bf16.msra.mxu0 0
        %5301 = vmatpush.bf16.msra.mxu0 0
        %5302 = vmatpush.bf16.msra.mxu0 0
        %5303 = vmatpush.bf16.msra.mxu0 0
        %5304 = vmatpush.bf16.msra.mxu0 %v5287
        %5305 = vmatmul.bf16.gmra.mxu0 %v5295
        %v5306 = vpop.f32.mrf.mxu0
        %v5307 = vadd.f32 0.0, %v5306
        %v5308 = vpop.f32.mrf.mxu0
        %v5309 = vadd.f32 0.0, %v5308
        %5310 = vdwg.mxu0
        %5311 = vmatpush.bf16.msra.mxu0 0
        %5312 = vmatpush.bf16.msra.mxu0 0
        %5313 = vmatpush.bf16.msra.mxu0 0
        %5314 = vmatpush.bf16.msra.mxu0 0
        %5315 = vmatpush.bf16.msra.mxu0 0
        %5316 = vmatpush.bf16.msra.mxu0 0
        %5317 = vmatpush.bf16.msra.mxu0 0
        %5318 = vmatpush.bf16.msra.mxu0 %v5288
        %5319 = vmatmul.bf16.gmra.mxu0 %v5295
        %v5320 = vpop.f32.mrf.mxu0
        %v5321 = vadd.f32 0.0, %v5320
        %v5322 = vpop.f32.mrf.mxu0
        %v5323 = vadd.f32 0.0, %v5322
        %5324 = vdwg.mxu0
        %v5325 = vadd.f32 %v5224, %v5307
        %v5326 = vadd.f32 %v5225, %v5321
        %v5327 = vadd.f32 %v5226, %v5309
        %v5328 = vadd.f32 %v5227, %v5323
        %5329 = vmatpush.bf16.msra.mxu0 %v3042
        %5330 = vmatpush.bf16.msra.mxu0 %v3040
        %5331 = vmatpush.bf16.msra.mxu0 %v3038
        %5332 = vmatpush.bf16.msra.mxu0 %v3036
        %5333 = vmatpush.bf16.msra.mxu0 %v3034
        %5334 = vmatpush.bf16.msra.mxu0 %v3032
        %5335 = vmatpush.bf16.msra.mxu0 %v3030
        %5336 = vmatpush.bf16.msra.mxu0 %v3028
        %5337 = vmatmul.bf16.gmra.mxu0 %v4730
        %v5338 = vpop.f32.mrf.mxu0
        %v5339 = vadd.f32 0.0, %v5338
        %v5340 = vpop.f32.mrf.mxu0
        %v5341 = vadd.f32 0.0, %v5340
        %5342 = vdwg.mxu0
        %5343 = vmatpush.bf16.msra.mxu0 %v3058
        %5344 = vmatpush.bf16.msra.mxu0 %v3056
        %5345 = vmatpush.bf16.msra.mxu0 %v3054
        %5346 = vmatpush.bf16.msra.mxu0 %v3052
        %5347 = vmatpush.bf16.msra.mxu0 %v3050
        %5348 = vmatpush.bf16.msra.mxu0 %v3048
        %5349 = vmatpush.bf16.msra.mxu0 %v3046
        %5350 = vmatpush.bf16.msra.mxu0 %v3044
        %5351 = vmatmul.bf16.gmra.mxu0 %v4731
        %v5352 = vpop.f32.mrf.mxu0
        %v5353 = vadd.f32 %v5339, %v5352
        %v5354 = vpop.f32.mrf.mxu0
        %v5355 = vadd.f32 %v5341, %v5354
        %5356 = vdwg.mxu0
        %5357 = vmatpush.bf16.msra.mxu0 %v3043
        %5358 = vmatpush.bf16.msra.mxu0 %v3041
        %5359 = vmatpush.bf16.msra.mxu0 %v3039
        %5360 = vmatpush.bf16.msra.mxu0 %v3037
        %5361 = vmatpush.bf16.msra.mxu0 %v3035
        %5362 = vmatpush.bf16.msra.mxu0 %v3033
        %5363 = vmatpush.bf16.msra.mxu0 %v3031
        %5364 = vmatpush.bf16.msra.mxu0 %v3029
        %5365 = vmatmul.bf16.gmra.mxu0 %v4730
        %v5366 = vpop.f32.mrf.mxu0
        %v5367 = vadd.f32 0.0, %v5366
        %v5368 = vpop.f32.mrf.mxu0
        %v5369 = vadd.f32 0.0, %v5368
        %5370 = vdwg.mxu0
        %5371 = vmatpush.bf16.msra.mxu0 %v3059
        %5372 = vmatpush.bf16.msra.mxu0 %v3057
        %5373 = vmatpush.bf16.msra.mxu0 %v3055
        %5374 = vmatpush.bf16.msra.mxu0 %v3053
        %5375 = vmatpush.bf16.msra.mxu0 %v3051
        %5376 = vmatpush.bf16.msra.mxu0 %v3049
        %5377 = vmatpush.bf16.msra.mxu0 %v3047
        %5378 = vmatpush.bf16.msra.mxu0 %v3045
        %5379 = vmatmul.bf16.gmra.mxu0 %v4731
        %v5380 = vpop.f32.mrf.mxu0
        %v5381 = vadd.f32 %v5367, %v5380
        %v5382 = vpop.f32.mrf.mxu0
        %v5383 = vadd.f32 %v5369, %v5382
        %5384 = vdwg.mxu0
        %s5385 = scalar_lea.vmem [#allocation18], 48
        %v5386 = vld [vmem:[%s5385] sm:$0xf]
        %v5387 = vld [vmem:[%s5385 + $0x4] sm:$0xf]
        %v5388 = vpack.c.bf16 %v5355, %v5353
        %v5389 = vpack.c.bf16 %v5383, %v5381
        %v5392 = vunpack.c.l.b16 %v5386
        %v5393 = vunpack.c.l.b16 %v5387
        %v5394 = vpack.c.b16 %v5393, %v5392
        %v5396 = vsel %vm3935, %v5394, 0
        %5398 = vmatpush.bf16.msra.mxu0 0
        %5399 = vmatpush.bf16.msra.mxu0 0
        %5400 = vmatpush.bf16.msra.mxu0 0
        %5401 = vmatpush.bf16.msra.mxu0 0
        %5402 = vmatpush.bf16.msra.mxu0 0
        %5403 = vmatpush.bf16.msra.mxu0 0
        %5404 = vmatpush.bf16.msra.mxu0 0
        %5405 = vmatpush.bf16.msra.mxu0 %v5388
        %5406 = vmatmul.bf16.gmra.mxu0 %v5396
        %v5407 = vpop.f32.mrf.mxu0
        %v5408 = vadd.f32 0.0, %v5407
        %v5409 = vpop.f32.mrf.mxu0
        %v5410 = vadd.f32 0.0, %v5409
        %5411 = vdwg.mxu0
        %5412 = vmatpush.bf16.msra.mxu0 0
        %5413 = vmatpush.bf16.msra.mxu0 0
        %5414 = vmatpush.bf16.msra.mxu0 0
        %5415 = vmatpush.bf16.msra.mxu0 0
        %5416 = vmatpush.bf16.msra.mxu0 0
        %5417 = vmatpush.bf16.msra.mxu0 0
        %5418 = vmatpush.bf16.msra.mxu0 0
        %5419 = vmatpush.bf16.msra.mxu0 %v5389
        %5420 = vmatmul.bf16.gmra.mxu0 %v5396
        %v5421 = vpop.f32.mrf.mxu0
        %v5422 = vadd.f32 0.0, %v5421
        %v5423 = vpop.f32.mrf.mxu0
        %v5424 = vadd.f32 0.0, %v5423
        %5425 = vdwg.mxu0
        %v5426 = vadd.f32 %v5325, %v5408
        %v5427 = vadd.f32 %v5326, %v5422
        %v5428 = vadd.f32 %v5327, %v5410
        %v5429 = vadd.f32 %v5328, %v5424
        %5430 = vmatpush.bf16.msra.mxu0 %v3338
        %5431 = vmatpush.bf16.msra.mxu0 %v3336
        %5432 = vmatpush.bf16.msra.mxu0 %v3334
        %5433 = vmatpush.bf16.msra.mxu0 %v3332
        %5434 = vmatpush.bf16.msra.mxu0 %v3330
        %5435 = vmatpush.bf16.msra.mxu0 %v3328
        %5436 = vmatpush.bf16.msra.mxu0 %v3326
        %5437 = vmatpush.bf16.msra.mxu0 %v3324
        %5438 = vmatmul.bf16.gmra.mxu0 %v4730
        %v5439 = vpop.f32.mrf.mxu0
        %v5440 = vadd.f32 0.0, %v5439
        %v5441 = vpop.f32.mrf.mxu0
        %v5442 = vadd.f32 0.0, %v5441
        %5443 = vdwg.mxu0
        %5444 = vmatpush.bf16.msra.mxu0 %v3354
        %5445 = vmatpush.bf16.msra.mxu0 %v3352
        %5446 = vmatpush.bf16.msra.mxu0 %v3350
        %5447 = vmatpush.bf16.msra.mxu0 %v3348
        %5448 = vmatpush.bf16.msra.mxu0 %v3346
        %5449 = vmatpush.bf16.msra.mxu0 %v3344
        %5450 = vmatpush.bf16.msra.mxu0 %v3342
        %5451 = vmatpush.bf16.msra.mxu0 %v3340
        %5452 = vmatmul.bf16.gmra.mxu0 %v4731
        %v5453 = vpop.f32.mrf.mxu0
        %v5454 = vadd.f32 %v5440, %v5453
        %v5455 = vpop.f32.mrf.mxu0
        %v5456 = vadd.f32 %v5442, %v5455
        %5457 = vdwg.mxu0
        %5458 = vmatpush.bf16.msra.mxu0 %v3339
        %5459 = vmatpush.bf16.msra.mxu0 %v3337
        %5460 = vmatpush.bf16.msra.mxu0 %v3335
        %5461 = vmatpush.bf16.msra.mxu0 %v3333
        %5462 = vmatpush.bf16.msra.mxu0 %v3331
        %5463 = vmatpush.bf16.msra.mxu0 %v3329
        %5464 = vmatpush.bf16.msra.mxu0 %v3327
        %5465 = vmatpush.bf16.msra.mxu0 %v3325
        %5466 = vmatmul.bf16.gmra.mxu0 %v4730
        %v5467 = vpop.f32.mrf.mxu0
        %v5468 = vadd.f32 0.0, %v5467
        %v5469 = vpop.f32.mrf.mxu0
        %v5470 = vadd.f32 0.0, %v5469
        %5471 = vdwg.mxu0
        %5472 = vmatpush.bf16.msra.mxu0 %v3355
        %5473 = vmatpush.bf16.msra.mxu0 %v3353
        %5474 = vmatpush.bf16.msra.mxu0 %v3351
        %5475 = vmatpush.bf16.msra.mxu0 %v3349
        %5476 = vmatpush.bf16.msra.mxu0 %v3347
        %5477 = vmatpush.bf16.msra.mxu0 %v3345
        %5478 = vmatpush.bf16.msra.mxu0 %v3343
        %5479 = vmatpush.bf16.msra.mxu0 %v3341
        %5480 = vmatmul.bf16.gmra.mxu0 %v4731
        %v5481 = vpop.f32.mrf.mxu0
        %v5482 = vadd.f32 %v5468, %v5481
        %v5483 = vpop.f32.mrf.mxu0
        %v5484 = vadd.f32 %v5470, %v5483
        %5485 = vdwg.mxu0
        %s5486 = scalar_lea.vmem [#allocation18], 56
        %v5487 = vld [vmem:[%s5486] sm:$0xf]
        %v5488 = vld [vmem:[%s5486 + $0x4] sm:$0xf]
        %v5489 = vpack.c.bf16 %v5456, %v5454
        %v5490 = vpack.c.bf16 %v5484, %v5482
        %v5493 = vunpack.c.l.b16 %v5487
        %v5494 = vunpack.c.l.b16 %v5488
        %v5495 = vpack.c.b16 %v5494, %v5493
        %v5497 = vsel %vm3935, %v5495, 0
        %5499 = vmatpush.bf16.msra.mxu0 0
        %5500 = vmatpush.bf16.msra.mxu0 0
        %5501 = vmatpush.bf16.msra.mxu0 0
        %5502 = vmatpush.bf16.msra.mxu0 0
        %5503 = vmatpush.bf16.msra.mxu0 0
        %5504 = vmatpush.bf16.msra.mxu0 0
        %5505 = vmatpush.bf16.msra.mxu0 0
        %5506 = vmatpush.bf16.msra.mxu0 %v5489
        %5507 = vmatmul.bf16.gmra.mxu0 %v5497
        %v5508 = vpop.f32.mrf.mxu0
        %v5509 = vadd.f32 0.0, %v5508
        %v5510 = vpop.f32.mrf.mxu0
        %v5511 = vadd.f32 0.0, %v5510
        %5512 = vdwg.mxu0
        %5513 = vmatpush.bf16.msra.mxu0 0
        %5514 = vmatpush.bf16.msra.mxu0 0
        %5515 = vmatpush.bf16.msra.mxu0 0
        %5516 = vmatpush.bf16.msra.mxu0 0
        %5517 = vmatpush.bf16.msra.mxu0 0
        %5518 = vmatpush.bf16.msra.mxu0 0
        %5519 = vmatpush.bf16.msra.mxu0 0
        %5520 = vmatpush.bf16.msra.mxu0 %v5490
        %5521 = vmatmul.bf16.gmra.mxu0 %v5497
        %v5522 = vpop.f32.mrf.mxu0
        %v5523 = vadd.f32 0.0, %v5522
        %v5524 = vpop.f32.mrf.mxu0
        %v5525 = vadd.f32 0.0, %v5524
        %5526 = vdwg.mxu0
        %v5527 = vadd.f32 %v5426, %v5509
        %v5528 = vadd.f32 %v5427, %v5523
        %v5529 = vadd.f32 %v5428, %v5511
        %v5530 = vadd.f32 %v5429, %v5525
        %5531 = vmatpush.bf16.msra.mxu0 %v3634
        %5532 = vmatpush.bf16.msra.mxu0 %v3632
        %5533 = vmatpush.bf16.msra.mxu0 %v3630
        %5534 = vmatpush.bf16.msra.mxu0 %v3628
        %5535 = vmatpush.bf16.msra.mxu0 %v3626
        %5536 = vmatpush.bf16.msra.mxu0 %v3624
        %5537 = vmatpush.bf16.msra.mxu0 %v3622
        %5538 = vmatpush.bf16.msra.mxu0 %v3620
        %5539 = vmatmul.bf16.gmra.mxu0 %v4730
        %v5540 = vpop.f32.mrf.mxu0
        %v5541 = vadd.f32 0.0, %v5540
        %v5542 = vpop.f32.mrf.mxu0
        %v5543 = vadd.f32 0.0, %v5542
        %5544 = vdwg.mxu0
        %5545 = vmatpush.bf16.msra.mxu0 %v3650
        %5546 = vmatpush.bf16.msra.mxu0 %v3648
        %5547 = vmatpush.bf16.msra.mxu0 %v3646
        %5548 = vmatpush.bf16.msra.mxu0 %v3644
        %5549 = vmatpush.bf16.msra.mxu0 %v3642
        %5550 = vmatpush.bf16.msra.mxu0 %v3640
        %5551 = vmatpush.bf16.msra.mxu0 %v3638
        %5552 = vmatpush.bf16.msra.mxu0 %v3636
        %5553 = vmatmul.bf16.gmra.mxu0 %v4731
        %v5554 = vpop.f32.mrf.mxu0
        %v5555 = vadd.f32 %v5541, %v5554
        %v5556 = vpop.f32.mrf.mxu0
        %v5557 = vadd.f32 %v5543, %v5556
        %5558 = vdwg.mxu0
        %5559 = vmatpush.bf16.msra.mxu0 %v3635
        %5560 = vmatpush.bf16.msra.mxu0 %v3633
        %5561 = vmatpush.bf16.msra.mxu0 %v3631
        %5562 = vmatpush.bf16.msra.mxu0 %v3629
        %5563 = vmatpush.bf16.msra.mxu0 %v3627
        %5564 = vmatpush.bf16.msra.mxu0 %v3625
        %5565 = vmatpush.bf16.msra.mxu0 %v3623
        %5566 = vmatpush.bf16.msra.mxu0 %v3621
        %5567 = vmatmul.bf16.gmra.mxu0 %v4730
        %v5568 = vpop.f32.mrf.mxu0
        %v5569 = vadd.f32 0.0, %v5568
        %v5570 = vpop.f32.mrf.mxu0
        %v5571 = vadd.f32 0.0, %v5570
        %5572 = vdwg.mxu0
        %5573 = vmatpush.bf16.msra.mxu0 %v3651
        %5574 = vmatpush.bf16.msra.mxu0 %v3649
        %5575 = vmatpush.bf16.msra.mxu0 %v3647
        %5576 = vmatpush.bf16.msra.mxu0 %v3645
        %5577 = vmatpush.bf16.msra.mxu0 %v3643
        %5578 = vmatpush.bf16.msra.mxu0 %v3641
        %5579 = vmatpush.bf16.msra.mxu0 %v3639
        %5580 = vmatpush.bf16.msra.mxu0 %v3637
        %5581 = vmatmul.bf16.gmra.mxu0 %v4731
        %v5582 = vpop.f32.mrf.mxu0
        %v5583 = vadd.f32 %v5569, %v5582
        %v5584 = vpop.f32.mrf.mxu0
        %v5585 = vadd.f32 %v5571, %v5584
        %5586 = vdwg.mxu0
        %s5587 = scalar_lea.vmem [#allocation18], 64
        %v5588 = vld [vmem:[%s5587] sm:$0xf]
        %v5589 = vld [vmem:[%s5587 + $0x4] sm:$0xf]
        %v5590 = vpack.c.bf16 %v5557, %v5555
        %v5591 = vpack.c.bf16 %v5585, %v5583
        %v5594 = vunpack.c.l.b16 %v5588
        %v5595 = vunpack.c.l.b16 %v5589
        %v5596 = vpack.c.b16 %v5595, %v5594
        %v5598 = vsel %vm3935, %v5596, 0
        %5600 = vmatpush.bf16.msra.mxu0 0
        %5601 = vmatpush.bf16.msra.mxu0 0
        %5602 = vmatpush.bf16.msra.mxu0 0
        %5603 = vmatpush.bf16.msra.mxu0 0
        %5604 = vmatpush.bf16.msra.mxu0 0
        %5605 = vmatpush.bf16.msra.mxu0 0
        %5606 = vmatpush.bf16.msra.mxu0 0
        %5607 = vmatpush.bf16.msra.mxu0 %v5590
        %5608 = vmatmul.bf16.gmra.mxu0 %v5598
        %v5609 = vpop.f32.mrf.mxu0
        %v5610 = vadd.f32 0.0, %v5609
        %v5611 = vpop.f32.mrf.mxu0
        %v5612 = vadd.f32 0.0, %v5611
        %5613 = vdwg.mxu0
        %5614 = vmatpush.bf16.msra.mxu0 0
        %5615 = vmatpush.bf16.msra.mxu0 0
        %5616 = vmatpush.bf16.msra.mxu0 0
        %5617 = vmatpush.bf16.msra.mxu0 0
        %5618 = vmatpush.bf16.msra.mxu0 0
        %5619 = vmatpush.bf16.msra.mxu0 0
        %5620 = vmatpush.bf16.msra.mxu0 0
        %5621 = vmatpush.bf16.msra.mxu0 %v5591
        %5622 = vmatmul.bf16.gmra.mxu0 %v5598
        %v5623 = vpop.f32.mrf.mxu0
        %v5624 = vadd.f32 0.0, %v5623
        %v5625 = vpop.f32.mrf.mxu0
        %v5626 = vadd.f32 0.0, %v5625
        %5627 = vdwg.mxu0
        %v5628 = vadd.f32 %v5527, %v5610
        %v5629 = vadd.f32 %v5528, %v5624
        %v5630 = vadd.f32 %v5529, %v5612
        %v5631 = vadd.f32 %v5530, %v5626
        %v5632 = vld [vmem:[#allocation16] sm:$0xff]
        %v5633 = vld [vmem:[#allocation16 + $0x8] sm:$0xff]
        %5635 = vset.pattern.permute.xlu0 0
        %5636 = vperm.xlu0 %5635, %v5632
        %v5637 = vpop.permute.xlu0 %5636
        %5640 = vset.pattern.permute.xlu0 0
        %5641 = vperm.xlu0 %5640, %v5633
        %v5642 = vpop.permute.xlu0 %5641
        %v5644 = vadd.f32 %v5628, %v5637
        %v5645 = vadd.f32 %v5629, %v5637
        %v5646 = vadd.f32 %v5630, %v5642
        %v5647 = vadd.f32 %v5631, %v5642
        %v5648 = vadd.f32 %v5644, %v3803
        %v5649 = vadd.f32 %v5645, %v3804
        %v5650 = vadd.f32 %v5646, %v3805
        %v5651 = vadd.f32 %v5647, %v3806
        %v5652 = vmax.f32 %v5648, 0.0
        %v5653 = vmax.f32 %v5649, 0.0
        %v5654 = vmax.f32 %v5650, 0.0
        %v5655 = vmax.f32 %v5651, 0.0
        %v5656 = vpack.c.bf16 %v5654, %v5652
        %v5657 = vpack.c.bf16 %v5655, %v5653
        %v5658 = vld [vmem:[#allocation4] sm:$0xf]
        %v5659 = vld [vmem:[#allocation4 + $0x4] sm:$0xf]
        %v5660 = vld [vmem:[#allocation4 + $0x8] sm:$0xf]
        %v5661 = vld [vmem:[#allocation4 + $0xc] sm:$0xf]
        %v5662 = vld [vmem:[#allocation4 + $0x10] sm:$0xf]
        %v5663 = vld [vmem:[#allocation4 + $0x14] sm:$0xf]
        %v5664 = vld [vmem:[#allocation4 + $0x18] sm:$0xf]
        %v5665 = vld [vmem:[#allocation4 + $0x1c] sm:$0xf]
        %v5666 = vld [vmem:[#allocation4 + $0x20] sm:$0xf]
        %v5667 = vld [vmem:[#allocation4 + $0x24] sm:$0xf]
        %v5668 = vld [vmem:[#allocation4 + $0x28] sm:$0xf]
        %v5669 = vld [vmem:[#allocation4 + $0x2c] sm:$0xf]
        %v5670 = vld [vmem:[#allocation4 + $0x30] sm:$0xf]
        %v5671 = vld [vmem:[#allocation4 + $0x34] sm:$0xf]
        %v5672 = vld [vmem:[#allocation4 + $0x38] sm:$0xf]
        %v5673 = vld [vmem:[#allocation4 + $0x3c] sm:$0xf]
        %v5674 = vld [vmem:[#allocation4 + $0x40] sm:$0xf]
        %v5675 = vld [vmem:[#allocation4 + $0x44] sm:$0xf]
        %v5676 = vld [vmem:[#allocation4 + $0x48] sm:$0xf]
        %v5677 = vld [vmem:[#allocation4 + $0x4c] sm:$0xf]
        %v5678 = vld [vmem:[#allocation4 + $0x50] sm:$0xf]
        %v5679 = vld [vmem:[#allocation4 + $0x54] sm:$0xf]
        %v5680 = vld [vmem:[#allocation4 + $0x58] sm:$0xf]
        %v5681 = vld [vmem:[#allocation4 + $0x5c] sm:$0xf]
        %v5682 = vld [vmem:[#allocation4 + $0x60] sm:$0xf]
        %v5683 = vld [vmem:[#allocation4 + $0x64] sm:$0xf]
        %v5684 = vld [vmem:[#allocation4 + $0x68] sm:$0xf]
        %v5685 = vld [vmem:[#allocation4 + $0x6c] sm:$0xf]
        %v5686 = vld [vmem:[#allocation4 + $0x70] sm:$0xf]
        %v5687 = vld [vmem:[#allocation4 + $0x74] sm:$0xf]
        %v5688 = vld [vmem:[#allocation4 + $0x78] sm:$0xf]
        %v5689 = vld [vmem:[#allocation4 + $0x7c] sm:$0xf]
        %v5722 = vunpack.c.l.b16 %v5658
        %v5723 = vunpack.c.l.b16 %v5659
        %v5724 = vunpack.c.l.b16 %v5660
        %v5725 = vunpack.c.l.b16 %v5661
        %v5726 = vunpack.c.l.b16 %v5662
        %v5727 = vunpack.c.l.b16 %v5663
        %v5728 = vunpack.c.l.b16 %v5664
        %v5729 = vunpack.c.l.b16 %v5665
        %v5730 = vunpack.c.l.b16 %v5666
        %v5731 = vunpack.c.l.b16 %v5667
        %v5732 = vunpack.c.l.b16 %v5668
        %v5733 = vunpack.c.l.b16 %v5669
        %v5734 = vunpack.c.l.b16 %v5670
        %v5735 = vunpack.c.l.b16 %v5671
        %v5736 = vunpack.c.l.b16 %v5672
        %v5737 = vunpack.c.l.b16 %v5673
        %v5738 = vunpack.c.l.b16 %v5674
        %v5739 = vunpack.c.l.b16 %v5675
        %v5740 = vunpack.c.l.b16 %v5676
        %v5741 = vunpack.c.l.b16 %v5677
        %v5742 = vunpack.c.l.b16 %v5678
        %v5743 = vunpack.c.l.b16 %v5679
        %v5744 = vunpack.c.l.b16 %v5680
        %v5745 = vunpack.c.l.b16 %v5681
        %v5746 = vunpack.c.l.b16 %v5682
        %v5747 = vunpack.c.l.b16 %v5683
        %v5748 = vunpack.c.l.b16 %v5684
        %v5749 = vunpack.c.l.b16 %v5685
        %v5750 = vunpack.c.l.b16 %v5686
        %v5751 = vunpack.c.l.b16 %v5687
        %v5752 = vunpack.c.l.b16 %v5688
        %v5753 = vunpack.c.l.b16 %v5689
        %v5754 = vpack.c.b16 %v5723, %v5722
        %v5755 = vpack.c.b16 %v5725, %v5724
        %v5756 = vpack.c.b16 %v5727, %v5726
        %v5757 = vpack.c.b16 %v5729, %v5728
        %v5758 = vpack.c.b16 %v5731, %v5730
        %v5759 = vpack.c.b16 %v5733, %v5732
        %v5760 = vpack.c.b16 %v5735, %v5734
        %v5761 = vpack.c.b16 %v5737, %v5736
        %v5762 = vpack.c.b16 %v5739, %v5738
        %v5763 = vpack.c.b16 %v5741, %v5740
        %v5764 = vpack.c.b16 %v5743, %v5742
        %v5765 = vpack.c.b16 %v5745, %v5744
        %v5766 = vpack.c.b16 %v5747, %v5746
        %v5767 = vpack.c.b16 %v5749, %v5748
        %v5768 = vpack.c.b16 %v5751, %v5750
        %v5769 = vpack.c.b16 %v5753, %v5752
        %5786 = vmatpush.bf16.msra.mxu0 %v5761
        %5787 = vmatpush.bf16.msra.mxu0 %v5760
        %5788 = vmatpush.bf16.msra.mxu0 %v5759
        %5789 = vmatpush.bf16.msra.mxu0 %v5758
        %5790 = vmatpush.bf16.msra.mxu0 %v5757
        %5791 = vmatpush.bf16.msra.mxu0 %v5756
        %5792 = vmatpush.bf16.msra.mxu0 %v5755
        %5793 = vmatpush.bf16.msra.mxu0 %v5754
        %5794 = vmatmul.bf16.gmra.mxu0 %v5656
        %v5795 = vpop.f32.mrf.mxu0
        %v5796 = vadd.f32 0.0, %v5795
        %v5797 = vpop.f32.mrf.mxu0
        %v5798 = vadd.f32 0.0, %v5797
        %5799 = vdwg.mxu0
        %5800 = vmatpush.bf16.msra.mxu0 %v5769
        %5801 = vmatpush.bf16.msra.mxu0 %v5768
        %5802 = vmatpush.bf16.msra.mxu0 %v5767
        %5803 = vmatpush.bf16.msra.mxu0 %v5766
        %5804 = vmatpush.bf16.msra.mxu0 %v5765
        %5805 = vmatpush.bf16.msra.mxu0 %v5764
        %5806 = vmatpush.bf16.msra.mxu0 %v5763
        %5807 = vmatpush.bf16.msra.mxu0 %v5762
        %5808 = vmatmul.bf16.gmra.mxu0 %v5657
        %v5809 = vpop.f32.mrf.mxu0
        %v5810 = vadd.f32 %v5796, %v5809
        %v5811 = vpop.f32.mrf.mxu0
        %v5812 = vadd.f32 %v5798, %v5811
        %5813 = vdwg.mxu0
        %v5814 = vld [vmem:[#allocation21] sm:$0xf]
        %v5815 = vld [vmem:[#allocation21 + $0x4] sm:$0xf]
        %v5816 = vpack.c.bf16 %v5812, %v5810
        %s5817 = scalar_lea.vmem [#allocation4], 128
        %v5818 = vld [vmem:[%s5817] sm:$0xf]
        %v5819 = vld [vmem:[%s5817 + $0x4] sm:$0xf]
        %v5820 = vld [vmem:[%s5817 + $0x8] sm:$0xf]
        %v5821 = vld [vmem:[%s5817 + $0xc] sm:$0xf]
        %v5822 = vld [vmem:[%s5817 + $0x10] sm:$0xf]
        %v5823 = vld [vmem:[%s5817 + $0x14] sm:$0xf]
        %v5824 = vld [vmem:[%s5817 + $0x18] sm:$0xf]
        %v5825 = vld [vmem:[%s5817 + $0x1c] sm:$0xf]
        %v5826 = vld [vmem:[%s5817 + $0x20] sm:$0xf]
        %v5827 = vld [vmem:[%s5817 + $0x24] sm:$0xf]
        %v5828 = vld [vmem:[%s5817 + $0x28] sm:$0xf]
        %v5829 = vld [vmem:[%s5817 + $0x2c] sm:$0xf]
        %v5830 = vld [vmem:[%s5817 + $0x30] sm:$0xf]
        %v5831 = vld [vmem:[%s5817 + $0x34] sm:$0xf]
        %v5832 = vld [vmem:[%s5817 + $0x38] sm:$0xf]
        %v5833 = vld [vmem:[%s5817 + $0x3c] sm:$0xf]
        %v5834 = vld [vmem:[%s5817 + $0x40] sm:$0xf]
        %v5835 = vld [vmem:[%s5817 + $0x44] sm:$0xf]
        %v5836 = vld [vmem:[%s5817 + $0x48] sm:$0xf]
        %v5837 = vld [vmem:[%s5817 + $0x4c] sm:$0xf]
        %v5838 = vld [vmem:[%s5817 + $0x50] sm:$0xf]
        %v5839 = vld [vmem:[%s5817 + $0x54] sm:$0xf]
        %v5840 = vld [vmem:[%s5817 + $0x58] sm:$0xf]
        %v5841 = vld [vmem:[%s5817 + $0x5c] sm:$0xf]
        %v5842 = vld [vmem:[%s5817 + $0x60] sm:$0xf]
        %v5843 = vld [vmem:[%s5817 + $0x64] sm:$0xf]
        %v5844 = vld [vmem:[%s5817 + $0x68] sm:$0xf]
        %v5845 = vld [vmem:[%s5817 + $0x6c] sm:$0xf]
        %v5846 = vld [vmem:[%s5817 + $0x70] sm:$0xf]
        %v5847 = vld [vmem:[%s5817 + $0x74] sm:$0xf]
        %v5848 = vld [vmem:[%s5817 + $0x78] sm:$0xf]
        %v5849 = vld [vmem:[%s5817 + $0x7c] sm:$0xf]
        %v5882 = vunpack.c.l.b16 %v5818
        %v5883 = vunpack.c.l.b16 %v5819
        %v5884 = vunpack.c.l.b16 %v5820
        %v5885 = vunpack.c.l.b16 %v5821
        %v5886 = vunpack.c.l.b16 %v5822
        %v5887 = vunpack.c.l.b16 %v5823
        %v5888 = vunpack.c.l.b16 %v5824
        %v5889 = vunpack.c.l.b16 %v5825
        %v5890 = vunpack.c.l.b16 %v5826
        %v5891 = vunpack.c.l.b16 %v5827
        %v5892 = vunpack.c.l.b16 %v5828
        %v5893 = vunpack.c.l.b16 %v5829
        %v5894 = vunpack.c.l.b16 %v5830
        %v5895 = vunpack.c.l.b16 %v5831
        %v5896 = vunpack.c.l.b16 %v5832
        %v5897 = vunpack.c.l.b16 %v5833
        %v5898 = vunpack.c.l.b16 %v5834
        %v5899 = vunpack.c.l.b16 %v5835
        %v5900 = vunpack.c.l.b16 %v5836
        %v5901 = vunpack.c.l.b16 %v5837
        %v5902 = vunpack.c.l.b16 %v5838
        %v5903 = vunpack.c.l.b16 %v5839
        %v5904 = vunpack.c.l.b16 %v5840
        %v5905 = vunpack.c.l.b16 %v5841
        %v5906 = vunpack.c.l.b16 %v5842
        %v5907 = vunpack.c.l.b16 %v5843
        %v5908 = vunpack.c.l.b16 %v5844
        %v5909 = vunpack.c.l.b16 %v5845
        %v5910 = vunpack.c.l.b16 %v5846
        %v5911 = vunpack.c.l.b16 %v5847
        %v5912 = vunpack.c.l.b16 %v5848
        %v5913 = vunpack.c.l.b16 %v5849
        %v5914 = vpack.c.b16 %v5883, %v5882
        %v5915 = vpack.c.b16 %v5885, %v5884
        %v5916 = vpack.c.b16 %v5887, %v5886
        %v5917 = vpack.c.b16 %v5889, %v5888
        %v5918 = vpack.c.b16 %v5891, %v5890
        %v5919 = vpack.c.b16 %v5893, %v5892
        %v5920 = vpack.c.b16 %v5895, %v5894
        %v5921 = vpack.c.b16 %v5897, %v5896
        %v5922 = vpack.c.b16 %v5899, %v5898
        %v5923 = vpack.c.b16 %v5901, %v5900
        %v5924 = vpack.c.b16 %v5903, %v5902
        %v5925 = vpack.c.b16 %v5905, %v5904
        %v5926 = vpack.c.b16 %v5907, %v5906
        %v5927 = vpack.c.b16 %v5909, %v5908
        %v5928 = vpack.c.b16 %v5911, %v5910
        %v5929 = vpack.c.b16 %v5913, %v5912
        %5946 = vmatpush.bf16.msra.mxu0 %v5921
        %5947 = vmatpush.bf16.msra.mxu0 %v5920
        %5948 = vmatpush.bf16.msra.mxu0 %v5919
        %5949 = vmatpush.bf16.msra.mxu0 %v5918
        %5950 = vmatpush.bf16.msra.mxu0 %v5917
        %5951 = vmatpush.bf16.msra.mxu0 %v5916
        %5952 = vmatpush.bf16.msra.mxu0 %v5915
        %5953 = vmatpush.bf16.msra.mxu0 %v5914
        %5954 = vmatmul.bf16.gmra.mxu0 %v5656
        %v5955 = vpop.f32.mrf.mxu0
        %v5956 = vadd.f32 0.0, %v5955
        %v5957 = vpop.f32.mrf.mxu0
        %v5958 = vadd.f32 0.0, %v5957
        %5959 = vdwg.mxu0
        %5960 = vmatpush.bf16.msra.mxu0 %v5929
        %5961 = vmatpush.bf16.msra.mxu0 %v5928
        %5962 = vmatpush.bf16.msra.mxu0 %v5927
        %5963 = vmatpush.bf16.msra.mxu0 %v5926
        %5964 = vmatpush.bf16.msra.mxu0 %v5925
        %5965 = vmatpush.bf16.msra.mxu0 %v5924
        %5966 = vmatpush.bf16.msra.mxu0 %v5923
        %5967 = vmatpush.bf16.msra.mxu0 %v5922
        %5968 = vmatmul.bf16.gmra.mxu0 %v5657
        %v5969 = vpop.f32.mrf.mxu0
        %v5970 = vadd.f32 %v5956, %v5969
        %v5971 = vpop.f32.mrf.mxu0
        %v5972 = vadd.f32 %v5958, %v5971
        %5973 = vdwg.mxu0
        %s5974 = scalar_lea.vmem [#allocation21], 8
        %v5975 = vld [vmem:[%s5974] sm:$0xf]
        %v5976 = vld [vmem:[%s5974 + $0x4] sm:$0xf]
        %v5977 = vpack.c.bf16 %v5972, %v5970
        %v5980 = vunpack.c.l.b16 %v5975
        %v5981 = vunpack.c.l.b16 %v5976
        %v5982 = vpack.c.b16 %v5981, %v5980
        %v5984 = vsel %vm3935, %v5982, 0
        %5986 = vmatpush.bf16.msra.mxu0 0
        %5987 = vmatpush.bf16.msra.mxu0 0
        %5988 = vmatpush.bf16.msra.mxu0 0
        %5989 = vmatpush.bf16.msra.mxu0 0
        %5990 = vmatpush.bf16.msra.mxu0 0
        %5991 = vmatpush.bf16.msra.mxu0 0
        %5992 = vmatpush.bf16.msra.mxu0 0
        %5993 = vmatpush.bf16.msra.mxu0 %v5977
        %5994 = vmatmul.bf16.gmra.mxu0 %v5984
        %v5995 = vpop.f32.mrf.mxu0
        %v5996 = vadd.f32 0.0, %v5995
        %v5997 = vpop.f32.mrf.mxu0
        %v5998 = vadd.f32 0.0, %v5997
        %5999 = vdwg.mxu0
        %v6002 = vunpack.c.l.b16 %v5814
        %v6003 = vunpack.c.l.b16 %v5815
        %v6004 = vpack.c.b16 %v6003, %v6002
        %v6006 = vsel %vm3935, %v6004, 0
        %6008 = vmatpush.bf16.msra.mxu0 0
        %6009 = vmatpush.bf16.msra.mxu0 0
        %6010 = vmatpush.bf16.msra.mxu0 0
        %6011 = vmatpush.bf16.msra.mxu0 0
        %6012 = vmatpush.bf16.msra.mxu0 0
        %6013 = vmatpush.bf16.msra.mxu0 0
        %6014 = vmatpush.bf16.msra.mxu0 0
        %6015 = vmatpush.bf16.msra.mxu0 %v5816
        %6016 = vmatmul.bf16.gmra.mxu0 %v6006
        %v6017 = vpop.f32.mrf.mxu0
        %v6018 = vadd.f32 %v5996, %v6017
        %v6019 = vpop.f32.mrf.mxu0
        %v6020 = vadd.f32 %v5998, %v6019
        %6021 = vdwg.mxu0
        %s6022 = scalar_lea.vmem [#allocation4], 256
        %v6023 = vld [vmem:[%s6022] sm:$0xf]
        %v6024 = vld [vmem:[%s6022 + $0x4] sm:$0xf]
        %v6025 = vld [vmem:[%s6022 + $0x8] sm:$0xf]
        %v6026 = vld [vmem:[%s6022 + $0xc] sm:$0xf]
        %v6027 = vld [vmem:[%s6022 + $0x10] sm:$0xf]
        %v6028 = vld [vmem:[%s6022 + $0x14] sm:$0xf]
        %v6029 = vld [vmem:[%s6022 + $0x18] sm:$0xf]
        %v6030 = vld [vmem:[%s6022 + $0x1c] sm:$0xf]
        %v6031 = vld [vmem:[%s6022 + $0x20] sm:$0xf]
        %v6032 = vld [vmem:[%s6022 + $0x24] sm:$0xf]
        %v6033 = vld [vmem:[%s6022 + $0x28] sm:$0xf]
        %v6034 = vld [vmem:[%s6022 + $0x2c] sm:$0xf]
        %v6035 = vld [vmem:[%s6022 + $0x30] sm:$0xf]
        %v6036 = vld [vmem:[%s6022 + $0x34] sm:$0xf]
        %v6037 = vld [vmem:[%s6022 + $0x38] sm:$0xf]
        %v6038 = vld [vmem:[%s6022 + $0x3c] sm:$0xf]
        %v6039 = vld [vmem:[%s6022 + $0x40] sm:$0xf]
        %v6040 = vld [vmem:[%s6022 + $0x44] sm:$0xf]
        %v6041 = vld [vmem:[%s6022 + $0x48] sm:$0xf]
        %v6042 = vld [vmem:[%s6022 + $0x4c] sm:$0xf]
        %v6043 = vld [vmem:[%s6022 + $0x50] sm:$0xf]
        %v6044 = vld [vmem:[%s6022 + $0x54] sm:$0xf]
        %v6045 = vld [vmem:[%s6022 + $0x58] sm:$0xf]
        %v6046 = vld [vmem:[%s6022 + $0x5c] sm:$0xf]
        %v6047 = vld [vmem:[%s6022 + $0x60] sm:$0xf]
        %v6048 = vld [vmem:[%s6022 + $0x64] sm:$0xf]
        %v6049 = vld [vmem:[%s6022 + $0x68] sm:$0xf]
        %v6050 = vld [vmem:[%s6022 + $0x6c] sm:$0xf]
        %v6051 = vld [vmem:[%s6022 + $0x70] sm:$0xf]
        %v6052 = vld [vmem:[%s6022 + $0x74] sm:$0xf]
        %v6053 = vld [vmem:[%s6022 + $0x78] sm:$0xf]
        %v6054 = vld [vmem:[%s6022 + $0x7c] sm:$0xf]
        %v6087 = vunpack.c.l.b16 %v6023
        %v6088 = vunpack.c.l.b16 %v6024
        %v6089 = vunpack.c.l.b16 %v6025
        %v6090 = vunpack.c.l.b16 %v6026
        %v6091 = vunpack.c.l.b16 %v6027
        %v6092 = vunpack.c.l.b16 %v6028
        %v6093 = vunpack.c.l.b16 %v6029
        %v6094 = vunpack.c.l.b16 %v6030
        %v6095 = vunpack.c.l.b16 %v6031
        %v6096 = vunpack.c.l.b16 %v6032
        %v6097 = vunpack.c.l.b16 %v6033
        %v6098 = vunpack.c.l.b16 %v6034
        %v6099 = vunpack.c.l.b16 %v6035
        %v6100 = vunpack.c.l.b16 %v6036
        %v6101 = vunpack.c.l.b16 %v6037
        %v6102 = vunpack.c.l.b16 %v6038
        %v6103 = vunpack.c.l.b16 %v6039
        %v6104 = vunpack.c.l.b16 %v6040
        %v6105 = vunpack.c.l.b16 %v6041
        %v6106 = vunpack.c.l.b16 %v6042
        %v6107 = vunpack.c.l.b16 %v6043
        %v6108 = vunpack.c.l.b16 %v6044
        %v6109 = vunpack.c.l.b16 %v6045
        %v6110 = vunpack.c.l.b16 %v6046
        %v6111 = vunpack.c.l.b16 %v6047
        %v6112 = vunpack.c.l.b16 %v6048
        %v6113 = vunpack.c.l.b16 %v6049
        %v6114 = vunpack.c.l.b16 %v6050
        %v6115 = vunpack.c.l.b16 %v6051
        %v6116 = vunpack.c.l.b16 %v6052
        %v6117 = vunpack.c.l.b16 %v6053
        %v6118 = vunpack.c.l.b16 %v6054
        %v6119 = vpack.c.b16 %v6088, %v6087
        %v6120 = vpack.c.b16 %v6090, %v6089
        %v6121 = vpack.c.b16 %v6092, %v6091
        %v6122 = vpack.c.b16 %v6094, %v6093
        %v6123 = vpack.c.b16 %v6096, %v6095
        %v6124 = vpack.c.b16 %v6098, %v6097
        %v6125 = vpack.c.b16 %v6100, %v6099
        %v6126 = vpack.c.b16 %v6102, %v6101
        %v6127 = vpack.c.b16 %v6104, %v6103
        %v6128 = vpack.c.b16 %v6106, %v6105
        %v6129 = vpack.c.b16 %v6108, %v6107
        %v6130 = vpack.c.b16 %v6110, %v6109
        %v6131 = vpack.c.b16 %v6112, %v6111
        %v6132 = vpack.c.b16 %v6114, %v6113
        %v6133 = vpack.c.b16 %v6116, %v6115
        %v6134 = vpack.c.b16 %v6118, %v6117
        %6151 = vmatpush.bf16.msra.mxu0 %v6126
        %6152 = vmatpush.bf16.msra.mxu0 %v6125
        %6153 = vmatpush.bf16.msra.mxu0 %v6124
        %6154 = vmatpush.bf16.msra.mxu0 %v6123
        %6155 = vmatpush.bf16.msra.mxu0 %v6122
        %6156 = vmatpush.bf16.msra.mxu0 %v6121
        %6157 = vmatpush.bf16.msra.mxu0 %v6120
        %6158 = vmatpush.bf16.msra.mxu0 %v6119
        %6159 = vmatmul.bf16.gmra.mxu0 %v5656
        %v6160 = vpop.f32.mrf.mxu0
        %v6161 = vadd.f32 0.0, %v6160
        %v6162 = vpop.f32.mrf.mxu0
        %v6163 = vadd.f32 0.0, %v6162
        %6164 = vdwg.mxu0
        %6165 = vmatpush.bf16.msra.mxu0 %v6134
        %6166 = vmatpush.bf16.msra.mxu0 %v6133
        %6167 = vmatpush.bf16.msra.mxu0 %v6132
        %6168 = vmatpush.bf16.msra.mxu0 %v6131
        %6169 = vmatpush.bf16.msra.mxu0 %v6130
        %6170 = vmatpush.bf16.msra.mxu0 %v6129
        %6171 = vmatpush.bf16.msra.mxu0 %v6128
        %6172 = vmatpush.bf16.msra.mxu0 %v6127
        %6173 = vmatmul.bf16.gmra.mxu0 %v5657
        %v6174 = vpop.f32.mrf.mxu0
        %v6175 = vadd.f32 %v6161, %v6174
        %v6176 = vpop.f32.mrf.mxu0
        %v6177 = vadd.f32 %v6163, %v6176
        %6178 = vdwg.mxu0
        %s6179 = scalar_lea.vmem [#allocation21], 16
        %v6180 = vld [vmem:[%s6179] sm:$0xf]
        %v6181 = vld [vmem:[%s6179 + $0x4] sm:$0xf]
        %v6182 = vpack.c.bf16 %v6177, %v6175
        %v6185 = vunpack.c.l.b16 %v6180
        %v6186 = vunpack.c.l.b16 %v6181
        %v6187 = vpack.c.b16 %v6186, %v6185
        %v6189 = vsel %vm3935, %v6187, 0
        %6191 = vmatpush.bf16.msra.mxu0 0
        %6192 = vmatpush.bf16.msra.mxu0 0
        %6193 = vmatpush.bf16.msra.mxu0 0
        %6194 = vmatpush.bf16.msra.mxu0 0
        %6195 = vmatpush.bf16.msra.mxu0 0
        %6196 = vmatpush.bf16.msra.mxu0 0
        %6197 = vmatpush.bf16.msra.mxu0 0
        %6198 = vmatpush.bf16.msra.mxu0 %v6182
        %6199 = vmatmul.bf16.gmra.mxu0 %v6189
        %v6200 = vpop.f32.mrf.mxu0
        %v6201 = vadd.f32 0.0, %v6200
        %v6202 = vpop.f32.mrf.mxu0
        %v6203 = vadd.f32 0.0, %v6202
        %6204 = vdwg.mxu0
        %v6205 = vadd.f32 %v6018, %v6201
        %v6206 = vadd.f32 %v6020, %v6203
        %s6207 = scalar_lea.vmem [#allocation4], 384
        %v6208 = vld [vmem:[%s6207] sm:$0xf]
        %v6209 = vld [vmem:[%s6207 + $0x4] sm:$0xf]
        %v6210 = vld [vmem:[%s6207 + $0x8] sm:$0xf]
        %v6211 = vld [vmem:[%s6207 + $0xc] sm:$0xf]
        %v6212 = vld [vmem:[%s6207 + $0x10] sm:$0xf]
        %v6213 = vld [vmem:[%s6207 + $0x14] sm:$0xf]
        %v6214 = vld [vmem:[%s6207 + $0x18] sm:$0xf]
        %v6215 = vld [vmem:[%s6207 + $0x1c] sm:$0xf]
        %v6216 = vld [vmem:[%s6207 + $0x20] sm:$0xf]
        %v6217 = vld [vmem:[%s6207 + $0x24] sm:$0xf]
        %v6218 = vld [vmem:[%s6207 + $0x28] sm:$0xf]
        %v6219 = vld [vmem:[%s6207 + $0x2c] sm:$0xf]
        %v6220 = vld [vmem:[%s6207 + $0x30] sm:$0xf]
        %v6221 = vld [vmem:[%s6207 + $0x34] sm:$0xf]
        %v6222 = vld [vmem:[%s6207 + $0x38] sm:$0xf]
        %v6223 = vld [vmem:[%s6207 + $0x3c] sm:$0xf]
        %v6224 = vld [vmem:[%s6207 + $0x40] sm:$0xf]
        %v6225 = vld [vmem:[%s6207 + $0x44] sm:$0xf]
        %v6226 = vld [vmem:[%s6207 + $0x48] sm:$0xf]
        %v6227 = vld [vmem:[%s6207 + $0x4c] sm:$0xf]
        %v6228 = vld [vmem:[%s6207 + $0x50] sm:$0xf]
        %v6229 = vld [vmem:[%s6207 + $0x54] sm:$0xf]
        %v6230 = vld [vmem:[%s6207 + $0x58] sm:$0xf]
        %v6231 = vld [vmem:[%s6207 + $0x5c] sm:$0xf]
        %v6232 = vld [vmem:[%s6207 + $0x60] sm:$0xf]
        %v6233 = vld [vmem:[%s6207 + $0x64] sm:$0xf]
        %v6234 = vld [vmem:[%s6207 + $0x68] sm:$0xf]
        %v6235 = vld [vmem:[%s6207 + $0x6c] sm:$0xf]
        %v6236 = vld [vmem:[%s6207 + $0x70] sm:$0xf]
        %v6237 = vld [vmem:[%s6207 + $0x74] sm:$0xf]
        %v6238 = vld [vmem:[%s6207 + $0x78] sm:$0xf]
        %v6239 = vld [vmem:[%s6207 + $0x7c] sm:$0xf]
        %v6272 = vunpack.c.l.b16 %v6208
        %v6273 = vunpack.c.l.b16 %v6209
        %v6274 = vunpack.c.l.b16 %v6210
        %v6275 = vunpack.c.l.b16 %v6211
        %v6276 = vunpack.c.l.b16 %v6212
        %v6277 = vunpack.c.l.b16 %v6213
        %v6278 = vunpack.c.l.b16 %v6214
        %v6279 = vunpack.c.l.b16 %v6215
        %v6280 = vunpack.c.l.b16 %v6216
        %v6281 = vunpack.c.l.b16 %v6217
        %v6282 = vunpack.c.l.b16 %v6218
        %v6283 = vunpack.c.l.b16 %v6219
        %v6284 = vunpack.c.l.b16 %v6220
        %v6285 = vunpack.c.l.b16 %v6221
        %v6286 = vunpack.c.l.b16 %v6222
        %v6287 = vunpack.c.l.b16 %v6223
        %v6288 = vunpack.c.l.b16 %v6224
        %v6289 = vunpack.c.l.b16 %v6225
        %v6290 = vunpack.c.l.b16 %v6226
        %v6291 = vunpack.c.l.b16 %v6227
        %v6292 = vunpack.c.l.b16 %v6228
        %v6293 = vunpack.c.l.b16 %v6229
        %v6294 = vunpack.c.l.b16 %v6230
        %v6295 = vunpack.c.l.b16 %v6231
        %v6296 = vunpack.c.l.b16 %v6232
        %v6297 = vunpack.c.l.b16 %v6233
        %v6298 = vunpack.c.l.b16 %v6234
        %v6299 = vunpack.c.l.b16 %v6235
        %v6300 = vunpack.c.l.b16 %v6236
        %v6301 = vunpack.c.l.b16 %v6237
        %v6302 = vunpack.c.l.b16 %v6238
        %v6303 = vunpack.c.l.b16 %v6239
        %v6304 = vpack.c.b16 %v6273, %v6272
        %v6305 = vpack.c.b16 %v6275, %v6274
        %v6306 = vpack.c.b16 %v6277, %v6276
        %v6307 = vpack.c.b16 %v6279, %v6278
        %v6308 = vpack.c.b16 %v6281, %v6280
        %v6309 = vpack.c.b16 %v6283, %v6282
        %v6310 = vpack.c.b16 %v6285, %v6284
        %v6311 = vpack.c.b16 %v6287, %v6286
        %v6312 = vpack.c.b16 %v6289, %v6288
        %v6313 = vpack.c.b16 %v6291, %v6290
        %v6314 = vpack.c.b16 %v6293, %v6292
        %v6315 = vpack.c.b16 %v6295, %v6294
        %v6316 = vpack.c.b16 %v6297, %v6296
        %v6317 = vpack.c.b16 %v6299, %v6298
        %v6318 = vpack.c.b16 %v6301, %v6300
        %v6319 = vpack.c.b16 %v6303, %v6302
        %6336 = vmatpush.bf16.msra.mxu0 %v6311
        %6337 = vmatpush.bf16.msra.mxu0 %v6310
        %6338 = vmatpush.bf16.msra.mxu0 %v6309
        %6339 = vmatpush.bf16.msra.mxu0 %v6308
        %6340 = vmatpush.bf16.msra.mxu0 %v6307
        %6341 = vmatpush.bf16.msra.mxu0 %v6306
        %6342 = vmatpush.bf16.msra.mxu0 %v6305
        %6343 = vmatpush.bf16.msra.mxu0 %v6304
        %6344 = vmatmul.bf16.gmra.mxu0 %v5656
        %v6345 = vpop.f32.mrf.mxu0
        %v6346 = vadd.f32 0.0, %v6345
        %v6347 = vpop.f32.mrf.mxu0
        %v6348 = vadd.f32 0.0, %v6347
        %6349 = vdwg.mxu0
        %6350 = vmatpush.bf16.msra.mxu0 %v6319
        %6351 = vmatpush.bf16.msra.mxu0 %v6318
        %6352 = vmatpush.bf16.msra.mxu0 %v6317
        %6353 = vmatpush.bf16.msra.mxu0 %v6316
        %6354 = vmatpush.bf16.msra.mxu0 %v6315
        %6355 = vmatpush.bf16.msra.mxu0 %v6314
        %6356 = vmatpush.bf16.msra.mxu0 %v6313
        %6357 = vmatpush.bf16.msra.mxu0 %v6312
        %6358 = vmatmul.bf16.gmra.mxu0 %v5657
        %v6359 = vpop.f32.mrf.mxu0
        %v6360 = vadd.f32 %v6346, %v6359
        %v6361 = vpop.f32.mrf.mxu0
        %v6362 = vadd.f32 %v6348, %v6361
        %6363 = vdwg.mxu0
        %s6364 = scalar_lea.vmem [#allocation21], 24
        %v6365 = vld [vmem:[%s6364] sm:$0xf]
        %v6366 = vld [vmem:[%s6364 + $0x4] sm:$0xf]
        %v6367 = vpack.c.bf16 %v6362, %v6360
        %v6370 = vunpack.c.l.b16 %v6365
        %v6371 = vunpack.c.l.b16 %v6366
        %v6372 = vpack.c.b16 %v6371, %v6370
        %v6374 = vsel %vm3935, %v6372, 0
        %6376 = vmatpush.bf16.msra.mxu0 0
        %6377 = vmatpush.bf16.msra.mxu0 0
        %6378 = vmatpush.bf16.msra.mxu0 0
        %6379 = vmatpush.bf16.msra.mxu0 0
        %6380 = vmatpush.bf16.msra.mxu0 0
        %6381 = vmatpush.bf16.msra.mxu0 0
        %6382 = vmatpush.bf16.msra.mxu0 0
        %6383 = vmatpush.bf16.msra.mxu0 %v6367
        %6384 = vmatmul.bf16.gmra.mxu0 %v6374
        %v6385 = vpop.f32.mrf.mxu0
        %v6386 = vadd.f32 0.0, %v6385
        %v6387 = vpop.f32.mrf.mxu0
        %v6388 = vadd.f32 0.0, %v6387
        %6389 = vdwg.mxu0
        %v6390 = vadd.f32 %v6205, %v6386
        %v6391 = vadd.f32 %v6206, %v6388
        %s6392 = scalar_lea.vmem [#allocation4], 512
        %v6393 = vld [vmem:[%s6392] sm:$0xf]
        %v6394 = vld [vmem:[%s6392 + $0x4] sm:$0xf]
        %v6395 = vld [vmem:[%s6392 + $0x8] sm:$0xf]
        %v6396 = vld [vmem:[%s6392 + $0xc] sm:$0xf]
        %v6397 = vld [vmem:[%s6392 + $0x10] sm:$0xf]
        %v6398 = vld [vmem:[%s6392 + $0x14] sm:$0xf]
        %v6399 = vld [vmem:[%s6392 + $0x18] sm:$0xf]
        %v6400 = vld [vmem:[%s6392 + $0x1c] sm:$0xf]
        %v6401 = vld [vmem:[%s6392 + $0x20] sm:$0xf]
        %v6402 = vld [vmem:[%s6392 + $0x24] sm:$0xf]
        %v6403 = vld [vmem:[%s6392 + $0x28] sm:$0xf]
        %v6404 = vld [vmem:[%s6392 + $0x2c] sm:$0xf]
        %v6405 = vld [vmem:[%s6392 + $0x30] sm:$0xf]
        %v6406 = vld [vmem:[%s6392 + $0x34] sm:$0xf]
        %v6407 = vld [vmem:[%s6392 + $0x38] sm:$0xf]
        %v6408 = vld [vmem:[%s6392 + $0x3c] sm:$0xf]
        %v6409 = vld [vmem:[%s6392 + $0x40] sm:$0xf]
        %v6410 = vld [vmem:[%s6392 + $0x44] sm:$0xf]
        %v6411 = vld [vmem:[%s6392 + $0x48] sm:$0xf]
        %v6412 = vld [vmem:[%s6392 + $0x4c] sm:$0xf]
        %v6413 = vld [vmem:[%s6392 + $0x50] sm:$0xf]
        %v6414 = vld [vmem:[%s6392 + $0x54] sm:$0xf]
        %v6415 = vld [vmem:[%s6392 + $0x58] sm:$0xf]
        %v6416 = vld [vmem:[%s6392 + $0x5c] sm:$0xf]
        %v6417 = vld [vmem:[%s6392 + $0x60] sm:$0xf]
        %v6418 = vld [vmem:[%s6392 + $0x64] sm:$0xf]
        %v6419 = vld [vmem:[%s6392 + $0x68] sm:$0xf]
        %v6420 = vld [vmem:[%s6392 + $0x6c] sm:$0xf]
        %v6421 = vld [vmem:[%s6392 + $0x70] sm:$0xf]
        %v6422 = vld [vmem:[%s6392 + $0x74] sm:$0xf]
        %v6423 = vld [vmem:[%s6392 + $0x78] sm:$0xf]
        %v6424 = vld [vmem:[%s6392 + $0x7c] sm:$0xf]
        %v6457 = vunpack.c.l.b16 %v6393
        %v6458 = vunpack.c.l.b16 %v6394
        %v6459 = vunpack.c.l.b16 %v6395
        %v6460 = vunpack.c.l.b16 %v6396
        %v6461 = vunpack.c.l.b16 %v6397
        %v6462 = vunpack.c.l.b16 %v6398
        %v6463 = vunpack.c.l.b16 %v6399
        %v6464 = vunpack.c.l.b16 %v6400
        %v6465 = vunpack.c.l.b16 %v6401
        %v6466 = vunpack.c.l.b16 %v6402
        %v6467 = vunpack.c.l.b16 %v6403
        %v6468 = vunpack.c.l.b16 %v6404
        %v6469 = vunpack.c.l.b16 %v6405
        %v6470 = vunpack.c.l.b16 %v6406
        %v6471 = vunpack.c.l.b16 %v6407
        %v6472 = vunpack.c.l.b16 %v6408
        %v6473 = vunpack.c.l.b16 %v6409
        %v6474 = vunpack.c.l.b16 %v6410
        %v6475 = vunpack.c.l.b16 %v6411
        %v6476 = vunpack.c.l.b16 %v6412
        %v6477 = vunpack.c.l.b16 %v6413
        %v6478 = vunpack.c.l.b16 %v6414
        %v6479 = vunpack.c.l.b16 %v6415
        %v6480 = vunpack.c.l.b16 %v6416
        %v6481 = vunpack.c.l.b16 %v6417
        %v6482 = vunpack.c.l.b16 %v6418
        %v6483 = vunpack.c.l.b16 %v6419
        %v6484 = vunpack.c.l.b16 %v6420
        %v6485 = vunpack.c.l.b16 %v6421
        %v6486 = vunpack.c.l.b16 %v6422
        %v6487 = vunpack.c.l.b16 %v6423
        %v6488 = vunpack.c.l.b16 %v6424
        %v6489 = vpack.c.b16 %v6458, %v6457
        %v6490 = vpack.c.b16 %v6460, %v6459
        %v6491 = vpack.c.b16 %v6462, %v6461
        %v6492 = vpack.c.b16 %v6464, %v6463
        %v6493 = vpack.c.b16 %v6466, %v6465
        %v6494 = vpack.c.b16 %v6468, %v6467
        %v6495 = vpack.c.b16 %v6470, %v6469
        %v6496 = vpack.c.b16 %v6472, %v6471
        %v6497 = vpack.c.b16 %v6474, %v6473
        %v6498 = vpack.c.b16 %v6476, %v6475
        %v6499 = vpack.c.b16 %v6478, %v6477
        %v6500 = vpack.c.b16 %v6480, %v6479
        %v6501 = vpack.c.b16 %v6482, %v6481
        %v6502 = vpack.c.b16 %v6484, %v6483
        %v6503 = vpack.c.b16 %v6486, %v6485
        %v6504 = vpack.c.b16 %v6488, %v6487
        %6521 = vmatpush.bf16.msra.mxu0 %v6496
        %6522 = vmatpush.bf16.msra.mxu0 %v6495
        %6523 = vmatpush.bf16.msra.mxu0 %v6494
        %6524 = vmatpush.bf16.msra.mxu0 %v6493
        %6525 = vmatpush.bf16.msra.mxu0 %v6492
        %6526 = vmatpush.bf16.msra.mxu0 %v6491
        %6527 = vmatpush.bf16.msra.mxu0 %v6490
        %6528 = vmatpush.bf16.msra.mxu0 %v6489
        %6529 = vmatmul.bf16.gmra.mxu0 %v5656
        %v6530 = vpop.f32.mrf.mxu0
        %v6531 = vadd.f32 0.0, %v6530
        %v6532 = vpop.f32.mrf.mxu0
        %v6533 = vadd.f32 0.0, %v6532
        %6534 = vdwg.mxu0
        %6535 = vmatpush.bf16.msra.mxu0 %v6504
        %6536 = vmatpush.bf16.msra.mxu0 %v6503
        %6537 = vmatpush.bf16.msra.mxu0 %v6502
        %6538 = vmatpush.bf16.msra.mxu0 %v6501
        %6539 = vmatpush.bf16.msra.mxu0 %v6500
        %6540 = vmatpush.bf16.msra.mxu0 %v6499
        %6541 = vmatpush.bf16.msra.mxu0 %v6498
        %6542 = vmatpush.bf16.msra.mxu0 %v6497
        %6543 = vmatmul.bf16.gmra.mxu0 %v5657
        %v6544 = vpop.f32.mrf.mxu0
        %v6545 = vadd.f32 %v6531, %v6544
        %v6546 = vpop.f32.mrf.mxu0
        %v6547 = vadd.f32 %v6533, %v6546
        %6548 = vdwg.mxu0
        %s6549 = scalar_lea.vmem [#allocation21], 32
        %v6550 = vld [vmem:[%s6549] sm:$0xf]
        %v6551 = vld [vmem:[%s6549 + $0x4] sm:$0xf]
        %v6552 = vpack.c.bf16 %v6547, %v6545
        %v6555 = vunpack.c.l.b16 %v6550
        %v6556 = vunpack.c.l.b16 %v6551
        %v6557 = vpack.c.b16 %v6556, %v6555
        %v6559 = vsel %vm3935, %v6557, 0
        %6561 = vmatpush.bf16.msra.mxu0 0
        %6562 = vmatpush.bf16.msra.mxu0 0
        %6563 = vmatpush.bf16.msra.mxu0 0
        %6564 = vmatpush.bf16.msra.mxu0 0
        %6565 = vmatpush.bf16.msra.mxu0 0
        %6566 = vmatpush.bf16.msra.mxu0 0
        %6567 = vmatpush.bf16.msra.mxu0 0
        %6568 = vmatpush.bf16.msra.mxu0 %v6552
        %6569 = vmatmul.bf16.gmra.mxu0 %v6559
        %v6570 = vpop.f32.mrf.mxu0
        %v6571 = vadd.f32 0.0, %v6570
        %v6572 = vpop.f32.mrf.mxu0
        %v6573 = vadd.f32 0.0, %v6572
        %6574 = vdwg.mxu0
        %v6575 = vadd.f32 %v6390, %v6571
        %v6576 = vadd.f32 %v6391, %v6573
        %s6577 = scalar_lea.vmem [#allocation4], 640
        %v6578 = vld [vmem:[%s6577] sm:$0xf]
        %v6579 = vld [vmem:[%s6577 + $0x4] sm:$0xf]
        %v6580 = vld [vmem:[%s6577 + $0x8] sm:$0xf]
        %v6581 = vld [vmem:[%s6577 + $0xc] sm:$0xf]
        %v6582 = vld [vmem:[%s6577 + $0x10] sm:$0xf]
        %v6583 = vld [vmem:[%s6577 + $0x14] sm:$0xf]
        %v6584 = vld [vmem:[%s6577 + $0x18] sm:$0xf]
        %v6585 = vld [vmem:[%s6577 + $0x1c] sm:$0xf]
        %v6586 = vld [vmem:[%s6577 + $0x20] sm:$0xf]
        %v6587 = vld [vmem:[%s6577 + $0x24] sm:$0xf]
        %v6588 = vld [vmem:[%s6577 + $0x28] sm:$0xf]
        %v6589 = vld [vmem:[%s6577 + $0x2c] sm:$0xf]
        %v6590 = vld [vmem:[%s6577 + $0x30] sm:$0xf]
        %v6591 = vld [vmem:[%s6577 + $0x34] sm:$0xf]
        %v6592 = vld [vmem:[%s6577 + $0x38] sm:$0xf]
        %v6593 = vld [vmem:[%s6577 + $0x3c] sm:$0xf]
        %v6594 = vld [vmem:[%s6577 + $0x40] sm:$0xf]
        %v6595 = vld [vmem:[%s6577 + $0x44] sm:$0xf]
        %v6596 = vld [vmem:[%s6577 + $0x48] sm:$0xf]
        %v6597 = vld [vmem:[%s6577 + $0x4c] sm:$0xf]
        %v6598 = vld [vmem:[%s6577 + $0x50] sm:$0xf]
        %v6599 = vld [vmem:[%s6577 + $0x54] sm:$0xf]
        %v6600 = vld [vmem:[%s6577 + $0x58] sm:$0xf]
        %v6601 = vld [vmem:[%s6577 + $0x5c] sm:$0xf]
        %v6602 = vld [vmem:[%s6577 + $0x60] sm:$0xf]
        %v6603 = vld [vmem:[%s6577 + $0x64] sm:$0xf]
        %v6604 = vld [vmem:[%s6577 + $0x68] sm:$0xf]
        %v6605 = vld [vmem:[%s6577 + $0x6c] sm:$0xf]
        %v6606 = vld [vmem:[%s6577 + $0x70] sm:$0xf]
        %v6607 = vld [vmem:[%s6577 + $0x74] sm:$0xf]
        %v6608 = vld [vmem:[%s6577 + $0x78] sm:$0xf]
        %v6609 = vld [vmem:[%s6577 + $0x7c] sm:$0xf]
        %v6642 = vunpack.c.l.b16 %v6578
        %v6643 = vunpack.c.l.b16 %v6579
        %v6644 = vunpack.c.l.b16 %v6580
        %v6645 = vunpack.c.l.b16 %v6581
        %v6646 = vunpack.c.l.b16 %v6582
        %v6647 = vunpack.c.l.b16 %v6583
        %v6648 = vunpack.c.l.b16 %v6584
        %v6649 = vunpack.c.l.b16 %v6585
        %v6650 = vunpack.c.l.b16 %v6586
        %v6651 = vunpack.c.l.b16 %v6587
        %v6652 = vunpack.c.l.b16 %v6588
        %v6653 = vunpack.c.l.b16 %v6589
        %v6654 = vunpack.c.l.b16 %v6590
        %v6655 = vunpack.c.l.b16 %v6591
        %v6656 = vunpack.c.l.b16 %v6592
        %v6657 = vunpack.c.l.b16 %v6593
        %v6658 = vunpack.c.l.b16 %v6594
        %v6659 = vunpack.c.l.b16 %v6595
        %v6660 = vunpack.c.l.b16 %v6596
        %v6661 = vunpack.c.l.b16 %v6597
        %v6662 = vunpack.c.l.b16 %v6598
        %v6663 = vunpack.c.l.b16 %v6599
        %v6664 = vunpack.c.l.b16 %v6600
        %v6665 = vunpack.c.l.b16 %v6601
        %v6666 = vunpack.c.l.b16 %v6602
        %v6667 = vunpack.c.l.b16 %v6603
        %v6668 = vunpack.c.l.b16 %v6604
        %v6669 = vunpack.c.l.b16 %v6605
        %v6670 = vunpack.c.l.b16 %v6606
        %v6671 = vunpack.c.l.b16 %v6607
        %v6672 = vunpack.c.l.b16 %v6608
        %v6673 = vunpack.c.l.b16 %v6609
        %v6674 = vpack.c.b16 %v6643, %v6642
        %v6675 = vpack.c.b16 %v6645, %v6644
        %v6676 = vpack.c.b16 %v6647, %v6646
        %v6677 = vpack.c.b16 %v6649, %v6648
        %v6678 = vpack.c.b16 %v6651, %v6650
        %v6679 = vpack.c.b16 %v6653, %v6652
        %v6680 = vpack.c.b16 %v6655, %v6654
        %v6681 = vpack.c.b16 %v6657, %v6656
        %v6682 = vpack.c.b16 %v6659, %v6658
        %v6683 = vpack.c.b16 %v6661, %v6660
        %v6684 = vpack.c.b16 %v6663, %v6662
        %v6685 = vpack.c.b16 %v6665, %v6664
        %v6686 = vpack.c.b16 %v6667, %v6666
        %v6687 = vpack.c.b16 %v6669, %v6668
        %v6688 = vpack.c.b16 %v6671, %v6670
        %v6689 = vpack.c.b16 %v6673, %v6672
        %6706 = vmatpush.bf16.msra.mxu0 %v6681
        %6707 = vmatpush.bf16.msra.mxu0 %v6680
        %6708 = vmatpush.bf16.msra.mxu0 %v6679
        %6709 = vmatpush.bf16.msra.mxu0 %v6678
        %6710 = vmatpush.bf16.msra.mxu0 %v6677
        %6711 = vmatpush.bf16.msra.mxu0 %v6676
        %6712 = vmatpush.bf16.msra.mxu0 %v6675
        %6713 = vmatpush.bf16.msra.mxu0 %v6674
        %6714 = vmatmul.bf16.gmra.mxu0 %v5656
        %v6715 = vpop.f32.mrf.mxu0
        %v6716 = vadd.f32 0.0, %v6715
        %v6717 = vpop.f32.mrf.mxu0
        %v6718 = vadd.f32 0.0, %v6717
        %6719 = vdwg.mxu0
        %6720 = vmatpush.bf16.msra.mxu0 %v6689
        %6721 = vmatpush.bf16.msra.mxu0 %v6688
        %6722 = vmatpush.bf16.msra.mxu0 %v6687
        %6723 = vmatpush.bf16.msra.mxu0 %v6686
        %6724 = vmatpush.bf16.msra.mxu0 %v6685
        %6725 = vmatpush.bf16.msra.mxu0 %v6684
        %6726 = vmatpush.bf16.msra.mxu0 %v6683
        %6727 = vmatpush.bf16.msra.mxu0 %v6682
        %6728 = vmatmul.bf16.gmra.mxu0 %v5657
        %v6729 = vpop.f32.mrf.mxu0
        %v6730 = vadd.f32 %v6716, %v6729
        %v6731 = vpop.f32.mrf.mxu0
        %v6732 = vadd.f32 %v6718, %v6731
        %6733 = vdwg.mxu0
        %s6734 = scalar_lea.vmem [#allocation21], 40
        %v6735 = vld [vmem:[%s6734] sm:$0xf]
        %v6736 = vld [vmem:[%s6734 + $0x4] sm:$0xf]
        %v6737 = vpack.c.bf16 %v6732, %v6730
        %v6740 = vunpack.c.l.b16 %v6735
        %v6741 = vunpack.c.l.b16 %v6736
        %v6742 = vpack.c.b16 %v6741, %v6740
        %v6744 = vsel %vm3935, %v6742, 0
        %6746 = vmatpush.bf16.msra.mxu0 0
        %6747 = vmatpush.bf16.msra.mxu0 0
        %6748 = vmatpush.bf16.msra.mxu0 0
        %6749 = vmatpush.bf16.msra.mxu0 0
        %6750 = vmatpush.bf16.msra.mxu0 0
        %6751 = vmatpush.bf16.msra.mxu0 0
        %6752 = vmatpush.bf16.msra.mxu0 0
        %6753 = vmatpush.bf16.msra.mxu0 %v6737
        %6754 = vmatmul.bf16.gmra.mxu0 %v6744
        %v6755 = vpop.f32.mrf.mxu0
        %v6756 = vadd.f32 0.0, %v6755
        %v6757 = vpop.f32.mrf.mxu0
        %v6758 = vadd.f32 0.0, %v6757
        %6759 = vdwg.mxu0
        %v6760 = vadd.f32 %v6575, %v6756
        %v6761 = vadd.f32 %v6576, %v6758
        %s6762 = scalar_lea.vmem [#allocation4], 768
        %v6763 = vld [vmem:[%s6762] sm:$0xf]
        %v6764 = vld [vmem:[%s6762 + $0x4] sm:$0xf]
        %v6765 = vld [vmem:[%s6762 + $0x8] sm:$0xf]
        %v6766 = vld [vmem:[%s6762 + $0xc] sm:$0xf]
        %v6767 = vld [vmem:[%s6762 + $0x10] sm:$0xf]
        %v6768 = vld [vmem:[%s6762 + $0x14] sm:$0xf]
        %v6769 = vld [vmem:[%s6762 + $0x18] sm:$0xf]
        %v6770 = vld [vmem:[%s6762 + $0x1c] sm:$0xf]
        %v6771 = vld [vmem:[%s6762 + $0x20] sm:$0xf]
        %v6772 = vld [vmem:[%s6762 + $0x24] sm:$0xf]
        %v6773 = vld [vmem:[%s6762 + $0x28] sm:$0xf]
        %v6774 = vld [vmem:[%s6762 + $0x2c] sm:$0xf]
        %v6775 = vld [vmem:[%s6762 + $0x30] sm:$0xf]
        %v6776 = vld [vmem:[%s6762 + $0x34] sm:$0xf]
        %v6777 = vld [vmem:[%s6762 + $0x38] sm:$0xf]
        %v6778 = vld [vmem:[%s6762 + $0x3c] sm:$0xf]
        %v6779 = vld [vmem:[%s6762 + $0x40] sm:$0xf]
        %v6780 = vld [vmem:[%s6762 + $0x44] sm:$0xf]
        %v6781 = vld [vmem:[%s6762 + $0x48] sm:$0xf]
        %v6782 = vld [vmem:[%s6762 + $0x4c] sm:$0xf]
        %v6783 = vld [vmem:[%s6762 + $0x50] sm:$0xf]
        %v6784 = vld [vmem:[%s6762 + $0x54] sm:$0xf]
        %v6785 = vld [vmem:[%s6762 + $0x58] sm:$0xf]
        %v6786 = vld [vmem:[%s6762 + $0x5c] sm:$0xf]
        %v6787 = vld [vmem:[%s6762 + $0x60] sm:$0xf]
        %v6788 = vld [vmem:[%s6762 + $0x64] sm:$0xf]
        %v6789 = vld [vmem:[%s6762 + $0x68] sm:$0xf]
        %v6790 = vld [vmem:[%s6762 + $0x6c] sm:$0xf]
        %v6791 = vld [vmem:[%s6762 + $0x70] sm:$0xf]
        %v6792 = vld [vmem:[%s6762 + $0x74] sm:$0xf]
        %v6793 = vld [vmem:[%s6762 + $0x78] sm:$0xf]
        %v6794 = vld [vmem:[%s6762 + $0x7c] sm:$0xf]
        %v6827 = vunpack.c.l.b16 %v6763
        %v6828 = vunpack.c.l.b16 %v6764
        %v6829 = vunpack.c.l.b16 %v6765
        %v6830 = vunpack.c.l.b16 %v6766
        %v6831 = vunpack.c.l.b16 %v6767
        %v6832 = vunpack.c.l.b16 %v6768
        %v6833 = vunpack.c.l.b16 %v6769
        %v6834 = vunpack.c.l.b16 %v6770
        %v6835 = vunpack.c.l.b16 %v6771
        %v6836 = vunpack.c.l.b16 %v6772
        %v6837 = vunpack.c.l.b16 %v6773
        %v6838 = vunpack.c.l.b16 %v6774
        %v6839 = vunpack.c.l.b16 %v6775
        %v6840 = vunpack.c.l.b16 %v6776
        %v6841 = vunpack.c.l.b16 %v6777
        %v6842 = vunpack.c.l.b16 %v6778
        %v6843 = vunpack.c.l.b16 %v6779
        %v6844 = vunpack.c.l.b16 %v6780
        %v6845 = vunpack.c.l.b16 %v6781
        %v6846 = vunpack.c.l.b16 %v6782
        %v6847 = vunpack.c.l.b16 %v6783
        %v6848 = vunpack.c.l.b16 %v6784
        %v6849 = vunpack.c.l.b16 %v6785
        %v6850 = vunpack.c.l.b16 %v6786
        %v6851 = vunpack.c.l.b16 %v6787
        %v6852 = vunpack.c.l.b16 %v6788
        %v6853 = vunpack.c.l.b16 %v6789
        %v6854 = vunpack.c.l.b16 %v6790
        %v6855 = vunpack.c.l.b16 %v6791
        %v6856 = vunpack.c.l.b16 %v6792
        %v6857 = vunpack.c.l.b16 %v6793
        %v6858 = vunpack.c.l.b16 %v6794
        %v6859 = vpack.c.b16 %v6828, %v6827
        %v6860 = vpack.c.b16 %v6830, %v6829
        %v6861 = vpack.c.b16 %v6832, %v6831
        %v6862 = vpack.c.b16 %v6834, %v6833
        %v6863 = vpack.c.b16 %v6836, %v6835
        %v6864 = vpack.c.b16 %v6838, %v6837
        %v6865 = vpack.c.b16 %v6840, %v6839
        %v6866 = vpack.c.b16 %v6842, %v6841
        %v6867 = vpack.c.b16 %v6844, %v6843
        %v6868 = vpack.c.b16 %v6846, %v6845
        %v6869 = vpack.c.b16 %v6848, %v6847
        %v6870 = vpack.c.b16 %v6850, %v6849
        %v6871 = vpack.c.b16 %v6852, %v6851
        %v6872 = vpack.c.b16 %v6854, %v6853
        %v6873 = vpack.c.b16 %v6856, %v6855
        %v6874 = vpack.c.b16 %v6858, %v6857
        %6891 = vmatpush.bf16.msra.mxu0 %v6866
        %6892 = vmatpush.bf16.msra.mxu0 %v6865
        %6893 = vmatpush.bf16.msra.mxu0 %v6864
        %6894 = vmatpush.bf16.msra.mxu0 %v6863
        %6895 = vmatpush.bf16.msra.mxu0 %v6862
        %6896 = vmatpush.bf16.msra.mxu0 %v6861
        %6897 = vmatpush.bf16.msra.mxu0 %v6860
        %6898 = vmatpush.bf16.msra.mxu0 %v6859
        %6899 = vmatmul.bf16.gmra.mxu0 %v5656
        %v6900 = vpop.f32.mrf.mxu0
        %v6901 = vadd.f32 0.0, %v6900
        %v6902 = vpop.f32.mrf.mxu0
        %v6903 = vadd.f32 0.0, %v6902
        %6904 = vdwg.mxu0
        %6905 = vmatpush.bf16.msra.mxu0 %v6874
        %6906 = vmatpush.bf16.msra.mxu0 %v6873
        %6907 = vmatpush.bf16.msra.mxu0 %v6872
        %6908 = vmatpush.bf16.msra.mxu0 %v6871
        %6909 = vmatpush.bf16.msra.mxu0 %v6870
        %6910 = vmatpush.bf16.msra.mxu0 %v6869
        %6911 = vmatpush.bf16.msra.mxu0 %v6868
        %6912 = vmatpush.bf16.msra.mxu0 %v6867
        %6913 = vmatmul.bf16.gmra.mxu0 %v5657
        %v6914 = vpop.f32.mrf.mxu0
        %v6915 = vadd.f32 %v6901, %v6914
        %v6916 = vpop.f32.mrf.mxu0
        %v6917 = vadd.f32 %v6903, %v6916
        %6918 = vdwg.mxu0
        %s6919 = scalar_lea.vmem [#allocation21], 48
        %v6920 = vld [vmem:[%s6919] sm:$0xf]
        %v6921 = vld [vmem:[%s6919 + $0x4] sm:$0xf]
        %v6922 = vpack.c.bf16 %v6917, %v6915
        %v6925 = vunpack.c.l.b16 %v6920
        %v6926 = vunpack.c.l.b16 %v6921
        %v6927 = vpack.c.b16 %v6926, %v6925
        %v6929 = vsel %vm3935, %v6927, 0
        %6931 = vmatpush.bf16.msra.mxu0 0
        %6932 = vmatpush.bf16.msra.mxu0 0
        %6933 = vmatpush.bf16.msra.mxu0 0
        %6934 = vmatpush.bf16.msra.mxu0 0
        %6935 = vmatpush.bf16.msra.mxu0 0
        %6936 = vmatpush.bf16.msra.mxu0 0
        %6937 = vmatpush.bf16.msra.mxu0 0
        %6938 = vmatpush.bf16.msra.mxu0 %v6922
        %6939 = vmatmul.bf16.gmra.mxu0 %v6929
        %v6940 = vpop.f32.mrf.mxu0
        %v6941 = vadd.f32 0.0, %v6940
        %v6942 = vpop.f32.mrf.mxu0
        %v6943 = vadd.f32 0.0, %v6942
        %6944 = vdwg.mxu0
        %v6945 = vadd.f32 %v6760, %v6941
        %v6946 = vadd.f32 %v6761, %v6943
        %s6947 = scalar_lea.vmem [#allocation4], 896
        %v6948 = vld [vmem:[%s6947] sm:$0xf]
        %v6949 = vld [vmem:[%s6947 + $0x4] sm:$0xf]
        %v6950 = vld [vmem:[%s6947 + $0x8] sm:$0xf]
        %v6951 = vld [vmem:[%s6947 + $0xc] sm:$0xf]
        %v6952 = vld [vmem:[%s6947 + $0x10] sm:$0xf]
        %v6953 = vld [vmem:[%s6947 + $0x14] sm:$0xf]
        %v6954 = vld [vmem:[%s6947 + $0x18] sm:$0xf]
        %v6955 = vld [vmem:[%s6947 + $0x1c] sm:$0xf]
        %v6956 = vld [vmem:[%s6947 + $0x20] sm:$0xf]
        %v6957 = vld [vmem:[%s6947 + $0x24] sm:$0xf]
        %v6958 = vld [vmem:[%s6947 + $0x28] sm:$0xf]
        %v6959 = vld [vmem:[%s6947 + $0x2c] sm:$0xf]
        %v6960 = vld [vmem:[%s6947 + $0x30] sm:$0xf]
        %v6961 = vld [vmem:[%s6947 + $0x34] sm:$0xf]
        %v6962 = vld [vmem:[%s6947 + $0x38] sm:$0xf]
        %v6963 = vld [vmem:[%s6947 + $0x3c] sm:$0xf]
        %v6964 = vld [vmem:[%s6947 + $0x40] sm:$0xf]
        %v6965 = vld [vmem:[%s6947 + $0x44] sm:$0xf]
        %v6966 = vld [vmem:[%s6947 + $0x48] sm:$0xf]
        %v6967 = vld [vmem:[%s6947 + $0x4c] sm:$0xf]
        %v6968 = vld [vmem:[%s6947 + $0x50] sm:$0xf]
        %v6969 = vld [vmem:[%s6947 + $0x54] sm:$0xf]
        %v6970 = vld [vmem:[%s6947 + $0x58] sm:$0xf]
        %v6971 = vld [vmem:[%s6947 + $0x5c] sm:$0xf]
        %v6972 = vld [vmem:[%s6947 + $0x60] sm:$0xf]
        %v6973 = vld [vmem:[%s6947 + $0x64] sm:$0xf]
        %v6974 = vld [vmem:[%s6947 + $0x68] sm:$0xf]
        %v6975 = vld [vmem:[%s6947 + $0x6c] sm:$0xf]
        %v6976 = vld [vmem:[%s6947 + $0x70] sm:$0xf]
        %v6977 = vld [vmem:[%s6947 + $0x74] sm:$0xf]
        %v6978 = vld [vmem:[%s6947 + $0x78] sm:$0xf]
        %v6979 = vld [vmem:[%s6947 + $0x7c] sm:$0xf]
        %v7012 = vunpack.c.l.b16 %v6948
        %v7013 = vunpack.c.l.b16 %v6949
        %v7014 = vunpack.c.l.b16 %v6950
        %v7015 = vunpack.c.l.b16 %v6951
        %v7016 = vunpack.c.l.b16 %v6952
        %v7017 = vunpack.c.l.b16 %v6953
        %v7018 = vunpack.c.l.b16 %v6954
        %v7019 = vunpack.c.l.b16 %v6955
        %v7020 = vunpack.c.l.b16 %v6956
        %v7021 = vunpack.c.l.b16 %v6957
        %v7022 = vunpack.c.l.b16 %v6958
        %v7023 = vunpack.c.l.b16 %v6959
        %v7024 = vunpack.c.l.b16 %v6960
        %v7025 = vunpack.c.l.b16 %v6961
        %v7026 = vunpack.c.l.b16 %v6962
        %v7027 = vunpack.c.l.b16 %v6963
        %v7028 = vunpack.c.l.b16 %v6964
        %v7029 = vunpack.c.l.b16 %v6965
        %v7030 = vunpack.c.l.b16 %v6966
        %v7031 = vunpack.c.l.b16 %v6967
        %v7032 = vunpack.c.l.b16 %v6968
        %v7033 = vunpack.c.l.b16 %v6969
        %v7034 = vunpack.c.l.b16 %v6970
        %v7035 = vunpack.c.l.b16 %v6971
        %v7036 = vunpack.c.l.b16 %v6972
        %v7037 = vunpack.c.l.b16 %v6973
        %v7038 = vunpack.c.l.b16 %v6974
        %v7039 = vunpack.c.l.b16 %v6975
        %v7040 = vunpack.c.l.b16 %v6976
        %v7041 = vunpack.c.l.b16 %v6977
        %v7042 = vunpack.c.l.b16 %v6978
        %v7043 = vunpack.c.l.b16 %v6979
        %v7044 = vpack.c.b16 %v7013, %v7012
        %v7045 = vpack.c.b16 %v7015, %v7014
        %v7046 = vpack.c.b16 %v7017, %v7016
        %v7047 = vpack.c.b16 %v7019, %v7018
        %v7048 = vpack.c.b16 %v7021, %v7020
        %v7049 = vpack.c.b16 %v7023, %v7022
        %v7050 = vpack.c.b16 %v7025, %v7024
        %v7051 = vpack.c.b16 %v7027, %v7026
        %v7052 = vpack.c.b16 %v7029, %v7028
        %v7053 = vpack.c.b16 %v7031, %v7030
        %v7054 = vpack.c.b16 %v7033, %v7032
        %v7055 = vpack.c.b16 %v7035, %v7034
        %v7056 = vpack.c.b16 %v7037, %v7036
        %v7057 = vpack.c.b16 %v7039, %v7038
        %v7058 = vpack.c.b16 %v7041, %v7040
        %v7059 = vpack.c.b16 %v7043, %v7042
        %7076 = vmatpush.bf16.msra.mxu0 %v7051
        %7077 = vmatpush.bf16.msra.mxu0 %v7050
        %7078 = vmatpush.bf16.msra.mxu0 %v7049
        %7079 = vmatpush.bf16.msra.mxu0 %v7048
        %7080 = vmatpush.bf16.msra.mxu0 %v7047
        %7081 = vmatpush.bf16.msra.mxu0 %v7046
        %7082 = vmatpush.bf16.msra.mxu0 %v7045
        %7083 = vmatpush.bf16.msra.mxu0 %v7044
        %7084 = vmatmul.bf16.gmra.mxu0 %v5656
        %v7085 = vpop.f32.mrf.mxu0
        %v7086 = vadd.f32 0.0, %v7085
        %v7087 = vpop.f32.mrf.mxu0
        %v7088 = vadd.f32 0.0, %v7087
        %7089 = vdwg.mxu0
        %7090 = vmatpush.bf16.msra.mxu0 %v7059
        %7091 = vmatpush.bf16.msra.mxu0 %v7058
        %7092 = vmatpush.bf16.msra.mxu0 %v7057
        %7093 = vmatpush.bf16.msra.mxu0 %v7056
        %7094 = vmatpush.bf16.msra.mxu0 %v7055
        %7095 = vmatpush.bf16.msra.mxu0 %v7054
        %7096 = vmatpush.bf16.msra.mxu0 %v7053
        %7097 = vmatpush.bf16.msra.mxu0 %v7052
        %7098 = vmatmul.bf16.gmra.mxu0 %v5657
        %v7099 = vpop.f32.mrf.mxu0
        %v7100 = vadd.f32 %v7086, %v7099
        %v7101 = vpop.f32.mrf.mxu0
        %v7102 = vadd.f32 %v7088, %v7101
        %7103 = vdwg.mxu0
        %s7104 = scalar_lea.vmem [#allocation21], 56
        %v7105 = vld [vmem:[%s7104] sm:$0xf]
        %v7106 = vld [vmem:[%s7104 + $0x4] sm:$0xf]
        %v7107 = vpack.c.bf16 %v7102, %v7100
        %v7110 = vunpack.c.l.b16 %v7105
        %v7111 = vunpack.c.l.b16 %v7106
        %v7112 = vpack.c.b16 %v7111, %v7110
        %v7114 = vsel %vm3935, %v7112, 0
        %7116 = vmatpush.bf16.msra.mxu0 0
        %7117 = vmatpush.bf16.msra.mxu0 0
        %7118 = vmatpush.bf16.msra.mxu0 0
        %7119 = vmatpush.bf16.msra.mxu0 0
        %7120 = vmatpush.bf16.msra.mxu0 0
        %7121 = vmatpush.bf16.msra.mxu0 0
        %7122 = vmatpush.bf16.msra.mxu0 0
        %7123 = vmatpush.bf16.msra.mxu0 %v7107
        %7124 = vmatmul.bf16.gmra.mxu0 %v7114
        %v7125 = vpop.f32.mrf.mxu0
        %v7126 = vadd.f32 0.0, %v7125
        %v7127 = vpop.f32.mrf.mxu0
        %v7128 = vadd.f32 0.0, %v7127
        %7129 = vdwg.mxu0
        %v7130 = vadd.f32 %v6945, %v7126
        %v7131 = vadd.f32 %v6946, %v7128
        %s7132 = scalar_lea.vmem [#allocation4], 1024
        %v7133 = vld [vmem:[%s7132] sm:$0xf]
        %v7134 = vld [vmem:[%s7132 + $0x4] sm:$0xf]
        %v7135 = vld [vmem:[%s7132 + $0x8] sm:$0xf]
        %v7136 = vld [vmem:[%s7132 + $0xc] sm:$0xf]
        %v7137 = vld [vmem:[%s7132 + $0x10] sm:$0xf]
        %v7138 = vld [vmem:[%s7132 + $0x14] sm:$0xf]
        %v7139 = vld [vmem:[%s7132 + $0x18] sm:$0xf]
        %v7140 = vld [vmem:[%s7132 + $0x1c] sm:$0xf]
        %v7141 = vld [vmem:[%s7132 + $0x20] sm:$0xf]
        %v7142 = vld [vmem:[%s7132 + $0x24] sm:$0xf]
        %v7143 = vld [vmem:[%s7132 + $0x28] sm:$0xf]
        %v7144 = vld [vmem:[%s7132 + $0x2c] sm:$0xf]
        %v7145 = vld [vmem:[%s7132 + $0x30] sm:$0xf]
        %v7146 = vld [vmem:[%s7132 + $0x34] sm:$0xf]
        %v7147 = vld [vmem:[%s7132 + $0x38] sm:$0xf]
        %v7148 = vld [vmem:[%s7132 + $0x3c] sm:$0xf]
        %v7149 = vld [vmem:[%s7132 + $0x40] sm:$0xf]
        %v7150 = vld [vmem:[%s7132 + $0x44] sm:$0xf]
        %v7151 = vld [vmem:[%s7132 + $0x48] sm:$0xf]
        %v7152 = vld [vmem:[%s7132 + $0x4c] sm:$0xf]
        %v7153 = vld [vmem:[%s7132 + $0x50] sm:$0xf]
        %v7154 = vld [vmem:[%s7132 + $0x54] sm:$0xf]
        %v7155 = vld [vmem:[%s7132 + $0x58] sm:$0xf]
        %v7156 = vld [vmem:[%s7132 + $0x5c] sm:$0xf]
        %v7157 = vld [vmem:[%s7132 + $0x60] sm:$0xf]
        %v7158 = vld [vmem:[%s7132 + $0x64] sm:$0xf]
        %v7159 = vld [vmem:[%s7132 + $0x68] sm:$0xf]
        %v7160 = vld [vmem:[%s7132 + $0x6c] sm:$0xf]
        %v7161 = vld [vmem:[%s7132 + $0x70] sm:$0xf]
        %v7162 = vld [vmem:[%s7132 + $0x74] sm:$0xf]
        %v7163 = vld [vmem:[%s7132 + $0x78] sm:$0xf]
        %v7164 = vld [vmem:[%s7132 + $0x7c] sm:$0xf]
        %v7197 = vunpack.c.l.b16 %v7133
        %v7198 = vunpack.c.l.b16 %v7134
        %v7199 = vunpack.c.l.b16 %v7135
        %v7200 = vunpack.c.l.b16 %v7136
        %v7201 = vunpack.c.l.b16 %v7137
        %v7202 = vunpack.c.l.b16 %v7138
        %v7203 = vunpack.c.l.b16 %v7139
        %v7204 = vunpack.c.l.b16 %v7140
        %v7205 = vunpack.c.l.b16 %v7141
        %v7206 = vunpack.c.l.b16 %v7142
        %v7207 = vunpack.c.l.b16 %v7143
        %v7208 = vunpack.c.l.b16 %v7144
        %v7209 = vunpack.c.l.b16 %v7145
        %v7210 = vunpack.c.l.b16 %v7146
        %v7211 = vunpack.c.l.b16 %v7147
        %v7212 = vunpack.c.l.b16 %v7148
        %v7213 = vunpack.c.l.b16 %v7149
        %v7214 = vunpack.c.l.b16 %v7150
        %v7215 = vunpack.c.l.b16 %v7151
        %v7216 = vunpack.c.l.b16 %v7152
        %v7217 = vunpack.c.l.b16 %v7153
        %v7218 = vunpack.c.l.b16 %v7154
        %v7219 = vunpack.c.l.b16 %v7155
        %v7220 = vunpack.c.l.b16 %v7156
        %v7221 = vunpack.c.l.b16 %v7157
        %v7222 = vunpack.c.l.b16 %v7158
        %v7223 = vunpack.c.l.b16 %v7159
        %v7224 = vunpack.c.l.b16 %v7160
        %v7225 = vunpack.c.l.b16 %v7161
        %v7226 = vunpack.c.l.b16 %v7162
        %v7227 = vunpack.c.l.b16 %v7163
        %v7228 = vunpack.c.l.b16 %v7164
        %v7229 = vpack.c.b16 %v7198, %v7197
        %v7230 = vpack.c.b16 %v7200, %v7199
        %v7231 = vpack.c.b16 %v7202, %v7201
        %v7232 = vpack.c.b16 %v7204, %v7203
        %v7233 = vpack.c.b16 %v7206, %v7205
        %v7234 = vpack.c.b16 %v7208, %v7207
        %v7235 = vpack.c.b16 %v7210, %v7209
        %v7236 = vpack.c.b16 %v7212, %v7211
        %v7237 = vpack.c.b16 %v7214, %v7213
        %v7238 = vpack.c.b16 %v7216, %v7215
        %v7239 = vpack.c.b16 %v7218, %v7217
        %v7240 = vpack.c.b16 %v7220, %v7219
        %v7241 = vpack.c.b16 %v7222, %v7221
        %v7242 = vpack.c.b16 %v7224, %v7223
        %v7243 = vpack.c.b16 %v7226, %v7225
        %v7244 = vpack.c.b16 %v7228, %v7227
        %7261 = vmatpush.bf16.msra.mxu0 %v7236
        %7262 = vmatpush.bf16.msra.mxu0 %v7235
        %7263 = vmatpush.bf16.msra.mxu0 %v7234
        %7264 = vmatpush.bf16.msra.mxu0 %v7233
        %7265 = vmatpush.bf16.msra.mxu0 %v7232
        %7266 = vmatpush.bf16.msra.mxu0 %v7231
        %7267 = vmatpush.bf16.msra.mxu0 %v7230
        %7268 = vmatpush.bf16.msra.mxu0 %v7229
        %7269 = vmatmul.bf16.gmra.mxu0 %v5656
        %v7270 = vpop.f32.mrf.mxu0
        %v7271 = vadd.f32 0.0, %v7270
        %v7272 = vpop.f32.mrf.mxu0
        %v7273 = vadd.f32 0.0, %v7272
        %7274 = vdwg.mxu0
        %7275 = vmatpush.bf16.msra.mxu0 %v7244
        %7276 = vmatpush.bf16.msra.mxu0 %v7243
        %7277 = vmatpush.bf16.msra.mxu0 %v7242
        %7278 = vmatpush.bf16.msra.mxu0 %v7241
        %7279 = vmatpush.bf16.msra.mxu0 %v7240
        %7280 = vmatpush.bf16.msra.mxu0 %v7239
        %7281 = vmatpush.bf16.msra.mxu0 %v7238
        %7282 = vmatpush.bf16.msra.mxu0 %v7237
        %7283 = vmatmul.bf16.gmra.mxu0 %v5657
        %v7284 = vpop.f32.mrf.mxu0
        %v7285 = vadd.f32 %v7271, %v7284
        %v7286 = vpop.f32.mrf.mxu0
        %v7287 = vadd.f32 %v7273, %v7286
        %7288 = vdwg.mxu0
        %s7289 = scalar_lea.vmem [#allocation21], 64
        %v7290 = vld [vmem:[%s7289] sm:$0xf]
        %v7291 = vld [vmem:[%s7289 + $0x4] sm:$0xf]
        %v7292 = vpack.c.bf16 %v7287, %v7285
        %v7295 = vunpack.c.l.b16 %v7290
        %v7296 = vunpack.c.l.b16 %v7291
        %v7297 = vpack.c.b16 %v7296, %v7295
        %v7299 = vsel %vm3935, %v7297, 0
        %7301 = vmatpush.bf16.msra.mxu0 0
        %7302 = vmatpush.bf16.msra.mxu0 0
        %7303 = vmatpush.bf16.msra.mxu0 0
        %7304 = vmatpush.bf16.msra.mxu0 0
        %7305 = vmatpush.bf16.msra.mxu0 0
        %7306 = vmatpush.bf16.msra.mxu0 0
        %7307 = vmatpush.bf16.msra.mxu0 0
        %7308 = vmatpush.bf16.msra.mxu0 %v7292
        %7309 = vmatmul.bf16.gmra.mxu0 %v7299
        %v7310 = vpop.f32.mrf.mxu0
        %v7311 = vadd.f32 0.0, %v7310
        %v7312 = vpop.f32.mrf.mxu0
        %v7313 = vadd.f32 0.0, %v7312
        %7314 = vdwg.mxu0
        %v7315 = vadd.f32 %v7130, %v7311
        %v7316 = vadd.f32 %v7131, %v7313
        %v7317 = vld [vmem:[#allocation19] sm:$0xff]
        %v7318 = vld [vmem:[#allocation19 + $0x8] sm:$0xff]
        %7320 = vset.pattern.permute.xlu0 0
        %7321 = vperm.xlu0 %7320, %v7317
        %v7322 = vpop.permute.xlu0 %7321
        %7325 = vset.pattern.permute.xlu0 0
        %7326 = vperm.xlu0 %7325, %v7318
        %v7327 = vpop.permute.xlu0 %7326
        %v7329 = vadd.f32 %v7315, %v7322
        %v7330 = vadd.f32 %v7316, %v7327
        %v7331 = vmax.f32 %v7329, 0.0
        %v7332 = vmax.f32 %v7330, 0.0
        %v7333 = vld [vmem:[#allocation27] sm:$0xf]
        %v7334 = vld [vmem:[#allocation27 + $0x4] sm:$0xf]
        %v7335 = vld [vmem:[#allocation25] sm:$0xff]
        %v7336 = vld [vmem:[#allocation25 + $0x8] sm:$0xff]
        %7338 = vset.pattern.permute.xlu0 0
        %7339 = vperm.xlu0 %7338, %v7335
        %v7340 = vpop.permute.xlu0 %7339
        %7343 = vset.pattern.permute.xlu0 0
        %7344 = vperm.xlu0 %7343, %v7336
        %v7345 = vpop.permute.xlu0 %7344
        %v7349 = vunpack.c.l.b16 %v7333
        %v7350 = vunpack.c.l.b16 %v7334
        %v7351 = vpack.c.b16 %v7350, %v7349
        %v7353 = vsel %vm3935, %v7351, 0
        %7355 = vmatpush.bf16.msra.mxu0 0
        %7356 = vmatpush.bf16.msra.mxu0 0
        %7357 = vmatpush.bf16.msra.mxu0 0
        %7358 = vmatpush.bf16.msra.mxu0 0
        %7359 = vmatpush.bf16.msra.mxu0 0
        %7360 = vmatpush.bf16.msra.mxu0 0
        %7361 = vmatpush.bf16.msra.mxu0 0
        %7362 = vmatpush.bf16.msra.mxu0 %v6552
        %7363 = vmatmul.bf16.gmra.mxu0 %v7353
        %v7364 = vpop.f32.mrf.mxu0
        %v7365 = vadd.f32 %v7340, %v7364
        %v7366 = vpop.f32.mrf.mxu0
        %v7367 = vadd.f32 %v7345, %v7366
        %7368 = vdwg.mxu0
        %v7369 = vpack.c.bf16 %v7332, %v7331
        %v7370 = vld [vmem:[#allocation6] sm:$0xf]
        %v7371 = vld [vmem:[#allocation6 + $0x4] sm:$0xf]
        %v7372 = vld [vmem:[#allocation6 + $0x8] sm:$0xf]
        %v7373 = vld [vmem:[#allocation6 + $0xc] sm:$0xf]
        %v7374 = vld [vmem:[#allocation6 + $0x10] sm:$0xf]
        %v7375 = vld [vmem:[#allocation6 + $0x14] sm:$0xf]
        %v7376 = vld [vmem:[#allocation6 + $0x18] sm:$0xf]
        %v7377 = vld [vmem:[#allocation6 + $0x1c] sm:$0xf]
        %v7386 = vunpack.c.l.b16 %v7370
        %v7387 = vunpack.c.l.b16 %v7371
        %v7388 = vunpack.c.l.b16 %v7372
        %v7389 = vunpack.c.l.b16 %v7373
        %v7390 = vunpack.c.l.b16 %v7374
        %v7391 = vunpack.c.l.b16 %v7375
        %v7392 = vunpack.c.l.b16 %v7376
        %v7393 = vunpack.c.l.b16 %v7377
        %v7394 = vpack.c.b16 %v7387, %v7386
        %v7395 = vpack.c.b16 %v7389, %v7388
        %v7396 = vpack.c.b16 %v7391, %v7390
        %v7397 = vpack.c.b16 %v7393, %v7392
        %vm7402 = vcmask 523264
        %v7404 = vsel %vm7402, %v7369, 0
        %7406 = vmatpush.bf16.msra.mxu0 0
        %7407 = vmatpush.bf16.msra.mxu0 0
        %7408 = vmatpush.bf16.msra.mxu0 0
        %7409 = vmatpush.bf16.msra.mxu0 0
        %7410 = vmatpush.bf16.msra.mxu0 %v7397
        %7411 = vmatpush.bf16.msra.mxu0 %v7396
        %7412 = vmatpush.bf16.msra.mxu0 %v7395
        %7413 = vmatpush.bf16.msra.mxu0 %v7394
        %7414 = vmatmul.bf16.gmra.mxu0 %v7404
        %v7415 = vpop.f32.mrf.mxu0
        %v7416 = vadd.f32 0.0, %v7415
        %v7417 = vpop.f32.mrf.mxu0
        %v7418 = vadd.f32 0.0, %v7417
        %7419 = vdwg.mxu0
        %v7420 = vld [vmem:[#allocation24] sm:$0xf]
        %v7421 = vld [vmem:[#allocation24 + $0x4] sm:$0xf]
        %v7422 = vpack.c.bf16 %v7418, %v7416
        %s7423 = scalar_lea.vmem [#allocation6], 32
        %v7424 = vld [vmem:[%s7423] sm:$0xf]
        %v7425 = vld [vmem:[%s7423 + $0x4] sm:$0xf]
        %v7426 = vld [vmem:[%s7423 + $0x8] sm:$0xf]
        %v7427 = vld [vmem:[%s7423 + $0xc] sm:$0xf]
        %v7428 = vld [vmem:[%s7423 + $0x10] sm:$0xf]
        %v7429 = vld [vmem:[%s7423 + $0x14] sm:$0xf]
        %v7430 = vld [vmem:[%s7423 + $0x18] sm:$0xf]
        %v7431 = vld [vmem:[%s7423 + $0x1c] sm:$0xf]
        %v7440 = vunpack.c.l.b16 %v7424
        %v7441 = vunpack.c.l.b16 %v7425
        %v7442 = vunpack.c.l.b16 %v7426
        %v7443 = vunpack.c.l.b16 %v7427
        %v7444 = vunpack.c.l.b16 %v7428
        %v7445 = vunpack.c.l.b16 %v7429
        %v7446 = vunpack.c.l.b16 %v7430
        %v7447 = vunpack.c.l.b16 %v7431
        %v7448 = vpack.c.b16 %v7441, %v7440
        %v7449 = vpack.c.b16 %v7443, %v7442
        %v7450 = vpack.c.b16 %v7445, %v7444
        %v7451 = vpack.c.b16 %v7447, %v7446
        %7456 = vmatpush.bf16.msra.mxu0 0
        %7457 = vmatpush.bf16.msra.mxu0 0
        %7458 = vmatpush.bf16.msra.mxu0 0
        %7459 = vmatpush.bf16.msra.mxu0 0
        %7460 = vmatpush.bf16.msra.mxu0 %v7451
        %7461 = vmatpush.bf16.msra.mxu0 %v7450
        %7462 = vmatpush.bf16.msra.mxu0 %v7449
        %7463 = vmatpush.bf16.msra.mxu0 %v7448
        %7464 = vmatmul.bf16.gmra.mxu0 %v7404
        %v7465 = vpop.f32.mrf.mxu0
        %v7466 = vadd.f32 0.0, %v7465
        %v7467 = vpop.f32.mrf.mxu0
        %v7468 = vadd.f32 0.0, %v7467
        %7469 = vdwg.mxu0
        %s7470 = scalar_lea.vmem [#allocation24], 8
        %v7471 = vld [vmem:[%s7470] sm:$0xf]
        %v7472 = vld [vmem:[%s7470 + $0x4] sm:$0xf]
        %v7473 = vpack.c.bf16 %v7468, %v7466
        %v7476 = vunpack.c.l.b16 %v7471
        %v7477 = vunpack.c.l.b16 %v7472
        %v7478 = vpack.c.b16 %v7477, %v7476
        %v7480 = vsel %vm3935, %v7478, 0
        %7482 = vmatpush.bf16.msra.mxu0 0
        %7483 = vmatpush.bf16.msra.mxu0 0
        %7484 = vmatpush.bf16.msra.mxu0 0
        %7485 = vmatpush.bf16.msra.mxu0 0
        %7486 = vmatpush.bf16.msra.mxu0 0
        %7487 = vmatpush.bf16.msra.mxu0 0
        %7488 = vmatpush.bf16.msra.mxu0 0
        %7489 = vmatpush.bf16.msra.mxu0 %v7473
        %7490 = vmatmul.bf16.gmra.mxu0 %v7480
        %v7491 = vpop.f32.mrf.mxu0
        %v7492 = vadd.f32 0.0, %v7491
        %v7493 = vpop.f32.mrf.mxu0
        %v7494 = vadd.f32 0.0, %v7493
        %7495 = vdwg.mxu0
        %v7498 = vunpack.c.l.b16 %v7420
        %v7499 = vunpack.c.l.b16 %v7421
        %v7500 = vpack.c.b16 %v7499, %v7498
        %v7502 = vsel %vm3935, %v7500, 0
        %7504 = vmatpush.bf16.msra.mxu0 0
        %7505 = vmatpush.bf16.msra.mxu0 0
        %7506 = vmatpush.bf16.msra.mxu0 0
        %7507 = vmatpush.bf16.msra.mxu0 0
        %7508 = vmatpush.bf16.msra.mxu0 0
        %7509 = vmatpush.bf16.msra.mxu0 0
        %7510 = vmatpush.bf16.msra.mxu0 0
        %7511 = vmatpush.bf16.msra.mxu0 %v7422
        %7512 = vmatmul.bf16.gmra.mxu0 %v7502
        %v7513 = vpop.f32.mrf.mxu0
        %v7514 = vadd.f32 %v7492, %v7513
        %v7515 = vpop.f32.mrf.mxu0
        %v7516 = vadd.f32 %v7494, %v7515
        %7517 = vdwg.mxu0
        %s7518 = scalar_lea.vmem [#allocation6], 64
        %v7519 = vld [vmem:[%s7518] sm:$0xf]
        %v7520 = vld [vmem:[%s7518 + $0x4] sm:$0xf]
        %v7521 = vld [vmem:[%s7518 + $0x8] sm:$0xf]
        %v7522 = vld [vmem:[%s7518 + $0xc] sm:$0xf]
        %v7523 = vld [vmem:[%s7518 + $0x10] sm:$0xf]
        %v7524 = vld [vmem:[%s7518 + $0x14] sm:$0xf]
        %v7525 = vld [vmem:[%s7518 + $0x18] sm:$0xf]
        %v7526 = vld [vmem:[%s7518 + $0x1c] sm:$0xf]
        %v7535 = vunpack.c.l.b16 %v7519
        %v7536 = vunpack.c.l.b16 %v7520
        %v7537 = vunpack.c.l.b16 %v7521
        %v7538 = vunpack.c.l.b16 %v7522
        %v7539 = vunpack.c.l.b16 %v7523
        %v7540 = vunpack.c.l.b16 %v7524
        %v7541 = vunpack.c.l.b16 %v7525
        %v7542 = vunpack.c.l.b16 %v7526
        %v7543 = vpack.c.b16 %v7536, %v7535
        %v7544 = vpack.c.b16 %v7538, %v7537
        %v7545 = vpack.c.b16 %v7540, %v7539
        %v7546 = vpack.c.b16 %v7542, %v7541
        %7551 = vmatpush.bf16.msra.mxu0 0
        %7552 = vmatpush.bf16.msra.mxu0 0
        %7553 = vmatpush.bf16.msra.mxu0 0
        %7554 = vmatpush.bf16.msra.mxu0 0
        %7555 = vmatpush.bf16.msra.mxu0 %v7546
        %7556 = vmatpush.bf16.msra.mxu0 %v7545
        %7557 = vmatpush.bf16.msra.mxu0 %v7544
        %7558 = vmatpush.bf16.msra.mxu0 %v7543
        %7559 = vmatmul.bf16.gmra.mxu0 %v7404
        %v7560 = vpop.f32.mrf.mxu0
        %v7561 = vadd.f32 0.0, %v7560
        %v7562 = vpop.f32.mrf.mxu0
        %v7563 = vadd.f32 0.0, %v7562
        %7564 = vdwg.mxu0
        %s7565 = scalar_lea.vmem [#allocation24], 16
        %v7566 = vld [vmem:[%s7565] sm:$0xf]
        %v7567 = vld [vmem:[%s7565 + $0x4] sm:$0xf]
        %v7568 = vpack.c.bf16 %v7563, %v7561
        %v7571 = vunpack.c.l.b16 %v7566
        %v7572 = vunpack.c.l.b16 %v7567
        %v7573 = vpack.c.b16 %v7572, %v7571
        %v7575 = vsel %vm3935, %v7573, 0
        %7577 = vmatpush.bf16.msra.mxu0 0
        %7578 = vmatpush.bf16.msra.mxu0 0
        %7579 = vmatpush.bf16.msra.mxu0 0
        %7580 = vmatpush.bf16.msra.mxu0 0
        %7581 = vmatpush.bf16.msra.mxu0 0
        %7582 = vmatpush.bf16.msra.mxu0 0
        %7583 = vmatpush.bf16.msra.mxu0 0
        %7584 = vmatpush.bf16.msra.mxu0 %v7568
        %7585 = vmatmul.bf16.gmra.mxu0 %v7575
        %v7586 = vpop.f32.mrf.mxu0
        %v7587 = vadd.f32 0.0, %v7586
        %v7588 = vpop.f32.mrf.mxu0
        %v7589 = vadd.f32 0.0, %v7588
        %7590 = vdwg.mxu0
        %v7591 = vadd.f32 %v7514, %v7587
        %v7592 = vadd.f32 %v7516, %v7589
        %s7593 = scalar_lea.vmem [#allocation6], 96
        %v7594 = vld [vmem:[%s7593] sm:$0xf]
        %v7595 = vld [vmem:[%s7593 + $0x4] sm:$0xf]
        %v7596 = vld [vmem:[%s7593 + $0x8] sm:$0xf]
        %v7597 = vld [vmem:[%s7593 + $0xc] sm:$0xf]
        %v7598 = vld [vmem:[%s7593 + $0x10] sm:$0xf]
        %v7599 = vld [vmem:[%s7593 + $0x14] sm:$0xf]
        %v7600 = vld [vmem:[%s7593 + $0x18] sm:$0xf]
        %v7601 = vld [vmem:[%s7593 + $0x1c] sm:$0xf]
        %v7610 = vunpack.c.l.b16 %v7594
        %v7611 = vunpack.c.l.b16 %v7595
        %v7612 = vunpack.c.l.b16 %v7596
        %v7613 = vunpack.c.l.b16 %v7597
        %v7614 = vunpack.c.l.b16 %v7598
        %v7615 = vunpack.c.l.b16 %v7599
        %v7616 = vunpack.c.l.b16 %v7600
        %v7617 = vunpack.c.l.b16 %v7601
        %v7618 = vpack.c.b16 %v7611, %v7610
        %v7619 = vpack.c.b16 %v7613, %v7612
        %v7620 = vpack.c.b16 %v7615, %v7614
        %v7621 = vpack.c.b16 %v7617, %v7616
        %7626 = vmatpush.bf16.msra.mxu0 0
        %7627 = vmatpush.bf16.msra.mxu0 0
        %7628 = vmatpush.bf16.msra.mxu0 0
        %7629 = vmatpush.bf16.msra.mxu0 0
        %7630 = vmatpush.bf16.msra.mxu0 %v7621
        %7631 = vmatpush.bf16.msra.mxu0 %v7620
        %7632 = vmatpush.bf16.msra.mxu0 %v7619
        %7633 = vmatpush.bf16.msra.mxu0 %v7618
        %7634 = vmatmul.bf16.gmra.mxu0 %v7404
        %v7635 = vpop.f32.mrf.mxu0
        %v7636 = vadd.f32 0.0, %v7635
        %v7637 = vpop.f32.mrf.mxu0
        %v7638 = vadd.f32 0.0, %v7637
        %7639 = vdwg.mxu0
        %s7640 = scalar_lea.vmem [#allocation24], 24
        %v7641 = vld [vmem:[%s7640] sm:$0xf]
        %v7642 = vld [vmem:[%s7640 + $0x4] sm:$0xf]
        %v7643 = vpack.c.bf16 %v7638, %v7636
        %v7646 = vunpack.c.l.b16 %v7641
        %v7647 = vunpack.c.l.b16 %v7642
        %v7648 = vpack.c.b16 %v7647, %v7646
        %v7650 = vsel %vm3935, %v7648, 0
        %7652 = vmatpush.bf16.msra.mxu0 0
        %7653 = vmatpush.bf16.msra.mxu0 0
        %7654 = vmatpush.bf16.msra.mxu0 0
        %7655 = vmatpush.bf16.msra.mxu0 0
        %7656 = vmatpush.bf16.msra.mxu0 0
        %7657 = vmatpush.bf16.msra.mxu0 0
        %7658 = vmatpush.bf16.msra.mxu0 0
        %7659 = vmatpush.bf16.msra.mxu0 %v7643
        %7660 = vmatmul.bf16.gmra.mxu0 %v7650
        %v7661 = vpop.f32.mrf.mxu0
        %v7662 = vadd.f32 0.0, %v7661
        %v7663 = vpop.f32.mrf.mxu0
        %v7664 = vadd.f32 0.0, %v7663
        %7665 = vdwg.mxu0
        %v7666 = vadd.f32 %v7591, %v7662
        %v7667 = vadd.f32 %v7592, %v7664
        %s7668 = scalar_lea.vmem [#allocation6], 128
        %v7669 = vld [vmem:[%s7668] sm:$0xf]
        %v7670 = vld [vmem:[%s7668 + $0x4] sm:$0xf]
        %v7671 = vld [vmem:[%s7668 + $0x8] sm:$0xf]
        %v7672 = vld [vmem:[%s7668 + $0xc] sm:$0xf]
        %v7673 = vld [vmem:[%s7668 + $0x10] sm:$0xf]
        %v7674 = vld [vmem:[%s7668 + $0x14] sm:$0xf]
        %v7675 = vld [vmem:[%s7668 + $0x18] sm:$0xf]
        %v7676 = vld [vmem:[%s7668 + $0x1c] sm:$0xf]
        %v7685 = vunpack.c.l.b16 %v7669
        %v7686 = vunpack.c.l.b16 %v7670
        %v7687 = vunpack.c.l.b16 %v7671
        %v7688 = vunpack.c.l.b16 %v7672
        %v7689 = vunpack.c.l.b16 %v7673
        %v7690 = vunpack.c.l.b16 %v7674
        %v7691 = vunpack.c.l.b16 %v7675
        %v7692 = vunpack.c.l.b16 %v7676
        %v7693 = vpack.c.b16 %v7686, %v7685
        %v7694 = vpack.c.b16 %v7688, %v7687
        %v7695 = vpack.c.b16 %v7690, %v7689
        %v7696 = vpack.c.b16 %v7692, %v7691
        %7701 = vmatpush.bf16.msra.mxu0 0
        %7702 = vmatpush.bf16.msra.mxu0 0
        %7703 = vmatpush.bf16.msra.mxu0 0
        %7704 = vmatpush.bf16.msra.mxu0 0
        %7705 = vmatpush.bf16.msra.mxu0 %v7696
        %7706 = vmatpush.bf16.msra.mxu0 %v7695
        %7707 = vmatpush.bf16.msra.mxu0 %v7694
        %7708 = vmatpush.bf16.msra.mxu0 %v7693
        %7709 = vmatmul.bf16.gmra.mxu0 %v7404
        %v7710 = vpop.f32.mrf.mxu0
        %v7711 = vadd.f32 0.0, %v7710
        %v7712 = vpop.f32.mrf.mxu0
        %v7713 = vadd.f32 0.0, %v7712
        %7714 = vdwg.mxu0
        %s7715 = scalar_lea.vmem [#allocation24], 32
        %v7716 = vld [vmem:[%s7715] sm:$0xf]
        %v7717 = vld [vmem:[%s7715 + $0x4] sm:$0xf]
        %v7718 = vpack.c.bf16 %v7713, %v7711
        %v7721 = vunpack.c.l.b16 %v7716
        %v7722 = vunpack.c.l.b16 %v7717
        %v7723 = vpack.c.b16 %v7722, %v7721
        %v7725 = vsel %vm3935, %v7723, 0
        %7727 = vmatpush.bf16.msra.mxu0 0
        %7728 = vmatpush.bf16.msra.mxu0 0
        %7729 = vmatpush.bf16.msra.mxu0 0
        %7730 = vmatpush.bf16.msra.mxu0 0
        %7731 = vmatpush.bf16.msra.mxu0 0
        %7732 = vmatpush.bf16.msra.mxu0 0
        %7733 = vmatpush.bf16.msra.mxu0 0
        %7734 = vmatpush.bf16.msra.mxu0 %v7718
        %7735 = vmatmul.bf16.gmra.mxu0 %v7725
        %v7736 = vpop.f32.mrf.mxu0
        %v7737 = vadd.f32 0.0, %v7736
        %v7738 = vpop.f32.mrf.mxu0
        %v7739 = vadd.f32 0.0, %v7738
        %7740 = vdwg.mxu0
        %v7741 = vadd.f32 %v7666, %v7737
        %v7742 = vadd.f32 %v7667, %v7739
        %s7743 = scalar_lea.vmem [#allocation6], 160
        %v7744 = vld [vmem:[%s7743] sm:$0xf]
        %v7745 = vld [vmem:[%s7743 + $0x4] sm:$0xf]
        %v7746 = vld [vmem:[%s7743 + $0x8] sm:$0xf]
        %v7747 = vld [vmem:[%s7743 + $0xc] sm:$0xf]
        %v7748 = vld [vmem:[%s7743 + $0x10] sm:$0xf]
        %v7749 = vld [vmem:[%s7743 + $0x14] sm:$0xf]
        %v7750 = vld [vmem:[%s7743 + $0x18] sm:$0xf]
        %v7751 = vld [vmem:[%s7743 + $0x1c] sm:$0xf]
        %v7760 = vunpack.c.l.b16 %v7744
        %v7761 = vunpack.c.l.b16 %v7745
        %v7762 = vunpack.c.l.b16 %v7746
        %v7763 = vunpack.c.l.b16 %v7747
        %v7764 = vunpack.c.l.b16 %v7748
        %v7765 = vunpack.c.l.b16 %v7749
        %v7766 = vunpack.c.l.b16 %v7750
        %v7767 = vunpack.c.l.b16 %v7751
        %v7768 = vpack.c.b16 %v7761, %v7760
        %v7769 = vpack.c.b16 %v7763, %v7762
        %v7770 = vpack.c.b16 %v7765, %v7764
        %v7771 = vpack.c.b16 %v7767, %v7766
        %7776 = vmatpush.bf16.msra.mxu0 0
        %7777 = vmatpush.bf16.msra.mxu0 0
        %7778 = vmatpush.bf16.msra.mxu0 0
        %7779 = vmatpush.bf16.msra.mxu0 0
        %7780 = vmatpush.bf16.msra.mxu0 %v7771
        %7781 = vmatpush.bf16.msra.mxu0 %v7770
        %7782 = vmatpush.bf16.msra.mxu0 %v7769
        %7783 = vmatpush.bf16.msra.mxu0 %v7768
        %7784 = vmatmul.bf16.gmra.mxu0 %v7404
        %v7785 = vpop.f32.mrf.mxu0
        %v7786 = vadd.f32 0.0, %v7785
        %v7787 = vpop.f32.mrf.mxu0
        %v7788 = vadd.f32 0.0, %v7787
        %7789 = vdwg.mxu0
        %s7790 = scalar_lea.vmem [#allocation24], 40
        %v7791 = vld [vmem:[%s7790] sm:$0xf]
        %v7792 = vld [vmem:[%s7790 + $0x4] sm:$0xf]
        %v7793 = vpack.c.bf16 %v7788, %v7786
        %v7796 = vunpack.c.l.b16 %v7791
        %v7797 = vunpack.c.l.b16 %v7792
        %v7798 = vpack.c.b16 %v7797, %v7796
        %v7800 = vsel %vm3935, %v7798, 0
        %7802 = vmatpush.bf16.msra.mxu0 0
        %7803 = vmatpush.bf16.msra.mxu0 0
        %7804 = vmatpush.bf16.msra.mxu0 0
        %7805 = vmatpush.bf16.msra.mxu0 0
        %7806 = vmatpush.bf16.msra.mxu0 0
        %7807 = vmatpush.bf16.msra.mxu0 0
        %7808 = vmatpush.bf16.msra.mxu0 0
        %7809 = vmatpush.bf16.msra.mxu0 %v7793
        %7810 = vmatmul.bf16.gmra.mxu0 %v7800
        %v7811 = vpop.f32.mrf.mxu0
        %v7812 = vadd.f32 0.0, %v7811
        %v7813 = vpop.f32.mrf.mxu0
        %v7814 = vadd.f32 0.0, %v7813
        %7815 = vdwg.mxu0
        %v7816 = vadd.f32 %v7741, %v7812
        %v7817 = vadd.f32 %v7742, %v7814
        %s7818 = scalar_lea.vmem [#allocation6], 192
        %v7819 = vld [vmem:[%s7818] sm:$0xf]
        %v7820 = vld [vmem:[%s7818 + $0x4] sm:$0xf]
        %v7821 = vld [vmem:[%s7818 + $0x8] sm:$0xf]
        %v7822 = vld [vmem:[%s7818 + $0xc] sm:$0xf]
        %v7823 = vld [vmem:[%s7818 + $0x10] sm:$0xf]
        %v7824 = vld [vmem:[%s7818 + $0x14] sm:$0xf]
        %v7825 = vld [vmem:[%s7818 + $0x18] sm:$0xf]
        %v7826 = vld [vmem:[%s7818 + $0x1c] sm:$0xf]
        %v7835 = vunpack.c.l.b16 %v7819
        %v7836 = vunpack.c.l.b16 %v7820
        %v7837 = vunpack.c.l.b16 %v7821
        %v7838 = vunpack.c.l.b16 %v7822
        %v7839 = vunpack.c.l.b16 %v7823
        %v7840 = vunpack.c.l.b16 %v7824
        %v7841 = vunpack.c.l.b16 %v7825
        %v7842 = vunpack.c.l.b16 %v7826
        %v7843 = vpack.c.b16 %v7836, %v7835
        %v7844 = vpack.c.b16 %v7838, %v7837
        %v7845 = vpack.c.b16 %v7840, %v7839
        %v7846 = vpack.c.b16 %v7842, %v7841
        %7851 = vmatpush.bf16.msra.mxu0 0
        %7852 = vmatpush.bf16.msra.mxu0 0
        %7853 = vmatpush.bf16.msra.mxu0 0
        %7854 = vmatpush.bf16.msra.mxu0 0
        %7855 = vmatpush.bf16.msra.mxu0 %v7846
        %7856 = vmatpush.bf16.msra.mxu0 %v7845
        %7857 = vmatpush.bf16.msra.mxu0 %v7844
        %7858 = vmatpush.bf16.msra.mxu0 %v7843
        %7859 = vmatmul.bf16.gmra.mxu0 %v7404
        %v7860 = vpop.f32.mrf.mxu0
        %v7861 = vadd.f32 0.0, %v7860
        %v7862 = vpop.f32.mrf.mxu0
        %v7863 = vadd.f32 0.0, %v7862
        %7864 = vdwg.mxu0
        %s7865 = scalar_lea.vmem [#allocation24], 48
        %v7866 = vld [vmem:[%s7865] sm:$0xf]
        %v7867 = vld [vmem:[%s7865 + $0x4] sm:$0xf]
        %v7868 = vpack.c.bf16 %v7863, %v7861
        %v7871 = vunpack.c.l.b16 %v7866
        %v7872 = vunpack.c.l.b16 %v7867
        %v7873 = vpack.c.b16 %v7872, %v7871
        %v7875 = vsel %vm3935, %v7873, 0
        %7877 = vmatpush.bf16.msra.mxu0 0
        %7878 = vmatpush.bf16.msra.mxu0 0
        %7879 = vmatpush.bf16.msra.mxu0 0
        %7880 = vmatpush.bf16.msra.mxu0 0
        %7881 = vmatpush.bf16.msra.mxu0 0
        %7882 = vmatpush.bf16.msra.mxu0 0
        %7883 = vmatpush.bf16.msra.mxu0 0
        %7884 = vmatpush.bf16.msra.mxu0 %v7868
        %7885 = vmatmul.bf16.gmra.mxu0 %v7875
        %v7886 = vpop.f32.mrf.mxu0
        %v7887 = vadd.f32 0.0, %v7886
        %v7888 = vpop.f32.mrf.mxu0
        %v7889 = vadd.f32 0.0, %v7888
        %7890 = vdwg.mxu0
        %v7891 = vadd.f32 %v7816, %v7887
        %v7892 = vadd.f32 %v7817, %v7889
        %s7893 = scalar_lea.vmem [#allocation6], 224
        %v7894 = vld [vmem:[%s7893] sm:$0xf]
        %v7895 = vld [vmem:[%s7893 + $0x4] sm:$0xf]
        %v7896 = vld [vmem:[%s7893 + $0x8] sm:$0xf]
        %v7897 = vld [vmem:[%s7893 + $0xc] sm:$0xf]
        %v7898 = vld [vmem:[%s7893 + $0x10] sm:$0xf]
        %v7899 = vld [vmem:[%s7893 + $0x14] sm:$0xf]
        %v7900 = vld [vmem:[%s7893 + $0x18] sm:$0xf]
        %v7901 = vld [vmem:[%s7893 + $0x1c] sm:$0xf]
        %v7910 = vunpack.c.l.b16 %v7894
        %v7911 = vunpack.c.l.b16 %v7895
        %v7912 = vunpack.c.l.b16 %v7896
        %v7913 = vunpack.c.l.b16 %v7897
        %v7914 = vunpack.c.l.b16 %v7898
        %v7915 = vunpack.c.l.b16 %v7899
        %v7916 = vunpack.c.l.b16 %v7900
        %v7917 = vunpack.c.l.b16 %v7901
        %v7918 = vpack.c.b16 %v7911, %v7910
        %v7919 = vpack.c.b16 %v7913, %v7912
        %v7920 = vpack.c.b16 %v7915, %v7914
        %v7921 = vpack.c.b16 %v7917, %v7916
        %7926 = vmatpush.bf16.msra.mxu0 0
        %7927 = vmatpush.bf16.msra.mxu0 0
        %7928 = vmatpush.bf16.msra.mxu0 0
        %7929 = vmatpush.bf16.msra.mxu0 0
        %7930 = vmatpush.bf16.msra.mxu0 %v7921
        %7931 = vmatpush.bf16.msra.mxu0 %v7920
        %7932 = vmatpush.bf16.msra.mxu0 %v7919
        %7933 = vmatpush.bf16.msra.mxu0 %v7918
        %7934 = vmatmul.bf16.gmra.mxu0 %v7404
        %v7935 = vpop.f32.mrf.mxu0
        %v7936 = vadd.f32 0.0, %v7935
        %v7937 = vpop.f32.mrf.mxu0
        %v7938 = vadd.f32 0.0, %v7937
        %7939 = vdwg.mxu0
        %s7940 = scalar_lea.vmem [#allocation24], 56
        %v7941 = vld [vmem:[%s7940] sm:$0xf]
        %v7942 = vld [vmem:[%s7940 + $0x4] sm:$0xf]
        %v7943 = vpack.c.bf16 %v7938, %v7936
        %v7946 = vunpack.c.l.b16 %v7941
        %v7947 = vunpack.c.l.b16 %v7942
        %v7948 = vpack.c.b16 %v7947, %v7946
        %v7950 = vsel %vm3935, %v7948, 0
        %7952 = vmatpush.bf16.msra.mxu0 0
        %7953 = vmatpush.bf16.msra.mxu0 0
        %7954 = vmatpush.bf16.msra.mxu0 0
        %7955 = vmatpush.bf16.msra.mxu0 0
        %7956 = vmatpush.bf16.msra.mxu0 0
        %7957 = vmatpush.bf16.msra.mxu0 0
        %7958 = vmatpush.bf16.msra.mxu0 0
        %7959 = vmatpush.bf16.msra.mxu0 %v7943
        %7960 = vmatmul.bf16.gmra.mxu0 %v7950
        %v7961 = vpop.f32.mrf.mxu0
        %v7962 = vadd.f32 0.0, %v7961
        %v7963 = vpop.f32.mrf.mxu0
        %v7964 = vadd.f32 0.0, %v7963
        %7965 = vdwg.mxu0
        %v7966 = vadd.f32 %v7891, %v7962
        %v7967 = vadd.f32 %v7892, %v7964
        %s7968 = scalar_lea.vmem [#allocation6], 256
        %v7969 = vld [vmem:[%s7968] sm:$0xf]
        %v7970 = vld [vmem:[%s7968 + $0x4] sm:$0xf]
        %v7971 = vld [vmem:[%s7968 + $0x8] sm:$0xf]
        %v7972 = vld [vmem:[%s7968 + $0xc] sm:$0xf]
        %v7973 = vld [vmem:[%s7968 + $0x10] sm:$0xf]
        %v7974 = vld [vmem:[%s7968 + $0x14] sm:$0xf]
        %v7975 = vld [vmem:[%s7968 + $0x18] sm:$0xf]
        %v7976 = vld [vmem:[%s7968 + $0x1c] sm:$0xf]
        %v7985 = vunpack.c.l.b16 %v7969
        %v7986 = vunpack.c.l.b16 %v7970
        %v7987 = vunpack.c.l.b16 %v7971
        %v7988 = vunpack.c.l.b16 %v7972
        %v7989 = vunpack.c.l.b16 %v7973
        %v7990 = vunpack.c.l.b16 %v7974
        %v7991 = vunpack.c.l.b16 %v7975
        %v7992 = vunpack.c.l.b16 %v7976
        %v7993 = vpack.c.b16 %v7986, %v7985
        %v7994 = vpack.c.b16 %v7988, %v7987
        %v7995 = vpack.c.b16 %v7990, %v7989
        %v7996 = vpack.c.b16 %v7992, %v7991
        %8001 = vmatpush.bf16.msra.mxu0 0
        %8002 = vmatpush.bf16.msra.mxu0 0
        %8003 = vmatpush.bf16.msra.mxu0 0
        %8004 = vmatpush.bf16.msra.mxu0 0
        %8005 = vmatpush.bf16.msra.mxu0 %v7996
        %8006 = vmatpush.bf16.msra.mxu0 %v7995
        %8007 = vmatpush.bf16.msra.mxu0 %v7994
        %8008 = vmatpush.bf16.msra.mxu0 %v7993
        %8009 = vmatmul.bf16.gmra.mxu0 %v7404
        %v8010 = vpop.f32.mrf.mxu0
        %v8011 = vadd.f32 0.0, %v8010
        %v8012 = vpop.f32.mrf.mxu0
        %v8013 = vadd.f32 0.0, %v8012
        %8014 = vdwg.mxu0
        %s8015 = scalar_lea.vmem [#allocation24], 64
        %v8016 = vld [vmem:[%s8015] sm:$0xf]
        %v8017 = vld [vmem:[%s8015 + $0x4] sm:$0xf]
        %v8018 = vpack.c.bf16 %v8013, %v8011
        %v8021 = vunpack.c.l.b16 %v8016
        %v8022 = vunpack.c.l.b16 %v8017
        %v8023 = vpack.c.b16 %v8022, %v8021
        %v8025 = vsel %vm3935, %v8023, 0
        %8027 = vmatpush.bf16.msra.mxu0 0
        %8028 = vmatpush.bf16.msra.mxu0 0
        %8029 = vmatpush.bf16.msra.mxu0 0
        %8030 = vmatpush.bf16.msra.mxu0 0
        %8031 = vmatpush.bf16.msra.mxu0 0
        %8032 = vmatpush.bf16.msra.mxu0 0
        %8033 = vmatpush.bf16.msra.mxu0 0
        %8034 = vmatpush.bf16.msra.mxu0 %v8018
        %8035 = vmatmul.bf16.gmra.mxu0 %v8025
        %v8036 = vpop.f32.mrf.mxu0
        %v8037 = vadd.f32 0.0, %v8036
        %v8038 = vpop.f32.mrf.mxu0
        %v8039 = vadd.f32 0.0, %v8038
        %8040 = vdwg.mxu0
        %v8041 = vadd.f32 %v7966, %v8037
        %v8042 = vadd.f32 %v7967, %v8039
        %v8043 = vld [vmem:[#allocation22] sm:$0xff]
        %v8044 = vld [vmem:[#allocation22 + $0x8] sm:$0xff]
        %8046 = vset.pattern.permute.xlu0 0
        %8047 = vperm.xlu0 %8046, %v8043
        %v8048 = vpop.permute.xlu0 %8047
        %8051 = vset.pattern.permute.xlu0 0
        %8052 = vperm.xlu0 %8051, %v8044
        %v8053 = vpop.permute.xlu0 %8052
        %v8055 = vadd.f32 %v8041, %v8048
        %v8056 = vadd.f32 %v8042, %v8053
        %v8057 = vadd.f32 %v8055, %v7365
        %v8058 = vadd.f32 %v8056, %v7367
        %v8059 = vmax.f32 %v8057, 0.0
        %v8060 = vmax.f32 %v8058, 0.0
        %v8061 = vpack.c.bf16 %v8060, %v8059
        %v8062 = vld [vmem:[#allocation7] sm:$0xf]
        %v8063 = vld [vmem:[#allocation7 + $0x4] sm:$0xf]
        %v8064 = vld [vmem:[#allocation7 + $0x8] sm:$0xf]
        %v8065 = vld [vmem:[#allocation7 + $0xc] sm:$0xf]
        %v8066 = vld [vmem:[#allocation7 + $0x10] sm:$0xf]
        %v8067 = vld [vmem:[#allocation7 + $0x14] sm:$0xf]
        %v8068 = vld [vmem:[#allocation7 + $0x18] sm:$0xf]
        %v8069 = vld [vmem:[#allocation7 + $0x1c] sm:$0xf]
        %v8078 = vunpack.c.l.b16 %v8062
        %v8079 = vunpack.c.l.b16 %v8063
        %v8080 = vunpack.c.l.b16 %v8064
        %v8081 = vunpack.c.l.b16 %v8065
        %v8082 = vunpack.c.l.b16 %v8066
        %v8083 = vunpack.c.l.b16 %v8067
        %v8084 = vunpack.c.l.b16 %v8068
        %v8085 = vunpack.c.l.b16 %v8069
        %v8086 = vpack.c.b16 %v8079, %v8078
        %v8087 = vpack.c.b16 %v8081, %v8080
        %v8088 = vpack.c.b16 %v8083, %v8082
        %v8089 = vpack.c.b16 %v8085, %v8084
        %v8095 = vsel %vm7402, %v8061, 0
        %8097 = vmatpush.bf16.msra.mxu0 0
        %8098 = vmatpush.bf16.msra.mxu0 0
        %8099 = vmatpush.bf16.msra.mxu0 0
        %8100 = vmatpush.bf16.msra.mxu0 0
        %8101 = vmatpush.bf16.msra.mxu0 %v8089
        %8102 = vmatpush.bf16.msra.mxu0 %v8088
        %8103 = vmatpush.bf16.msra.mxu0 %v8087
        %8104 = vmatpush.bf16.msra.mxu0 %v8086
        %8105 = vmatmul.bf16.gmra.mxu0 %v8095
        %v8106 = vpop.f32.mrf.mxu0
        %v8107 = vadd.f32 0.0, %v8106
        %v8108 = vpop.f32.mrf.mxu0
        %v8109 = vadd.f32 0.0, %v8108
        %8110 = vdwg.mxu0
        %v8111 = vld [vmem:[#allocation30] sm:$0xf]
        %v8112 = vld [vmem:[#allocation30 + $0x4] sm:$0xf]
        %v8113 = vld [vmem:[#allocation30 + $0x8] sm:$0xf]
        %v8114 = vld [vmem:[#allocation30 + $0xc] sm:$0xf]
        %v8115 = vpack.c.bf16 %v8109, %v8107
        %s8116 = scalar_lea.vmem [#allocation7], 32
        %v8117 = vld [vmem:[%s8116] sm:$0xf]
        %v8118 = vld [vmem:[%s8116 + $0x4] sm:$0xf]
        %v8119 = vld [vmem:[%s8116 + $0x8] sm:$0xf]
        %v8120 = vld [vmem:[%s8116 + $0xc] sm:$0xf]
        %v8121 = vld [vmem:[%s8116 + $0x10] sm:$0xf]
        %v8122 = vld [vmem:[%s8116 + $0x14] sm:$0xf]
        %v8123 = vld [vmem:[%s8116 + $0x18] sm:$0xf]
        %v8124 = vld [vmem:[%s8116 + $0x1c] sm:$0xf]
        %v8133 = vunpack.c.l.b16 %v8117
        %v8134 = vunpack.c.l.b16 %v8118
        %v8135 = vunpack.c.l.b16 %v8119
        %v8136 = vunpack.c.l.b16 %v8120
        %v8137 = vunpack.c.l.b16 %v8121
        %v8138 = vunpack.c.l.b16 %v8122
        %v8139 = vunpack.c.l.b16 %v8123
        %v8140 = vunpack.c.l.b16 %v8124
        %v8141 = vpack.c.b16 %v8134, %v8133
        %v8142 = vpack.c.b16 %v8136, %v8135
        %v8143 = vpack.c.b16 %v8138, %v8137
        %v8144 = vpack.c.b16 %v8140, %v8139
        %8149 = vmatpush.bf16.msra.mxu0 0
        %8150 = vmatpush.bf16.msra.mxu0 0
        %8151 = vmatpush.bf16.msra.mxu0 0
        %8152 = vmatpush.bf16.msra.mxu0 0
        %8153 = vmatpush.bf16.msra.mxu0 %v8144
        %8154 = vmatpush.bf16.msra.mxu0 %v8143
        %8155 = vmatpush.bf16.msra.mxu0 %v8142
        %8156 = vmatpush.bf16.msra.mxu0 %v8141
        %8157 = vmatmul.bf16.gmra.mxu0 %v8095
        %v8158 = vpop.f32.mrf.mxu0
        %v8159 = vadd.f32 0.0, %v8158
        %v8160 = vpop.f32.mrf.mxu0
        %v8161 = vadd.f32 0.0, %v8160
        %8162 = vdwg.mxu0
        %s8163 = scalar_lea.vmem [#allocation30], 16
        %v8164 = vld [vmem:[%s8163] sm:$0xf]
        %v8165 = vld [vmem:[%s8163 + $0x4] sm:$0xf]
        %v8166 = vld [vmem:[%s8163 + $0x8] sm:$0xf]
        %v8167 = vld [vmem:[%s8163 + $0xc] sm:$0xf]
        %v8168 = vpack.c.bf16 %v8161, %v8159
        %v8173 = vunpack.c.l.b16 %v8164
        %v8174 = vunpack.c.l.b16 %v8165
        %v8175 = vunpack.c.l.b16 %v8166
        %v8176 = vunpack.c.l.b16 %v8167
        %v8177 = vpack.c.b16 %v8174, %v8173
        %v8178 = vpack.c.b16 %v8176, %v8175
        %v8180 = vsel %vm3935, %v8177, 0
        %v8183 = vsel %vm3935, %v8178, 0
        %8185 = vmatpush.bf16.msra.mxu0 0
        %8186 = vmatpush.bf16.msra.mxu0 0
        %8187 = vmatpush.bf16.msra.mxu0 0
        %8188 = vmatpush.bf16.msra.mxu0 0
        %8189 = vmatpush.bf16.msra.mxu0 0
        %8190 = vmatpush.bf16.msra.mxu0 0
        %8191 = vmatpush.bf16.msra.mxu0 0
        %8192 = vmatpush.bf16.msra.mxu0 %v8168
        %8193 = vmatmul.bf16.gmra.mxu0 %v8180
        %v8194 = vpop.f32.mrf.mxu0
        %v8195 = vadd.f32 0.0, %v8194
        %v8196 = vpop.f32.mrf.mxu0
        %v8197 = vadd.f32 0.0, %v8196
        %8198 = vmatmul.bf16.gmra.mxu0 %v8183
        %v8199 = vpop.f32.mrf.mxu0
        %v8200 = vadd.f32 0.0, %v8199
        %v8201 = vpop.f32.mrf.mxu0
        %v8202 = vadd.f32 0.0, %v8201
        %8203 = vdwg.mxu0
        %v8208 = vunpack.c.l.b16 %v8111
        %v8209 = vunpack.c.l.b16 %v8112
        %v8210 = vunpack.c.l.b16 %v8113
        %v8211 = vunpack.c.l.b16 %v8114
        %v8212 = vpack.c.b16 %v8209, %v8208
        %v8213 = vpack.c.b16 %v8211, %v8210
        %v8215 = vsel %vm3935, %v8212, 0
        %v8218 = vsel %vm3935, %v8213, 0
        %8220 = vmatpush.bf16.msra.mxu0 0
        %8221 = vmatpush.bf16.msra.mxu0 0
        %8222 = vmatpush.bf16.msra.mxu0 0
        %8223 = vmatpush.bf16.msra.mxu0 0
        %8224 = vmatpush.bf16.msra.mxu0 0
        %8225 = vmatpush.bf16.msra.mxu0 0
        %8226 = vmatpush.bf16.msra.mxu0 0
        %8227 = vmatpush.bf16.msra.mxu0 %v8115
        %8228 = vmatmul.bf16.gmra.mxu0 %v8215
        %v8229 = vpop.f32.mrf.mxu0
        %v8230 = vadd.f32 %v8195, %v8229
        %v8231 = vpop.f32.mrf.mxu0
        %v8232 = vadd.f32 %v8197, %v8231
        %8233 = vmatmul.bf16.gmra.mxu0 %v8218
        %v8234 = vpop.f32.mrf.mxu0
        %v8235 = vadd.f32 %v8200, %v8234
        %v8236 = vpop.f32.mrf.mxu0
        %v8237 = vadd.f32 %v8202, %v8236
        %8238 = vdwg.mxu0
        %s8239 = scalar_lea.vmem [#allocation7], 64
        %v8240 = vld [vmem:[%s8239] sm:$0xf]
        %v8241 = vld [vmem:[%s8239 + $0x4] sm:$0xf]
        %v8242 = vld [vmem:[%s8239 + $0x8] sm:$0xf]
        %v8243 = vld [vmem:[%s8239 + $0xc] sm:$0xf]
        %v8244 = vld [vmem:[%s8239 + $0x10] sm:$0xf]
        %v8245 = vld [vmem:[%s8239 + $0x14] sm:$0xf]
        %v8246 = vld [vmem:[%s8239 + $0x18] sm:$0xf]
        %v8247 = vld [vmem:[%s8239 + $0x1c] sm:$0xf]
        %v8256 = vunpack.c.l.b16 %v8240
        %v8257 = vunpack.c.l.b16 %v8241
        %v8258 = vunpack.c.l.b16 %v8242
        %v8259 = vunpack.c.l.b16 %v8243
        %v8260 = vunpack.c.l.b16 %v8244
        %v8261 = vunpack.c.l.b16 %v8245
        %v8262 = vunpack.c.l.b16 %v8246
        %v8263 = vunpack.c.l.b16 %v8247
        %v8264 = vpack.c.b16 %v8257, %v8256
        %v8265 = vpack.c.b16 %v8259, %v8258
        %v8266 = vpack.c.b16 %v8261, %v8260
        %v8267 = vpack.c.b16 %v8263, %v8262
        %8272 = vmatpush.bf16.msra.mxu0 0
        %8273 = vmatpush.bf16.msra.mxu0 0
        %8274 = vmatpush.bf16.msra.mxu0 0
        %8275 = vmatpush.bf16.msra.mxu0 0
        %8276 = vmatpush.bf16.msra.mxu0 %v8267
        %8277 = vmatpush.bf16.msra.mxu0 %v8266
        %8278 = vmatpush.bf16.msra.mxu0 %v8265
        %8279 = vmatpush.bf16.msra.mxu0 %v8264
        %8280 = vmatmul.bf16.gmra.mxu0 %v8095
        %v8281 = vpop.f32.mrf.mxu0
        %v8282 = vadd.f32 0.0, %v8281
        %v8283 = vpop.f32.mrf.mxu0
        %v8284 = vadd.f32 0.0, %v8283
        %8285 = vdwg.mxu0
        %s8286 = scalar_lea.vmem [#allocation30], 32
        %v8287 = vld [vmem:[%s8286] sm:$0xf]
        %v8288 = vld [vmem:[%s8286 + $0x4] sm:$0xf]
        %v8289 = vld [vmem:[%s8286 + $0x8] sm:$0xf]
        %v8290 = vld [vmem:[%s8286 + $0xc] sm:$0xf]
        %v8291 = vpack.c.bf16 %v8284, %v8282
        %v8296 = vunpack.c.l.b16 %v8287
        %v8297 = vunpack.c.l.b16 %v8288
        %v8298 = vunpack.c.l.b16 %v8289
        %v8299 = vunpack.c.l.b16 %v8290
        %v8300 = vpack.c.b16 %v8297, %v8296
        %v8301 = vpack.c.b16 %v8299, %v8298
        %v8303 = vsel %vm3935, %v8300, 0
        %v8306 = vsel %vm3935, %v8301, 0
        %8308 = vmatpush.bf16.msra.mxu0 0
        %8309 = vmatpush.bf16.msra.mxu0 0
        %8310 = vmatpush.bf16.msra.mxu0 0
        %8311 = vmatpush.bf16.msra.mxu0 0
        %8312 = vmatpush.bf16.msra.mxu0 0
        %8313 = vmatpush.bf16.msra.mxu0 0
        %8314 = vmatpush.bf16.msra.mxu0 0
        %8315 = vmatpush.bf16.msra.mxu0 %v8291
        %8316 = vmatmul.bf16.gmra.mxu0 %v8303
        %v8317 = vpop.f32.mrf.mxu0
        %v8318 = vadd.f32 0.0, %v8317
        %v8319 = vpop.f32.mrf.mxu0
        %v8320 = vadd.f32 0.0, %v8319
        %8321 = vmatmul.bf16.gmra.mxu0 %v8306
        %v8322 = vpop.f32.mrf.mxu0
        %v8323 = vadd.f32 0.0, %v8322
        %v8324 = vpop.f32.mrf.mxu0
        %v8325 = vadd.f32 0.0, %v8324
        %8326 = vdwg.mxu0
        %v8327 = vadd.f32 %v8230, %v8318
        %v8328 = vadd.f32 %v8232, %v8320
        %v8329 = vadd.f32 %v8235, %v8323
        %v8330 = vadd.f32 %v8237, %v8325
        %s8331 = scalar_lea.vmem [#allocation7], 96
        %v8332 = vld [vmem:[%s8331] sm:$0xf]
        %v8333 = vld [vmem:[%s8331 + $0x4] sm:$0xf]
        %v8334 = vld [vmem:[%s8331 + $0x8] sm:$0xf]
        %v8335 = vld [vmem:[%s8331 + $0xc] sm:$0xf]
        %v8336 = vld [vmem:[%s8331 + $0x10] sm:$0xf]
        %v8337 = vld [vmem:[%s8331 + $0x14] sm:$0xf]
        %v8338 = vld [vmem:[%s8331 + $0x18] sm:$0xf]
        %v8339 = vld [vmem:[%s8331 + $0x1c] sm:$0xf]
        %v8348 = vunpack.c.l.b16 %v8332
        %v8349 = vunpack.c.l.b16 %v8333
        %v8350 = vunpack.c.l.b16 %v8334
        %v8351 = vunpack.c.l.b16 %v8335
        %v8352 = vunpack.c.l.b16 %v8336
        %v8353 = vunpack.c.l.b16 %v8337
        %v8354 = vunpack.c.l.b16 %v8338
        %v8355 = vunpack.c.l.b16 %v8339
        %v8356 = vpack.c.b16 %v8349, %v8348
        %v8357 = vpack.c.b16 %v8351, %v8350
        %v8358 = vpack.c.b16 %v8353, %v8352
        %v8359 = vpack.c.b16 %v8355, %v8354
        %8364 = vmatpush.bf16.msra.mxu0 0
        %8365 = vmatpush.bf16.msra.mxu0 0
        %8366 = vmatpush.bf16.msra.mxu0 0
        %8367 = vmatpush.bf16.msra.mxu0 0
        %8368 = vmatpush.bf16.msra.mxu0 %v8359
        %8369 = vmatpush.bf16.msra.mxu0 %v8358
        %8370 = vmatpush.bf16.msra.mxu0 %v8357
        %8371 = vmatpush.bf16.msra.mxu0 %v8356
        %8372 = vmatmul.bf16.gmra.mxu0 %v8095
        %v8373 = vpop.f32.mrf.mxu0
        %v8374 = vadd.f32 0.0, %v8373
        %v8375 = vpop.f32.mrf.mxu0
        %v8376 = vadd.f32 0.0, %v8375
        %8377 = vdwg.mxu0
        %s8378 = scalar_lea.vmem [#allocation30], 48
        %v8379 = vld [vmem:[%s8378] sm:$0xf]
        %v8380 = vld [vmem:[%s8378 + $0x4] sm:$0xf]
        %v8381 = vld [vmem:[%s8378 + $0x8] sm:$0xf]
        %v8382 = vld [vmem:[%s8378 + $0xc] sm:$0xf]
        %v8383 = vpack.c.bf16 %v8376, %v8374
        %v8388 = vunpack.c.l.b16 %v8379
        %v8389 = vunpack.c.l.b16 %v8380
        %v8390 = vunpack.c.l.b16 %v8381
        %v8391 = vunpack.c.l.b16 %v8382
        %v8392 = vpack.c.b16 %v8389, %v8388
        %v8393 = vpack.c.b16 %v8391, %v8390
        %v8395 = vsel %vm3935, %v8392, 0
        %v8398 = vsel %vm3935, %v8393, 0
        %8400 = vmatpush.bf16.msra.mxu0 0
        %8401 = vmatpush.bf16.msra.mxu0 0
        %8402 = vmatpush.bf16.msra.mxu0 0
        %8403 = vmatpush.bf16.msra.mxu0 0
        %8404 = vmatpush.bf16.msra.mxu0 0
        %8405 = vmatpush.bf16.msra.mxu0 0
        %8406 = vmatpush.bf16.msra.mxu0 0
        %8407 = vmatpush.bf16.msra.mxu0 %v8383
        %8408 = vmatmul.bf16.gmra.mxu0 %v8395
        %v8409 = vpop.f32.mrf.mxu0
        %v8410 = vadd.f32 0.0, %v8409
        %v8411 = vpop.f32.mrf.mxu0
        %v8412 = vadd.f32 0.0, %v8411
        %8413 = vmatmul.bf16.gmra.mxu0 %v8398
        %v8414 = vpop.f32.mrf.mxu0
        %v8415 = vadd.f32 0.0, %v8414
        %v8416 = vpop.f32.mrf.mxu0
        %v8417 = vadd.f32 0.0, %v8416
        %8418 = vdwg.mxu0
        %v8419 = vadd.f32 %v8327, %v8410
        %v8420 = vadd.f32 %v8328, %v8412
        %v8421 = vadd.f32 %v8329, %v8415
        %v8422 = vadd.f32 %v8330, %v8417
        %s8423 = scalar_lea.vmem [#allocation7], 128
        %v8424 = vld [vmem:[%s8423] sm:$0xf]
        %v8425 = vld [vmem:[%s8423 + $0x4] sm:$0xf]
        %v8426 = vld [vmem:[%s8423 + $0x8] sm:$0xf]
        %v8427 = vld [vmem:[%s8423 + $0xc] sm:$0xf]
        %v8428 = vld [vmem:[%s8423 + $0x10] sm:$0xf]
        %v8429 = vld [vmem:[%s8423 + $0x14] sm:$0xf]
        %v8430 = vld [vmem:[%s8423 + $0x18] sm:$0xf]
        %v8431 = vld [vmem:[%s8423 + $0x1c] sm:$0xf]
        %v8440 = vunpack.c.l.b16 %v8424
        %v8441 = vunpack.c.l.b16 %v8425
        %v8442 = vunpack.c.l.b16 %v8426
        %v8443 = vunpack.c.l.b16 %v8427
        %v8444 = vunpack.c.l.b16 %v8428
        %v8445 = vunpack.c.l.b16 %v8429
        %v8446 = vunpack.c.l.b16 %v8430
        %v8447 = vunpack.c.l.b16 %v8431
        %v8448 = vpack.c.b16 %v8441, %v8440
        %v8449 = vpack.c.b16 %v8443, %v8442
        %v8450 = vpack.c.b16 %v8445, %v8444
        %v8451 = vpack.c.b16 %v8447, %v8446
        %8456 = vmatpush.bf16.msra.mxu0 0
        %8457 = vmatpush.bf16.msra.mxu0 0
        %8458 = vmatpush.bf16.msra.mxu0 0
        %8459 = vmatpush.bf16.msra.mxu0 0
        %8460 = vmatpush.bf16.msra.mxu0 %v8451
        %8461 = vmatpush.bf16.msra.mxu0 %v8450
        %8462 = vmatpush.bf16.msra.mxu0 %v8449
        %8463 = vmatpush.bf16.msra.mxu0 %v8448
        %8464 = vmatmul.bf16.gmra.mxu0 %v8095
        %v8465 = vpop.f32.mrf.mxu0
        %v8466 = vadd.f32 0.0, %v8465
        %v8467 = vpop.f32.mrf.mxu0
        %v8468 = vadd.f32 0.0, %v8467
        %8469 = vdwg.mxu0
        %s8470 = scalar_lea.vmem [#allocation30], 64
        %v8471 = vld [vmem:[%s8470] sm:$0xf]
        %v8472 = vld [vmem:[%s8470 + $0x4] sm:$0xf]
        %v8473 = vld [vmem:[%s8470 + $0x8] sm:$0xf]
        %v8474 = vld [vmem:[%s8470 + $0xc] sm:$0xf]
        %v8475 = vpack.c.bf16 %v8468, %v8466
        %v8480 = vunpack.c.l.b16 %v8471
        %v8481 = vunpack.c.l.b16 %v8472
        %v8482 = vunpack.c.l.b16 %v8473
        %v8483 = vunpack.c.l.b16 %v8474
        %v8484 = vpack.c.b16 %v8481, %v8480
        %v8485 = vpack.c.b16 %v8483, %v8482
        %v8487 = vsel %vm3935, %v8484, 0
        %v8490 = vsel %vm3935, %v8485, 0
        %8492 = vmatpush.bf16.msra.mxu0 0
        %8493 = vmatpush.bf16.msra.mxu0 0
        %8494 = vmatpush.bf16.msra.mxu0 0
        %8495 = vmatpush.bf16.msra.mxu0 0
        %8496 = vmatpush.bf16.msra.mxu0 0
        %8497 = vmatpush.bf16.msra.mxu0 0
        %8498 = vmatpush.bf16.msra.mxu0 0
        %8499 = vmatpush.bf16.msra.mxu0 %v8475
        %8500 = vmatmul.bf16.gmra.mxu0 %v8487
        %v8501 = vpop.f32.mrf.mxu0
        %v8502 = vadd.f32 0.0, %v8501
        %v8503 = vpop.f32.mrf.mxu0
        %v8504 = vadd.f32 0.0, %v8503
        %8505 = vmatmul.bf16.gmra.mxu0 %v8490
        %v8506 = vpop.f32.mrf.mxu0
        %v8507 = vadd.f32 0.0, %v8506
        %v8508 = vpop.f32.mrf.mxu0
        %v8509 = vadd.f32 0.0, %v8508
        %8510 = vdwg.mxu0
        %v8511 = vadd.f32 %v8419, %v8502
        %v8512 = vadd.f32 %v8420, %v8504
        %v8513 = vadd.f32 %v8421, %v8507
        %v8514 = vadd.f32 %v8422, %v8509
        %s8515 = scalar_lea.vmem [#allocation7], 160
        %v8516 = vld [vmem:[%s8515] sm:$0xf]
        %v8517 = vld [vmem:[%s8515 + $0x4] sm:$0xf]
        %v8518 = vld [vmem:[%s8515 + $0x8] sm:$0xf]
        %v8519 = vld [vmem:[%s8515 + $0xc] sm:$0xf]
        %v8520 = vld [vmem:[%s8515 + $0x10] sm:$0xf]
        %v8521 = vld [vmem:[%s8515 + $0x14] sm:$0xf]
        %v8522 = vld [vmem:[%s8515 + $0x18] sm:$0xf]
        %v8523 = vld [vmem:[%s8515 + $0x1c] sm:$0xf]
        %v8532 = vunpack.c.l.b16 %v8516
        %v8533 = vunpack.c.l.b16 %v8517
        %v8534 = vunpack.c.l.b16 %v8518
        %v8535 = vunpack.c.l.b16 %v8519
        %v8536 = vunpack.c.l.b16 %v8520
        %v8537 = vunpack.c.l.b16 %v8521
        %v8538 = vunpack.c.l.b16 %v8522
        %v8539 = vunpack.c.l.b16 %v8523
        %v8540 = vpack.c.b16 %v8533, %v8532
        %v8541 = vpack.c.b16 %v8535, %v8534
        %v8542 = vpack.c.b16 %v8537, %v8536
        %v8543 = vpack.c.b16 %v8539, %v8538
        %8548 = vmatpush.bf16.msra.mxu0 0
        %8549 = vmatpush.bf16.msra.mxu0 0
        %8550 = vmatpush.bf16.msra.mxu0 0
        %8551 = vmatpush.bf16.msra.mxu0 0
        %8552 = vmatpush.bf16.msra.mxu0 %v8543
        %8553 = vmatpush.bf16.msra.mxu0 %v8542
        %8554 = vmatpush.bf16.msra.mxu0 %v8541
        %8555 = vmatpush.bf16.msra.mxu0 %v8540
        %8556 = vmatmul.bf16.gmra.mxu0 %v8095
        %v8557 = vpop.f32.mrf.mxu0
        %v8558 = vadd.f32 0.0, %v8557
        %v8559 = vpop.f32.mrf.mxu0
        %v8560 = vadd.f32 0.0, %v8559
        %8561 = vdwg.mxu0
        %s8562 = scalar_lea.vmem [#allocation30], 80
        %v8563 = vld [vmem:[%s8562] sm:$0xf]
        %v8564 = vld [vmem:[%s8562 + $0x4] sm:$0xf]
        %v8565 = vld [vmem:[%s8562 + $0x8] sm:$0xf]
        %v8566 = vld [vmem:[%s8562 + $0xc] sm:$0xf]
        %v8567 = vpack.c.bf16 %v8560, %v8558
        %v8572 = vunpack.c.l.b16 %v8563
        %v8573 = vunpack.c.l.b16 %v8564
        %v8574 = vunpack.c.l.b16 %v8565
        %v8575 = vunpack.c.l.b16 %v8566
        %v8576 = vpack.c.b16 %v8573, %v8572
        %v8577 = vpack.c.b16 %v8575, %v8574
        %v8579 = vsel %vm3935, %v8576, 0
        %v8582 = vsel %vm3935, %v8577, 0
        %8584 = vmatpush.bf16.msra.mxu0 0
        %8585 = vmatpush.bf16.msra.mxu0 0
        %8586 = vmatpush.bf16.msra.mxu0 0
        %8587 = vmatpush.bf16.msra.mxu0 0
        %8588 = vmatpush.bf16.msra.mxu0 0
        %8589 = vmatpush.bf16.msra.mxu0 0
        %8590 = vmatpush.bf16.msra.mxu0 0
        %8591 = vmatpush.bf16.msra.mxu0 %v8567
        %8592 = vmatmul.bf16.gmra.mxu0 %v8579
        %v8593 = vpop.f32.mrf.mxu0
        %v8594 = vadd.f32 0.0, %v8593
        %v8595 = vpop.f32.mrf.mxu0
        %v8596 = vadd.f32 0.0, %v8595
        %8597 = vmatmul.bf16.gmra.mxu0 %v8582
        %v8598 = vpop.f32.mrf.mxu0
        %v8599 = vadd.f32 0.0, %v8598
        %v8600 = vpop.f32.mrf.mxu0
        %v8601 = vadd.f32 0.0, %v8600
        %8602 = vdwg.mxu0
        %v8603 = vadd.f32 %v8511, %v8594
        %v8604 = vadd.f32 %v8512, %v8596
        %v8605 = vadd.f32 %v8513, %v8599
        %v8606 = vadd.f32 %v8514, %v8601
        %s8607 = scalar_lea.vmem [#allocation7], 192
        %v8608 = vld [vmem:[%s8607] sm:$0xf]
        %v8609 = vld [vmem:[%s8607 + $0x4] sm:$0xf]
        %v8610 = vld [vmem:[%s8607 + $0x8] sm:$0xf]
        %v8611 = vld [vmem:[%s8607 + $0xc] sm:$0xf]
        %v8612 = vld [vmem:[%s8607 + $0x10] sm:$0xf]
        %v8613 = vld [vmem:[%s8607 + $0x14] sm:$0xf]
        %v8614 = vld [vmem:[%s8607 + $0x18] sm:$0xf]
        %v8615 = vld [vmem:[%s8607 + $0x1c] sm:$0xf]
        %v8624 = vunpack.c.l.b16 %v8608
        %v8625 = vunpack.c.l.b16 %v8609
        %v8626 = vunpack.c.l.b16 %v8610
        %v8627 = vunpack.c.l.b16 %v8611
        %v8628 = vunpack.c.l.b16 %v8612
        %v8629 = vunpack.c.l.b16 %v8613
        %v8630 = vunpack.c.l.b16 %v8614
        %v8631 = vunpack.c.l.b16 %v8615
        %v8632 = vpack.c.b16 %v8625, %v8624
        %v8633 = vpack.c.b16 %v8627, %v8626
        %v8634 = vpack.c.b16 %v8629, %v8628
        %v8635 = vpack.c.b16 %v8631, %v8630
        %8640 = vmatpush.bf16.msra.mxu0 0
        %8641 = vmatpush.bf16.msra.mxu0 0
        %8642 = vmatpush.bf16.msra.mxu0 0
        %8643 = vmatpush.bf16.msra.mxu0 0
        %8644 = vmatpush.bf16.msra.mxu0 %v8635
        %8645 = vmatpush.bf16.msra.mxu0 %v8634
        %8646 = vmatpush.bf16.msra.mxu0 %v8633
        %8647 = vmatpush.bf16.msra.mxu0 %v8632
        %8648 = vmatmul.bf16.gmra.mxu0 %v8095
        %v8649 = vpop.f32.mrf.mxu0
        %v8650 = vadd.f32 0.0, %v8649
        %v8651 = vpop.f32.mrf.mxu0
        %v8652 = vadd.f32 0.0, %v8651
        %8653 = vdwg.mxu0
        %s8654 = scalar_lea.vmem [#allocation30], 96
        %v8655 = vld [vmem:[%s8654] sm:$0xf]
        %v8656 = vld [vmem:[%s8654 + $0x4] sm:$0xf]
        %v8657 = vld [vmem:[%s8654 + $0x8] sm:$0xf]
        %v8658 = vld [vmem:[%s8654 + $0xc] sm:$0xf]
        %v8659 = vpack.c.bf16 %v8652, %v8650
        %v8664 = vunpack.c.l.b16 %v8655
        %v8665 = vunpack.c.l.b16 %v8656
        %v8666 = vunpack.c.l.b16 %v8657
        %v8667 = vunpack.c.l.b16 %v8658
        %v8668 = vpack.c.b16 %v8665, %v8664
        %v8669 = vpack.c.b16 %v8667, %v8666
        %v8671 = vsel %vm3935, %v8668, 0
        %v8674 = vsel %vm3935, %v8669, 0
        %8676 = vmatpush.bf16.msra.mxu0 0
        %8677 = vmatpush.bf16.msra.mxu0 0
        %8678 = vmatpush.bf16.msra.mxu0 0
        %8679 = vmatpush.bf16.msra.mxu0 0
        %8680 = vmatpush.bf16.msra.mxu0 0
        %8681 = vmatpush.bf16.msra.mxu0 0
        %8682 = vmatpush.bf16.msra.mxu0 0
        %8683 = vmatpush.bf16.msra.mxu0 %v8659
        %8684 = vmatmul.bf16.gmra.mxu0 %v8671
        %v8685 = vpop.f32.mrf.mxu0
        %v8686 = vadd.f32 0.0, %v8685
        %v8687 = vpop.f32.mrf.mxu0
        %v8688 = vadd.f32 0.0, %v8687
        %8689 = vmatmul.bf16.gmra.mxu0 %v8674
        %v8690 = vpop.f32.mrf.mxu0
        %v8691 = vadd.f32 0.0, %v8690
        %v8692 = vpop.f32.mrf.mxu0
        %v8693 = vadd.f32 0.0, %v8692
        %8694 = vdwg.mxu0
        %v8695 = vadd.f32 %v8603, %v8686
        %v8696 = vadd.f32 %v8604, %v8688
        %v8697 = vadd.f32 %v8605, %v8691
        %v8698 = vadd.f32 %v8606, %v8693
        %s8699 = scalar_lea.vmem [#allocation7], 224
        %v8700 = vld [vmem:[%s8699] sm:$0xf]
        %v8701 = vld [vmem:[%s8699 + $0x4] sm:$0xf]
        %v8702 = vld [vmem:[%s8699 + $0x8] sm:$0xf]
        %v8703 = vld [vmem:[%s8699 + $0xc] sm:$0xf]
        %v8704 = vld [vmem:[%s8699 + $0x10] sm:$0xf]
        %v8705 = vld [vmem:[%s8699 + $0x14] sm:$0xf]
        %v8706 = vld [vmem:[%s8699 + $0x18] sm:$0xf]
        %v8707 = vld [vmem:[%s8699 + $0x1c] sm:$0xf]
        %v8716 = vunpack.c.l.b16 %v8700
        %v8717 = vunpack.c.l.b16 %v8701
        %v8718 = vunpack.c.l.b16 %v8702
        %v8719 = vunpack.c.l.b16 %v8703
        %v8720 = vunpack.c.l.b16 %v8704
        %v8721 = vunpack.c.l.b16 %v8705
        %v8722 = vunpack.c.l.b16 %v8706
        %v8723 = vunpack.c.l.b16 %v8707
        %v8724 = vpack.c.b16 %v8717, %v8716
        %v8725 = vpack.c.b16 %v8719, %v8718
        %v8726 = vpack.c.b16 %v8721, %v8720
        %v8727 = vpack.c.b16 %v8723, %v8722
        %8732 = vmatpush.bf16.msra.mxu0 0
        %8733 = vmatpush.bf16.msra.mxu0 0
        %8734 = vmatpush.bf16.msra.mxu0 0
        %8735 = vmatpush.bf16.msra.mxu0 0
        %8736 = vmatpush.bf16.msra.mxu0 %v8727
        %8737 = vmatpush.bf16.msra.mxu0 %v8726
        %8738 = vmatpush.bf16.msra.mxu0 %v8725
        %8739 = vmatpush.bf16.msra.mxu0 %v8724
        %8740 = vmatmul.bf16.gmra.mxu0 %v8095
        %v8741 = vpop.f32.mrf.mxu0
        %v8742 = vadd.f32 0.0, %v8741
        %v8743 = vpop.f32.mrf.mxu0
        %v8744 = vadd.f32 0.0, %v8743
        %8745 = vdwg.mxu0
        %s8746 = scalar_lea.vmem [#allocation30], 112
        %v8747 = vld [vmem:[%s8746] sm:$0xf]
        %v8748 = vld [vmem:[%s8746 + $0x4] sm:$0xf]
        %v8749 = vld [vmem:[%s8746 + $0x8] sm:$0xf]
        %v8750 = vld [vmem:[%s8746 + $0xc] sm:$0xf]
        %v8751 = vpack.c.bf16 %v8744, %v8742
        %v8756 = vunpack.c.l.b16 %v8747
        %v8757 = vunpack.c.l.b16 %v8748
        %v8758 = vunpack.c.l.b16 %v8749
        %v8759 = vunpack.c.l.b16 %v8750
        %v8760 = vpack.c.b16 %v8757, %v8756
        %v8761 = vpack.c.b16 %v8759, %v8758
        %v8763 = vsel %vm3935, %v8760, 0
        %v8766 = vsel %vm3935, %v8761, 0
        %8768 = vmatpush.bf16.msra.mxu0 0
        %8769 = vmatpush.bf16.msra.mxu0 0
        %8770 = vmatpush.bf16.msra.mxu0 0
        %8771 = vmatpush.bf16.msra.mxu0 0
        %8772 = vmatpush.bf16.msra.mxu0 0
        %8773 = vmatpush.bf16.msra.mxu0 0
        %8774 = vmatpush.bf16.msra.mxu0 0
        %8775 = vmatpush.bf16.msra.mxu0 %v8751
        %8776 = vmatmul.bf16.gmra.mxu0 %v8763
        %v8777 = vpop.f32.mrf.mxu0
        %v8778 = vadd.f32 0.0, %v8777
        %v8779 = vpop.f32.mrf.mxu0
        %v8780 = vadd.f32 0.0, %v8779
        %8781 = vmatmul.bf16.gmra.mxu0 %v8766
        %v8782 = vpop.f32.mrf.mxu0
        %v8783 = vadd.f32 0.0, %v8782
        %v8784 = vpop.f32.mrf.mxu0
        %v8785 = vadd.f32 0.0, %v8784
        %8786 = vdwg.mxu0
        %v8787 = vadd.f32 %v8695, %v8778
        %v8788 = vadd.f32 %v8696, %v8780
        %v8789 = vadd.f32 %v8697, %v8783
        %v8790 = vadd.f32 %v8698, %v8785
        %s8791 = scalar_lea.vmem [#allocation7], 256
        %v8792 = vld [vmem:[%s8791] sm:$0xf]
        %v8793 = vld [vmem:[%s8791 + $0x4] sm:$0xf]
        %v8794 = vld [vmem:[%s8791 + $0x8] sm:$0xf]
        %v8795 = vld [vmem:[%s8791 + $0xc] sm:$0xf]
        %v8796 = vld [vmem:[%s8791 + $0x10] sm:$0xf]
        %v8797 = vld [vmem:[%s8791 + $0x14] sm:$0xf]
        %v8798 = vld [vmem:[%s8791 + $0x18] sm:$0xf]
        %v8799 = vld [vmem:[%s8791 + $0x1c] sm:$0xf]
        %v8808 = vunpack.c.l.b16 %v8792
        %v8809 = vunpack.c.l.b16 %v8793
        %v8810 = vunpack.c.l.b16 %v8794
        %v8811 = vunpack.c.l.b16 %v8795
        %v8812 = vunpack.c.l.b16 %v8796
        %v8813 = vunpack.c.l.b16 %v8797
        %v8814 = vunpack.c.l.b16 %v8798
        %v8815 = vunpack.c.l.b16 %v8799
        %v8816 = vpack.c.b16 %v8809, %v8808
        %v8817 = vpack.c.b16 %v8811, %v8810
        %v8818 = vpack.c.b16 %v8813, %v8812
        %v8819 = vpack.c.b16 %v8815, %v8814
        %8824 = vmatpush.bf16.msra.mxu0 0
        %8825 = vmatpush.bf16.msra.mxu0 0
        %8826 = vmatpush.bf16.msra.mxu0 0
        %8827 = vmatpush.bf16.msra.mxu0 0
        %8828 = vmatpush.bf16.msra.mxu0 %v8819
        %8829 = vmatpush.bf16.msra.mxu0 %v8818
        %8830 = vmatpush.bf16.msra.mxu0 %v8817
        %8831 = vmatpush.bf16.msra.mxu0 %v8816
        %8832 = vmatmul.bf16.gmra.mxu0 %v8095
        %v8833 = vpop.f32.mrf.mxu0
        %v8834 = vadd.f32 0.0, %v8833
        %v8835 = vpop.f32.mrf.mxu0
        %v8836 = vadd.f32 0.0, %v8835
        %8837 = vdwg.mxu0
        %s8838 = scalar_lea.vmem [#allocation30], 128
        %v8839 = vld [vmem:[%s8838] sm:$0xf]
        %v8840 = vld [vmem:[%s8838 + $0x4] sm:$0xf]
        %v8841 = vld [vmem:[%s8838 + $0x8] sm:$0xf]
        %v8842 = vld [vmem:[%s8838 + $0xc] sm:$0xf]
        %v8843 = vpack.c.bf16 %v8836, %v8834
        %v8848 = vunpack.c.l.b16 %v8839
        %v8849 = vunpack.c.l.b16 %v8840
        %v8850 = vunpack.c.l.b16 %v8841
        %v8851 = vunpack.c.l.b16 %v8842
        %v8852 = vpack.c.b16 %v8849, %v8848
        %v8853 = vpack.c.b16 %v8851, %v8850
        %v8855 = vsel %vm3935, %v8852, 0
        %v8858 = vsel %vm3935, %v8853, 0
        %8860 = vmatpush.bf16.msra.mxu0 0
        %8861 = vmatpush.bf16.msra.mxu0 0
        %8862 = vmatpush.bf16.msra.mxu0 0
        %8863 = vmatpush.bf16.msra.mxu0 0
        %8864 = vmatpush.bf16.msra.mxu0 0
        %8865 = vmatpush.bf16.msra.mxu0 0
        %8866 = vmatpush.bf16.msra.mxu0 0
        %8867 = vmatpush.bf16.msra.mxu0 %v8843
        %8868 = vmatmul.bf16.gmra.mxu0 %v8855
        %v8869 = vpop.f32.mrf.mxu0
        %v8870 = vadd.f32 0.0, %v8869
        %v8871 = vpop.f32.mrf.mxu0
        %v8872 = vadd.f32 0.0, %v8871
        %8873 = vmatmul.bf16.gmra.mxu0 %v8858
        %v8874 = vpop.f32.mrf.mxu0
        %v8875 = vadd.f32 0.0, %v8874
        %v8876 = vpop.f32.mrf.mxu0
        %v8877 = vadd.f32 0.0, %v8876
        %8878 = vdwg.mxu0
        %v8879 = vadd.f32 %v8787, %v8870
        %v8880 = vadd.f32 %v8788, %v8872
        %v8881 = vadd.f32 %v8789, %v8875
        %v8882 = vadd.f32 %v8790, %v8877
        %v8883 = vld [vmem:[#allocation28] sm:$0xff]
        %v8884 = vld [vmem:[#allocation28 + $0x8] sm:$0xff]
        %v8885 = vld [vmem:[#allocation28 + $0x10] sm:$0xff]
        %v8886 = vld [vmem:[#allocation28 + $0x18] sm:$0xff]
        %8888 = vset.pattern.permute.xlu0 0
        %8889 = vperm.xlu0 %8888, %v8883
        %v8890 = vpop.permute.xlu0 %8889
        %8893 = vset.pattern.permute.xlu0 0
        %8894 = vperm.xlu0 %8893, %v8884
        %v8895 = vpop.permute.xlu0 %8894
        %8898 = vset.pattern.permute.xlu0 0
        %8899 = vperm.xlu0 %8898, %v8885
        %v8900 = vpop.permute.xlu0 %8899
        %8903 = vset.pattern.permute.xlu0 0
        %8904 = vperm.xlu0 %8903, %v8886
        %v8905 = vpop.permute.xlu0 %8904
        %v8907 = vadd.f32 %v8879, %v8890
        %v8908 = vadd.f32 %v8880, %v8895
        %v8909 = vadd.f32 %v8881, %v8900
        %v8910 = vadd.f32 %v8882, %v8905
        %v8911 = vmax.f32 %v8907, 0.0
        %v8912 = vmax.f32 %v8908, 0.0
        %v8913 = vmax.f32 %v8909, 0.0
        %v8914 = vmax.f32 %v8910, 0.0
        %v8915 = vld [vmem:[#allocation36] sm:$0xf]
        %v8916 = vld [vmem:[#allocation36 + $0x4] sm:$0xf]
        %v8917 = vld [vmem:[#allocation36 + $0x8] sm:$0xf]
        %v8918 = vld [vmem:[#allocation36 + $0xc] sm:$0xf]
        %v8919 = vld [vmem:[#allocation34] sm:$0xff]
        %v8920 = vld [vmem:[#allocation34 + $0x8] sm:$0xff]
        %v8921 = vld [vmem:[#allocation34 + $0x10] sm:$0xff]
        %v8922 = vld [vmem:[#allocation34 + $0x18] sm:$0xff]
        %8924 = vset.pattern.permute.xlu0 0
        %8925 = vperm.xlu0 %8924, %v8919
        %v8926 = vpop.permute.xlu0 %8925
        %8929 = vset.pattern.permute.xlu0 0
        %8930 = vperm.xlu0 %8929, %v8920
        %v8931 = vpop.permute.xlu0 %8930
        %8934 = vset.pattern.permute.xlu0 0
        %8935 = vperm.xlu0 %8934, %v8921
        %v8936 = vpop.permute.xlu0 %8935
        %8939 = vset.pattern.permute.xlu0 0
        %8940 = vperm.xlu0 %8939, %v8922
        %v8941 = vpop.permute.xlu0 %8940
        %v8947 = vunpack.c.l.b16 %v8915
        %v8948 = vunpack.c.l.b16 %v8916
        %v8949 = vunpack.c.l.b16 %v8917
        %v8950 = vunpack.c.l.b16 %v8918
        %v8951 = vpack.c.b16 %v8948, %v8947
        %v8952 = vpack.c.b16 %v8950, %v8949
        %v8954 = vsel %vm3935, %v8951, 0
        %v8957 = vsel %vm3935, %v8952, 0
        %8959 = vmatpush.bf16.msra.mxu0 0
        %8960 = vmatpush.bf16.msra.mxu0 0
        %8961 = vmatpush.bf16.msra.mxu0 0
        %8962 = vmatpush.bf16.msra.mxu0 0
        %8963 = vmatpush.bf16.msra.mxu0 0
        %8964 = vmatpush.bf16.msra.mxu0 0
        %8965 = vmatpush.bf16.msra.mxu0 0
        %8966 = vmatpush.bf16.msra.mxu0 %v8475
        %8967 = vmatmul.bf16.gmra.mxu0 %v8954
        %v8968 = vpop.f32.mrf.mxu0
        %v8969 = vadd.f32 %v8926, %v8968
        %v8970 = vpop.f32.mrf.mxu0
        %v8971 = vadd.f32 %v8931, %v8970
        %8972 = vmatmul.bf16.gmra.mxu0 %v8957
        %v8973 = vpop.f32.mrf.mxu0
        %v8974 = vadd.f32 %v8936, %v8973
        %v8975 = vpop.f32.mrf.mxu0
        %v8976 = vadd.f32 %v8941, %v8975
        %8977 = vdwg.mxu0
        %v8978 = vpack.c.bf16 %v8912, %v8911
        %v8979 = vpack.c.bf16 %v8914, %v8913
        %v8980 = vld [vmem:[#allocation9] sm:$0xf]
        %v8981 = vld [vmem:[#allocation9 + $0x4] sm:$0xf]
        %v8984 = vunpack.c.l.b16 %v8980
        %v8985 = vunpack.c.l.b16 %v8981
        %v8986 = vpack.c.b16 %v8985, %v8984
        %v8989 = vsel %vm3935, %v8978, 0
        %v8992 = vsel %vm3935, %v8979, 0
        %8994 = vmatpush.bf16.msra.mxu0 0
        %8995 = vmatpush.bf16.msra.mxu0 0
        %8996 = vmatpush.bf16.msra.mxu0 0
        %8997 = vmatpush.bf16.msra.mxu0 0
        %8998 = vmatpush.bf16.msra.mxu0 0
        %8999 = vmatpush.bf16.msra.mxu0 0
        %9000 = vmatpush.bf16.msra.mxu0 0
        %9001 = vmatpush.bf16.msra.mxu0 %v8986
        %9002 = vmatmul.bf16.gmra.mxu0 %v8989
        %v9003 = vpop.f32.mrf.mxu0
        %v9004 = vadd.f32 0.0, %v9003
        %v9005 = vpop.f32.mrf.mxu0
        %v9006 = vadd.f32 0.0, %v9005
        %9007 = vmatmul.bf16.gmra.mxu0 %v8992
        %v9008 = vpop.f32.mrf.mxu0
        %v9009 = vadd.f32 0.0, %v9008
        %v9010 = vpop.f32.mrf.mxu0
        %v9011 = vadd.f32 0.0, %v9010
        %9012 = vdwg.mxu0
        %v9013 = vld [vmem:[#allocation33] sm:$0xf]
        %v9014 = vld [vmem:[#allocation33 + $0x4] sm:$0xf]
        %v9015 = vld [vmem:[#allocation33 + $0x8] sm:$0xf]
        %v9016 = vld [vmem:[#allocation33 + $0xc] sm:$0xf]
        %v9017 = vpack.c.bf16 %v9006, %v9004
        %v9018 = vpack.c.bf16 %v9011, %v9009
        %s9019 = scalar_lea.vmem [#allocation9], 8
        %v9020 = vld [vmem:[%s9019] sm:$0xf]
        %v9021 = vld [vmem:[%s9019 + $0x4] sm:$0xf]
        %v9024 = vunpack.c.l.b16 %v9020
        %v9025 = vunpack.c.l.b16 %v9021
        %v9026 = vpack.c.b16 %v9025, %v9024
        %9028 = vmatpush.bf16.msra.mxu0 0
        %9029 = vmatpush.bf16.msra.mxu0 0
        %9030 = vmatpush.bf16.msra.mxu0 0
        %9031 = vmatpush.bf16.msra.mxu0 0
        %9032 = vmatpush.bf16.msra.mxu0 0
        %9033 = vmatpush.bf16.msra.mxu0 0
        %9034 = vmatpush.bf16.msra.mxu0 0
        %9035 = vmatpush.bf16.msra.mxu0 %v9026
        %9036 = vmatmul.bf16.gmra.mxu0 %v8989
        %v9037 = vpop.f32.mrf.mxu0
        %v9038 = vadd.f32 0.0, %v9037
        %v9039 = vpop.f32.mrf.mxu0
        %v9040 = vadd.f32 0.0, %v9039
        %9041 = vmatmul.bf16.gmra.mxu0 %v8992
        %v9042 = vpop.f32.mrf.mxu0
        %v9043 = vadd.f32 0.0, %v9042
        %v9044 = vpop.f32.mrf.mxu0
        %v9045 = vadd.f32 0.0, %v9044
        %9046 = vdwg.mxu0
        %s9047 = scalar_lea.vmem [#allocation33], 16
        %v9048 = vld [vmem:[%s9047] sm:$0xf]
        %v9049 = vld [vmem:[%s9047 + $0x4] sm:$0xf]
        %v9050 = vld [vmem:[%s9047 + $0x8] sm:$0xf]
        %v9051 = vld [vmem:[%s9047 + $0xc] sm:$0xf]
        %v9052 = vpack.c.bf16 %v9040, %v9038
        %v9053 = vpack.c.bf16 %v9045, %v9043
        %v9058 = vunpack.c.l.b16 %v9048
        %v9059 = vunpack.c.l.b16 %v9049
        %v9060 = vunpack.c.l.b16 %v9050
        %v9061 = vunpack.c.l.b16 %v9051
        %v9062 = vpack.c.b16 %v9059, %v9058
        %v9063 = vpack.c.b16 %v9061, %v9060
        %vm9064 = vcmask 261120
        %v9066 = vsel %vm9064, %v9062, 0
        %v9069 = vsel %vm9064, %v9063, 0
        %9071 = vmatpush.bf16.msra.mxu0 0
        %9072 = vmatpush.bf16.msra.mxu0 0
        %9073 = vmatpush.bf16.msra.mxu0 0
        %9074 = vmatpush.bf16.msra.mxu0 0
        %9075 = vmatpush.bf16.msra.mxu0 0
        %9076 = vmatpush.bf16.msra.mxu0 0
        %9077 = vmatpush.bf16.msra.mxu0 %v9053
        %9078 = vmatpush.bf16.msra.mxu0 %v9052
        %9079 = vmatmul.bf16.gmra.mxu0 %v9066
        %v9080 = vpop.f32.mrf.mxu0
        %v9081 = vadd.f32 0.0, %v9080
        %v9082 = vpop.f32.mrf.mxu0
        %v9083 = vadd.f32 0.0, %v9082
        %9084 = vmatmul.bf16.gmra.mxu0 %v9069
        %v9085 = vpop.f32.mrf.mxu0
        %v9086 = vadd.f32 0.0, %v9085
        %v9087 = vpop.f32.mrf.mxu0
        %v9088 = vadd.f32 0.0, %v9087
        %9089 = vdwg.mxu0
        %v9094 = vunpack.c.l.b16 %v9013
        %v9095 = vunpack.c.l.b16 %v9014
        %v9096 = vunpack.c.l.b16 %v9015
        %v9097 = vunpack.c.l.b16 %v9016
        %v9098 = vpack.c.b16 %v9095, %v9094
        %v9099 = vpack.c.b16 %v9097, %v9096
        %v9101 = vsel %vm9064, %v9098, 0
        %v9104 = vsel %vm9064, %v9099, 0
        %9106 = vmatpush.bf16.msra.mxu0 0
        %9107 = vmatpush.bf16.msra.mxu0 0
        %9108 = vmatpush.bf16.msra.mxu0 0
        %9109 = vmatpush.bf16.msra.mxu0 0
        %9110 = vmatpush.bf16.msra.mxu0 0
        %9111 = vmatpush.bf16.msra.mxu0 0
        %9112 = vmatpush.bf16.msra.mxu0 %v9018
        %9113 = vmatpush.bf16.msra.mxu0 %v9017
        %9114 = vmatmul.bf16.gmra.mxu0 %v9101
        %v9115 = vpop.f32.mrf.mxu0
        %v9116 = vadd.f32 %v9081, %v9115
        %v9117 = vpop.f32.mrf.mxu0
        %v9118 = vadd.f32 %v9083, %v9117
        %9119 = vmatmul.bf16.gmra.mxu0 %v9104
        %v9120 = vpop.f32.mrf.mxu0
        %v9121 = vadd.f32 %v9086, %v9120
        %v9122 = vpop.f32.mrf.mxu0
        %v9123 = vadd.f32 %v9088, %v9122
        %9124 = vdwg.mxu0
        %s9125 = scalar_lea.vmem [#allocation9], 16
        %v9126 = vld [vmem:[%s9125] sm:$0xf]
        %v9127 = vld [vmem:[%s9125 + $0x4] sm:$0xf]
        %v9130 = vunpack.c.l.b16 %v9126
        %v9131 = vunpack.c.l.b16 %v9127
        %v9132 = vpack.c.b16 %v9131, %v9130
        %9134 = vmatpush.bf16.msra.mxu0 0
        %9135 = vmatpush.bf16.msra.mxu0 0
        %9136 = vmatpush.bf16.msra.mxu0 0
        %9137 = vmatpush.bf16.msra.mxu0 0
        %9138 = vmatpush.bf16.msra.mxu0 0
        %9139 = vmatpush.bf16.msra.mxu0 0
        %9140 = vmatpush.bf16.msra.mxu0 0
        %9141 = vmatpush.bf16.msra.mxu0 %v9132
        %9142 = vmatmul.bf16.gmra.mxu0 %v8989
        %v9143 = vpop.f32.mrf.mxu0
        %v9144 = vadd.f32 0.0, %v9143
        %v9145 = vpop.f32.mrf.mxu0
        %v9146 = vadd.f32 0.0, %v9145
        %9147 = vmatmul.bf16.gmra.mxu0 %v8992
        %v9148 = vpop.f32.mrf.mxu0
        %v9149 = vadd.f32 0.0, %v9148
        %v9150 = vpop.f32.mrf.mxu0
        %v9151 = vadd.f32 0.0, %v9150
        %9152 = vdwg.mxu0
        %s9153 = scalar_lea.vmem [#allocation33], 32
        %v9154 = vld [vmem:[%s9153] sm:$0xf]
        %v9155 = vld [vmem:[%s9153 + $0x4] sm:$0xf]
        %v9156 = vld [vmem:[%s9153 + $0x8] sm:$0xf]
        %v9157 = vld [vmem:[%s9153 + $0xc] sm:$0xf]
        %v9158 = vpack.c.bf16 %v9146, %v9144
        %v9159 = vpack.c.bf16 %v9151, %v9149
        %v9164 = vunpack.c.l.b16 %v9154
        %v9165 = vunpack.c.l.b16 %v9155
        %v9166 = vunpack.c.l.b16 %v9156
        %v9167 = vunpack.c.l.b16 %v9157
        %v9168 = vpack.c.b16 %v9165, %v9164
        %v9169 = vpack.c.b16 %v9167, %v9166
        %v9171 = vsel %vm9064, %v9168, 0
        %v9174 = vsel %vm9064, %v9169, 0
        %9176 = vmatpush.bf16.msra.mxu0 0
        %9177 = vmatpush.bf16.msra.mxu0 0
        %9178 = vmatpush.bf16.msra.mxu0 0
        %9179 = vmatpush.bf16.msra.mxu0 0
        %9180 = vmatpush.bf16.msra.mxu0 0
        %9181 = vmatpush.bf16.msra.mxu0 0
        %9182 = vmatpush.bf16.msra.mxu0 %v9159
        %9183 = vmatpush.bf16.msra.mxu0 %v9158
        %9184 = vmatmul.bf16.gmra.mxu0 %v9171
        %v9185 = vpop.f32.mrf.mxu0
        %v9186 = vadd.f32 0.0, %v9185
        %v9187 = vpop.f32.mrf.mxu0
        %v9188 = vadd.f32 0.0, %v9187
        %9189 = vmatmul.bf16.gmra.mxu0 %v9174
        %v9190 = vpop.f32.mrf.mxu0
        %v9191 = vadd.f32 0.0, %v9190
        %v9192 = vpop.f32.mrf.mxu0
        %v9193 = vadd.f32 0.0, %v9192
        %9194 = vdwg.mxu0
        %v9195 = vadd.f32 %v9116, %v9186
        %v9196 = vadd.f32 %v9118, %v9188
        %v9197 = vadd.f32 %v9121, %v9191
        %v9198 = vadd.f32 %v9123, %v9193
        %s9199 = scalar_lea.vmem [#allocation9], 24
        %v9200 = vld [vmem:[%s9199] sm:$0xf]
        %v9201 = vld [vmem:[%s9199 + $0x4] sm:$0xf]
        %v9204 = vunpack.c.l.b16 %v9200
        %v9205 = vunpack.c.l.b16 %v9201
        %v9206 = vpack.c.b16 %v9205, %v9204
        %9208 = vmatpush.bf16.msra.mxu0 0
        %9209 = vmatpush.bf16.msra.mxu0 0
        %9210 = vmatpush.bf16.msra.mxu0 0
        %9211 = vmatpush.bf16.msra.mxu0 0
        %9212 = vmatpush.bf16.msra.mxu0 0
        %9213 = vmatpush.bf16.msra.mxu0 0
        %9214 = vmatpush.bf16.msra.mxu0 0
        %9215 = vmatpush.bf16.msra.mxu0 %v9206
        %9216 = vmatmul.bf16.gmra.mxu0 %v8989
        %v9217 = vpop.f32.mrf.mxu0
        %v9218 = vadd.f32 0.0, %v9217
        %v9219 = vpop.f32.mrf.mxu0
        %v9220 = vadd.f32 0.0, %v9219
        %9221 = vmatmul.bf16.gmra.mxu0 %v8992
        %v9222 = vpop.f32.mrf.mxu0
        %v9223 = vadd.f32 0.0, %v9222
        %v9224 = vpop.f32.mrf.mxu0
        %v9225 = vadd.f32 0.0, %v9224
        %9226 = vdwg.mxu0
        %s9227 = scalar_lea.vmem [#allocation33], 48
        %v9228 = vld [vmem:[%s9227] sm:$0xf]
        %v9229 = vld [vmem:[%s9227 + $0x4] sm:$0xf]
        %v9230 = vld [vmem:[%s9227 + $0x8] sm:$0xf]
        %v9231 = vld [vmem:[%s9227 + $0xc] sm:$0xf]
        %v9232 = vpack.c.bf16 %v9220, %v9218
        %v9233 = vpack.c.bf16 %v9225, %v9223
        %v9238 = vunpack.c.l.b16 %v9228
        %v9239 = vunpack.c.l.b16 %v9229
        %v9240 = vunpack.c.l.b16 %v9230
        %v9241 = vunpack.c.l.b16 %v9231
        %v9242 = vpack.c.b16 %v9239, %v9238
        %v9243 = vpack.c.b16 %v9241, %v9240
        %v9245 = vsel %vm9064, %v9242, 0
        %v9248 = vsel %vm9064, %v9243, 0
        %9250 = vmatpush.bf16.msra.mxu0 0
        %9251 = vmatpush.bf16.msra.mxu0 0
        %9252 = vmatpush.bf16.msra.mxu0 0
        %9253 = vmatpush.bf16.msra.mxu0 0
        %9254 = vmatpush.bf16.msra.mxu0 0
        %9255 = vmatpush.bf16.msra.mxu0 0
        %9256 = vmatpush.bf16.msra.mxu0 %v9233
        %9257 = vmatpush.bf16.msra.mxu0 %v9232
        %9258 = vmatmul.bf16.gmra.mxu0 %v9245
        %v9259 = vpop.f32.mrf.mxu0
        %v9260 = vadd.f32 0.0, %v9259
        %v9261 = vpop.f32.mrf.mxu0
        %v9262 = vadd.f32 0.0, %v9261
        %9263 = vmatmul.bf16.gmra.mxu0 %v9248
        %v9264 = vpop.f32.mrf.mxu0
        %v9265 = vadd.f32 0.0, %v9264
        %v9266 = vpop.f32.mrf.mxu0
        %v9267 = vadd.f32 0.0, %v9266
        %9268 = vdwg.mxu0
        %v9269 = vadd.f32 %v9195, %v9260
        %v9270 = vadd.f32 %v9196, %v9262
        %v9271 = vadd.f32 %v9197, %v9265
        %v9272 = vadd.f32 %v9198, %v9267
        %s9273 = scalar_lea.vmem [#allocation9], 32
        %v9274 = vld [vmem:[%s9273] sm:$0xf]
        %v9275 = vld [vmem:[%s9273 + $0x4] sm:$0xf]
        %v9278 = vunpack.c.l.b16 %v9274
        %v9279 = vunpack.c.l.b16 %v9275
        %v9280 = vpack.c.b16 %v9279, %v9278
        %9282 = vmatpush.bf16.msra.mxu0 0
        %9283 = vmatpush.bf16.msra.mxu0 0
        %9284 = vmatpush.bf16.msra.mxu0 0
        %9285 = vmatpush.bf16.msra.mxu0 0
        %9286 = vmatpush.bf16.msra.mxu0 0
        %9287 = vmatpush.bf16.msra.mxu0 0
        %9288 = vmatpush.bf16.msra.mxu0 0
        %9289 = vmatpush.bf16.msra.mxu0 %v9280
        %9290 = vmatmul.bf16.gmra.mxu0 %v8989
        %v9291 = vpop.f32.mrf.mxu0
        %v9292 = vadd.f32 0.0, %v9291
        %v9293 = vpop.f32.mrf.mxu0
        %v9294 = vadd.f32 0.0, %v9293
        %9295 = vmatmul.bf16.gmra.mxu0 %v8992
        %v9296 = vpop.f32.mrf.mxu0
        %v9297 = vadd.f32 0.0, %v9296
        %v9298 = vpop.f32.mrf.mxu0
        %v9299 = vadd.f32 0.0, %v9298
        %9300 = vdwg.mxu0
        %s9301 = scalar_lea.vmem [#allocation33], 64
        %v9302 = vld [vmem:[%s9301] sm:$0xf]
        %v9303 = vld [vmem:[%s9301 + $0x4] sm:$0xf]
        %v9304 = vld [vmem:[%s9301 + $0x8] sm:$0xf]
        %v9305 = vld [vmem:[%s9301 + $0xc] sm:$0xf]
        %v9306 = vpack.c.bf16 %v9294, %v9292
        %v9307 = vpack.c.bf16 %v9299, %v9297
        %v9312 = vunpack.c.l.b16 %v9302
        %v9313 = vunpack.c.l.b16 %v9303
        %v9314 = vunpack.c.l.b16 %v9304
        %v9315 = vunpack.c.l.b16 %v9305
        %v9316 = vpack.c.b16 %v9313, %v9312
        %v9317 = vpack.c.b16 %v9315, %v9314
        %v9319 = vsel %vm9064, %v9316, 0
        %v9322 = vsel %vm9064, %v9317, 0
        %9324 = vmatpush.bf16.msra.mxu0 0
        %9325 = vmatpush.bf16.msra.mxu0 0
        %9326 = vmatpush.bf16.msra.mxu0 0
        %9327 = vmatpush.bf16.msra.mxu0 0
        %9328 = vmatpush.bf16.msra.mxu0 0
        %9329 = vmatpush.bf16.msra.mxu0 0
        %9330 = vmatpush.bf16.msra.mxu0 %v9307
        %9331 = vmatpush.bf16.msra.mxu0 %v9306
        %9332 = vmatmul.bf16.gmra.mxu0 %v9319
        %v9333 = vpop.f32.mrf.mxu0
        %v9334 = vadd.f32 0.0, %v9333
        %v9335 = vpop.f32.mrf.mxu0
        %v9336 = vadd.f32 0.0, %v9335
        %9337 = vmatmul.bf16.gmra.mxu0 %v9322
        %v9338 = vpop.f32.mrf.mxu0
        %v9339 = vadd.f32 0.0, %v9338
        %v9340 = vpop.f32.mrf.mxu0
        %v9341 = vadd.f32 0.0, %v9340
        %9342 = vdwg.mxu0
        %v9343 = vadd.f32 %v9269, %v9334
        %v9344 = vadd.f32 %v9270, %v9336
        %v9345 = vadd.f32 %v9271, %v9339
        %v9346 = vadd.f32 %v9272, %v9341
        %s9347 = scalar_lea.vmem [#allocation9], 40
        %v9348 = vld [vmem:[%s9347] sm:$0xf]
        %v9349 = vld [vmem:[%s9347 + $0x4] sm:$0xf]
        %v9352 = vunpack.c.l.b16 %v9348
        %v9353 = vunpack.c.l.b16 %v9349
        %v9354 = vpack.c.b16 %v9353, %v9352
        %9356 = vmatpush.bf16.msra.mxu0 0
        %9357 = vmatpush.bf16.msra.mxu0 0
        %9358 = vmatpush.bf16.msra.mxu0 0
        %9359 = vmatpush.bf16.msra.mxu0 0
        %9360 = vmatpush.bf16.msra.mxu0 0
        %9361 = vmatpush.bf16.msra.mxu0 0
        %9362 = vmatpush.bf16.msra.mxu0 0
        %9363 = vmatpush.bf16.msra.mxu0 %v9354
        %9364 = vmatmul.bf16.gmra.mxu0 %v8989
        %v9365 = vpop.f32.mrf.mxu0
        %v9366 = vadd.f32 0.0, %v9365
        %v9367 = vpop.f32.mrf.mxu0
        %v9368 = vadd.f32 0.0, %v9367
        %9369 = vmatmul.bf16.gmra.mxu0 %v8992
        %v9370 = vpop.f32.mrf.mxu0
        %v9371 = vadd.f32 0.0, %v9370
        %v9372 = vpop.f32.mrf.mxu0
        %v9373 = vadd.f32 0.0, %v9372
        %9374 = vdwg.mxu0
        %s9375 = scalar_lea.vmem [#allocation33], 80
        %v9376 = vld [vmem:[%s9375] sm:$0xf]
        %v9377 = vld [vmem:[%s9375 + $0x4] sm:$0xf]
        %v9378 = vld [vmem:[%s9375 + $0x8] sm:$0xf]
        %v9379 = vld [vmem:[%s9375 + $0xc] sm:$0xf]
        %v9380 = vpack.c.bf16 %v9368, %v9366
        %v9381 = vpack.c.bf16 %v9373, %v9371
        %v9386 = vunpack.c.l.b16 %v9376
        %v9387 = vunpack.c.l.b16 %v9377
        %v9388 = vunpack.c.l.b16 %v9378
        %v9389 = vunpack.c.l.b16 %v9379
        %v9390 = vpack.c.b16 %v9387, %v9386
        %v9391 = vpack.c.b16 %v9389, %v9388
        %v9393 = vsel %vm9064, %v9390, 0
        %v9396 = vsel %vm9064, %v9391, 0
        %9398 = vmatpush.bf16.msra.mxu0 0
        %9399 = vmatpush.bf16.msra.mxu0 0
        %9400 = vmatpush.bf16.msra.mxu0 0
        %9401 = vmatpush.bf16.msra.mxu0 0
        %9402 = vmatpush.bf16.msra.mxu0 0
        %9403 = vmatpush.bf16.msra.mxu0 0
        %9404 = vmatpush.bf16.msra.mxu0 %v9381
        %9405 = vmatpush.bf16.msra.mxu0 %v9380
        %9406 = vmatmul.bf16.gmra.mxu0 %v9393
        %v9407 = vpop.f32.mrf.mxu0
        %v9408 = vadd.f32 0.0, %v9407
        %v9409 = vpop.f32.mrf.mxu0
        %v9410 = vadd.f32 0.0, %v9409
        %9411 = vmatmul.bf16.gmra.mxu0 %v9396
        %v9412 = vpop.f32.mrf.mxu0
        %v9413 = vadd.f32 0.0, %v9412
        %v9414 = vpop.f32.mrf.mxu0
        %v9415 = vadd.f32 0.0, %v9414
        %9416 = vdwg.mxu0
        %v9417 = vadd.f32 %v9343, %v9408
        %v9418 = vadd.f32 %v9344, %v9410
        %v9419 = vadd.f32 %v9345, %v9413
        %v9420 = vadd.f32 %v9346, %v9415
        %s9421 = scalar_lea.vmem [#allocation9], 48
        %v9422 = vld [vmem:[%s9421] sm:$0xf]
        %v9423 = vld [vmem:[%s9421 + $0x4] sm:$0xf]
        %v9426 = vunpack.c.l.b16 %v9422
        %v9427 = vunpack.c.l.b16 %v9423
        %v9428 = vpack.c.b16 %v9427, %v9426
        %9430 = vmatpush.bf16.msra.mxu0 0
        %9431 = vmatpush.bf16.msra.mxu0 0
        %9432 = vmatpush.bf16.msra.mxu0 0
        %9433 = vmatpush.bf16.msra.mxu0 0
        %9434 = vmatpush.bf16.msra.mxu0 0
        %9435 = vmatpush.bf16.msra.mxu0 0
        %9436 = vmatpush.bf16.msra.mxu0 0
        %9437 = vmatpush.bf16.msra.mxu0 %v9428
        %9438 = vmatmul.bf16.gmra.mxu0 %v8989
        %v9439 = vpop.f32.mrf.mxu0
        %v9440 = vadd.f32 0.0, %v9439
        %v9441 = vpop.f32.mrf.mxu0
        %v9442 = vadd.f32 0.0, %v9441
        %9443 = vmatmul.bf16.gmra.mxu0 %v8992
        %v9444 = vpop.f32.mrf.mxu0
        %v9445 = vadd.f32 0.0, %v9444
        %v9446 = vpop.f32.mrf.mxu0
        %v9447 = vadd.f32 0.0, %v9446
        %9448 = vdwg.mxu0
        %s9449 = scalar_lea.vmem [#allocation33], 96
        %v9450 = vld [vmem:[%s9449] sm:$0xf]
        %v9451 = vld [vmem:[%s9449 + $0x4] sm:$0xf]
        %v9452 = vld [vmem:[%s9449 + $0x8] sm:$0xf]
        %v9453 = vld [vmem:[%s9449 + $0xc] sm:$0xf]
        %v9454 = vpack.c.bf16 %v9442, %v9440
        %v9455 = vpack.c.bf16 %v9447, %v9445
        %v9460 = vunpack.c.l.b16 %v9450
        %v9461 = vunpack.c.l.b16 %v9451
        %v9462 = vunpack.c.l.b16 %v9452
        %v9463 = vunpack.c.l.b16 %v9453
        %v9464 = vpack.c.b16 %v9461, %v9460
        %v9465 = vpack.c.b16 %v9463, %v9462
        %v9467 = vsel %vm9064, %v9464, 0
        %v9470 = vsel %vm9064, %v9465, 0
        %9472 = vmatpush.bf16.msra.mxu0 0
        %9473 = vmatpush.bf16.msra.mxu0 0
        %9474 = vmatpush.bf16.msra.mxu0 0
        %9475 = vmatpush.bf16.msra.mxu0 0
        %9476 = vmatpush.bf16.msra.mxu0 0
        %9477 = vmatpush.bf16.msra.mxu0 0
        %9478 = vmatpush.bf16.msra.mxu0 %v9455
        %9479 = vmatpush.bf16.msra.mxu0 %v9454
        %9480 = vmatmul.bf16.gmra.mxu0 %v9467
        %v9481 = vpop.f32.mrf.mxu0
        %v9482 = vadd.f32 0.0, %v9481
        %v9483 = vpop.f32.mrf.mxu0
        %v9484 = vadd.f32 0.0, %v9483
        %9485 = vmatmul.bf16.gmra.mxu0 %v9470
        %v9486 = vpop.f32.mrf.mxu0
        %v9487 = vadd.f32 0.0, %v9486
        %v9488 = vpop.f32.mrf.mxu0
        %v9489 = vadd.f32 0.0, %v9488
        %9490 = vdwg.mxu0
        %v9491 = vadd.f32 %v9417, %v9482
        %v9492 = vadd.f32 %v9418, %v9484
        %v9493 = vadd.f32 %v9419, %v9487
        %v9494 = vadd.f32 %v9420, %v9489
        %s9495 = scalar_lea.vmem [#allocation9], 56
        %v9496 = vld [vmem:[%s9495] sm:$0xf]
        %v9497 = vld [vmem:[%s9495 + $0x4] sm:$0xf]
        %v9500 = vunpack.c.l.b16 %v9496
        %v9501 = vunpack.c.l.b16 %v9497
        %v9502 = vpack.c.b16 %v9501, %v9500
        %9504 = vmatpush.bf16.msra.mxu0 0
        %9505 = vmatpush.bf16.msra.mxu0 0
        %9506 = vmatpush.bf16.msra.mxu0 0
        %9507 = vmatpush.bf16.msra.mxu0 0
        %9508 = vmatpush.bf16.msra.mxu0 0
        %9509 = vmatpush.bf16.msra.mxu0 0
        %9510 = vmatpush.bf16.msra.mxu0 0
        %9511 = vmatpush.bf16.msra.mxu0 %v9502
        %9512 = vmatmul.bf16.gmra.mxu0 %v8989
        %v9513 = vpop.f32.mrf.mxu0
        %v9514 = vadd.f32 0.0, %v9513
        %v9515 = vpop.f32.mrf.mxu0
        %v9516 = vadd.f32 0.0, %v9515
        %9517 = vmatmul.bf16.gmra.mxu0 %v8992
        %v9518 = vpop.f32.mrf.mxu0
        %v9519 = vadd.f32 0.0, %v9518
        %v9520 = vpop.f32.mrf.mxu0
        %v9521 = vadd.f32 0.0, %v9520
        %9522 = vdwg.mxu0
        %s9523 = scalar_lea.vmem [#allocation33], 112
        %v9524 = vld [vmem:[%s9523] sm:$0xf]
        %v9525 = vld [vmem:[%s9523 + $0x4] sm:$0xf]
        %v9526 = vld [vmem:[%s9523 + $0x8] sm:$0xf]
        %v9527 = vld [vmem:[%s9523 + $0xc] sm:$0xf]
        %v9528 = vpack.c.bf16 %v9516, %v9514
        %v9529 = vpack.c.bf16 %v9521, %v9519
        %v9534 = vunpack.c.l.b16 %v9524
        %v9535 = vunpack.c.l.b16 %v9525
        %v9536 = vunpack.c.l.b16 %v9526
        %v9537 = vunpack.c.l.b16 %v9527
        %v9538 = vpack.c.b16 %v9535, %v9534
        %v9539 = vpack.c.b16 %v9537, %v9536
        %v9541 = vsel %vm9064, %v9538, 0
        %v9544 = vsel %vm9064, %v9539, 0
        %9546 = vmatpush.bf16.msra.mxu0 0
        %9547 = vmatpush.bf16.msra.mxu0 0
        %9548 = vmatpush.bf16.msra.mxu0 0
        %9549 = vmatpush.bf16.msra.mxu0 0
        %9550 = vmatpush.bf16.msra.mxu0 0
        %9551 = vmatpush.bf16.msra.mxu0 0
        %9552 = vmatpush.bf16.msra.mxu0 %v9529
        %9553 = vmatpush.bf16.msra.mxu0 %v9528
        %9554 = vmatmul.bf16.gmra.mxu0 %v9541
        %v9555 = vpop.f32.mrf.mxu0
        %v9556 = vadd.f32 0.0, %v9555
        %v9557 = vpop.f32.mrf.mxu0
        %v9558 = vadd.f32 0.0, %v9557
        %9559 = vmatmul.bf16.gmra.mxu0 %v9544
        %v9560 = vpop.f32.mrf.mxu0
        %v9561 = vadd.f32 0.0, %v9560
        %v9562 = vpop.f32.mrf.mxu0
        %v9563 = vadd.f32 0.0, %v9562
        %9564 = vdwg.mxu0
        %v9565 = vadd.f32 %v9491, %v9556
        %v9566 = vadd.f32 %v9492, %v9558
        %v9567 = vadd.f32 %v9493, %v9561
        %v9568 = vadd.f32 %v9494, %v9563
        %s9569 = scalar_lea.vmem [#allocation9], 64
        %v9570 = vld [vmem:[%s9569] sm:$0xf]
        %v9571 = vld [vmem:[%s9569 + $0x4] sm:$0xf]
        %v9574 = vunpack.c.l.b16 %v9570
        %v9575 = vunpack.c.l.b16 %v9571
        %v9576 = vpack.c.b16 %v9575, %v9574
        %9578 = vmatpush.bf16.msra.mxu0 0
        %9579 = vmatpush.bf16.msra.mxu0 0
        %9580 = vmatpush.bf16.msra.mxu0 0
        %9581 = vmatpush.bf16.msra.mxu0 0
        %9582 = vmatpush.bf16.msra.mxu0 0
        %9583 = vmatpush.bf16.msra.mxu0 0
        %9584 = vmatpush.bf16.msra.mxu0 0
        %9585 = vmatpush.bf16.msra.mxu0 %v9576
        %9586 = vmatmul.bf16.gmra.mxu0 %v8989
        %v9587 = vpop.f32.mrf.mxu0
        %v9588 = vadd.f32 0.0, %v9587
        %v9589 = vpop.f32.mrf.mxu0
        %v9590 = vadd.f32 0.0, %v9589
        %9591 = vmatmul.bf16.gmra.mxu0 %v8992
        %v9592 = vpop.f32.mrf.mxu0
        %v9593 = vadd.f32 0.0, %v9592
        %v9594 = vpop.f32.mrf.mxu0
        %v9595 = vadd.f32 0.0, %v9594
        %9596 = vdwg.mxu0
        %s9597 = scalar_lea.vmem [#allocation33], 128
        %v9598 = vld [vmem:[%s9597] sm:$0xf]
        %v9599 = vld [vmem:[%s9597 + $0x4] sm:$0xf]
        %v9600 = vld [vmem:[%s9597 + $0x8] sm:$0xf]
        %v9601 = vld [vmem:[%s9597 + $0xc] sm:$0xf]
        %v9602 = vpack.c.bf16 %v9590, %v9588
        %v9603 = vpack.c.bf16 %v9595, %v9593
        %v9608 = vunpack.c.l.b16 %v9598
        %v9609 = vunpack.c.l.b16 %v9599
        %v9610 = vunpack.c.l.b16 %v9600
        %v9611 = vunpack.c.l.b16 %v9601
        %v9612 = vpack.c.b16 %v9609, %v9608
        %v9613 = vpack.c.b16 %v9611, %v9610
        %v9615 = vsel %vm9064, %v9612, 0
        %v9618 = vsel %vm9064, %v9613, 0
        %9620 = vmatpush.bf16.msra.mxu0 0
        %9621 = vmatpush.bf16.msra.mxu0 0
        %9622 = vmatpush.bf16.msra.mxu0 0
        %9623 = vmatpush.bf16.msra.mxu0 0
        %9624 = vmatpush.bf16.msra.mxu0 0
        %9625 = vmatpush.bf16.msra.mxu0 0
        %9626 = vmatpush.bf16.msra.mxu0 %v9603
        %9627 = vmatpush.bf16.msra.mxu0 %v9602
        %9628 = vmatmul.bf16.gmra.mxu0 %v9615
        %v9629 = vpop.f32.mrf.mxu0
        %v9630 = vadd.f32 0.0, %v9629
        %v9631 = vpop.f32.mrf.mxu0
        %v9632 = vadd.f32 0.0, %v9631
        %9633 = vmatmul.bf16.gmra.mxu0 %v9618
        %v9634 = vpop.f32.mrf.mxu0
        %v9635 = vadd.f32 0.0, %v9634
        %v9636 = vpop.f32.mrf.mxu0
        %v9637 = vadd.f32 0.0, %v9636
        %9638 = vdwg.mxu0
        %v9639 = vadd.f32 %v9565, %v9630
        %v9640 = vadd.f32 %v9566, %v9632
        %v9641 = vadd.f32 %v9567, %v9635
        %v9642 = vadd.f32 %v9568, %v9637
        %v9643 = vld [vmem:[#allocation31] sm:$0xff]
        %v9644 = vld [vmem:[#allocation31 + $0x8] sm:$0xff]
        %v9645 = vld [vmem:[#allocation31 + $0x10] sm:$0xff]
        %v9646 = vld [vmem:[#allocation31 + $0x18] sm:$0xff]
        %9648 = vset.pattern.permute.xlu0 0
        %9649 = vperm.xlu0 %9648, %v9643
        %v9650 = vpop.permute.xlu0 %9649
        %9653 = vset.pattern.permute.xlu0 0
        %9654 = vperm.xlu0 %9653, %v9644
        %v9655 = vpop.permute.xlu0 %9654
        %9658 = vset.pattern.permute.xlu0 0
        %9659 = vperm.xlu0 %9658, %v9645
        %v9660 = vpop.permute.xlu0 %9659
        %9663 = vset.pattern.permute.xlu0 0
        %9664 = vperm.xlu0 %9663, %v9646
        %v9665 = vpop.permute.xlu0 %9664
        %v9667 = vadd.f32 %v9639, %v9650
        %v9668 = vadd.f32 %v9640, %v9655
        %v9669 = vadd.f32 %v9641, %v9660
        %v9670 = vadd.f32 %v9642, %v9665
        %v9671 = vadd.f32 %v9667, %v8969
        %v9672 = vadd.f32 %v9668, %v8971
        %v9673 = vadd.f32 %v9669, %v8974
        %v9674 = vadd.f32 %v9670, %v8976
        %v9675 = vmul.f32 %v9671, %v9671
        %v9676 = vmul.f32 %v9672, %v9672
        %v9677 = vmul.f32 %v9673, %v9673
        %v9678 = vmul.f32 %v9674, %v9674
        %v9679 = vsel %vm3935, %v9675, 0.0
        %v9680 = vsel %vm3935, %v9676, 0.0
        %v9681 = vadd.f32 %v9679, %v9680
        %v9682 = vsel %vm3935, %v9677, 0.0
        %v9683 = vadd.f32 %v9681, %v9682
        %v9684 = vsel %vm3935, %v9678, 0.0
        %v9685 = vadd.f32 %v9683, %v9684
        %9686 = vadd.xlane.f32.xlu0 %v9685
        %v9687 = vpop.xlane.xlu0 %9686
        %v9688 = vrot.slane %v9687, 4
        %v9689 = vadd.f32 %v9687, %v9688
        %v9690 = vrot.slane %v9689, 2
        %v9691 = vadd.f32 %v9689, %v9690
        %v9692 = vrot.slane %v9691, 1
        %v9693 = vadd.f32 %v9691, %v9692
        %s9694 = vtos %v9693
        %s9695 = smax.f32 %s9694, 1e-24
        %v9696 = vstv %s9695
        %v9697 = vrsqrt.pop %v9696
        %v9698 = vmul.f32 %v9697, %v9696
        %v9699 = vmul.f32 %v9698, %v9697
        %v9700 = vmul.f32 0.5, %v9699
        %v9701 = vsub.f32 1.5, %v9700
        %v9702 = vmul.f32 %v9697, %v9701
        %vm9703 = vweird.f32 %v9696
        %vm9704 = vweird.f32 %v9697
        %vm9705 = vmor %vm9703, %vm9704
        %v9706 = vsel %vm9705, %v9697, %v9702
        %s9707 = vtos %v9706
        %v9708 = vstv %s9707
        %v9709 = vmul.f32 %v9671, %v9708
        %v9710 = vmul.f32 %v9672, %v9708
        %v9711 = vmul.f32 %v9673, %v9708
        %v9712 = vmul.f32 %v9674, %v9708
        %9713 = vst.msk [vmem:[%s1117] sm:$0xff] %vm3935, %v9709
        %9714 = vst.msk [vmem:[%s1117 + $0x8] sm:$0xff] %vm3935, %v9710
        %9715 = vst.msk [vmem:[%s1117 + $0x10] sm:$0xff] %vm3935, %v9711
        %9716 = vst.msk [vmem:[%s1117 + $0x18] sm:$0xff] %vm3935, %v9712
        %p9717 = scmp.lt.s32.totalorder %s47, 1
        %s9718 = scalar_select %p9717, %s47, 1
        %s9719 = smul.addr %s9718, 4
        %s9720 = smul.addr %s9719, 8
        %s9721 = scalar_lea.vmem %s24, %s9720
        // Predicated region
        $region209: #{fwd.1} parent=115 // pred_check
          %p9722 = pneg %p574
        $region210: #{fwd.1} parent=115 // pred_check_branch
          %9724 = sbr.rel (%p9722) target = $region212
        $region211: #{fwd.1} parent=115 // pred_region
          _
        $region212: #{fwd.1} parent=115 // pred_fallthru
          _
      $region116: #{fwd.1} parent=5 // pred_fallthru
        _
      %p9725 = scmp.le.s32.totalorder 2, %s42
      // Predicated region
      $region213: #{fwd.1} parent=5 // pred_check
        %p9726 = pneg %p9725
      $region214: #{fwd.1} parent=5 // pred_check_branch
        %9728 = sbr.rel (%p9726) target = $region216
      $region215: #{fwd.1} parent=5 // pred_region
        %s9729 = ssub.s32 %s42, 2
        // Predicated region
        $region217: #{fwd.1} parent=215 // pred_check
          %p9730 = pneg %p580
        $region218: #{fwd.1} parent=215 // pred_check_branch
          %9732 = sbr.rel (%p9730) target = $region220
        $region219: #{fwd.1} parent=215 // pred_region
          %p9733 = scmp.lt.s32.totalorder %s48, 1
          %s9734 = scalar_select %p9733, %s48, 1
          %s9735 = smul.addr %s9734, 4
          %s9736 = smul.addr %s9735, 8
          %s9737 = scalar_lea.vmem %s24, %s9736
        $region220: #{fwd.1} parent=215 // pred_fallthru
          _
      $region216: #{fwd.1} parent=5 // pred_fallthru
        _
    $region6: #{fwd.1} parent=1 // loop_footer
      %s46 = sadd.s32 1, %s42
    $region7: #{fwd.1} parent=1 // loop_footer_branch
      %41 = sbr.rel target = $region3
    $region8: #{fwd.1} parent=1 // loop_exit
      _
    %9738 = vsyncpa [#allocation3], 1
    %s9739 = scalar_lea.sflag [#allocation3], 1
    %9740 = vsyncpa %s9739, 1
    %9741 = vsyncpa [#allocation5], 1
    %9742 = vsyncpa [#allocation8], 1
    %9743 = vsyncpa [#allocation11], 1
    %9744 = vsyncpa [#allocation14], 1
    %9745 = vsyncpa [#allocation17], 1
    %9746 = vsyncpa [#allocation20], 1
    %9747 = vsyncpa [#allocation23], 1
    %9748 = vsyncpa [#allocation26], 1
    %9749 = vsyncpa [#allocation29], 1
    %9750 = vsyncpa [#allocation32], 1
    %9751 = vsyncpa [#allocation35], 1

</llo_original>
